<compile_context>
chip_gen: v7x
topology: tpu7x:2x2x1
jax: 0.10.0
libtpu: 0.0.40
codegen_flags: <defaults>
</compile_context>

<pallas_src>
import functools

import jax
import jax.numpy as jnp
from jax.experimental import pallas as pl
from jax.experimental.pallas import tpu as pltpu


LANE = 128  # TPU vreg lane width


def _round_up(x, m):
    return ((x + m - 1) // m) * m


def _pick_tile(dim, base, max_tile):
    """Largest multiple of `base` that divides `dim` and is <= max_tile, else dim."""
    t = (max_tile // base) * base
    while t >= base:
        if dim % t == 0:
            return t
        t -= base
    return dim


def _pick_chunk(T, max_ct=128):
    """Time-chunk length for the LSTM recurrence: divides T, bounded by max_ct."""
    if T <= max_ct:
        return T
    t = _pick_tile(T, 8, max_ct)
    if t != T:
        return t
    for ct in range(max_ct, 0, -1):
        if T % ct == 0:
            return ct
    return T


# ----------------------------------------------------------------------------
# Tiled linear:  y = x @ w + b  (optional ReLU).  bf16 MXU operands, f32 accum.
# ----------------------------------------------------------------------------

def _linear_kernel(x_ref, w_ref, b_ref, o_ref, *, relu):
    x = x_ref[...].astype(jnp.bfloat16)
    w = w_ref[...].astype(jnp.bfloat16)
    y = jnp.dot(x, w, preferred_element_type=jnp.float32) + b_ref[...]
    if relu:
        y = jnp.maximum(y, 0.0)
    o_ref[...] = y.astype(o_ref.dtype)


def pallas_linear(x, w, b, relu=False, out_dtype=jnp.float32,
                  tm_max=512, tn_max=512):
    M, K = x.shape
    N = w.shape[1]
    tm = min(M, tm_max)
    if M % tm != 0 or tm % 8 != 0:
        tm = M
    tn = min(N, tn_max)
    if N % tn != 0 or tn % LANE != 0:
        tn = N
    return pl.pallas_call(
        functools.partial(_linear_kernel, relu=relu),
        out_shape=jax.ShapeDtypeStruct((M, N), out_dtype),
        grid=(M // tm, N // tn),
        in_specs=[
            pl.BlockSpec((tm, K), lambda i, j: (i, 0)),
            pl.BlockSpec((K, tn), lambda i, j: (0, j)),
            pl.BlockSpec((1, tn), lambda i, j: (0, j)),
        ],
        out_specs=pl.BlockSpec((tm, tn), lambda i, j: (i, j)),
        compiler_params=pltpu.CompilerParams(
            dimension_semantics=("parallel", "parallel")),
    )(x, w, b.reshape(1, N).astype(jnp.float32))


# ----------------------------------------------------------------------------
# Dual-input linear:  y = x1 @ w1 + x2 @ w2 + b.
# Used to fuse away the reference's cat((context, aligns), dim=2): the
# lane-sparse concat never hits HBM.
# ----------------------------------------------------------------------------

def _dual_linear_kernel(x1_ref, w1_ref, x2_ref, w2_ref, b_ref, o_ref):
    y = jnp.dot(x1_ref[...].astype(jnp.bfloat16),
                w1_ref[...].astype(jnp.bfloat16),
                preferred_element_type=jnp.float32)
    y = y + jnp.dot(x2_ref[...].astype(jnp.bfloat16),
                    w2_ref[...].astype(jnp.bfloat16),
                    preferred_element_type=jnp.float32)
    y = y + b_ref[...]
    o_ref[...] = y.astype(o_ref.dtype)


def pallas_dual_linear(x1, w1, x2, w2, b, out_dtype=jnp.float32,
                       tm_max=512, tn_max=512):
    M, K1 = x1.shape
    K2 = x2.shape[1]
    N = w1.shape[1]
    tm = min(M, tm_max)
    if M % tm != 0 or tm % 8 != 0:
        tm = M
    tn = min(N, tn_max)
    if N % tn != 0 or tn % LANE != 0:
        tn = N
    return pl.pallas_call(
        _dual_linear_kernel,
        out_shape=jax.ShapeDtypeStruct((M, N), out_dtype),
        grid=(M // tm, N // tn),
        in_specs=[
            pl.BlockSpec((tm, K1), lambda i, j: (i, 0)),
            pl.BlockSpec((K1, tn), lambda i, j: (0, j)),
            pl.BlockSpec((tm, K2), lambda i, j: (i, 0)),
            pl.BlockSpec((K2, tn), lambda i, j: (0, j)),
            pl.BlockSpec((1, tn), lambda i, j: (0, j)),
        ],
        out_specs=pl.BlockSpec((tm, tn), lambda i, j: (i, j)),
        compiler_params=pltpu.CompilerParams(
            dimension_semantics=("parallel", "parallel")),
    )(x1, w1, x2, w2, b.reshape(1, N).astype(jnp.float32))


# ----------------------------------------------------------------------------
# Bidirectional LSTM recurrence.
#   grid = (direction, time-chunk); time-major layout; bf16 recurrent matmul;
#   unrolled in-kernel time loop; h/c kept in VMEM scratch across chunks.
# ----------------------------------------------------------------------------

def _bilstm_kernel(gx_ref, whh_ref, lens_ref, out_ref, h_sc, c_sc,
                   *, hp, ct, unroll):
    """gx_ref  : (ct, B, 4*hp) bf16  x_t @ W_ih^T + b for this direction/chunk
       whh_ref : (hp, 4*hp)    bf16  W_hh^T (gate- and lane-padded)
       lens_ref: (B, 1)        int32 sequence lengths
       out_ref : (ct, B, hp)   f32   hidden states (0 past each seq length)
       h_sc/c_sc: (B, hp)      f32   recurrent state, persists across chunks
    """
    direction = pl.program_id(0)          # 0 = forward, 1 = backward
    chunk_i = pl.program_id(1)
    nchunks = pl.num_programs(1)

    @pl.when(chunk_i == 0)
    def _():
        h_sc[...] = jnp.zeros_like(h_sc)
        c_sc[...] = jnp.zeros_like(c_sc)

    # global time offset of the chunk this grid step works on
    chunk = (1 - direction) * chunk_i + direction * (nchunks - 1 - chunk_i)
    base_t = chunk * ct
    lens = lens_ref[...]                  # (B, 1)
    whh = whh_ref[...]                    # (hp, 4hp) bf16, hoisted / resident

    def step(i, carry):
        # local (within-chunk) timestep; walked backwards for direction == 1
        lt = (1 - direction) * i + direction * (ct - 1 - i)
        gt = base_t + lt                  # global timestep
        h = h_sc[...]
        c = c_sc[...]
        gxt = gx_ref[lt]                  # (B, 4hp) bf16, contiguous slab
        gates = gxt.astype(jnp.float32) + jnp.dot(
            h.astype(jnp.bfloat16), whh, preferred_element_type=jnp.float32)
        # gate slices are 128-lane aligned thanks to the hp padding
        i_g = jax.nn.sigmoid(gates[:, 0 * hp:1 * hp])
        f_g = jax.nn.sigmoid(gates[:, 1 * hp:2 * hp])
        g_g = jnp.tanh(gates[:, 2 * hp:3 * hp])
        o_g = jax.nn.sigmoid(gates[:, 3 * hp:4 * hp])
        c_new = f_g * c + i_g * g_g
        h_new = o_g * jnp.tanh(c_new)
        valid = lens > gt                 # (B, 1)
        h_sc[...] = jnp.where(valid, h_new, h)     # freeze state past length
        c_sc[...] = jnp.where(valid, c_new, c)
        out_ref[lt] = jnp.where(valid, h_new, 0.0)
        return carry

    jax.lax.fori_loop(0, ct, step, 0, unroll=unroll)


def pallas_bilstm_recurrence(gx, whh_stack, lens, hp):
    """gx: (T, B, 8*hp) bf16, whh_stack: (2, hp, 4*hp) bf16 -> (2, T, B, hp) f32."""
    T, B, _ = gx.shape
    ct = _pick_chunk(T)
    nchunks = T // ct
    unroll = True if ct <= 16 else 8
    lens2 = lens.reshape(B, 1).astype(jnp.int32)

    def chunk_sel(d, c):
        # forward walks chunks 0..n-1, backward walks n-1..0
        return (1 - d) * c + d * (nchunks - 1 - c)

    return pl.pallas_call(
        functools.partial(_bilstm_kernel, hp=hp, ct=ct, unroll=unroll),
        out_shape=jax.ShapeDtypeStruct((2, T, B, hp), jnp.float32),
        grid=(2, nchunks),
        in_specs=[
            # direction index picks the 4*hp lane-block of gx, chunk picks time
            pl.BlockSpec((ct, B, 4 * hp), lambda d, c: (chunk_sel(d, c), 0, d)),
            pl.BlockSpec((None, hp, 4 * hp), lambda d, c: (d, 0, 0)),
            pl.BlockSpec((B, 1), lambda d, c: (0, 0)),
        ],
        out_specs=pl.BlockSpec((None, ct, B, hp),
                               lambda d, c: (d, chunk_sel(d, c), 0, 0)),
        scratch_shapes=[pltpu.VMEM((B, hp), jnp.float32),
                        pltpu.VMEM((B, hp), jnp.float32)],
        compiler_params=pltpu.CompilerParams(
            # direction axis is independent -> megacore-shardable on v7x;
            # the time-chunk axis carries the recurrence -> arbitrary.
            dimension_semantics=("parallel", "arbitrary"),
            vmem_limit_bytes=48 * 1024 * 1024),
    )(gx, whh_stack, lens2)
    # TODO(synk): on single-TC chips (v5e/v6e) the two directions could be
    # fused into one kernel instance (block-diagonal W_hh) to halve the number
    # of serialized recurrent steps.


# ----------------------------------------------------------------------------
# Question self-attention -> summary vector q (kept in the Hp-padded layout).
# VPU mul+reduce instead of M=1 matmuls.
# ----------------------------------------------------------------------------

def _qattn_kernel(qo_ref, w_ref, qlen_ref, out_ref):
    qo = qo_ref[...]                                      # (2, Tq, B, Hp)
    w = w_ref[...]                                        # (2, Hp)
    s = jnp.sum(qo * w[:, None, None, :], axis=(0, 3))    # (Tq, B)
    # explicit length mask (replaces the reference's `score == 0` sentinel;
    # identical result since padded q_output rows are exactly 0).
    # NOTE: a zero-length question would make every score -inf (NaN softmax).
    t_iota = jax.lax.broadcasted_iota(jnp.int32, s.shape, 0)
    s = jnp.where(t_iota < qlen_ref[...], s, -jnp.inf)
    m = jnp.max(s, axis=0, keepdims=True)
    e = jnp.exp(s - m)
    a = e * pl.reciprocal(jnp.sum(e, axis=0, keepdims=True), approx=True)
    qsum = jnp.sum(a[None, :, :, None] * qo, axis=1)      # (2, B, Hp)
    out_ref[...] = jnp.concatenate([qsum[0], qsum[1]], axis=-1)   # (B, 2Hp)


def pallas_question_attention(q_out, w_pad, q_lens):
    _, Tq, B, Hp = q_out.shape
    qlens = q_lens.reshape(1, B).astype(jnp.int32)
    return pl.pallas_call(
        _qattn_kernel,
        out_shape=jax.ShapeDtypeStruct((B, 2 * Hp), jnp.float32),
    )(q_out, w_pad, qlens)


# ----------------------------------------------------------------------------
# Aligned-question attention, gridded over context tiles ("parallel").
# ----------------------------------------------------------------------------

def _align_kernel(cp_ref, qp_ref, qn_ref, out_ref):
    s = jnp.einsum('bik,bjk->bij', cp_ref[...], qp_ref[...],
                   preferred_element_type=jnp.float32)    # (B, tct, Tq)
    # NOTE: intentionally no question-length mask -- the reference softmaxes
    # over all (zero-padded) question positions as well.
    s = s - jnp.max(s, axis=-1, keepdims=True)
    e = jnp.exp(s)
    a = e * pl.reciprocal(jnp.sum(e, axis=-1, keepdims=True), approx=True)
    out_ref[...] = jnp.einsum('bij,bjd->bid', a.astype(jnp.bfloat16),
                              qn_ref[...],
                              preferred_element_type=jnp.float32
                              ).astype(out_ref.dtype)


def pallas_align(c_proj, q_proj, question_bf16, tct_max=256):
    B, Tc, P = c_proj.shape
    _, Tq, q_dim = question_bf16.shape
    tct = _pick_tile(Tc, 8, tct_max)
    return pl.pallas_call(
        _align_kernel,
        out_shape=jax.ShapeDtypeStruct((B, Tc, q_dim), jnp.bfloat16),
        grid=(Tc // tct,),
        in_specs=[
            pl.BlockSpec((B, tct, P), lambda i: (0, i, 0)),
            pl.BlockSpec((B, Tq, P), lambda i: (0, 0, 0)),
            pl.BlockSpec((B, Tq, q_dim), lambda i: (0, 0, 0)),
        ],
        out_specs=pl.BlockSpec((B, tct, q_dim), lambda i: (0, i, 0)),
        compiler_params=pltpu.CompilerParams(
            dimension_semantics=("parallel",)),
    )(c_proj, q_proj, question_bf16)


# ----------------------------------------------------------------------------
# Start/end span pointers.
#   1) Tc-tiled "parallel" score kernel: s[b,t] = <p[:,t,b,:], qv[:, :, b, :]>
#      (VPU mul+reduce, lane-major (B, Tc) outputs).
#   2) tiny masked log-softmax kernel producing (B, Tc+1) log-probs.
# ----------------------------------------------------------------------------

def _span_scores_kernel(p_ref, qv_ref, ss_ref, se_ref):
    p = p_ref[...]                                        # (2, tct, B, Hp)
    qv = qv_ref[...]                                      # (2se, 2dir, B, Hp)
    s_start = jnp.sum(p * qv[0][:, None], axis=(0, 3))    # (tct, B)
    s_end = jnp.sum(p * qv[1][:, None], axis=(0, 3))      # (tct, B)
    ss_ref[...] = s_start.T                               # (B, tct) lane-major
    se_ref[...] = s_end.T


def pallas_span_scores(p_out, qv, tct_max=512):
    _, Tc, B, Hp = p_out.shape
    tct = _pick_tile(Tc, LANE, tct_max)
    return pl.pallas_call(
        _span_scores_kernel,
        out_shape=(jax.ShapeDtypeStruct((B, Tc), jnp.float32),
                   jax.ShapeDtypeStruct((B, Tc), jnp.float32)),
        grid=(Tc // tct,),
        in_specs=[
            pl.BlockSpec((2, tct, B, Hp), lambda i: (0, i, 0, 0)),
            pl.BlockSpec((2, 2, B, Hp), lambda i: (0, 0, 0, 0)),
        ],
        out_specs=(pl.BlockSpec((B, tct), lambda i: (0, i)),
                   pl.BlockSpec((B, tct), lambda i: (0, i))),
        compiler_params=pltpu.CompilerParams(
            dimension_semantics=("parallel",)),
    )(p_out, qv)


def _span_logsoftmax_kernel(ss_ref, se_ref, clen_ref, thr_ref, ps_ref, pe_ref):
    thr = thr_ref[0, 0]
    B, Tc = ss_ref.shape
    lane = jax.lax.broadcasted_iota(jnp.int32, (B, Tc + 1), 1)
    # keep the threshold slot (lane 0) and positions within the context length
    # (replaces the reference's `score == 0` sentinel for zero-padded inputs).
    keep = (lane == 0) | ((lane - 1) < clen_ref[...])

    def lsm(s):
        full = jnp.concatenate(
            [jnp.full((B, 1), thr, jnp.float32), s], axis=1)   # (B, Tc+1)
        full = jnp.where(keep, full, -jnp.inf)
        m = jnp.max(full, axis=-1, keepdims=True)
        z = full - m
        lse = jnp.log(jnp.sum(jnp.exp(z), axis=-1, keepdims=True))
        return z - lse

    ps_ref[...] = lsm(ss_ref[...])
    pe_ref[...] = lsm(se_ref[...])


def pallas_span_logsoftmax(s_start, s_end, c_lens, threshold):
    B, Tc = s_start.shape
    clens = c_lens.reshape(B, 1).astype(jnp.int32)
    thr = jnp.asarray(threshold, jnp.float32).reshape(1, 1)
    return pl.pallas_call(
        _span_logsoftmax_kernel,
        out_shape=(jax.ShapeDtypeStruct((B, Tc + 1), jnp.float32),
                   jax.ShapeDtypeStruct((B, Tc + 1), jnp.float32)),
    )(s_start, s_end, clens, thr)


# ----------------------------------------------------------------------------
# Parameters: init (torch-like layout) + one-time packing (pad / transpose /
# bf16-cast, done OUTSIDE the jitted forward).
# ----------------------------------------------------------------------------

def init_params(key, q_dim, p_dim, hidden):
    ks = iter(jax.random.split(key, 32))
    std = 0.1

    def mat(k, o, i):
        return jax.random.normal(k, (o, i), jnp.float32) * std

    def vec(k, d):
        return jax.random.normal(k, (d,), jnp.float32) * std

    def lstm(in_d):
        d = {}
        for name in ("fwd", "bwd"):
            d[name] = (mat(next(ks), 4 * hidden, in_d),    # W_ih
                       mat(next(ks), 4 * hidden, hidden),  # W_hh
                       vec(next(ks), 4 * hidden),          # b_ih
                       vec(next(ks), 4 * hidden))          # b_hh
        return d

    return {
        "ctx_lin_W": mat(next(ks), 128, p_dim), "ctx_lin_b": vec(next(ks), 128),
        "q_lin_W": mat(next(ks), 128, q_dim),  "q_lin_b": vec(next(ks), 128),
        "q_rnn": lstm(q_dim),
        "c_rnn": lstm(p_dim + q_dim),
        "w_vec": mat(next(ks), 1, 2 * hidden),        # weight_vec (no bias)
        "start_W": mat(next(ks), 2 * hidden, 2 * hidden),
        "end_W": mat(next(ks), 2 * hidden, 2 * hidden),
        "threshold": jax.random.uniform(next(ks), (1,), jnp.float32),
    }


def _pad_gate_rows(w, h, hp):
    """(4h, ...) -> (4hp, ...): each gate block moved to an hp-strided row
    offset; padded rows are zero, so padded hidden units stay exactly 0."""
    parts = []
    for g in range(4):
        parts.append(w[g * h:(g + 1) * h])
        if hp > h:
            parts.append(jnp.zeros((hp - h,) + w.shape[1:], w.dtype))
    return jnp.concatenate(parts, axis=0)


def _pad_2h(x, h, hp, axes):
    """Pad each [fwd h | bwd h] block to [fwd hp | bwd hp] (zeros) along axes."""
    for ax in axes:
        a, b = jnp.split(x, 2, axis=ax)
        pad = [(0, 0)] * x.ndim
        pad[ax] = (0, hp - h)
        x = jnp.concatenate([jnp.pad(a, pad), jnp.pad(b, pad)], axis=ax)
    return x


def pack_params(params, q_dim, p_dim, hidden):
    H = hidden
    Hp = _round_up(H, LANE)

    def pack_lstm(rnn):
        wih_cols, bias_cols, whh_list = [], [], []
        for name in ("fwd", "bwd"):
            W_ih, W_hh, b_ih, b_hh = rnn[name]
            wih_cols.append(_pad_gate_rows(W_ih, H, Hp).T)               # (D, 4Hp)
            bias_cols.append(_pad_gate_rows((b_ih + b_hh)[:, None], H, Hp)[:, 0])
            whh_p = _pad_gate_rows(W_hh, H, Hp)                          # (4Hp, H)
            whh_p = jnp.pad(whh_p, ((0, 0), (0, Hp - H)))                # (4Hp, Hp)
            whh_list.append(whh_p.T)                                     # (Hp, 4Hp)
        wih = jnp.concatenate(wih_cols, axis=1).astype(jnp.bfloat16)     # (D, 8Hp)
        bias = jnp.concatenate(bias_cols, axis=0)                        # (8Hp,) f32
        whh = jnp.stack(whh_list, axis=0).astype(jnp.bfloat16)           # (2,Hp,4Hp)
        return wih, bias, whh

    q_wih, q_bias, q_whh = pack_lstm(params["q_rnn"])
    c_wih, c_bias, c_whh = pack_lstm(params["c_rnn"])

    w_pad = _pad_2h(params["w_vec"], H, Hp, axes=(1,)).reshape(2, Hp)    # f32
    WsT = _pad_2h(params["start_W"].T, H, Hp, axes=(0, 1))               # (2Hp,2Hp)
    WeT = _pad_2h(params["end_W"].T, H, Hp, axes=(0, 1))
    W_se = jnp.concatenate([WsT, WeT], axis=1).astype(jnp.bfloat16)      # (2Hp,4Hp)

    return {
        "q_wih": q_wih, "q_bias": q_bias, "q_whh": q_whh,
        "c_wih_ctx": c_wih[:p_dim],        # rows multiplying `context`
        "c_wih_align": c_wih[p_dim:],      # rows multiplying `aligns`
        "c_bias": c_bias, "c_whh": c_whh,
        "w_pad": w_pad, "W_se": W_se,
        "ctx_lin_W": params["ctx_lin_W"].T.astype(jnp.bfloat16),
        "ctx_lin_b": params["ctx_lin_b"],
        "q_lin_W": params["q_lin_W"].T.astype(jnp.bfloat16),
        "q_lin_b": params["q_lin_b"],
        "threshold": params["threshold"],
    }


# ----------------------------------------------------------------------------
# Forward pass
# ----------------------------------------------------------------------------

def drqa_forward(pp, context, question, c_lens, q_lens, hidden):
    B, Tc, p_dim = context.shape
    _, Tq, q_dim = question.shape
    Hp = _round_up(hidden, LANE)

    # ---- question bi-LSTM (time-major bf16 gx, packed-sequence via masking) --
    question_tm = jnp.swapaxes(question, 0, 1)                        # (Tq,B,q)
    gx_q = pallas_linear(question_tm.reshape(Tq * B, q_dim), pp["q_wih"],
                         pp["q_bias"], out_dtype=jnp.bfloat16)
    gx_q = gx_q.reshape(Tq, B, 8 * Hp)
    q_out = pallas_bilstm_recurrence(gx_q, pp["q_whh"], q_lens, Hp)   # (2,Tq,B,Hp)

    # ---- question self-attention -> summary vector q ------------------------
    q_vec = pallas_question_attention(q_out, pp["w_pad"], q_lens)     # (B, 2Hp)

    # ---- aligned-question attention over the context ------------------------
    c_proj = pallas_linear(context.reshape(B * Tc, p_dim), pp["ctx_lin_W"],
                           pp["ctx_lin_b"], relu=True,
                           out_dtype=jnp.bfloat16).reshape(B, Tc, 128)
    q_proj = pallas_linear(question.reshape(B * Tq, q_dim), pp["q_lin_W"],
                           pp["q_lin_b"], relu=True,
                           out_dtype=jnp.bfloat16).reshape(B, Tq, 128)
    aligns = pallas_align(c_proj, q_proj, question.astype(jnp.bfloat16))

    # ---- context bi-LSTM: ctx_cat fused into the gx projection --------------
    context_tm = jnp.swapaxes(context, 0, 1).reshape(Tc * B, p_dim)
    aligns_tm = jnp.swapaxes(aligns, 0, 1).reshape(Tc * B, q_dim)
    gx_c = pallas_dual_linear(context_tm, pp["c_wih_ctx"],
                              aligns_tm, pp["c_wih_align"], pp["c_bias"],
                              out_dtype=jnp.bfloat16)
    gx_c = gx_c.reshape(Tc, B, 8 * Hp)
    p_out = pallas_bilstm_recurrence(gx_c, pp["c_whh"], c_lens, Hp)   # (2,Tc,B,Hp)

    # ---- start / end pointers ------------------------------------------------
    qv = pallas_linear(q_vec, pp["W_se"], jnp.zeros((4 * Hp,), jnp.float32))
    qv = jnp.transpose(qv.reshape(B, 2, 2, Hp), (1, 2, 0, 3))         # (2se,2dir,B,Hp)
    s_start, s_end = pallas_span_scores(p_out, qv)                    # (B, Tc) x2
    prob_start, prob_end = pallas_span_logsoftmax(s_start, s_end, c_lens,
                                                  pp["threshold"])
    return prob_start, prob_end                                       # (B, Tc+1)


# ----------------------------------------------------------------------------
# Main
# ----------------------------------------------------------------------------

if __name__ == "__main__":
    B, Tq, Tc = 2, 8, 12
    q_dim, p_dim, hidden = 16, 20, 32

    key = jax.random.PRNGKey(0)
    kp, kc, kq = jax.random.split(key, 3)

    params = init_params(kp, q_dim, p_dim, hidden)
    packed = pack_params(params, q_dim, p_dim, hidden)   # one-time weight pack

    q_lens = jnp.array([Tq, Tq - 2], jnp.int32)   # max length == Tq
    c_lens = jnp.array([Tc, Tc - 3], jnp.int32)   # max length == Tc

    question = jax.random.normal(kq, (B, Tq, q_dim), jnp.float32)
    context = jax.random.normal(kc, (B, Tc, p_dim), jnp.float32)
    # zero-pad beyond lengths, as a padded batch would be
    qmask = (jnp.arange(Tq)[None, :] < q_lens[:, None])[:, :, None]
    cmask = (jnp.arange(Tc)[None, :] < c_lens[:, None])[:, :, None]
    question = question * qmask.astype(jnp.float32)
    context = context * cmask.astype(jnp.float32)

    fwd = jax.jit(functools.partial(drqa_forward, hidden=hidden))
    prob_start, prob_end = fwd(packed, context, question, c_lens, q_lens)
    jax.block_until_ready((prob_start, prob_end))

    assert prob_start.shape == (B, Tc + 1)
    assert prob_end.shape == (B, Tc + 1)
    assert bool(jnp.all(jnp.isfinite(jnp.exp(prob_start))))
    assert bool(jnp.all(jnp.isfinite(jnp.exp(prob_end))))
    # log-softmax rows must (almost) exponentiate to probability distributions
    assert bool(jnp.allclose(jnp.exp(prob_start).sum(-1), 1.0, atol=1e-3))
    assert bool(jnp.allclose(jnp.exp(prob_end).sum(-1), 1.0, atol=1e-3))
    print("KERNEL_OK")
</pallas_src>

<mosaic_0001>
module attributes {stable_mosaic.version = 11 : i64} {
  func.func @_linear_kernel(%arg0: i32, %arg1: i32, %arg2: memref<24x20xf32, #tpu.memory_space<vmem>>, %arg3: memref<20x128xbf16, #tpu.memory_space<vmem>>, %arg4: memref<1x128xf32, #tpu.memory_space<vmem>>, %arg5: memref<24x128xbf16, #tpu.memory_space<vmem>>) attributes {dimension_semantics = [#tpu.dimension_semantics<parallel>, #tpu.dimension_semantics<parallel>], iteration_bounds = array<i64: 1, 1>, scalar_prefetch = 0 : i64, scratch_operands = 0 : i64, tpu.core_type = #tpu.core_type<tc>, window_params = [{transform_indices = @transform_0, window_bounds = array<i64: 24, 20>}, {transform_indices = @transform_1, window_bounds = array<i64: 20, 128>}, {transform_indices = @transform_2, window_bounds = array<i64: 1, 128>}, {transform_indices = @transform_3, window_bounds = array<i64: 24, 128>}]} {
    %c0 = arith.constant 0 : index
    %c0_0 = arith.constant 0 : index
    %0 = vector.load %arg2[%c0, %c0_0] : memref<24x20xf32, #tpu.memory_space<vmem>>, vector<24x20xf32>
    %1 = arith.truncf %0 : vector<24x20xf32> to vector<24x20xbf16>
    %c0_1 = arith.constant 0 : index
    %c0_2 = arith.constant 0 : index
    %2 = vector.load %arg3[%c0_1, %c0_2] : memref<20x128xbf16, #tpu.memory_space<vmem>>, vector<20x128xbf16>
    %cst = arith.constant dense<0.000000e+00> : vector<24x128xf32>
    %3 = tpu.matmul %1, %2, %cst {dimension_numbers = #tpu.dot_dimension_numbers<[1], [0], [0], [1], [0, 0, 1, 1], [], []>} : vector<24x20xbf16>, vector<20x128xbf16>, vector<24x128xf32> -> vector<24x128xf32>
    %c0_3 = arith.constant 0 : index
    %c0_4 = arith.constant 0 : index
    %4 = vector.load %arg4[%c0_3, %c0_4] : memref<1x128xf32, #tpu.memory_space<vmem>>, vector<1x128xf32>
    %5 = vector.broadcast %4 : vector<1x128xf32> to vector<24x128xf32>
    %6 = arith.addf %3, %5 : vector<24x128xf32>
    %cst_5 = arith.constant 0.000000e+00 : f32
    %7 = vector.broadcast %cst_5 : f32 to vector<24x128xf32>
    %8 = arith.maximumf %6, %7 : vector<24x128xf32>
    %9 = arith.truncf %8 : vector<24x128xf32> to vector<24x128xbf16>
    %c0_6 = arith.constant 0 : index
    %c0_7 = arith.constant 0 : index
    %10 = vector.load %arg5[%c0_6, %c0_7] : memref<24x128xbf16, #tpu.memory_space<vmem>>, vector<24x128xbf16>
    tpu.vector_store %arg5[%c0_6, %c0_7], %9 {strides = array<i32>} : memref<24x128xbf16, #tpu.memory_space<vmem>>, vector<24x128xbf16>,
    return
  }
  func.func @transform_0(%arg0: i32, %arg1: i32) -> (i32, i32) {
    %c0_i32 = arith.constant 0 : i32
    %c0_i32_0 = arith.constant 0 : i32
    return %arg0, %c0_i32 : i32, i32
  }
  func.func @transform_1(%arg0: i32, %arg1: i32) -> (i32, i32) {
    %c0_i32 = arith.constant 0 : i32
    %c0_i32_0 = arith.constant 0 : i32
    return %c0_i32, %arg1 : i32, i32
  }
  func.func @transform_2(%arg0: i32, %arg1: i32) -> (i32, i32) {
    %c0_i32 = arith.constant 0 : i32
    %c0_i32_0 = arith.constant 0 : i32
    return %c0_i32, %arg1 : i32, i32
  }
  func.func @transform_3(%arg0: i32, %arg1: i32) -> (i32, i32) {
    %c0_i32 = arith.constant 0 : i32
    return %arg0, %arg1 : i32, i32
  }
}

module attributes {stable_mosaic.version = 11 : i64} {
  func.func @_linear_kernel(%arg0: i32, %arg1: i32, %arg2: memref<16x16xf32, #tpu.memory_space<vmem>>, %arg3: memref<16x128xbf16, #tpu.memory_space<vmem>>, %arg4: memref<1x128xf32, #tpu.memory_space<vmem>>, %arg5: memref<16x128xbf16, #tpu.memory_space<vmem>>) attributes {dimension_semantics = [#tpu.dimension_semantics<parallel>, #tpu.dimension_semantics<parallel>], iteration_bounds = array<i64: 1, 1>, scalar_prefetch = 0 : i64, scratch_operands = 0 : i64, tpu.core_type = #tpu.core_type<tc>, window_params = [{transform_indices = @transform_0, window_bounds = array<i64: 16, 16>}, {transform_indices = @transform_1, window_bounds = array<i64: 16, 128>}, {transform_indices = @transform_2, window_bounds = array<i64: 1, 128>}, {transform_indices = @transform_3, window_bounds = array<i64: 16, 128>}]} {
    %c0 = arith.constant 0 : index
    %c0_0 = arith.constant 0 : index
    %0 = vector.load %arg2[%c0, %c0_0] : memref<16x16xf32, #tpu.memory_space<vmem>>, vector<16x16xf32>
    %1 = arith.truncf %0 : vector<16x16xf32> to vector<16x16xbf16>
    %c0_1 = arith.constant 0 : index
    %c0_2 = arith.constant 0 : index
    %2 = vector.load %arg3[%c0_1, %c0_2] : memref<16x128xbf16, #tpu.memory_space<vmem>>, vector<16x128xbf16>
    %cst = arith.constant dense<0.000000e+00> : vector<16x128xf32>
    %3 = tpu.matmul %1, %2, %cst {dimension_numbers = #tpu.dot_dimension_numbers<[1], [0], [0], [1], [0, 0, 1, 1], [], []>} : vector<16x16xbf16>, vector<16x128xbf16>, vector<16x128xf32> -> vector<16x128xf32>
    %c0_3 = arith.constant 0 : index
    %c0_4 = arith.constant 0 : index
    %4 = vector.load %arg4[%c0_3, %c0_4] : memref<1x128xf32, #tpu.memory_space<vmem>>, vector<1x128xf32>
    %5 = vector.broadcast %4 : vector<1x128xf32> to vector<16x128xf32>
    %6 = arith.addf %3, %5 : vector<16x128xf32>
    %cst_5 = arith.constant 0.000000e+00 : f32
    %7 = vector.broadcast %cst_5 : f32 to vector<16x128xf32>
    %8 = arith.maximumf %6, %7 : vector<16x128xf32>
    %9 = arith.truncf %8 : vector<16x128xf32> to vector<16x128xbf16>
    %c0_6 = arith.constant 0 : index
    %c0_7 = arith.constant 0 : index
    %10 = vector.load %arg5[%c0_6, %c0_7] : memref<16x128xbf16, #tpu.memory_space<vmem>>, vector<16x128xbf16>
    tpu.vector_store %arg5[%c0_6, %c0_7], %9 {strides = array<i32>} : memref<16x128xbf16, #tpu.memory_space<vmem>>, vector<16x128xbf16>,
    return
  }
  func.func @transform_0(%arg0: i32, %arg1: i32) -> (i32, i32) {
    %c0_i32 = arith.constant 0 : i32
    %c0_i32_0 = arith.constant 0 : i32
    return %arg0, %c0_i32 : i32, i32
  }
  func.func @transform_1(%arg0: i32, %arg1: i32) -> (i32, i32) {
    %c0_i32 = arith.constant 0 : i32
    %c0_i32_0 = arith.constant 0 : i32
    return %c0_i32, %arg1 : i32, i32
  }
  func.func @transform_2(%arg0: i32, %arg1: i32) -> (i32, i32) {
    %c0_i32 = arith.constant 0 : i32
    %c0_i32_0 = arith.constant 0 : i32
    return %c0_i32, %arg1 : i32, i32
  }
  func.func @transform_3(%arg0: i32, %arg1: i32) -> (i32, i32) {
    %c0_i32 = arith.constant 0 : i32
    return %arg0, %arg1 : i32, i32
  }
}

module attributes {stable_mosaic.version = 11 : i64} {
  func.func @_align_kernel(%arg0: i32, %arg1: memref<2x12x128xbf16, #tpu.memory_space<vmem>>, %arg2: memref<2x8x128xbf16, #tpu.memory_space<vmem>>, %arg3: memref<2x8x16xbf16, #tpu.memory_space<vmem>>, %arg4: memref<2x12x16xbf16, #tpu.memory_space<vmem>>) attributes {dimension_semantics = [#tpu.dimension_semantics<parallel>], iteration_bounds = array<i64: 1>, scalar_prefetch = 0 : i64, scratch_operands = 0 : i64, tpu.core_type = #tpu.core_type<tc>, window_params = [{transform_indices = @transform_0, window_bounds = array<i64: 2, 12, 128>}, {pipeline_mode = #tpu.pipeline_mode<synchronous>, transform_indices = @transform_1, window_bounds = array<i64: 2, 8, 128>}, {pipeline_mode = #tpu.pipeline_mode<synchronous>, transform_indices = @transform_2, window_bounds = array<i64: 2, 8, 16>}, {transform_indices = @transform_3, window_bounds = array<i64: 2, 12, 16>}]} {
    %c0 = arith.constant 0 : index
    %c0_0 = arith.constant 0 : index
    %c0_1 = arith.constant 0 : index
    %0 = vector.load %arg1[%c0, %c0_0, %c0_1] : memref<2x12x128xbf16, #tpu.memory_space<vmem>>, vector<2x12x128xbf16>
    %c0_2 = arith.constant 0 : index
    %c0_3 = arith.constant 0 : index
    %c0_4 = arith.constant 0 : index
    %1 = vector.load %arg2[%c0_2, %c0_3, %c0_4] : memref<2x8x128xbf16, #tpu.memory_space<vmem>>, vector<2x8x128xbf16>
    "tpu.trace_start"() <{level = 10 : i32, message = "bik,bjk->bij"}> : () -> ()
    %cst = arith.constant dense<0.000000e+00> : vector<2x12x8xf32>
    %2 = tpu.matmul %0, %1, %cst {dimension_numbers = #tpu.dot_dimension_numbers<[2], [2], [1], [1], [0, 0, 0, 1, 1, 1], [0], [0]>} : vector<2x12x128xbf16>, vector<2x8x128xbf16>, vector<2x12x8xf32> -> vector<2x12x8xf32>
    "tpu.trace_stop"() : () -> ()
    %cst_5 = arith.constant dense<0xFF800000> : vector<2x12xf32>
    %3 = vector.multi_reduction <maximumf>, %2, %cst_5 [2] : vector<2x12x8xf32> to vector<2x12xf32>
    %4 = vector.shape_cast %3 : vector<2x12xf32> to vector<2x12x1xf32>
    %5 = vector.broadcast %4 : vector<2x12x1xf32> to vector<2x12x8xf32>
    %6 = arith.subf %2, %5 : vector<2x12x8xf32>
    %7 = math.exp %6 : vector<2x12x8xf32>
    %cst_6 = arith.constant dense<0.000000e+00> : vector<2x12xf32>
    %8 = vector.multi_reduction <add>, %7, %cst_6 [2] : vector<2x12x8xf32> to vector<2x12xf32>
    %9 = vector.shape_cast %8 : vector<2x12xf32> to vector<2x12x1xf32>
    %10 = tpu.reciprocal %9 {approx = true} : vector<2x12x1xf32> -> vector<2x12x1xf32>
    %11 = vector.broadcast %10 : vector<2x12x1xf32> to vector<2x12x8xf32>
    %12 = arith.mulf %7, %11 : vector<2x12x8xf32>
    %13 = arith.truncf %12 : vector<2x12x8xf32> to vector<2x12x8xbf16>
    %c0_7 = arith.constant 0 : index
    %c0_8 = arith.constant 0 : index
    %c0_9 = arith.constant 0 : index
    %14 = vector.load %arg3[%c0_7, %c0_8, %c0_9] : memref<2x8x16xbf16, #tpu.memory_space<vmem>>, vector<2x8x16xbf16>
    "tpu.trace_start"() <{level = 10 : i32, message = "bij,bjd->bid"}> : () -> ()
    %cst_10 = arith.constant dense<0.000000e+00> : vector<2x12x16xf32>
    %15 = tpu.matmul %13, %14, %cst_10 {dimension_numbers = #tpu.dot_dimension_numbers<[2], [1], [1], [2], [0, 0, 0, 1, 1, 2], [0], [0]>} : vector<2x12x8xbf16>, vector<2x8x16xbf16>, vector<2x12x16xf32> -> vector<2x12x16xf32>
    "tpu.trace_stop"() : () -> ()
    %16 = arith.truncf %15 : vector<2x12x16xf32> to vector<2x12x16xbf16>
    %c0_11 = arith.constant 0 : index
    %c0_12 = arith.constant 0 : index
    %c0_13 = arith.constant 0 : index
    %17 = vector.load %arg4[%c0_11, %c0_12, %c0_13] : memref<2x12x16xbf16, #tpu.memory_space<vmem>>, vector<2x12x16xbf16>
    tpu.vector_store %arg4[%c0_11, %c0_12, %c0_13], %16 {strides = array<i32>} : memref<2x12x16xbf16, #tpu.memory_space<vmem>>, vector<2x12x16xbf16>,
    return
  }
  func.func @transform_0(%arg0: i32) -> (i32, i32, i32) {
    %c0_i32 = arith.constant 0 : i32
    %c0_i32_0 = arith.constant 0 : i32
    %c0_i32_1 = arith.constant 0 : i32
    return %c0_i32, %arg0, %c0_i32_0 : i32, i32, i32
  }
  func.func @transform_1(%arg0: i32) -> (i32, i32, i32) {
    %c0_i32 = arith.constant 0 : i32
    %c0_i32_0 = arith.constant 0 : i32
    %c0_i32_1 = arith.constant 0 : i32
    %c0_i32_2 = arith.constant 0 : i32
    return %c0_i32, %c0_i32_0, %c0_i32_1 : i32, i32, i32
  }
  func.func @transform_2(%arg0: i32) -> (i32, i32, i32) {
    %c0_i32 = arith.constant 0 : i32
    %c0_i32_0 = arith.constant 0 : i32
    %c0_i32_1 = arith.constant 0 : i32
    %c0_i32_2 = arith.constant 0 : i32
    return %c0_i32, %c0_i32_0, %c0_i32_1 : i32, i32, i32
  }
  func.func @transform_3(%arg0: i32) -> (i32, i32, i32) {
    %c0_i32 = arith.constant 0 : i32
    %c0_i32_0 = arith.constant 0 : i32
    %c0_i32_1 = arith.constant 0 : i32
    return %c0_i32, %arg0, %c0_i32_0 : i32, i32, i32
  }
}

module attributes {stable_mosaic.version = 11 : i64} {
  func.func @_dual_linear_kernel(%arg0: i32, %arg1: i32, %arg2: memref<24x20xf32, #tpu.memory_space<vmem>>, %arg3: memref<20x512xbf16, #tpu.memory_space<vmem>>, %arg4: memref<24x16xbf16, #tpu.memory_space<vmem>>, %arg5: memref<16x512xbf16, #tpu.memory_space<vmem>>, %arg6: memref<1x512xf32, #tpu.memory_space<vmem>>, %arg7: memref<24x512xbf16, #tpu.memory_space<vmem>>) attributes {dimension_semantics = [#tpu.dimension_semantics<parallel>, #tpu.dimension_semantics<parallel>], iteration_bounds = array<i64: 1, 2>, scalar_prefetch = 0 : i64, scratch_operands = 0 : i64, tpu.core_type = #tpu.core_type<tc>, window_params = [{transform_indices = @transform_0, window_bounds = array<i64: 24, 20>}, {transform_indices = @transform_1, window_bounds = array<i64: 20, 512>}, {transform_indices = @transform_2, window_bounds = array<i64: 24, 16>}, {transform_indices = @transform_3, window_bounds = array<i64: 16, 512>}, {transform_indices = @transform_4, window_bounds = array<i64: 1, 512>}, {transform_indices = @transform_5, window_bounds = array<i64: 24, 512>}]} {
    %c0 = arith.constant 0 : index
    %c0_0 = arith.constant 0 : index
    %0 = vector.load %arg2[%c0, %c0_0] : memref<24x20xf32, #tpu.memory_space<vmem>>, vector<24x20xf32>
    %1 = arith.truncf %0 : vector<24x20xf32> to vector<24x20xbf16>
    %c0_1 = arith.constant 0 : index
    %c0_2 = arith.constant 0 : index
    %2 = vector.load %arg3[%c0_1, %c0_2] : memref<20x512xbf16, #tpu.memory_space<vmem>>, vector<20x512xbf16>
    %cst = arith.constant dense<0.000000e+00> : vector<24x512xf32>
    %3 = tpu.matmul %1, %2, %cst {dimension_numbers = #tpu.dot_dimension_numbers<[1], [0], [0], [1], [0, 0, 1, 1], [], []>} : vector<24x20xbf16>, vector<20x512xbf16>, vector<24x512xf32> -> vector<24x512xf32>
    %c0_3 = arith.constant 0 : index
    %c0_4 = arith.constant 0 : index
    %4 = vector.load %arg4[%c0_3, %c0_4] : memref<24x16xbf16, #tpu.memory_space<vmem>>, vector<24x16xbf16>
    %c0_5 = arith.constant 0 : index
    %c0_6 = arith.constant 0 : index
    %5 = vector.load %arg5[%c0_5, %c0_6] : memref<16x512xbf16, #tpu.memory_space<vmem>>, vector<16x512xbf16>
    %cst_7 = arith.constant dense<0.000000e+00> : vector<24x512xf32>
    %6 = tpu.matmul %4, %5, %cst_7 {dimension_numbers = #tpu.dot_dimension_numbers<[1], [0], [0], [1], [0, 0, 1, 1], [], []>} : vector<24x16xbf16>, vector<16x512xbf16>, vector<24x512xf32> -> vector<24x512xf32>
    %7 = arith.addf %3, %6 : vector<24x512xf32>
    %c0_8 = arith.constant 0 : index
    %c0_9 = arith.constant 0 : index
    %8 = vector.load %arg6[%c0_8, %c0_9] : memref<1x512xf32, #tpu.memory_space<vmem>>, vector<1x512xf32>
    %9 = vector.broadcast %8 : vector<1x512xf32> to vector<24x512xf32>
    %10 = arith.addf %7, %9 : vector<24x512xf32>
    %11 = arith.truncf %10 : vector<24x512xf32> to vector<24x512xbf16>
    %c0_10 = arith.constant 0 : index
    %c0_11 = arith.constant 0 : index
    %12 = vector.load %arg7[%c0_10, %c0_11] : memref<24x512xbf16, #tpu.memory_space<vmem>>, vector<24x512xbf16>
    tpu.vector_store %arg7[%c0_10, %c0_11], %11 {strides = array<i32>} : memref<24x512xbf16, #tpu.memory_space<vmem>>, vector<24x512xbf16>,
    return
  }
  func.func @transform_0(%arg0: i32, %arg1: i32) -> (i32, i32) {
    %c0_i32 = arith.constant 0 : i32
    %c0_i32_0 = arith.constant 0 : i32
    return %arg0, %c0_i32 : i32, i32
  }
  func.func @transform_1(%arg0: i32, %arg1: i32) -> (i32, i32) {
    %c0_i32 = arith.constant 0 : i32
    %c0_i32_0 = arith.constant 0 : i32
    return %c0_i32, %arg1 : i32, i32
  }
  func.func @transform_2(%arg0: i32, %arg1: i32) -> (i32, i32) {
    %c0_i32 = arith.constant 0 : i32
    %c0_i32_0 = arith.constant 0 : i32
    return %arg0, %c0_i32 : i32, i32
  }
  func.func @transform_3(%arg0: i32, %arg1: i32) -> (i32, i32) {
    %c0_i32 = arith.constant 0 : i32
    %c0_i32_0 = arith.constant 0 : i32
    return %c0_i32, %arg1 : i32, i32
  }
  func.func @transform_4(%arg0: i32, %arg1: i32) -> (i32, i32) {
    %c0_i32 = arith.constant 0 : i32
    %c0_i32_0 = arith.constant 0 : i32
    return %c0_i32, %arg1 : i32, i32
  }
  func.func @transform_5(%arg0: i32, %arg1: i32) -> (i32, i32) {
    %c0_i32 = arith.constant 0 : i32
    return %arg0, %arg1 : i32, i32
  }
}

module attributes {stable_mosaic.version = 11 : i64} {
  func.func @_linear_kernel(%arg0: i32, %arg1: i32, %arg2: memref<16x16xf32, #tpu.memory_space<vmem>>, %arg3: memref<16x512xbf16, #tpu.memory_space<vmem>>, %arg4: memref<1x512xf32, #tpu.memory_space<vmem>>, %arg5: memref<16x512xbf16, #tpu.memory_space<vmem>>) attributes {dimension_semantics = [#tpu.dimension_semantics<parallel>, #tpu.dimension_semantics<parallel>], iteration_bounds = array<i64: 1, 2>, scalar_prefetch = 0 : i64, scratch_operands = 0 : i64, tpu.core_type = #tpu.core_type<tc>, window_params = [{transform_indices = @transform_0, window_bounds = array<i64: 16, 16>}, {transform_indices = @transform_1, window_bounds = array<i64: 16, 512>}, {transform_indices = @transform_2, window_bounds = array<i64: 1, 512>}, {transform_indices = @transform_3, window_bounds = array<i64: 16, 512>}]} {
    %c0 = arith.constant 0 : index
    %c0_0 = arith.constant 0 : index
    %0 = vector.load %arg2[%c0, %c0_0] : memref<16x16xf32, #tpu.memory_space<vmem>>, vector<16x16xf32>
    %1 = arith.truncf %0 : vector<16x16xf32> to vector<16x16xbf16>
    %c0_1 = arith.constant 0 : index
    %c0_2 = arith.constant 0 : index
    %2 = vector.load %arg3[%c0_1, %c0_2] : memref<16x512xbf16, #tpu.memory_space<vmem>>, vector<16x512xbf16>
    %cst = arith.constant dense<0.000000e+00> : vector<16x512xf32>
    %3 = tpu.matmul %1, %2, %cst {dimension_numbers = #tpu.dot_dimension_numbers<[1], [0], [0], [1], [0, 0, 1, 1], [], []>} : vector<16x16xbf16>, vector<16x512xbf16>, vector<16x512xf32> -> vector<16x512xf32>
    %c0_3 = arith.constant 0 : index
    %c0_4 = arith.constant 0 : index
    %4 = vector.load %arg4[%c0_3, %c0_4] : memref<1x512xf32, #tpu.memory_space<vmem>>, vector<1x512xf32>
    %5 = vector.broadcast %4 : vector<1x512xf32> to vector<16x512xf32>
    %6 = arith.addf %3, %5 : vector<16x512xf32>
    %7 = arith.truncf %6 : vector<16x512xf32> to vector<16x512xbf16>
    %c0_5 = arith.constant 0 : index
    %c0_6 = arith.constant 0 : index
    %8 = vector.load %arg5[%c0_5, %c0_6] : memref<16x512xbf16, #tpu.memory_space<vmem>>, vector<16x512xbf16>
    tpu.vector_store %arg5[%c0_5, %c0_6], %7 {strides = array<i32>} : memref<16x512xbf16, #tpu.memory_space<vmem>>, vector<16x512xbf16>,
    return
  }
  func.func @transform_0(%arg0: i32, %arg1: i32) -> (i32, i32) {
    %c0_i32 = arith.constant 0 : i32
    %c0_i32_0 = arith.constant 0 : i32
    return %arg0, %c0_i32 : i32, i32
  }
  func.func @transform_1(%arg0: i32, %arg1: i32) -> (i32, i32) {
    %c0_i32 = arith.constant 0 : i32
    %c0_i32_0 = arith.constant 0 : i32
    return %c0_i32, %arg1 : i32, i32
  }
  func.func @transform_2(%arg0: i32, %arg1: i32) -> (i32, i32) {
    %c0_i32 = arith.constant 0 : i32
    %c0_i32_0 = arith.constant 0 : i32
    return %c0_i32, %arg1 : i32, i32
  }
  func.func @transform_3(%arg0: i32, %arg1: i32) -> (i32, i32) {
    %c0_i32 = arith.constant 0 : i32
    return %arg0, %arg1 : i32, i32
  }
}

module attributes {stable_mosaic.version = 11 : i64} {
  func.func @_bilstm_kernel(%arg0: i32, %arg1: i32, %arg2: memref<12x2x512xbf16, #tpu.memory_space<vmem>>, %arg3: memref<1x128x512xbf16, #tpu.memory_space<vmem>>, %arg4: memref<2x1xi32, #tpu.memory_space<vmem>>, %arg5: memref<1x12x2x128xf32, #tpu.memory_space<vmem>>, %arg6: memref<2x128xf32, #tpu.memory_space<vmem>>, %arg7: memref<2x128xf32, #tpu.memory_space<vmem>>) attributes {dimension_semantics = [#tpu.dimension_semantics<parallel>, #tpu.dimension_semantics<arbitrary>], iteration_bounds = array<i64: 2, 1>, scalar_prefetch = 0 : i64, scratch_operands = 2 : i64, tpu.core_type = #tpu.core_type<tc>, window_params = [{transform_indices = @transform_0, window_bounds = array<i64: 12, 2, 512>}, {transform_indices = @transform_1, window_bounds = array<i64: 1, 128, 512>}, {pipeline_mode = #tpu.pipeline_mode<synchronous>, transform_indices = @transform_2, window_bounds = array<i64: 2, 1>}, {transform_indices = @transform_3, window_bounds = array<i64: 1, 12, 2, 128>}]} {
    %c0_i32 = arith.constant 0 : i32
    %0 = arith.cmpi eq, %arg1, %c0_i32 : i32
    %1 = arith.extui %0 : i1 to i32
    %c0_i32_0 = arith.constant 0 : i32
    %2 = arith.cmpi ne, %1, %c0_i32_0 : i32
    scf.if %2 {
      %cst_248 = arith.constant 0.000000e+00 : f32
      %708 = vector.broadcast %cst_248 : f32 to vector<2x128xf32>
      %c0_249 = arith.constant 0 : index
      %c0_250 = arith.constant 0 : index
      %709 = vector.load %arg6[%c0_249, %c0_250] : memref<2x128xf32, #tpu.memory_space<vmem>>, vector<2x128xf32>
      tpu.vector_store %arg6[%c0_249, %c0_250], %708 {strides = array<i32>} : memref<2x128xf32, #tpu.memory_space<vmem>>, vector<2x128xf32>,
      %cst_251 = arith.constant 0.000000e+00 : f32
      %710 = vector.broadcast %cst_251 : f32 to vector<2x128xf32>
      %c0_252 = arith.constant 0 : index
      %c0_253 = arith.constant 0 : index
      %711 = vector.load %arg7[%c0_252, %c0_253] : memref<2x128xf32, #tpu.memory_space<vmem>>, vector<2x128xf32>
      tpu.vector_store %arg7[%c0_252, %c0_253], %710 {strides = array<i32>} : memref<2x128xf32, #tpu.memory_space<vmem>>, vector<2x128xf32>,
    } else {
    }
    %c1_i32 = arith.constant 1 : i32
    %3 = arith.subi %c1_i32, %arg0 : i32
    %4 = arith.muli %3, %arg1 : i32
    %c0_i32_1 = arith.constant 0 : i32
    %5 = arith.subi %c0_i32_1, %arg1 : i32
    %6 = arith.muli %arg0, %5 : i32
    %7 = arith.addi %4, %6 : i32
    %c12_i32 = arith.constant 12 : i32
    %8 = arith.muli %7, %c12_i32 : i32
    %c0 = arith.constant 0 : index
    %c0_2 = arith.constant 0 : index
    %9 = vector.load %arg4[%c0, %c0_2] : memref<2x1xi32, #tpu.memory_space<vmem>>, vector<2x1xi32>
    %c0_3 = arith.constant 0 : index
    %c0_4 = arith.constant 0 : index
    %c0_5 = arith.constant 0 : index
    %10 = vector.load %arg3[%c0_3, %c0_4, %c0_5] : memref<1x128x512xbf16, #tpu.memory_space<vmem>>, vector<1x128x512xbf16>
    %11 = vector.shape_cast %10 : vector<1x128x512xbf16> to vector<128x512xbf16>
    %c0_i32_6 = arith.constant 0 : i32
    %c1_i32_7 = arith.constant 1 : i32
    %12 = arith.subi %c1_i32_7, %arg0 : i32
    %13 = arith.muli %12, %c0_i32_6 : i32
    %c11_i32 = arith.constant 11 : i32
    %14 = arith.subi %c11_i32, %c0_i32_6 : i32
    %15 = arith.muli %arg0, %14 : i32
    %16 = arith.addi %13, %15 : i32
    %17 = arith.addi %8, %16 : i32
    %c0_8 = arith.constant 0 : index
    %c0_9 = arith.constant 0 : index
    %18 = vector.load %arg6[%c0_8, %c0_9] : memref<2x128xf32, #tpu.memory_space<vmem>>, vector<2x128xf32>
    %c0_10 = arith.constant 0 : index
    %c0_11 = arith.constant 0 : index
    %19 = vector.load %arg7[%c0_10, %c0_11] : memref<2x128xf32, #tpu.memory_space<vmem>>, vector<2x128xf32>
    %20 = arith.index_cast %16 : i32 to index
    %c0_12 = arith.constant 0 : index
    %c0_13 = arith.constant 0 : index
    %21 = vector.load %arg2[%20, %c0_12, %c0_13] : memref<12x2x512xbf16, #tpu.memory_space<vmem>>, vector<1x2x512xbf16>
    %22 = vector.shape_cast %21 : vector<1x2x512xbf16> to vector<2x512xbf16>
    %23 = arith.extf %22 : vector<2x512xbf16> to vector<2x512xf32>
    %24 = arith.truncf %18 : vector<2x128xf32> to vector<2x128xbf16>
    %cst = arith.constant dense<0.000000e+00> : vector<2x512xf32>
    %25 = tpu.matmul %24, %11, %cst {dimension_numbers = #tpu.dot_dimension_numbers<[1], [0], [0], [1], [0, 0, 1, 1], [], []>} : vector<2x128xbf16>, vector<128x512xbf16>, vector<2x512xf32> -> vector<2x512xf32>
    %26 = arith.addf %23, %25 : vector<2x512xf32>
    %27 = vector.extract_strided_slice %26 {offsets = [0, 0], sizes = [2, 128], strides = [1, 1]} : vector<2x512xf32> to vector<2x128xf32>
    %28 = arith.negf %27 : vector<2x128xf32>
    %29 = math.exp %28 : vector<2x128xf32>
    %cst_14 = arith.constant 1.000000e+00 : f32
    %30 = vector.broadcast %cst_14 : f32 to vector<2x128xf32>
    %31 = arith.addf %30, %29 : vector<2x128xf32>
    %32 = arith.divf %30, %31 : vector<2x128xf32>
    %33 = vector.extract_strided_slice %26 {offsets = [0, 128], sizes = [2, 128], strides = [1, 1]} : vector<2x512xf32> to vector<2x128xf32>
    %34 = arith.negf %33 : vector<2x128xf32>
    %35 = math.exp %34 : vector<2x128xf32>
    %cst_15 = arith.constant 1.000000e+00 : f32
    %36 = vector.broadcast %cst_15 : f32 to vector<2x128xf32>
    %37 = arith.addf %36, %35 : vector<2x128xf32>
    %38 = arith.divf %36, %37 : vector<2x128xf32>
    %39 = vector.extract_strided_slice %26 {offsets = [0, 256], sizes = [2, 128], strides = [1, 1]} : vector<2x512xf32> to vector<2x128xf32>
    %40 = math.tanh %39 : vector<2x128xf32>
    %41 = vector.extract_strided_slice %26 {offsets = [0, 384], sizes = [2, 128], strides = [1, 1]} : vector<2x512xf32> to vector<2x128xf32>
    %42 = arith.negf %41 : vector<2x128xf32>
    %43 = math.exp %42 : vector<2x128xf32>
    %cst_16 = arith.constant 1.000000e+00 : f32
    %44 = vector.broadcast %cst_16 : f32 to vector<2x128xf32>
    %45 = arith.addf %44, %43 : vector<2x128xf32>
    %46 = arith.divf %44, %45 : vector<2x128xf32>
    %47 = arith.mulf %38, %19 : vector<2x128xf32>
    %48 = arith.mulf %32, %40 : vector<2x128xf32>
    %49 = arith.addf %47, %48 : vector<2x128xf32>
    %50 = math.tanh %49 : vector<2x128xf32>
    %51 = arith.mulf %46, %50 : vector<2x128xf32>
    %52 = vector.broadcast %17 : i32 to vector<2x1xi32>
    %53 = arith.cmpi sgt, %9, %52 : vector<2x1xi32>
    %54 = vector.shape_cast %53 : vector<2x1xi1> to vector<2x1xi1>
    %55 = vector.broadcast %54 : vector<2x1xi1> to vector<2x128xi1>
    %56 = arith.select %55, %51, %18 : vector<2x128xi1>, vector<2x128xf32>
    %c0_17 = arith.constant 0 : index
    %c0_18 = arith.constant 0 : index
    %57 = vector.load %arg6[%c0_17, %c0_18] : memref<2x128xf32, #tpu.memory_space<vmem>>, vector<2x128xf32>
    tpu.vector_store %arg6[%c0_17, %c0_18], %56 {strides = array<i32>} : memref<2x128xf32, #tpu.memory_space<vmem>>, vector<2x128xf32>,
    %58 = vector.shape_cast %53 : vector<2x1xi1> to vector<2x1xi1>
    %59 = vector.broadcast %58 : vector<2x1xi1> to vector<2x128xi1>
    %60 = arith.select %59, %49, %19 : vector<2x128xi1>, vector<2x128xf32>
    %c0_19 = arith.constant 0 : index
    %c0_20 = arith.constant 0 : index
    %61 = vector.load %arg7[%c0_19, %c0_20] : memref<2x128xf32, #tpu.memory_space<vmem>>, vector<2x128xf32>
    tpu.vector_store %arg7[%c0_19, %c0_20], %60 {strides = array<i32>} : memref<2x128xf32, #tpu.memory_space<vmem>>, vector<2x128xf32>,
    %cst_21 = arith.constant 0.000000e+00 : f32
    %62 = vector.shape_cast %53 : vector<2x1xi1> to vector<2x1xi1>
    %63 = vector.broadcast %62 : vector<2x1xi1> to vector<2x128xi1>
    %64 = vector.broadcast %cst_21 : f32 to vector<2x128xf32>
    %65 = arith.select %63, %51, %64 : vector<2x128xi1>, vector<2x128xf32>
    %c0_22 = arith.constant 0 : index
    %66 = arith.index_cast %16 : i32 to index
    %c0_23 = arith.constant 0 : index
    %c0_24 = arith.constant 0 : index
    %67 = vector.load %arg5[%c0_22, %66, %c0_23, %c0_24] : memref<1x12x2x128xf32, #tpu.memory_space<vmem>>, vector<1x1x2x128xf32>
    %68 = vector.shape_cast %67 : vector<1x1x2x128xf32> to vector<2x128xf32>
    %69 = vector.shape_cast %65 : vector<2x128xf32> to vector<1x1x2x128xf32>
    tpu.vector_store %arg5[%c0_22, %66, %c0_23, %c0_24], %69 {strides = array<i32>} : memref<1x12x2x128xf32, #tpu.memory_space<vmem>>, vector<1x1x2x128xf32>,
    %c1_i32_25 = arith.constant 1 : i32
    %c1_i32_26 = arith.constant 1 : i32
    %70 = arith.subi %c1_i32_26, %arg0 : i32
    %71 = arith.muli %70, %c1_i32_25 : i32
    %c11_i32_27 = arith.constant 11 : i32
    %72 = arith.subi %c11_i32_27, %c1_i32_25 : i32
    %73 = arith.muli %arg0, %72 : i32
    %74 = arith.addi %71, %73 : i32
    %75 = arith.addi %8, %74 : i32
    %c0_28 = arith.constant 0 : index
    %c0_29 = arith.constant 0 : index
    %76 = vector.load %arg6[%c0_28, %c0_29] : memref<2x128xf32, #tpu.memory_space<vmem>>, vector<2x128xf32>
    %c0_30 = arith.constant 0 : index
    %c0_31 = arith.constant 0 : index
    %77 = vector.load %arg7[%c0_30, %c0_31] : memref<2x128xf32, #tpu.memory_space<vmem>>, vector<2x128xf32>
    %78 = arith.index_cast %74 : i32 to index
    %c0_32 = arith.constant 0 : index
    %c0_33 = arith.constant 0 : index
    %79 = vector.load %arg2[%78, %c0_32, %c0_33] : memref<12x2x512xbf16, #tpu.memory_space<vmem>>, vector<1x2x512xbf16>
    %80 = vector.shape_cast %79 : vector<1x2x512xbf16> to vector<2x512xbf16>
    %81 = arith.extf %80 : vector<2x512xbf16> to vector<2x512xf32>
    %82 = arith.truncf %76 : vector<2x128xf32> to vector<2x128xbf16>
    %cst_34 = arith.constant dense<0.000000e+00> : vector<2x512xf32>
    %83 = tpu.matmul %82, %11, %cst_34 {dimension_numbers = #tpu.dot_dimension_numbers<[1], [0], [0], [1], [0, 0, 1, 1], [], []>} : vector<2x128xbf16>, vector<128x512xbf16>, vector<2x512xf32> -> vector<2x512xf32>
    %84 = arith.addf %81, %83 : vector<2x512xf32>
    %85 = vector.extract_strided_slice %84 {offsets = [0, 0], sizes = [2, 128], strides = [1, 1]} : vector<2x512xf32> to vector<2x128xf32>
    %86 = arith.negf %85 : vector<2x128xf32>
    %87 = math.exp %86 : vector<2x128xf32>
    %cst_35 = arith.constant 1.000000e+00 : f32
    %88 = vector.broadcast %cst_35 : f32 to vector<2x128xf32>
    %89 = arith.addf %88, %87 : vector<2x128xf32>
    %90 = arith.divf %88, %89 : vector<2x128xf32>
    %91 = vector.extract_strided_slice %84 {offsets = [0, 128], sizes = [2, 128], strides = [1, 1]} : vector<2x512xf32> to vector<2x128xf32>
    %92 = arith.negf %91 : vector<2x128xf32>
    %93 = math.exp %92 : vector<2x128xf32>
    %cst_36 = arith.constant 1.000000e+00 : f32
    %94 = vector.broadcast %cst_36 : f32 to vector<2x128xf32>
    %95 = arith.addf %94, %93 : vector<2x128xf32>
    %96 = arith.divf %94, %95 : vector<2x128xf32>
    %97 = vector.extract_strided_slice %84 {offsets = [0, 256], sizes = [2, 128], strides = [1, 1]} : vector<2x512xf32> to vector<2x128xf32>
    %98 = math.tanh %97 : vector<2x128xf32>
    %99 = vector.extract_strided_slice %84 {offsets = [0, 384], sizes = [2, 128], strides = [1, 1]} : vector<2x512xf32> to vector<2x128xf32>
    %100 = arith.negf %99 : vector<2x128xf32>
    %101 = math.exp %100 : vector<2x128xf32>
    %cst_37 = arith.constant 1.000000e+00 : f32
    %102 = vector.broadcast %cst_37 : f32 to vector<2x128xf32>
    %103 = arith.addf %102, %101 : vector<2x128xf32>
    %104 = arith.divf %102, %103 : vector<2x128xf32>
    %105 = arith.mulf %96, %77 : vector<2x128xf32>
    %106 = arith.mulf %90, %98 : vector<2x128xf32>
    %107 = arith.addf %105, %106 : vector<2x128xf32>
    %108 = math.tanh %107 : vector<2x128xf32>
    %109 = arith.mulf %104, %108 : vector<2x128xf32>
    %110 = vector.broadcast %75 : i32 to vector<2x1xi32>
    %111 = arith.cmpi sgt, %9, %110 : vector<2x1xi32>
    %112 = vector.shape_cast %111 : vector<2x1xi1> to vector<2x1xi1>
    %113 = vector.broadcast %112 : vector<2x1xi1> to vector<2x128xi1>
    %114 = arith.select %113, %109, %76 : vector<2x128xi1>, vector<2x128xf32>
    %c0_38 = arith.constant 0 : index
    %c0_39 = arith.constant 0 : index
    %115 = vector.load %arg6[%c0_38, %c0_39] : memref<2x128xf32, #tpu.memory_space<vmem>>, vector<2x128xf32>
    tpu.vector_store %arg6[%c0_38, %c0_39], %114 {strides = array<i32>} : memref<2x128xf32, #tpu.memory_space<vmem>>, vector<2x128xf32>,
    %116 = vector.shape_cast %111 : vector<2x1xi1> to vector<2x1xi1>
    %117 = vector.broadcast %116 : vector<2x1xi1> to vector<2x128xi1>
    %118 = arith.select %117, %107, %77 : vector<2x128xi1>, vector<2x128xf32>
    %c0_40 = arith.constant 0 : index
    %c0_41 = arith.constant 0 : index
    %119 = vector.load %arg7[%c0_40, %c0_41] : memref<2x128xf32, #tpu.memory_space<vmem>>, vector<2x128xf32>
    tpu.vector_store %arg7[%c0_40, %c0_41], %118 {strides = array<i32>} : memref<2x128xf32, #tpu.memory_space<vmem>>, vector<2x128xf32>,
    %cst_42 = arith.constant 0.000000e+00 : f32
    %120 = vector.shape_cast %111 : vector<2x1xi1> to vector<2x1xi1>
    %121 = vector.broadcast %120 : vector<2x1xi1> to vector<2x128xi1>
    %122 = vector.broadcast %cst_42 : f32 to vector<2x128xf32>
    %123 = arith.select %121, %109, %122 : vector<2x128xi1>, vector<2x128xf32>
    %c0_43 = arith.constant 0 : index
    %124 = arith.index_cast %74 : i32 to index
    %c0_44 = arith.constant 0 : index
    %c0_45 = arith.constant 0 : index
    %125 = vector.load %arg5[%c0_43, %124, %c0_44, %c0_45] : memref<1x12x2x128xf32, #tpu.memory_space<vmem>>, vector<1x1x2x128xf32>
    %126 = vector.shape_cast %125 : vector<1x1x2x128xf32> to vector<2x128xf32>
    %127 = vector.shape_cast %123 : vector<2x128xf32> to vector<1x1x2x128xf32>
    tpu.vector_store %arg5[%c0_43, %124, %c0_44, %c0_45], %127 {strides = array<i32>} : memref<1x12x2x128xf32, #tpu.memory_space<vmem>>, vector<1x1x2x128xf32>,
    %c2_i32 = arith.constant 2 : i32
    %c1_i32_46 = arith.constant 1 : i32
    %128 = arith.subi %c1_i32_46, %arg0 : i32
    %129 = arith.muli %128, %c2_i32 : i32
    %c11_i32_47 = arith.constant 11 : i32
    %130 = arith.subi %c11_i32_47, %c2_i32 : i32
    %131 = arith.muli %arg0, %130 : i32
    %132 = arith.addi %129, %131 : i32
    %133 = arith.addi %8, %132 : i32
    %c0_48 = arith.constant 0 : index
    %c0_49 = arith.constant 0 : index
    %134 = vector.load %arg6[%c0_48, %c0_49] : memref<2x128xf32, #tpu.memory_space<vmem>>, vector<2x128xf32>
    %c0_50 = arith.constant 0 : index
    %c0_51 = arith.constant 0 : index
    %135 = vector.load %arg7[%c0_50, %c0_51] : memref<2x128xf32, #tpu.memory_space<vmem>>, vector<2x128xf32>
    %136 = arith.index_cast %132 : i32 to index
    %c0_52 = arith.constant 0 : index
    %c0_53 = arith.constant 0 : index
    %137 = vector.load %arg2[%136, %c0_52, %c0_53] : memref<12x2x512xbf16, #tpu.memory_space<vmem>>, vector<1x2x512xbf16>
    %138 = vector.shape_cast %137 : vector<1x2x512xbf16> to vector<2x512xbf16>
    %139 = arith.extf %138 : vector<2x512xbf16> to vector<2x512xf32>
    %140 = arith.truncf %134 : vector<2x128xf32> to vector<2x128xbf16>
    %cst_54 = arith.constant dense<0.000000e+00> : vector<2x512xf32>
    %141 = tpu.matmul %140, %11, %cst_54 {dimension_numbers = #tpu.dot_dimension_numbers<[1], [0], [0], [1], [0, 0, 1, 1], [], []>} : vector<2x128xbf16>, vector<128x512xbf16>, vector<2x512xf32> -> vector<2x512xf32>
    %142 = arith.addf %139, %141 : vector<2x512xf32>
    %143 = vector.extract_strided_slice %142 {offsets = [0, 0], sizes = [2, 128], strides = [1, 1]} : vector<2x512xf32> to vector<2x128xf32>
    %144 = arith.negf %143 : vector<2x128xf32>
    %145 = math.exp %144 : vector<2x128xf32>
    %cst_55 = arith.constant 1.000000e+00 : f32
    %146 = vector.broadcast %cst_55 : f32 to vector<2x128xf32>
    %147 = arith.addf %146, %145 : vector<2x128xf32>
    %148 = arith.divf %146, %147 : vector<2x128xf32>
    %149 = vector.extract_strided_slice %142 {offsets = [0, 128], sizes = [2, 128], strides = [1, 1]} : vector<2x512xf32> to vector<2x128xf32>
    %150 = arith.negf %149 : vector<2x128xf32>
    %151 = math.exp %150 : vector<2x128xf32>
    %cst_56 = arith.constant 1.000000e+00 : f32
    %152 = vector.broadcast %cst_56 : f32 to vector<2x128xf32>
    %153 = arith.addf %152, %151 : vector<2x128xf32>
    %154 = arith.divf %152, %153 : vector<2x128xf32>
    %155 = vector.extract_strided_slice %142 {offsets = [0, 256], sizes = [2, 128], strides = [1, 1]} : vector<2x512xf32> to vector<2x128xf32>
    %156 = math.tanh %155 : vector<2x128xf32>
    %157 = vector.extract_strided_slice %142 {offsets = [0, 384], sizes = [2, 128], strides = [1, 1]} : vector<2x512xf32> to vector<2x128xf32>
    %158 = arith.negf %157 : vector<2x128xf32>
    %159 = math.exp %158 : vector<2x128xf32>
    %cst_57 = arith.constant 1.000000e+00 : f32
    %160 = vector.broadcast %cst_57 : f32 to vector<2x128xf32>
    %161 = arith.addf %160, %159 : vector<2x128xf32>
    %162 = arith.divf %160, %161 : vector<2x128xf32>
    %163 = arith.mulf %154, %135 : vector<2x128xf32>
    %164 = arith.mulf %148, %156 : vector<2x128xf32>
    %165 = arith.addf %163, %164 : vector<2x128xf32>
    %166 = math.tanh %165 : vector<2x128xf32>
    %167 = arith.mulf %162, %166 : vector<2x128xf32>
    %168 = vector.broadcast %133 : i32 to vector<2x1xi32>
    %169 = arith.cmpi sgt, %9, %168 : vector<2x1xi32>
    %170 = vector.shape_cast %169 : vector<2x1xi1> to vector<2x1xi1>
    %171 = vector.broadcast %170 : vector<2x1xi1> to vector<2x128xi1>
    %172 = arith.select %171, %167, %134 : vector<2x128xi1>, vector<2x128xf32>
    %c0_58 = arith.constant 0 : index
    %c0_59 = arith.constant 0 : index
    %173 = vector.load %arg6[%c0_58, %c0_59] : memref<2x128xf32, #tpu.memory_space<vmem>>, vector<2x128xf32>
    tpu.vector_store %arg6[%c0_58, %c0_59], %172 {strides = array<i32>} : memref<2x128xf32, #tpu.memory_space<vmem>>, vector<2x128xf32>,
    %174 = vector.shape_cast %169 : vector<2x1xi1> to vector<2x1xi1>
    %175 = vector.broadcast %174 : vector<2x1xi1> to vector<2x128xi1>
    %176 = arith.select %175, %165, %135 : vector<2x128xi1>, vector<2x128xf32>
    %c0_60 = arith.constant 0 : index
    %c0_61 = arith.constant 0 : index
    %177 = vector.load %arg7[%c0_60, %c0_61] : memref<2x128xf32, #tpu.memory_space<vmem>>, vector<2x128xf32>
    tpu.vector_store %arg7[%c0_60, %c0_61], %176 {strides = array<i32>} : memref<2x128xf32, #tpu.memory_space<vmem>>, vector<2x128xf32>,
    %cst_62 = arith.constant 0.000000e+00 : f32
    %178 = vector.shape_cast %169 : vector<2x1xi1> to vector<2x1xi1>
    %179 = vector.broadcast %178 : vector<2x1xi1> to vector<2x128xi1>
    %180 = vector.broadcast %cst_62 : f32 to vector<2x128xf32>
    %181 = arith.select %179, %167, %180 : vector<2x128xi1>, vector<2x128xf32>
    %c0_63 = arith.constant 0 : index
    %182 = arith.index_cast %132 : i32 to index
    %c0_64 = arith.constant 0 : index
    %c0_65 = arith.constant 0 : index
    %183 = vector.load %arg5[%c0_63, %182, %c0_64, %c0_65] : memref<1x12x2x128xf32, #tpu.memory_space<vmem>>, vector<1x1x2x128xf32>
    %184 = vector.shape_cast %183 : vector<1x1x2x128xf32> to vector<2x128xf32>
    %185 = vector.shape_cast %181 : vector<2x128xf32> to vector<1x1x2x128xf32>
    tpu.vector_store %arg5[%c0_63, %182, %c0_64, %c0_65], %185 {strides = array<i32>} : memref<1x12x2x128xf32, #tpu.memory_space<vmem>>, vector<1x1x2x128xf32>,
    %c3_i32 = arith.constant 3 : i32
    %c1_i32_66 = arith.constant 1 : i32
    %186 = arith.subi %c1_i32_66, %arg0 : i32
    %187 = arith.muli %186, %c3_i32 : i32
    %c11_i32_67 = arith.constant 11 : i32
    %188 = arith.subi %c11_i32_67, %c3_i32 : i32
    %189 = arith.muli %arg0, %188 : i32
    %190 = arith.addi %187, %189 : i32
    %191 = arith.addi %8, %190 : i32
    %c0_68 = arith.constant 0 : index
    %c0_69 = arith.constant 0 : index
    %192 = vector.load %arg6[%c0_68, %c0_69] : memref<2x128xf32, #tpu.memory_space<vmem>>, vector<2x128xf32>
    %c0_70 = arith.constant 0 : index
    %c0_71 = arith.constant 0 : index
    %193 = vector.load %arg7[%c0_70, %c0_71] : memref<2x128xf32, #tpu.memory_space<vmem>>, vector<2x128xf32>
    %194 = arith.index_cast %190 : i32 to index
    %c0_72 = arith.constant 0 : index
    %c0_73 = arith.constant 0 : index
    %195 = vector.load %arg2[%194, %c0_72, %c0_73] : memref<12x2x512xbf16, #tpu.memory_space<vmem>>, vector<1x2x512xbf16>
    %196 = vector.shape_cast %195 : vector<1x2x512xbf16> to vector<2x512xbf16>
    %197 = arith.extf %196 : vector<2x512xbf16> to vector<2x512xf32>
    %198 = arith.truncf %192 : vector<2x128xf32> to vector<2x128xbf16>
    %cst_74 = arith.constant dense<0.000000e+00> : vector<2x512xf32>
    %199 = tpu.matmul %198, %11, %cst_74 {dimension_numbers = #tpu.dot_dimension_numbers<[1], [0], [0], [1], [0, 0, 1, 1], [], []>} : vector<2x128xbf16>, vector<128x512xbf16>, vector<2x512xf32> -> vector<2x512xf32>
    %200 = arith.addf %197, %199 : vector<2x512xf32>
    %201 = vector.extract_strided_slice %200 {offsets = [0, 0], sizes = [2, 128], strides = [1, 1]} : vector<2x512xf32> to vector<2x128xf32>
    %202 = arith.negf %201 : vector<2x128xf32>
    %203 = math.exp %202 : vector<2x128xf32>
    %cst_75 = arith.constant 1.000000e+00 : f32
    %204 = vector.broadcast %cst_75 : f32 to vector<2x128xf32>
    %205 = arith.addf %204, %203 : vector<2x128xf32>
    %206 = arith.divf %204, %205 : vector<2x128xf32>
    %207 = vector.extract_strided_slice %200 {offsets = [0, 128], sizes = [2, 128], strides = [1, 1]} : vector<2x512xf32> to vector<2x128xf32>
    %208 = arith.negf %207 : vector<2x128xf32>
    %209 = math.exp %208 : vector<2x128xf32>
    %cst_76 = arith.constant 1.000000e+00 : f32
    %210 = vector.broadcast %cst_76 : f32 to vector<2x128xf32>
    %211 = arith.addf %210, %209 : vector<2x128xf32>
    %212 = arith.divf %210, %211 : vector<2x128xf32>
    %213 = vector.extract_strided_slice %200 {offsets = [0, 256], sizes = [2, 128], strides = [1, 1]} : vector<2x512xf32> to vector<2x128xf32>
    %214 = math.tanh %213 : vector<2x128xf32>
    %215 = vector.extract_strided_slice %200 {offsets = [0, 384], sizes = [2, 128], strides = [1, 1]} : vector<2x512xf32> to vector<2x128xf32>
    %216 = arith.negf %215 : vector<2x128xf32>
    %217 = math.exp %216 : vector<2x128xf32>
    %cst_77 = arith.constant 1.000000e+00 : f32
    %218 = vector.broadcast %cst_77 : f32 to vector<2x128xf32>
    %219 = arith.addf %218, %217 : vector<2x128xf32>
    %220 = arith.divf %218, %219 : vector<2x128xf32>
    %221 = arith.mulf %212, %193 : vector<2x128xf32>
    %222 = arith.mulf %206, %214 : vector<2x128xf32>
    %223 = arith.addf %221, %222 : vector<2x128xf32>
    %224 = math.tanh %223 : vector<2x128xf32>
    %225 = arith.mulf %220, %224 : vector<2x128xf32>
    %226 = vector.broadcast %191 : i32 to vector<2x1xi32>
    %227 = arith.cmpi sgt, %9, %226 : vector<2x1xi32>
    %228 = vector.shape_cast %227 : vector<2x1xi1> to vector<2x1xi1>
    %229 = vector.broadcast %228 : vector<2x1xi1> to vector<2x128xi1>
    %230 = arith.select %229, %225, %192 : vector<2x128xi1>, vector<2x128xf32>
    %c0_78 = arith.constant 0 : index
    %c0_79 = arith.constant 0 : index
    %231 = vector.load %arg6[%c0_78, %c0_79] : memref<2x128xf32, #tpu.memory_space<vmem>>, vector<2x128xf32>
    tpu.vector_store %arg6[%c0_78, %c0_79], %230 {strides = array<i32>} : memref<2x128xf32, #tpu.memory_space<vmem>>, vector<2x128xf32>,
    %232 = vector.shape_cast %227 : vector<2x1xi1> to vector<2x1xi1>
    %233 = vector.broadcast %232 : vector<2x1xi1> to vector<2x128xi1>
    %234 = arith.select %233, %223, %193 : vector<2x128xi1>, vector<2x128xf32>
    %c0_80 = arith.constant 0 : index
    %c0_81 = arith.constant 0 : index
    %235 = vector.load %arg7[%c0_80, %c0_81] : memref<2x128xf32, #tpu.memory_space<vmem>>, vector<2x128xf32>
    tpu.vector_store %arg7[%c0_80, %c0_81], %234 {strides = array<i32>} : memref<2x128xf32, #tpu.memory_space<vmem>>, vector<2x128xf32>,
    %cst_82 = arith.constant 0.000000e+00 : f32
    %236 = vector.shape_cast %227 : vector<2x1xi1> to vector<2x1xi1>
    %237 = vector.broadcast %236 : vector<2x1xi1> to vector<2x128xi1>
    %238 = vector.broadcast %cst_82 : f32 to vector<2x128xf32>
    %239 = arith.select %237, %225, %238 : vector<2x128xi1>, vector<2x128xf32>
    %c0_83 = arith.constant 0 : index
    %240 = arith.index_cast %190 : i32 to index
    %c0_84 = arith.constant 0 : index
    %c0_85 = arith.constant 0 : index
    %241 = vector.load %arg5[%c0_83, %240, %c0_84, %c0_85] : memref<1x12x2x128xf32, #tpu.memory_space<vmem>>, vector<1x1x2x128xf32>
    %242 = vector.shape_cast %241 : vector<1x1x2x128xf32> to vector<2x128xf32>
    %243 = vector.shape_cast %239 : vector<2x128xf32> to vector<1x1x2x128xf32>
    tpu.vector_store %arg5[%c0_83, %240, %c0_84, %c0_85], %243 {strides = array<i32>} : memref<1x12x2x128xf32, #tpu.memory_space<vmem>>, vector<1x1x2x128xf32>,
    %c4_i32 = arith.constant 4 : i32
    %c1_i32_86 = arith.constant 1 : i32
    %244 = arith.subi %c1_i32_86, %arg0 : i32
    %245 = arith.muli %244, %c4_i32 : i32
    %c11_i32_87 = arith.constant 11 : i32
    %246 = arith.subi %c11_i32_87, %c4_i32 : i32
    %247 = arith.muli %arg0, %246 : i32
    %248 = arith.addi %245, %247 : i32
    %249 = arith.addi %8, %248 : i32
    %c0_88 = arith.constant 0 : index
    %c0_89 = arith.constant 0 : index
    %250 = vector.load %arg6[%c0_88, %c0_89] : memref<2x128xf32, #tpu.memory_space<vmem>>, vector<2x128xf32>
    %c0_90 = arith.constant 0 : index
    %c0_91 = arith.constant 0 : index
    %251 = vector.load %arg7[%c0_90, %c0_91] : memref<2x128xf32, #tpu.memory_space<vmem>>, vector<2x128xf32>
    %252 = arith.index_cast %248 : i32 to index
    %c0_92 = arith.constant 0 : index
    %c0_93 = arith.constant 0 : index
    %253 = vector.load %arg2[%252, %c0_92, %c0_93] : memref<12x2x512xbf16, #tpu.memory_space<vmem>>, vector<1x2x512xbf16>
    %254 = vector.shape_cast %253 : vector<1x2x512xbf16> to vector<2x512xbf16>
    %255 = arith.extf %254 : vector<2x512xbf16> to vector<2x512xf32>
    %256 = arith.truncf %250 : vector<2x128xf32> to vector<2x128xbf16>
    %cst_94 = arith.constant dense<0.000000e+00> : vector<2x512xf32>
    %257 = tpu.matmul %256, %11, %cst_94 {dimension_numbers = #tpu.dot_dimension_numbers<[1], [0], [0], [1], [0, 0, 1, 1], [], []>} : vector<2x128xbf16>, vector<128x512xbf16>, vector<2x512xf32> -> vector<2x512xf32>
    %258 = arith.addf %255, %257 : vector<2x512xf32>
    %259 = vector.extract_strided_slice %258 {offsets = [0, 0], sizes = [2, 128], strides = [1, 1]} : vector<2x512xf32> to vector<2x128xf32>
    %260 = arith.negf %259 : vector<2x128xf32>
    %261 = math.exp %260 : vector<2x128xf32>
    %cst_95 = arith.constant 1.000000e+00 : f32
    %262 = vector.broadcast %cst_95 : f32 to vector<2x128xf32>
    %263 = arith.addf %262, %261 : vector<2x128xf32>
    %264 = arith.divf %262, %263 : vector<2x128xf32>
    %265 = vector.extract_strided_slice %258 {offsets = [0, 128], sizes = [2, 128], strides = [1, 1]} : vector<2x512xf32> to vector<2x128xf32>
    %266 = arith.negf %265 : vector<2x128xf32>
    %267 = math.exp %266 : vector<2x128xf32>
    %cst_96 = arith.constant 1.000000e+00 : f32
    %268 = vector.broadcast %cst_96 : f32 to vector<2x128xf32>
    %269 = arith.addf %268, %267 : vector<2x128xf32>
    %270 = arith.divf %268, %269 : vector<2x128xf32>
    %271 = vector.extract_strided_slice %258 {offsets = [0, 256], sizes = [2, 128], strides = [1, 1]} : vector<2x512xf32> to vector<2x128xf32>
    %272 = math.tanh %271 : vector<2x128xf32>
    %273 = vector.extract_strided_slice %258 {offsets = [0, 384], sizes = [2, 128], strides = [1, 1]} : vector<2x512xf32> to vector<2x128xf32>
    %274 = arith.negf %273 : vector<2x128xf32>
    %275 = math.exp %274 : vector<2x128xf32>
    %cst_97 = arith.constant 1.000000e+00 : f32
    %276 = vector.broadcast %cst_97 : f32 to vector<2x128xf32>
    %277 = arith.addf %276, %275 : vector<2x128xf32>
    %278 = arith.divf %276, %277 : vector<2x128xf32>
    %279 = arith.mulf %270, %251 : vector<2x128xf32>
    %280 = arith.mulf %264, %272 : vector<2x128xf32>
    %281 = arith.addf %279, %280 : vector<2x128xf32>
    %282 = math.tanh %281 : vector<2x128xf32>
    %283 = arith.mulf %278, %282 : vector<2x128xf32>
    %284 = vector.broadcast %249 : i32 to vector<2x1xi32>
    %285 = arith.cmpi sgt, %9, %284 : vector<2x1xi32>
    %286 = vector.shape_cast %285 : vector<2x1xi1> to vector<2x1xi1>
    %287 = vector.broadcast %286 : vector<2x1xi1> to vector<2x128xi1>
    %288 = arith.select %287, %283, %250 : vector<2x128xi1>, vector<2x128xf32>
    %c0_98 = arith.constant 0 : index
    %c0_99 = arith.constant 0 : index
    %289 = vector.load %arg6[%c0_98, %c0_99] : memref<2x128xf32, #tpu.memory_space<vmem>>, vector<2x128xf32>
    tpu.vector_store %arg6[%c0_98, %c0_99], %288 {strides = array<i32>} : memref<2x128xf32, #tpu.memory_space<vmem>>, vector<2x128xf32>,
    %290 = vector.shape_cast %285 : vector<2x1xi1> to vector<2x1xi1>
    %291 = vector.broadcast %290 : vector<2x1xi1> to vector<2x128xi1>
    %292 = arith.select %291, %281, %251 : vector<2x128xi1>, vector<2x128xf32>
    %c0_100 = arith.constant 0 : index
    %c0_101 = arith.constant 0 : index
    %293 = vector.load %arg7[%c0_100, %c0_101] : memref<2x128xf32, #tpu.memory_space<vmem>>, vector<2x128xf32>
    tpu.vector_store %arg7[%c0_100, %c0_101], %292 {strides = array<i32>} : memref<2x128xf32, #tpu.memory_space<vmem>>, vector<2x128xf32>,
    %cst_102 = arith.constant 0.000000e+00 : f32
    %294 = vector.shape_cast %285 : vector<2x1xi1> to vector<2x1xi1>
    %295 = vector.broadcast %294 : vector<2x1xi1> to vector<2x128xi1>
    %296 = vector.broadcast %cst_102 : f32 to vector<2x128xf32>
    %297 = arith.select %295, %283, %296 : vector<2x128xi1>, vector<2x128xf32>
    %c0_103 = arith.constant 0 : index
    %298 = arith.index_cast %248 : i32 to index
    %c0_104 = arith.constant 0 : index
    %c0_105 = arith.constant 0 : index
    %299 = vector.load %arg5[%c0_103, %298, %c0_104, %c0_105] : memref<1x12x2x128xf32, #tpu.memory_space<vmem>>, vector<1x1x2x128xf32>
    %300 = vector.shape_cast %299 : vector<1x1x2x128xf32> to vector<2x128xf32>
    %301 = vector.shape_cast %297 : vector<2x128xf32> to vector<1x1x2x128xf32>
    tpu.vector_store %arg5[%c0_103, %298, %c0_104, %c0_105], %301 {strides = array<i32>} : memref<1x12x2x128xf32, #tpu.memory_space<vmem>>, vector<1x1x2x128xf32>,
    %c5_i32 = arith.constant 5 : i32
    %c1_i32_106 = arith.constant 1 : i32
    %302 = arith.subi %c1_i32_106, %arg0 : i32
    %303 = arith.muli %302, %c5_i32 : i32
    %c11_i32_107 = arith.constant 11 : i32
    %304 = arith.subi %c11_i32_107, %c5_i32 : i32
    %305 = arith.muli %arg0, %304 : i32
    %306 = arith.addi %303, %305 : i32
    %307 = arith.addi %8, %306 : i32
    %c0_108 = arith.constant 0 : index
    %c0_109 = arith.constant 0 : index
    %308 = vector.load %arg6[%c0_108, %c0_109] : memref<2x128xf32, #tpu.memory_space<vmem>>, vector<2x128xf32>
    %c0_110 = arith.constant 0 : index
    %c0_111 = arith.constant 0 : index
    %309 = vector.load %arg7[%c0_110, %c0_111] : memref<2x128xf32, #tpu.memory_space<vmem>>, vector<2x128xf32>
    %310 = arith.index_cast %306 : i32 to index
    %c0_112 = arith.constant 0 : index
    %c0_113 = arith.constant 0 : index
    %311 = vector.load %arg2[%310, %c0_112, %c0_113] : memref<12x2x512xbf16, #tpu.memory_space<vmem>>, vector<1x2x512xbf16>
    %312 = vector.shape_cast %311 : vector<1x2x512xbf16> to vector<2x512xbf16>
    %313 = arith.extf %312 : vector<2x512xbf16> to vector<2x512xf32>
    %314 = arith.truncf %308 : vector<2x128xf32> to vector<2x128xbf16>
    %cst_114 = arith.constant dense<0.000000e+00> : vector<2x512xf32>
    %315 = tpu.matmul %314, %11, %cst_114 {dimension_numbers = #tpu.dot_dimension_numbers<[1], [0], [0], [1], [0, 0, 1, 1], [], []>} : vector<2x128xbf16>, vector<128x512xbf16>, vector<2x512xf32> -> vector<2x512xf32>
    %316 = arith.addf %313, %315 : vector<2x512xf32>
    %317 = vector.extract_strided_slice %316 {offsets = [0, 0], sizes = [2, 128], strides = [1, 1]} : vector<2x512xf32> to vector<2x128xf32>
    %318 = arith.negf %317 : vector<2x128xf32>
    %319 = math.exp %318 : vector<2x128xf32>
    %cst_115 = arith.constant 1.000000e+00 : f32
    %320 = vector.broadcast %cst_115 : f32 to vector<2x128xf32>
    %321 = arith.addf %320, %319 : vector<2x128xf32>
    %322 = arith.divf %320, %321 : vector<2x128xf32>
    %323 = vector.extract_strided_slice %316 {offsets = [0, 128], sizes = [2, 128], strides = [1, 1]} : vector<2x512xf32> to vector<2x128xf32>
    %324 = arith.negf %323 : vector<2x128xf32>
    %325 = math.exp %324 : vector<2x128xf32>
    %cst_116 = arith.constant 1.000000e+00 : f32
    %326 = vector.broadcast %cst_116 : f32 to vector<2x128xf32>
    %327 = arith.addf %326, %325 : vector<2x128xf32>
    %328 = arith.divf %326, %327 : vector<2x128xf32>
    %329 = vector.extract_strided_slice %316 {offsets = [0, 256], sizes = [2, 128], strides = [1, 1]} : vector<2x512xf32> to vector<2x128xf32>
    %330 = math.tanh %329 : vector<2x128xf32>
    %331 = vector.extract_strided_slice %316 {offsets = [0, 384], sizes = [2, 128], strides = [1, 1]} : vector<2x512xf32> to vector<2x128xf32>
    %332 = arith.negf %331 : vector<2x128xf32>
    %333 = math.exp %332 : vector<2x128xf32>
    %cst_117 = arith.constant 1.000000e+00 : f32
    %334 = vector.broadcast %cst_117 : f32 to vector<2x128xf32>
    %335 = arith.addf %334, %333 : vector<2x128xf32>
    %336 = arith.divf %334, %335 : vector<2x128xf32>
    %337 = arith.mulf %328, %309 : vector<2x128xf32>
    %338 = arith.mulf %322, %330 : vector<2x128xf32>
    %339 = arith.addf %337, %338 : vector<2x128xf32>
    %340 = math.tanh %339 : vector<2x128xf32>
    %341 = arith.mulf %336, %340 : vector<2x128xf32>
    %342 = vector.broadcast %307 : i32 to vector<2x1xi32>
    %343 = arith.cmpi sgt, %9, %342 : vector<2x1xi32>
    %344 = vector.shape_cast %343 : vector<2x1xi1> to vector<2x1xi1>
    %345 = vector.broadcast %344 : vector<2x1xi1> to vector<2x128xi1>
    %346 = arith.select %345, %341, %308 : vector<2x128xi1>, vector<2x128xf32>
    %c0_118 = arith.constant 0 : index
    %c0_119 = arith.constant 0 : index
    %347 = vector.load %arg6[%c0_118, %c0_119] : memref<2x128xf32, #tpu.memory_space<vmem>>, vector<2x128xf32>
    tpu.vector_store %arg6[%c0_118, %c0_119], %346 {strides = array<i32>} : memref<2x128xf32, #tpu.memory_space<vmem>>, vector<2x128xf32>,
    %348 = vector.shape_cast %343 : vector<2x1xi1> to vector<2x1xi1>
    %349 = vector.broadcast %348 : vector<2x1xi1> to vector<2x128xi1>
    %350 = arith.select %349, %339, %309 : vector<2x128xi1>, vector<2x128xf32>
    %c0_120 = arith.constant 0 : index
    %c0_121 = arith.constant 0 : index
    %351 = vector.load %arg7[%c0_120, %c0_121] : memref<2x128xf32, #tpu.memory_space<vmem>>, vector<2x128xf32>
    tpu.vector_store %arg7[%c0_120, %c0_121], %350 {strides = array<i32>} : memref<2x128xf32, #tpu.memory_space<vmem>>, vector<2x128xf32>,
    %cst_122 = arith.constant 0.000000e+00 : f32
    %352 = vector.shape_cast %343 : vector<2x1xi1> to vector<2x1xi1>
    %353 = vector.broadcast %352 : vector<2x1xi1> to vector<2x128xi1>
    %354 = vector.broadcast %cst_122 : f32 to vector<2x128xf32>
    %355 = arith.select %353, %341, %354 : vector<2x128xi1>, vector<2x128xf32>
    %c0_123 = arith.constant 0 : index
    %356 = arith.index_cast %306 : i32 to index
    %c0_124 = arith.constant 0 : index
    %c0_125 = arith.constant 0 : index
    %357 = vector.load %arg5[%c0_123, %356, %c0_124, %c0_125] : memref<1x12x2x128xf32, #tpu.memory_space<vmem>>, vector<1x1x2x128xf32>
    %358 = vector.shape_cast %357 : vector<1x1x2x128xf32> to vector<2x128xf32>
    %359 = vector.shape_cast %355 : vector<2x128xf32> to vector<1x1x2x128xf32>
    tpu.vector_store %arg5[%c0_123, %356, %c0_124, %c0_125], %359 {strides = array<i32>} : memref<1x12x2x128xf32, #tpu.memory_space<vmem>>, vector<1x1x2x128xf32>,
    %c6_i32 = arith.constant 6 : i32
    %c1_i32_126 = arith.constant 1 : i32
    %360 = arith.subi %c1_i32_126, %arg0 : i32
    %361 = arith.muli %360, %c6_i32 : i32
    %c11_i32_127 = arith.constant 11 : i32
    %362 = arith.subi %c11_i32_127, %c6_i32 : i32
    %363 = arith.muli %arg0, %362 : i32
    %364 = arith.addi %361, %363 : i32
    %365 = arith.addi %8, %364 : i32
    %c0_128 = arith.constant 0 : index
    %c0_129 = arith.constant 0 : index
    %366 = vector.load %arg6[%c0_128, %c0_129] : memref<2x128xf32, #tpu.memory_space<vmem>>, vector<2x128xf32>
    %c0_130 = arith.constant 0 : index
    %c0_131 = arith.constant 0 : index
    %367 = vector.load %arg7[%c0_130, %c0_131] : memref<2x128xf32, #tpu.memory_space<vmem>>, vector<2x128xf32>
    %368 = arith.index_cast %364 : i32 to index
    %c0_132 = arith.constant 0 : index
    %c0_133 = arith.constant 0 : index
    %369 = vector.load %arg2[%368, %c0_132, %c0_133] : memref<12x2x512xbf16, #tpu.memory_space<vmem>>, vector<1x2x512xbf16>
    %370 = vector.shape_cast %369 : vector<1x2x512xbf16> to vector<2x512xbf16>
    %371 = arith.extf %370 : vector<2x512xbf16> to vector<2x512xf32>
    %372 = arith.truncf %366 : vector<2x128xf32> to vector<2x128xbf16>
    %cst_134 = arith.constant dense<0.000000e+00> : vector<2x512xf32>
    %373 = tpu.matmul %372, %11, %cst_134 {dimension_numbers = #tpu.dot_dimension_numbers<[1], [0], [0], [1], [0, 0, 1, 1], [], []>} : vector<2x128xbf16>, vector<128x512xbf16>, vector<2x512xf32> -> vector<2x512xf32>
    %374 = arith.addf %371, %373 : vector<2x512xf32>
    %375 = vector.extract_strided_slice %374 {offsets = [0, 0], sizes = [2, 128], strides = [1, 1]} : vector<2x512xf32> to vector<2x128xf32>
    %376 = arith.negf %375 : vector<2x128xf32>
    %377 = math.exp %376 : vector<2x128xf32>
    %cst_135 = arith.constant 1.000000e+00 : f32
    %378 = vector.broadcast %cst_135 : f32 to vector<2x128xf32>
    %379 = arith.addf %378, %377 : vector<2x128xf32>
    %380 = arith.divf %378, %379 : vector<2x128xf32>
    %381 = vector.extract_strided_slice %374 {offsets = [0, 128], sizes = [2, 128], strides = [1, 1]} : vector<2x512xf32> to vector<2x128xf32>
    %382 = arith.negf %381 : vector<2x128xf32>
    %383 = math.exp %382 : vector<2x128xf32>
    %cst_136 = arith.constant 1.000000e+00 : f32
    %384 = vector.broadcast %cst_136 : f32 to vector<2x128xf32>
    %385 = arith.addf %384, %383 : vector<2x128xf32>
    %386 = arith.divf %384, %385 : vector<2x128xf32>
    %387 = vector.extract_strided_slice %374 {offsets = [0, 256], sizes = [2, 128], strides = [1, 1]} : vector<2x512xf32> to vector<2x128xf32>
    %388 = math.tanh %387 : vector<2x128xf32>
    %389 = vector.extract_strided_slice %374 {offsets = [0, 384], sizes = [2, 128], strides = [1, 1]} : vector<2x512xf32> to vector<2x128xf32>
    %390 = arith.negf %389 : vector<2x128xf32>
    %391 = math.exp %390 : vector<2x128xf32>
    %cst_137 = arith.constant 1.000000e+00 : f32
    %392 = vector.broadcast %cst_137 : f32 to vector<2x128xf32>
    %393 = arith.addf %392, %391 : vector<2x128xf32>
    %394 = arith.divf %392, %393 : vector<2x128xf32>
    %395 = arith.mulf %386, %367 : vector<2x128xf32>
    %396 = arith.mulf %380, %388 : vector<2x128xf32>
    %397 = arith.addf %395, %396 : vector<2x128xf32>
    %398 = math.tanh %397 : vector<2x128xf32>
    %399 = arith.mulf %394, %398 : vector<2x128xf32>
    %400 = vector.broadcast %365 : i32 to vector<2x1xi32>
    %401 = arith.cmpi sgt, %9, %400 : vector<2x1xi32>
    %402 = vector.shape_cast %401 : vector<2x1xi1> to vector<2x1xi1>
    %403 = vector.broadcast %402 : vector<2x1xi1> to vector<2x128xi1>
    %404 = arith.select %403, %399, %366 : vector<2x128xi1>, vector<2x128xf32>
    %c0_138 = arith.constant 0 : index
    %c0_139 = arith.constant 0 : index
    %405 = vector.load %arg6[%c0_138, %c0_139] : memref<2x128xf32, #tpu.memory_space<vmem>>, vector<2x128xf32>
    tpu.vector_store %arg6[%c0_138, %c0_139], %404 {strides = array<i32>} : memref<2x128xf32, #tpu.memory_space<vmem>>, vector<2x128xf32>,
    %406 = vector.shape_cast %401 : vector<2x1xi1> to vector<2x1xi1>
    %407 = vector.broadcast %406 : vector<2x1xi1> to vector<2x128xi1>
    %408 = arith.select %407, %397, %367 : vector<2x128xi1>, vector<2x128xf32>
    %c0_140 = arith.constant 0 : index
    %c0_141 = arith.constant 0 : index
    %409 = vector.load %arg7[%c0_140, %c0_141] : memref<2x128xf32, #tpu.memory_space<vmem>>, vector<2x128xf32>
    tpu.vector_store %arg7[%c0_140, %c0_141], %408 {strides = array<i32>} : memref<2x128xf32, #tpu.memory_space<vmem>>, vector<2x128xf32>,
    %cst_142 = arith.constant 0.000000e+00 : f32
    %410 = vector.shape_cast %401 : vector<2x1xi1> to vector<2x1xi1>
    %411 = vector.broadcast %410 : vector<2x1xi1> to vector<2x128xi1>
    %412 = vector.broadcast %cst_142 : f32 to vector<2x128xf32>
    %413 = arith.select %411, %399, %412 : vector<2x128xi1>, vector<2x128xf32>
    %c0_143 = arith.constant 0 : index
    %414 = arith.index_cast %364 : i32 to index
    %c0_144 = arith.constant 0 : index
    %c0_145 = arith.constant 0 : index
    %415 = vector.load %arg5[%c0_143, %414, %c0_144, %c0_145] : memref<1x12x2x128xf32, #tpu.memory_space<vmem>>, vector<1x1x2x128xf32>
    %416 = vector.shape_cast %415 : vector<1x1x2x128xf32> to vector<2x128xf32>
    %417 = vector.shape_cast %413 : vector<2x128xf32> to vector<1x1x2x128xf32>
    tpu.vector_store %arg5[%c0_143, %414, %c0_144, %c0_145], %417 {strides = array<i32>} : memref<1x12x2x128xf32, #tpu.memory_space<vmem>>, vector<1x1x2x128xf32>,
    %c7_i32 = arith.constant 7 : i32
    %c1_i32_146 = arith.constant 1 : i32
    %418 = arith.subi %c1_i32_146, %arg0 : i32
    %419 = arith.muli %418, %c7_i32 : i32
    %c11_i32_147 = arith.constant 11 : i32
    %420 = arith.subi %c11_i32_147, %c7_i32 : i32
    %421 = arith.muli %arg0, %420 : i32
    %422 = arith.addi %419, %421 : i32
    %423 = arith.addi %8, %422 : i32
    %c0_148 = arith.constant 0 : index
    %c0_149 = arith.constant 0 : index
    %424 = vector.load %arg6[%c0_148, %c0_149] : memref<2x128xf32, #tpu.memory_space<vmem>>, vector<2x128xf32>
    %c0_150 = arith.constant 0 : index
    %c0_151 = arith.constant 0 : index
    %425 = vector.load %arg7[%c0_150, %c0_151] : memref<2x128xf32, #tpu.memory_space<vmem>>, vector<2x128xf32>
    %426 = arith.index_cast %422 : i32 to index
    %c0_152 = arith.constant 0 : index
    %c0_153 = arith.constant 0 : index
    %427 = vector.load %arg2[%426, %c0_152, %c0_153] : memref<12x2x512xbf16, #tpu.memory_space<vmem>>, vector<1x2x512xbf16>
    %428 = vector.shape_cast %427 : vector<1x2x512xbf16> to vector<2x512xbf16>
    %429 = arith.extf %428 : vector<2x512xbf16> to vector<2x512xf32>
    %430 = arith.truncf %424 : vector<2x128xf32> to vector<2x128xbf16>
    %cst_154 = arith.constant dense<0.000000e+00> : vector<2x512xf32>
    %431 = tpu.matmul %430, %11, %cst_154 {dimension_numbers = #tpu.dot_dimension_numbers<[1], [0], [0], [1], [0, 0, 1, 1], [], []>} : vector<2x128xbf16>, vector<128x512xbf16>, vector<2x512xf32> -> vector<2x512xf32>
    %432 = arith.addf %429, %431 : vector<2x512xf32>
    %433 = vector.extract_strided_slice %432 {offsets = [0, 0], sizes = [2, 128], strides = [1, 1]} : vector<2x512xf32> to vector<2x128xf32>
    %434 = arith.negf %433 : vector<2x128xf32>
    %435 = math.exp %434 : vector<2x128xf32>
    %cst_155 = arith.constant 1.000000e+00 : f32
    %436 = vector.broadcast %cst_155 : f32 to vector<2x128xf32>
    %437 = arith.addf %436, %435 : vector<2x128xf32>
    %438 = arith.divf %436, %437 : vector<2x128xf32>
    %439 = vector.extract_strided_slice %432 {offsets = [0, 128], sizes = [2, 128], strides = [1, 1]} : vector<2x512xf32> to vector<2x128xf32>
    %440 = arith.negf %439 : vector<2x128xf32>
    %441 = math.exp %440 : vector<2x128xf32>
    %cst_156 = arith.constant 1.000000e+00 : f32
    %442 = vector.broadcast %cst_156 : f32 to vector<2x128xf32>
    %443 = arith.addf %442, %441 : vector<2x128xf32>
    %444 = arith.divf %442, %443 : vector<2x128xf32>
    %445 = vector.extract_strided_slice %432 {offsets = [0, 256], sizes = [2, 128], strides = [1, 1]} : vector<2x512xf32> to vector<2x128xf32>
    %446 = math.tanh %445 : vector<2x128xf32>
    %447 = vector.extract_strided_slice %432 {offsets = [0, 384], sizes = [2, 128], strides = [1, 1]} : vector<2x512xf32> to vector<2x128xf32>
    %448 = arith.negf %447 : vector<2x128xf32>
    %449 = math.exp %448 : vector<2x128xf32>
    %cst_157 = arith.constant 1.000000e+00 : f32
    %450 = vector.broadcast %cst_157 : f32 to vector<2x128xf32>
    %451 = arith.addf %450, %449 : vector<2x128xf32>
    %452 = arith.divf %450, %451 : vector<2x128xf32>
    %453 = arith.mulf %444, %425 : vector<2x128xf32>
    %454 = arith.mulf %438, %446 : vector<2x128xf32>
    %455 = arith.addf %453, %454 : vector<2x128xf32>
    %456 = math.tanh %455 : vector<2x128xf32>
    %457 = arith.mulf %452, %456 : vector<2x128xf32>
    %458 = vector.broadcast %423 : i32 to vector<2x1xi32>
    %459 = arith.cmpi sgt, %9, %458 : vector<2x1xi32>
    %460 = vector.shape_cast %459 : vector<2x1xi1> to vector<2x1xi1>
    %461 = vector.broadcast %460 : vector<2x1xi1> to vector<2x128xi1>
    %462 = arith.select %461, %457, %424 : vector<2x128xi1>, vector<2x128xf32>
    %c0_158 = arith.constant 0 : index
    %c0_159 = arith.constant 0 : index
    %463 = vector.load %arg6[%c0_158, %c0_159] : memref<2x128xf32, #tpu.memory_space<vmem>>, vector<2x128xf32>
    tpu.vector_store %arg6[%c0_158, %c0_159], %462 {strides = array<i32>} : memref<2x128xf32, #tpu.memory_space<vmem>>, vector<2x128xf32>,
    %464 = vector.shape_cast %459 : vector<2x1xi1> to vector<2x1xi1>
    %465 = vector.broadcast %464 : vector<2x1xi1> to vector<2x128xi1>
    %466 = arith.select %465, %455, %425 : vector<2x128xi1>, vector<2x128xf32>
    %c0_160 = arith.constant 0 : index
    %c0_161 = arith.constant 0 : index
    %467 = vector.load %arg7[%c0_160, %c0_161] : memref<2x128xf32, #tpu.memory_space<vmem>>, vector<2x128xf32>
    tpu.vector_store %arg7[%c0_160, %c0_161], %466 {strides = array<i32>} : memref<2x128xf32, #tpu.memory_space<vmem>>, vector<2x128xf32>,
    %cst_162 = arith.constant 0.000000e+00 : f32
    %468 = vector.shape_cast %459 : vector<2x1xi1> to vector<2x1xi1>
    %469 = vector.broadcast %468 : vector<2x1xi1> to vector<2x128xi1>
    %470 = vector.broadcast %cst_162 : f32 to vector<2x128xf32>
    %471 = arith.select %469, %457, %470 : vector<2x128xi1>, vector<2x128xf32>
    %c0_163 = arith.constant 0 : index
    %472 = arith.index_cast %422 : i32 to index
    %c0_164 = arith.constant 0 : index
    %c0_165 = arith.constant 0 : index
    %473 = vector.load %arg5[%c0_163, %472, %c0_164, %c0_165] : memref<1x12x2x128xf32, #tpu.memory_space<vmem>>, vector<1x1x2x128xf32>
    %474 = vector.shape_cast %473 : vector<1x1x2x128xf32> to vector<2x128xf32>
    %475 = vector.shape_cast %471 : vector<2x128xf32> to vector<1x1x2x128xf32>
    tpu.vector_store %arg5[%c0_163, %472, %c0_164, %c0_165], %475 {strides = array<i32>} : memref<1x12x2x128xf32, #tpu.memory_space<vmem>>, vector<1x1x2x128xf32>,
    %c8_i32 = arith.constant 8 : i32
    %c1_i32_166 = arith.constant 1 : i32
    %476 = arith.subi %c1_i32_166, %arg0 : i32
    %477 = arith.muli %476, %c8_i32 : i32
    %c11_i32_167 = arith.constant 11 : i32
    %478 = arith.subi %c11_i32_167, %c8_i32 : i32
    %479 = arith.muli %arg0, %478 : i32
    %480 = arith.addi %477, %479 : i32
    %481 = arith.addi %8, %480 : i32
    %c0_168 = arith.constant 0 : index
    %c0_169 = arith.constant 0 : index
    %482 = vector.load %arg6[%c0_168, %c0_169] : memref<2x128xf32, #tpu.memory_space<vmem>>, vector<2x128xf32>
    %c0_170 = arith.constant 0 : index
    %c0_171 = arith.constant 0 : index
    %483 = vector.load %arg7[%c0_170, %c0_171] : memref<2x128xf32, #tpu.memory_space<vmem>>, vector<2x128xf32>
    %484 = arith.index_cast %480 : i32 to index
    %c0_172 = arith.constant 0 : index
    %c0_173 = arith.constant 0 : index
    %485 = vector.load %arg2[%484, %c0_172, %c0_173] : memref<12x2x512xbf16, #tpu.memory_space<vmem>>, vector<1x2x512xbf16>
    %486 = vector.shape_cast %485 : vector<1x2x512xbf16> to vector<2x512xbf16>
    %487 = arith.extf %486 : vector<2x512xbf16> to vector<2x512xf32>
    %488 = arith.truncf %482 : vector<2x128xf32> to vector<2x128xbf16>
    %cst_174 = arith.constant dense<0.000000e+00> : vector<2x512xf32>
    %489 = tpu.matmul %488, %11, %cst_174 {dimension_numbers = #tpu.dot_dimension_numbers<[1], [0], [0], [1], [0, 0, 1, 1], [], []>} : vector<2x128xbf16>, vector<128x512xbf16>, vector<2x512xf32> -> vector<2x512xf32>
    %490 = arith.addf %487, %489 : vector<2x512xf32>
    %491 = vector.extract_strided_slice %490 {offsets = [0, 0], sizes = [2, 128], strides = [1, 1]} : vector<2x512xf32> to vector<2x128xf32>
    %492 = arith.negf %491 : vector<2x128xf32>
    %493 = math.exp %492 : vector<2x128xf32>
    %cst_175 = arith.constant 1.000000e+00 : f32
    %494 = vector.broadcast %cst_175 : f32 to vector<2x128xf32>
    %495 = arith.addf %494, %493 : vector<2x128xf32>
    %496 = arith.divf %494, %495 : vector<2x128xf32>
    %497 = vector.extract_strided_slice %490 {offsets = [0, 128], sizes = [2, 128], strides = [1, 1]} : vector<2x512xf32> to vector<2x128xf32>
    %498 = arith.negf %497 : vector<2x128xf32>
    %499 = math.exp %498 : vector<2x128xf32>
    %cst_176 = arith.constant 1.000000e+00 : f32
    %500 = vector.broadcast %cst_176 : f32 to vector<2x128xf32>
    %501 = arith.addf %500, %499 : vector<2x128xf32>
    %502 = arith.divf %500, %501 : vector<2x128xf32>
    %503 = vector.extract_strided_slice %490 {offsets = [0, 256], sizes = [2, 128], strides = [1, 1]} : vector<2x512xf32> to vector<2x128xf32>
    %504 = math.tanh %503 : vector<2x128xf32>
    %505 = vector.extract_strided_slice %490 {offsets = [0, 384], sizes = [2, 128], strides = [1, 1]} : vector<2x512xf32> to vector<2x128xf32>
    %506 = arith.negf %505 : vector<2x128xf32>
    %507 = math.exp %506 : vector<2x128xf32>
    %cst_177 = arith.constant 1.000000e+00 : f32
    %508 = vector.broadcast %cst_177 : f32 to vector<2x128xf32>
    %509 = arith.addf %508, %507 : vector<2x128xf32>
    %510 = arith.divf %508, %509 : vector<2x128xf32>
    %511 = arith.mulf %502, %483 : vector<2x128xf32>
    %512 = arith.mulf %496, %504 : vector<2x128xf32>
    %513 = arith.addf %511, %512 : vector<2x128xf32>
    %514 = math.tanh %513 : vector<2x128xf32>
    %515 = arith.mulf %510, %514 : vector<2x128xf32>
    %516 = vector.broadcast %481 : i32 to vector<2x1xi32>
    %517 = arith.cmpi sgt, %9, %516 : vector<2x1xi32>
    %518 = vector.shape_cast %517 : vector<2x1xi1> to vector<2x1xi1>
    %519 = vector.broadcast %518 : vector<2x1xi1> to vector<2x128xi1>
    %520 = arith.select %519, %515, %482 : vector<2x128xi1>, vector<2x128xf32>
    %c0_178 = arith.constant 0 : index
    %c0_179 = arith.constant 0 : index
    %521 = vector.load %arg6[%c0_178, %c0_179] : memref<2x128xf32, #tpu.memory_space<vmem>>, vector<2x128xf32>
    tpu.vector_store %arg6[%c0_178, %c0_179], %520 {strides = array<i32>} : memref<2x128xf32, #tpu.memory_space<vmem>>, vector<2x128xf32>,
    %522 = vector.shape_cast %517 : vector<2x1xi1> to vector<2x1xi1>
    %523 = vector.broadcast %522 : vector<2x1xi1> to vector<2x128xi1>
    %524 = arith.select %523, %513, %483 : vector<2x128xi1>, vector<2x128xf32>
    %c0_180 = arith.constant 0 : index
    %c0_181 = arith.constant 0 : index
    %525 = vector.load %arg7[%c0_180, %c0_181] : memref<2x128xf32, #tpu.memory_space<vmem>>, vector<2x128xf32>
    tpu.vector_store %arg7[%c0_180, %c0_181], %524 {strides = array<i32>} : memref<2x128xf32, #tpu.memory_space<vmem>>, vector<2x128xf32>,
    %cst_182 = arith.constant 0.000000e+00 : f32
    %526 = vector.shape_cast %517 : vector<2x1xi1> to vector<2x1xi1>
    %527 = vector.broadcast %526 : vector<2x1xi1> to vector<2x128xi1>
    %528 = vector.broadcast %cst_182 : f32 to vector<2x128xf32>
    %529 = arith.select %527, %515, %528 : vector<2x128xi1>, vector<2x128xf32>
    %c0_183 = arith.constant 0 : index
    %530 = arith.index_cast %480 : i32 to index
    %c0_184 = arith.constant 0 : index
    %c0_185 = arith.constant 0 : index
    %531 = vector.load %arg5[%c0_183, %530, %c0_184, %c0_185] : memref<1x12x2x128xf32, #tpu.memory_space<vmem>>, vector<1x1x2x128xf32>
    %532 = vector.shape_cast %531 : vector<1x1x2x128xf32> to vector<2x128xf32>
    %533 = vector.shape_cast %529 : vector<2x128xf32> to vector<1x1x2x128xf32>
    tpu.vector_store %arg5[%c0_183, %530, %c0_184, %c0_185], %533 {strides = array<i32>} : memref<1x12x2x128xf32, #tpu.memory_space<vmem>>, vector<1x1x2x128xf32>,
    %c9_i32 = arith.constant 9 : i32
    %c1_i32_186 = arith.constant 1 : i32
    %534 = arith.subi %c1_i32_186, %arg0 : i32
    %535 = arith.muli %534, %c9_i32 : i32
    %c11_i32_187 = arith.constant 11 : i32
    %536 = arith.subi %c11_i32_187, %c9_i32 : i32
    %537 = arith.muli %arg0, %536 : i32
    %538 = arith.addi %535, %537 : i32
    %539 = arith.addi %8, %538 : i32
    %c0_188 = arith.constant 0 : index
    %c0_189 = arith.constant 0 : index
    %540 = vector.load %arg6[%c0_188, %c0_189] : memref<2x128xf32, #tpu.memory_space<vmem>>, vector<2x128xf32>
    %c0_190 = arith.constant 0 : index
    %c0_191 = arith.constant 0 : index
    %541 = vector.load %arg7[%c0_190, %c0_191] : memref<2x128xf32, #tpu.memory_space<vmem>>, vector<2x128xf32>
    %542 = arith.index_cast %538 : i32 to index
    %c0_192 = arith.constant 0 : index
    %c0_193 = arith.constant 0 : index
    %543 = vector.load %arg2[%542, %c0_192, %c0_193] : memref<12x2x512xbf16, #tpu.memory_space<vmem>>, vector<1x2x512xbf16>
    %544 = vector.shape_cast %543 : vector<1x2x512xbf16> to vector<2x512xbf16>
    %545 = arith.extf %544 : vector<2x512xbf16> to vector<2x512xf32>
    %546 = arith.truncf %540 : vector<2x128xf32> to vector<2x128xbf16>
    %cst_194 = arith.constant dense<0.000000e+00> : vector<2x512xf32>
    %547 = tpu.matmul %546, %11, %cst_194 {dimension_numbers = #tpu.dot_dimension_numbers<[1], [0], [0], [1], [0, 0, 1, 1], [], []>} : vector<2x128xbf16>, vector<128x512xbf16>, vector<2x512xf32> -> vector<2x512xf32>
    %548 = arith.addf %545, %547 : vector<2x512xf32>
    %549 = vector.extract_strided_slice %548 {offsets = [0, 0], sizes = [2, 128], strides = [1, 1]} : vector<2x512xf32> to vector<2x128xf32>
    %550 = arith.negf %549 : vector<2x128xf32>
    %551 = math.exp %550 : vector<2x128xf32>
    %cst_195 = arith.constant 1.000000e+00 : f32
    %552 = vector.broadcast %cst_195 : f32 to vector<2x128xf32>
    %553 = arith.addf %552, %551 : vector<2x128xf32>
    %554 = arith.divf %552, %553 : vector<2x128xf32>
    %555 = vector.extract_strided_slice %548 {offsets = [0, 128], sizes = [2, 128], strides = [1, 1]} : vector<2x512xf32> to vector<2x128xf32>
    %556 = arith.negf %555 : vector<2x128xf32>
    %557 = math.exp %556 : vector<2x128xf32>
    %cst_196 = arith.constant 1.000000e+00 : f32
    %558 = vector.broadcast %cst_196 : f32 to vector<2x128xf32>
    %559 = arith.addf %558, %557 : vector<2x128xf32>
    %560 = arith.divf %558, %559 : vector<2x128xf32>
    %561 = vector.extract_strided_slice %548 {offsets = [0, 256], sizes = [2, 128], strides = [1, 1]} : vector<2x512xf32> to vector<2x128xf32>
    %562 = math.tanh %561 : vector<2x128xf32>
    %563 = vector.extract_strided_slice %548 {offsets = [0, 384], sizes = [2, 128], strides = [1, 1]} : vector<2x512xf32> to vector<2x128xf32>
    %564 = arith.negf %563 : vector<2x128xf32>
    %565 = math.exp %564 : vector<2x128xf32>
    %cst_197 = arith.constant 1.000000e+00 : f32
    %566 = vector.broadcast %cst_197 : f32 to vector<2x128xf32>
    %567 = arith.addf %566, %565 : vector<2x128xf32>
    %568 = arith.divf %566, %567 : vector<2x128xf32>
    %569 = arith.mulf %560, %541 : vector<2x128xf32>
    %570 = arith.mulf %554, %562 : vector<2x128xf32>
    %571 = arith.addf %569, %570 : vector<2x128xf32>
    %572 = math.tanh %571 : vector<2x128xf32>
    %573 = arith.mulf %568, %572 : vector<2x128xf32>
    %574 = vector.broadcast %539 : i32 to vector<2x1xi32>
    %575 = arith.cmpi sgt, %9, %574 : vector<2x1xi32>
    %576 = vector.shape_cast %575 : vector<2x1xi1> to vector<2x1xi1>
    %577 = vector.broadcast %576 : vector<2x1xi1> to vector<2x128xi1>
    %578 = arith.select %577, %573, %540 : vector<2x128xi1>, vector<2x128xf32>
    %c0_198 = arith.constant 0 : index
    %c0_199 = arith.constant 0 : index
    %579 = vector.load %arg6[%c0_198, %c0_199] : memref<2x128xf32, #tpu.memory_space<vmem>>, vector<2x128xf32>
    tpu.vector_store %arg6[%c0_198, %c0_199], %578 {strides = array<i32>} : memref<2x128xf32, #tpu.memory_space<vmem>>, vector<2x128xf32>,
    %580 = vector.shape_cast %575 : vector<2x1xi1> to vector<2x1xi1>
    %581 = vector.broadcast %580 : vector<2x1xi1> to vector<2x128xi1>
    %582 = arith.select %581, %571, %541 : vector<2x128xi1>, vector<2x128xf32>
    %c0_200 = arith.constant 0 : index
    %c0_201 = arith.constant 0 : index
    %583 = vector.load %arg7[%c0_200, %c0_201] : memref<2x128xf32, #tpu.memory_space<vmem>>, vector<2x128xf32>
    tpu.vector_store %arg7[%c0_200, %c0_201], %582 {strides = array<i32>} : memref<2x128xf32, #tpu.memory_space<vmem>>, vector<2x128xf32>,
    %cst_202 = arith.constant 0.000000e+00 : f32
    %584 = vector.shape_cast %575 : vector<2x1xi1> to vector<2x1xi1>
    %585 = vector.broadcast %584 : vector<2x1xi1> to vector<2x128xi1>
    %586 = vector.broadcast %cst_202 : f32 to vector<2x128xf32>
    %587 = arith.select %585, %573, %586 : vector<2x128xi1>, vector<2x128xf32>
    %c0_203 = arith.constant 0 : index
    %588 = arith.index_cast %538 : i32 to index
    %c0_204 = arith.constant 0 : index
    %c0_205 = arith.constant 0 : index
    %589 = vector.load %arg5[%c0_203, %588, %c0_204, %c0_205] : memref<1x12x2x128xf32, #tpu.memory_space<vmem>>, vector<1x1x2x128xf32>
    %590 = vector.shape_cast %589 : vector<1x1x2x128xf32> to vector<2x128xf32>
    %591 = vector.shape_cast %587 : vector<2x128xf32> to vector<1x1x2x128xf32>
    tpu.vector_store %arg5[%c0_203, %588, %c0_204, %c0_205], %591 {strides = array<i32>} : memref<1x12x2x128xf32, #tpu.memory_space<vmem>>, vector<1x1x2x128xf32>,
    %c10_i32 = arith.constant 10 : i32
    %c1_i32_206 = arith.constant 1 : i32
    %592 = arith.subi %c1_i32_206, %arg0 : i32
    %593 = arith.muli %592, %c10_i32 : i32
    %c11_i32_207 = arith.constant 11 : i32
    %594 = arith.subi %c11_i32_207, %c10_i32 : i32
    %595 = arith.muli %arg0, %594 : i32
    %596 = arith.addi %593, %595 : i32
    %597 = arith.addi %8, %596 : i32
    %c0_208 = arith.constant 0 : index
    %c0_209 = arith.constant 0 : index
    %598 = vector.load %arg6[%c0_208, %c0_209] : memref<2x128xf32, #tpu.memory_space<vmem>>, vector<2x128xf32>
    %c0_210 = arith.constant 0 : index
    %c0_211 = arith.constant 0 : index
    %599 = vector.load %arg7[%c0_210, %c0_211] : memref<2x128xf32, #tpu.memory_space<vmem>>, vector<2x128xf32>
    %600 = arith.index_cast %596 : i32 to index
    %c0_212 = arith.constant 0 : index
    %c0_213 = arith.constant 0 : index
    %601 = vector.load %arg2[%600, %c0_212, %c0_213] : memref<12x2x512xbf16, #tpu.memory_space<vmem>>, vector<1x2x512xbf16>
    %602 = vector.shape_cast %601 : vector<1x2x512xbf16> to vector<2x512xbf16>
    %603 = arith.extf %602 : vector<2x512xbf16> to vector<2x512xf32>
    %604 = arith.truncf %598 : vector<2x128xf32> to vector<2x128xbf16>
    %cst_214 = arith.constant dense<0.000000e+00> : vector<2x512xf32>
    %605 = tpu.matmul %604, %11, %cst_214 {dimension_numbers = #tpu.dot_dimension_numbers<[1], [0], [0], [1], [0, 0, 1, 1], [], []>} : vector<2x128xbf16>, vector<128x512xbf16>, vector<2x512xf32> -> vector<2x512xf32>
    %606 = arith.addf %603, %605 : vector<2x512xf32>
    %607 = vector.extract_strided_slice %606 {offsets = [0, 0], sizes = [2, 128], strides = [1, 1]} : vector<2x512xf32> to vector<2x128xf32>
    %608 = arith.negf %607 : vector<2x128xf32>
    %609 = math.exp %608 : vector<2x128xf32>
    %cst_215 = arith.constant 1.000000e+00 : f32
    %610 = vector.broadcast %cst_215 : f32 to vector<2x128xf32>
    %611 = arith.addf %610, %609 : vector<2x128xf32>
    %612 = arith.divf %610, %611 : vector<2x128xf32>
    %613 = vector.extract_strided_slice %606 {offsets = [0, 128], sizes = [2, 128], strides = [1, 1]} : vector<2x512xf32> to vector<2x128xf32>
    %614 = arith.negf %613 : vector<2x128xf32>
    %615 = math.exp %614 : vector<2x128xf32>
    %cst_216 = arith.constant 1.000000e+00 : f32
    %616 = vector.broadcast %cst_216 : f32 to vector<2x128xf32>
    %617 = arith.addf %616, %615 : vector<2x128xf32>
    %618 = arith.divf %616, %617 : vector<2x128xf32>
    %619 = vector.extract_strided_slice %606 {offsets = [0, 256], sizes = [2, 128], strides = [1, 1]} : vector<2x512xf32> to vector<2x128xf32>
    %620 = math.tanh %619 : vector<2x128xf32>
    %621 = vector.extract_strided_slice %606 {offsets = [0, 384], sizes = [2, 128], strides = [1, 1]} : vector<2x512xf32> to vector<2x128xf32>
    %622 = arith.negf %621 : vector<2x128xf32>
    %623 = math.exp %622 : vector<2x128xf32>
    %cst_217 = arith.constant 1.000000e+00 : f32
    %624 = vector.broadcast %cst_217 : f32 to vector<2x128xf32>
    %625 = arith.addf %624, %623 : vector<2x128xf32>
    %626 = arith.divf %624, %625 : vector<2x128xf32>
    %627 = arith.mulf %618, %599 : vector<2x128xf32>
    %628 = arith.mulf %612, %620 : vector<2x128xf32>
    %629 = arith.addf %627, %628 : vector<2x128xf32>
    %630 = math.tanh %629 : vector<2x128xf32>
    %631 = arith.mulf %626, %630 : vector<2x128xf32>
    %632 = vector.broadcast %597 : i32 to vector<2x1xi32>
    %633 = arith.cmpi sgt, %9, %632 : vector<2x1xi32>
    %634 = vector.shape_cast %633 : vector<2x1xi1> to vector<2x1xi1>
    %635 = vector.broadcast %634 : vector<2x1xi1> to vector<2x128xi1>
    %636 = arith.select %635, %631, %598 : vector<2x128xi1>, vector<2x128xf32>
    %c0_218 = arith.constant 0 : index
    %c0_219 = arith.constant 0 : index
    %637 = vector.load %arg6[%c0_218, %c0_219] : memref<2x128xf32, #tpu.memory_space<vmem>>, vector<2x128xf32>
    tpu.vector_store %arg6[%c0_218, %c0_219], %636 {strides = array<i32>} : memref<2x128xf32, #tpu.memory_space<vmem>>, vector<2x128xf32>,
    %638 = vector.shape_cast %633 : vector<2x1xi1> to vector<2x1xi1>
    %639 = vector.broadcast %638 : vector<2x1xi1> to vector<2x128xi1>
    %640 = arith.select %639, %629, %599 : vector<2x128xi1>, vector<2x128xf32>
    %c0_220 = arith.constant 0 : index
    %c0_221 = arith.constant 0 : index
    %641 = vector.load %arg7[%c0_220, %c0_221] : memref<2x128xf32, #tpu.memory_space<vmem>>, vector<2x128xf32>
    tpu.vector_store %arg7[%c0_220, %c0_221], %640 {strides = array<i32>} : memref<2x128xf32, #tpu.memory_space<vmem>>, vector<2x128xf32>,
    %cst_222 = arith.constant 0.000000e+00 : f32
    %642 = vector.shape_cast %633 : vector<2x1xi1> to vector<2x1xi1>
    %643 = vector.broadcast %642 : vector<2x1xi1> to vector<2x128xi1>
    %644 = vector.broadcast %cst_222 : f32 to vector<2x128xf32>
    %645 = arith.select %643, %631, %644 : vector<2x128xi1>, vector<2x128xf32>
    %c0_223 = arith.constant 0 : index
    %646 = arith.index_cast %596 : i32 to index
    %c0_224 = arith.constant 0 : index
    %c0_225 = arith.constant 0 : index
    %647 = vector.load %arg5[%c0_223, %646, %c0_224, %c0_225] : memref<1x12x2x128xf32, #tpu.memory_space<vmem>>, vector<1x1x2x128xf32>
    %648 = vector.shape_cast %647 : vector<1x1x2x128xf32> to vector<2x128xf32>
    %649 = vector.shape_cast %645 : vector<2x128xf32> to vector<1x1x2x128xf32>
    tpu.vector_store %arg5[%c0_223, %646, %c0_224, %c0_225], %649 {strides = array<i32>} : memref<1x12x2x128xf32, #tpu.memory_space<vmem>>, vector<1x1x2x128xf32>,
    %c11_i32_226 = arith.constant 11 : i32
    %c1_i32_227 = arith.constant 1 : i32
    %650 = arith.subi %c1_i32_227, %arg0 : i32
    %651 = arith.muli %650, %c11_i32_226 : i32
    %c11_i32_228 = arith.constant 11 : i32
    %652 = arith.subi %c11_i32_228, %c11_i32_226 : i32
    %653 = arith.muli %arg0, %652 : i32
    %654 = arith.addi %651, %653 : i32
    %655 = arith.addi %8, %654 : i32
    %c0_229 = arith.constant 0 : index
    %c0_230 = arith.constant 0 : index
    %656 = vector.load %arg6[%c0_229, %c0_230] : memref<2x128xf32, #tpu.memory_space<vmem>>, vector<2x128xf32>
    %c0_231 = arith.constant 0 : index
    %c0_232 = arith.constant 0 : index
    %657 = vector.load %arg7[%c0_231, %c0_232] : memref<2x128xf32, #tpu.memory_space<vmem>>, vector<2x128xf32>
    %658 = arith.index_cast %654 : i32 to index
    %c0_233 = arith.constant 0 : index
    %c0_234 = arith.constant 0 : index
    %659 = vector.load %arg2[%658, %c0_233, %c0_234] : memref<12x2x512xbf16, #tpu.memory_space<vmem>>, vector<1x2x512xbf16>
    %660 = vector.shape_cast %659 : vector<1x2x512xbf16> to vector<2x512xbf16>
    %661 = arith.extf %660 : vector<2x512xbf16> to vector<2x512xf32>
    %662 = arith.truncf %656 : vector<2x128xf32> to vector<2x128xbf16>
    %cst_235 = arith.constant dense<0.000000e+00> : vector<2x512xf32>
    %663 = tpu.matmul %662, %11, %cst_235 {dimension_numbers = #tpu.dot_dimension_numbers<[1], [0], [0], [1], [0, 0, 1, 1], [], []>} : vector<2x128xbf16>, vector<128x512xbf16>, vector<2x512xf32> -> vector<2x512xf32>
    %664 = arith.addf %661, %663 : vector<2x512xf32>
    %665 = vector.extract_strided_slice %664 {offsets = [0, 0], sizes = [2, 128], strides = [1, 1]} : vector<2x512xf32> to vector<2x128xf32>
    %666 = arith.negf %665 : vector<2x128xf32>
    %667 = math.exp %666 : vector<2x128xf32>
    %cst_236 = arith.constant 1.000000e+00 : f32
    %668 = vector.broadcast %cst_236 : f32 to vector<2x128xf32>
    %669 = arith.addf %668, %667 : vector<2x128xf32>
    %670 = arith.divf %668, %669 : vector<2x128xf32>
    %671 = vector.extract_strided_slice %664 {offsets = [0, 128], sizes = [2, 128], strides = [1, 1]} : vector<2x512xf32> to vector<2x128xf32>
    %672 = arith.negf %671 : vector<2x128xf32>
    %673 = math.exp %672 : vector<2x128xf32>
    %cst_237 = arith.constant 1.000000e+00 : f32
    %674 = vector.broadcast %cst_237 : f32 to vector<2x128xf32>
    %675 = arith.addf %674, %673 : vector<2x128xf32>
    %676 = arith.divf %674, %675 : vector<2x128xf32>
    %677 = vector.extract_strided_slice %664 {offsets = [0, 256], sizes = [2, 128], strides = [1, 1]} : vector<2x512xf32> to vector<2x128xf32>
    %678 = math.tanh %677 : vector<2x128xf32>
    %679 = vector.extract_strided_slice %664 {offsets = [0, 384], sizes = [2, 128], strides = [1, 1]} : vector<2x512xf32> to vector<2x128xf32>
    %680 = arith.negf %679 : vector<2x128xf32>
    %681 = math.exp %680 : vector<2x128xf32>
    %cst_238 = arith.constant 1.000000e+00 : f32
    %682 = vector.broadcast %cst_238 : f32 to vector<2x128xf32>
    %683 = arith.addf %682, %681 : vector<2x128xf32>
    %684 = arith.divf %682, %683 : vector<2x128xf32>
    %685 = arith.mulf %676, %657 : vector<2x128xf32>
    %686 = arith.mulf %670, %678 : vector<2x128xf32>
    %687 = arith.addf %685, %686 : vector<2x128xf32>
    %688 = math.tanh %687 : vector<2x128xf32>
    %689 = arith.mulf %684, %688 : vector<2x128xf32>
    %690 = vector.broadcast %655 : i32 to vector<2x1xi32>
    %691 = arith.cmpi sgt, %9, %690 : vector<2x1xi32>
    %692 = vector.shape_cast %691 : vector<2x1xi1> to vector<2x1xi1>
    %693 = vector.broadcast %692 : vector<2x1xi1> to vector<2x128xi1>
    %694 = arith.select %693, %689, %656 : vector<2x128xi1>, vector<2x128xf32>
    %c0_239 = arith.constant 0 : index
    %c0_240 = arith.constant 0 : index
    %695 = vector.load %arg6[%c0_239, %c0_240] : memref<2x128xf32, #tpu.memory_space<vmem>>, vector<2x128xf32>
    tpu.vector_store %arg6[%c0_239, %c0_240], %694 {strides = array<i32>} : memref<2x128xf32, #tpu.memory_space<vmem>>, vector<2x128xf32>,
    %696 = vector.shape_cast %691 : vector<2x1xi1> to vector<2x1xi1>
    %697 = vector.broadcast %696 : vector<2x1xi1> to vector<2x128xi1>
    %698 = arith.select %697, %687, %657 : vector<2x128xi1>, vector<2x128xf32>
    %c0_241 = arith.constant 0 : index
    %c0_242 = arith.constant 0 : index
    %699 = vector.load %arg7[%c0_241, %c0_242] : memref<2x128xf32, #tpu.memory_space<vmem>>, vector<2x128xf32>
    tpu.vector_store %arg7[%c0_241, %c0_242], %698 {strides = array<i32>} : memref<2x128xf32, #tpu.memory_space<vmem>>, vector<2x128xf32>,
    %cst_243 = arith.constant 0.000000e+00 : f32
    %700 = vector.shape_cast %691 : vector<2x1xi1> to vector<2x1xi1>
    %701 = vector.broadcast %700 : vector<2x1xi1> to vector<2x128xi1>
    %702 = vector.broadcast %cst_243 : f32 to vector<2x128xf32>
    %703 = arith.select %701, %689, %702 : vector<2x128xi1>, vector<2x128xf32>
    %c0_244 = arith.constant 0 : index
    %704 = arith.index_cast %654 : i32 to index
    %c0_245 = arith.constant 0 : index
    %c0_246 = arith.constant 0 : index
    %705 = vector.load %arg5[%c0_244, %704, %c0_245, %c0_246] : memref<1x12x2x128xf32, #tpu.memory_space<vmem>>, vector<1x1x2x128xf32>
    %706 = vector.shape_cast %705 : vector<1x1x2x128xf32> to vector<2x128xf32>
    %707 = vector.shape_cast %703 : vector<2x128xf32> to vector<1x1x2x128xf32>
    tpu.vector_store %arg5[%c0_244, %704, %c0_245, %c0_246], %707 {strides = array<i32>} : memref<1x12x2x128xf32, #tpu.memory_space<vmem>>, vector<1x1x2x128xf32>,
    %c12_i32_247 = arith.constant 12 : i32
    return
  }
  func.func @transform_0(%arg0: i32, %arg1: i32) -> (i32, i32, i32) {
    %c1_i32 = arith.constant 1 : i32
    %0 = arith.subi %c1_i32, %arg0 : i32
    %1 = arith.muli %0, %arg1 : i32
    %c0_i32 = arith.constant 0 : i32
    %2 = arith.subi %c0_i32, %arg1 : i32
    %3 = arith.muli %arg0, %2 : i32
    %4 = arith.addi %1, %3 : i32
    %c0_i32_0 = arith.constant 0 : i32
    %c0_i32_1 = arith.constant 0 : i32
    return %4, %c0_i32_0, %arg0 : i32, i32, i32
  }
  func.func @transform_1(%arg0: i32, %arg1: i32) -> (i32, i32, i32) {
    %c0_i32 = arith.constant 0 : i32
    %c0_i32_0 = arith.constant 0 : i32
    %c0_i32_1 = arith.constant 0 : i32
    return %arg0, %c0_i32, %c0_i32_0 : i32, i32, i32
  }
  func.func @transform_2(%arg0: i32, %arg1: i32) -> (i32, i32) {
    %c0_i32 = arith.constant 0 : i32
    %c0_i32_0 = arith.constant 0 : i32
    %c0_i32_1 = arith.constant 0 : i32
    return %c0_i32, %c0_i32_0 : i32, i32
  }
  func.func @transform_3(%arg0: i32, %arg1: i32) -> (i32, i32, i32, i32) {
    %c1_i32 = arith.constant 1 : i32
    %0 = arith.subi %c1_i32, %arg0 : i32
    %1 = arith.muli %0, %arg1 : i32
    %c0_i32 = arith.constant 0 : i32
    %2 = arith.subi %c0_i32, %arg1 : i32
    %3 = arith.muli %arg0, %2 : i32
    %4 = arith.addi %1, %3 : i32
    %c0_i32_0 = arith.constant 0 : i32
    %c0_i32_1 = arith.constant 0 : i32
    %c0_i32_2 = arith.constant 0 : i32
    return %arg0, %4, %c0_i32_0, %c0_i32_1 : i32, i32, i32, i32
  }
}

module attributes {stable_mosaic.version = 11 : i64} {
  func.func @_qattn_kernel(%arg0: memref<2x8x2x128xf32, #tpu.memory_space<vmem>>, %arg1: memref<2x128xf32, #tpu.memory_space<vmem>>, %arg2: memref<1x2xi32, #tpu.memory_space<vmem>>, %arg3: memref<2x256xf32, #tpu.memory_space<vmem>>) attributes {dimension_semantics = [], scalar_prefetch = 0 : i64, scratch_operands = 0 : i64, tpu.core_type = #tpu.core_type<tc>} {
    %c0 = arith.constant 0 : index
    %c0_0 = arith.constant 0 : index
    %c0_1 = arith.constant 0 : index
    %c0_2 = arith.constant 0 : index
    %0 = vector.load %arg0[%c0, %c0_0, %c0_1, %c0_2] : memref<2x8x2x128xf32, #tpu.memory_space<vmem>>, vector<2x8x2x128xf32>
    %c0_3 = arith.constant 0 : index
    %c0_4 = arith.constant 0 : index
    %1 = vector.load %arg1[%c0_3, %c0_4] : memref<2x128xf32, #tpu.memory_space<vmem>>, vector<2x128xf32>
    %2 = vector.shape_cast %1 : vector<2x128xf32> to vector<2x1x1x128xf32>
    %3 = vector.broadcast %2 : vector<2x1x1x128xf32> to vector<2x8x2x128xf32>
    %4 = arith.mulf %0, %3 : vector<2x8x2x128xf32>
    %cst = arith.constant dense<0.000000e+00> : vector<8x2xf32>
    %5 = vector.multi_reduction <add>, %4, %cst [0, 3] : vector<2x8x2x128xf32> to vector<8x2xf32>
    %6 = tpu.iota {dimensions = array<i32: 0>} : vector<8x2xi32>
    %c0_5 = arith.constant 0 : index
    %c0_6 = arith.constant 0 : index
    %7 = vector.load %arg2[%c0_5, %c0_6] : memref<1x2xi32, #tpu.memory_space<vmem>>, vector<1x2xi32>
    %8 = vector.broadcast %7 : vector<1x2xi32> to vector<8x2xi32>
    %9 = arith.cmpi slt, %6, %8 : vector<8x2xi32>
    %cst_7 = arith.constant 0xFF800000 : f32
    %10 = vector.broadcast %cst_7 : f32 to vector<8x2xf32>
    %11 = arith.select %9, %5, %10 : vector<8x2xi1>, vector<8x2xf32>
    %cst_8 = arith.constant dense<0xFF800000> : vector<2xf32>
    %12 = vector.multi_reduction <maximumf>, %11, %cst_8 [0] : vector<8x2xf32> to vector<2xf32>
    %13 = vector.shape_cast %12 : vector<2xf32> to vector<1x2xf32>
    %14 = vector.broadcast %13 : vector<1x2xf32> to vector<8x2xf32>
    %15 = arith.subf %11, %14 : vector<8x2xf32>
    %16 = math.exp %15 : vector<8x2xf32>
    %cst_9 = arith.constant dense<0.000000e+00> : vector<2xf32>
    %17 = vector.multi_reduction <add>, %16, %cst_9 [0] : vector<8x2xf32> to vector<2xf32>
    %18 = vector.shape_cast %17 : vector<2xf32> to vector<1x2xf32>
    %19 = tpu.reciprocal %18 {approx = true} : vector<1x2xf32> -> vector<1x2xf32>
    %20 = vector.broadcast %19 : vector<1x2xf32> to vector<8x2xf32>
    %21 = arith.mulf %16, %20 : vector<8x2xf32>
    %22 = vector.shape_cast %21 : vector<8x2xf32> to vector<1x8x2x1xf32>
    %23 = vector.broadcast %22 : vector<1x8x2x1xf32> to vector<2x8x2x128xf32>
    %24 = arith.mulf %23, %0 : vector<2x8x2x128xf32>
    %cst_10 = arith.constant dense<0.000000e+00> : vector<2x2x128xf32>
    %25 = vector.multi_reduction <add>, %24, %cst_10 [1] : vector<2x8x2x128xf32> to vector<2x2x128xf32>
    %26 = vector.extract_strided_slice %25 {offsets = [0, 0, 0], sizes = [1, 2, 128], strides = [1, 1, 1]} : vector<2x2x128xf32> to vector<1x2x128xf32>
    %27 = vector.shape_cast %26 : vector<1x2x128xf32> to vector<2x128xf32>
    %28 = vector.extract_strided_slice %25 {offsets = [1, 0, 0], sizes = [1, 2, 128], strides = [1, 1, 1]} : vector<2x2x128xf32> to vector<1x2x128xf32>
    %29 = vector.shape_cast %28 : vector<1x2x128xf32> to vector<2x128xf32>
    %30 = tpu.concatenate %27, %29 in 1 : vector<2x128xf32>, vector<2x128xf32> -> vector<2x256xf32>
    %c0_11 = arith.constant 0 : index
    %c0_12 = arith.constant 0 : index
    %31 = vector.load %arg3[%c0_11, %c0_12] : memref<2x256xf32, #tpu.memory_space<vmem>>, vector<2x256xf32>
    tpu.vector_store %arg3[%c0_11, %c0_12], %30 {strides = array<i32>} : memref<2x256xf32, #tpu.memory_space<vmem>>, vector<2x256xf32>,
    return
  }
}

module attributes {stable_mosaic.version = 11 : i64} {
  func.func @_bilstm_kernel(%arg0: i32, %arg1: i32, %arg2: memref<8x2x512xbf16, #tpu.memory_space<vmem>>, %arg3: memref<1x128x512xbf16, #tpu.memory_space<vmem>>, %arg4: memref<2x1xi32, #tpu.memory_space<vmem>>, %arg5: memref<1x8x2x128xf32, #tpu.memory_space<vmem>>, %arg6: memref<2x128xf32, #tpu.memory_space<vmem>>, %arg7: memref<2x128xf32, #tpu.memory_space<vmem>>) attributes {dimension_semantics = [#tpu.dimension_semantics<parallel>, #tpu.dimension_semantics<arbitrary>], iteration_bounds = array<i64: 2, 1>, scalar_prefetch = 0 : i64, scratch_operands = 2 : i64, tpu.core_type = #tpu.core_type<tc>, window_params = [{transform_indices = @transform_0, window_bounds = array<i64: 8, 2, 512>}, {transform_indices = @transform_1, window_bounds = array<i64: 1, 128, 512>}, {pipeline_mode = #tpu.pipeline_mode<synchronous>, transform_indices = @transform_2, window_bounds = array<i64: 2, 1>}, {transform_indices = @transform_3, window_bounds = array<i64: 1, 8, 2, 128>}]} {
    %c0_i32 = arith.constant 0 : i32
    %0 = arith.cmpi eq, %arg1, %c0_i32 : i32
    %1 = arith.extui %0 : i1 to i32
    %c0_i32_0 = arith.constant 0 : i32
    %2 = arith.cmpi ne, %1, %c0_i32_0 : i32
    scf.if %2 {
      %cst_168 = arith.constant 0.000000e+00 : f32
      %476 = vector.broadcast %cst_168 : f32 to vector<2x128xf32>
      %c0_169 = arith.constant 0 : index
      %c0_170 = arith.constant 0 : index
      %477 = vector.load %arg6[%c0_169, %c0_170] : memref<2x128xf32, #tpu.memory_space<vmem>>, vector<2x128xf32>
      tpu.vector_store %arg6[%c0_169, %c0_170], %476 {strides = array<i32>} : memref<2x128xf32, #tpu.memory_space<vmem>>, vector<2x128xf32>,
      %cst_171 = arith.constant 0.000000e+00 : f32
      %478 = vector.broadcast %cst_171 : f32 to vector<2x128xf32>
      %c0_172 = arith.constant 0 : index
      %c0_173 = arith.constant 0 : index
      %479 = vector.load %arg7[%c0_172, %c0_173] : memref<2x128xf32, #tpu.memory_space<vmem>>, vector<2x128xf32>
      tpu.vector_store %arg7[%c0_172, %c0_173], %478 {strides = array<i32>} : memref<2x128xf32, #tpu.memory_space<vmem>>, vector<2x128xf32>,
    } else {
    }
    %c1_i32 = arith.constant 1 : i32
    %3 = arith.subi %c1_i32, %arg0 : i32
    %4 = arith.muli %3, %arg1 : i32
    %c0_i32_1 = arith.constant 0 : i32
    %5 = arith.subi %c0_i32_1, %arg1 : i32
    %6 = arith.muli %arg0, %5 : i32
    %7 = arith.addi %4, %6 : i32
    %c8_i32 = arith.constant 8 : i32
    %8 = arith.muli %7, %c8_i32 : i32
    %c0 = arith.constant 0 : index
    %c0_2 = arith.constant 0 : index
    %9 = vector.load %arg4[%c0, %c0_2] : memref<2x1xi32, #tpu.memory_space<vmem>>, vector<2x1xi32>
    %c0_3 = arith.constant 0 : index
    %c0_4 = arith.constant 0 : index
    %c0_5 = arith.constant 0 : index
    %10 = vector.load %arg3[%c0_3, %c0_4, %c0_5] : memref<1x128x512xbf16, #tpu.memory_space<vmem>>, vector<1x128x512xbf16>
    %11 = vector.shape_cast %10 : vector<1x128x512xbf16> to vector<128x512xbf16>
    %c0_i32_6 = arith.constant 0 : i32
    %c1_i32_7 = arith.constant 1 : i32
    %12 = arith.subi %c1_i32_7, %arg0 : i32
    %13 = arith.muli %12, %c0_i32_6 : i32
    %c7_i32 = arith.constant 7 : i32
    %14 = arith.subi %c7_i32, %c0_i32_6 : i32
    %15 = arith.muli %arg0, %14 : i32
    %16 = arith.addi %13, %15 : i32
    %17 = arith.addi %8, %16 : i32
    %c0_8 = arith.constant 0 : index
    %c0_9 = arith.constant 0 : index
    %18 = vector.load %arg6[%c0_8, %c0_9] : memref<2x128xf32, #tpu.memory_space<vmem>>, vector<2x128xf32>
    %c0_10 = arith.constant 0 : index
    %c0_11 = arith.constant 0 : index
    %19 = vector.load %arg7[%c0_10, %c0_11] : memref<2x128xf32, #tpu.memory_space<vmem>>, vector<2x128xf32>
    %20 = arith.index_cast %16 : i32 to index
    %c0_12 = arith.constant 0 : index
    %c0_13 = arith.constant 0 : index
    %21 = vector.load %arg2[%20, %c0_12, %c0_13] : memref<8x2x512xbf16, #tpu.memory_space<vmem>>, vector<1x2x512xbf16>
    %22 = vector.shape_cast %21 : vector<1x2x512xbf16> to vector<2x512xbf16>
    %23 = arith.extf %22 : vector<2x512xbf16> to vector<2x512xf32>
    %24 = arith.truncf %18 : vector<2x128xf32> to vector<2x128xbf16>
    %cst = arith.constant dense<0.000000e+00> : vector<2x512xf32>
    %25 = tpu.matmul %24, %11, %cst {dimension_numbers = #tpu.dot_dimension_numbers<[1], [0], [0], [1], [0, 0, 1, 1], [], []>} : vector<2x128xbf16>, vector<128x512xbf16>, vector<2x512xf32> -> vector<2x512xf32>
    %26 = arith.addf %23, %25 : vector<2x512xf32>
    %27 = vector.extract_strided_slice %26 {offsets = [0, 0], sizes = [2, 128], strides = [1, 1]} : vector<2x512xf32> to vector<2x128xf32>
    %28 = arith.negf %27 : vector<2x128xf32>
    %29 = math.exp %28 : vector<2x128xf32>
    %cst_14 = arith.constant 1.000000e+00 : f32
    %30 = vector.broadcast %cst_14 : f32 to vector<2x128xf32>
    %31 = arith.addf %30, %29 : vector<2x128xf32>
    %32 = arith.divf %30, %31 : vector<2x128xf32>
    %33 = vector.extract_strided_slice %26 {offsets = [0, 128], sizes = [2, 128], strides = [1, 1]} : vector<2x512xf32> to vector<2x128xf32>
    %34 = arith.negf %33 : vector<2x128xf32>
    %35 = math.exp %34 : vector<2x128xf32>
    %cst_15 = arith.constant 1.000000e+00 : f32
    %36 = vector.broadcast %cst_15 : f32 to vector<2x128xf32>
    %37 = arith.addf %36, %35 : vector<2x128xf32>
    %38 = arith.divf %36, %37 : vector<2x128xf32>
    %39 = vector.extract_strided_slice %26 {offsets = [0, 256], sizes = [2, 128], strides = [1, 1]} : vector<2x512xf32> to vector<2x128xf32>
    %40 = math.tanh %39 : vector<2x128xf32>
    %41 = vector.extract_strided_slice %26 {offsets = [0, 384], sizes = [2, 128], strides = [1, 1]} : vector<2x512xf32> to vector<2x128xf32>
    %42 = arith.negf %41 : vector<2x128xf32>
    %43 = math.exp %42 : vector<2x128xf32>
    %cst_16 = arith.constant 1.000000e+00 : f32
    %44 = vector.broadcast %cst_16 : f32 to vector<2x128xf32>
    %45 = arith.addf %44, %43 : vector<2x128xf32>
    %46 = arith.divf %44, %45 : vector<2x128xf32>
    %47 = arith.mulf %38, %19 : vector<2x128xf32>
    %48 = arith.mulf %32, %40 : vector<2x128xf32>
    %49 = arith.addf %47, %48 : vector<2x128xf32>
    %50 = math.tanh %49 : vector<2x128xf32>
    %51 = arith.mulf %46, %50 : vector<2x128xf32>
    %52 = vector.broadcast %17 : i32 to vector<2x1xi32>
    %53 = arith.cmpi sgt, %9, %52 : vector<2x1xi32>
    %54 = vector.shape_cast %53 : vector<2x1xi1> to vector<2x1xi1>
    %55 = vector.broadcast %54 : vector<2x1xi1> to vector<2x128xi1>
    %56 = arith.select %55, %51, %18 : vector<2x128xi1>, vector<2x128xf32>
    %c0_17 = arith.constant 0 : index
    %c0_18 = arith.constant 0 : index
    %57 = vector.load %arg6[%c0_17, %c0_18] : memref<2x128xf32, #tpu.memory_space<vmem>>, vector<2x128xf32>
    tpu.vector_store %arg6[%c0_17, %c0_18], %56 {strides = array<i32>} : memref<2x128xf32, #tpu.memory_space<vmem>>, vector<2x128xf32>,
    %58 = vector.shape_cast %53 : vector<2x1xi1> to vector<2x1xi1>
    %59 = vector.broadcast %58 : vector<2x1xi1> to vector<2x128xi1>
    %60 = arith.select %59, %49, %19 : vector<2x128xi1>, vector<2x128xf32>
    %c0_19 = arith.constant 0 : index
    %c0_20 = arith.constant 0 : index
    %61 = vector.load %arg7[%c0_19, %c0_20] : memref<2x128xf32, #tpu.memory_space<vmem>>, vector<2x128xf32>
    tpu.vector_store %arg7[%c0_19, %c0_20], %60 {strides = array<i32>} : memref<2x128xf32, #tpu.memory_space<vmem>>, vector<2x128xf32>,
    %cst_21 = arith.constant 0.000000e+00 : f32
    %62 = vector.shape_cast %53 : vector<2x1xi1> to vector<2x1xi1>
    %63 = vector.broadcast %62 : vector<2x1xi1> to vector<2x128xi1>
    %64 = vector.broadcast %cst_21 : f32 to vector<2x128xf32>
    %65 = arith.select %63, %51, %64 : vector<2x128xi1>, vector<2x128xf32>
    %c0_22 = arith.constant 0 : index
    %66 = arith.index_cast %16 : i32 to index
    %c0_23 = arith.constant 0 : index
    %c0_24 = arith.constant 0 : index
    %67 = vector.load %arg5[%c0_22, %66, %c0_23, %c0_24] : memref<1x8x2x128xf32, #tpu.memory_space<vmem>>, vector<1x1x2x128xf32>
    %68 = vector.shape_cast %67 : vector<1x1x2x128xf32> to vector<2x128xf32>
    %69 = vector.shape_cast %65 : vector<2x128xf32> to vector<1x1x2x128xf32>
    tpu.vector_store %arg5[%c0_22, %66, %c0_23, %c0_24], %69 {strides = array<i32>} : memref<1x8x2x128xf32, #tpu.memory_space<vmem>>, vector<1x1x2x128xf32>,
    %c1_i32_25 = arith.constant 1 : i32
    %c1_i32_26 = arith.constant 1 : i32
    %70 = arith.subi %c1_i32_26, %arg0 : i32
    %71 = arith.muli %70, %c1_i32_25 : i32
    %c7_i32_27 = arith.constant 7 : i32
    %72 = arith.subi %c7_i32_27, %c1_i32_25 : i32
    %73 = arith.muli %arg0, %72 : i32
    %74 = arith.addi %71, %73 : i32
    %75 = arith.addi %8, %74 : i32
    %c0_28 = arith.constant 0 : index
    %c0_29 = arith.constant 0 : index
    %76 = vector.load %arg6[%c0_28, %c0_29] : memref<2x128xf32, #tpu.memory_space<vmem>>, vector<2x128xf32>
    %c0_30 = arith.constant 0 : index
    %c0_31 = arith.constant 0 : index
    %77 = vector.load %arg7[%c0_30, %c0_31] : memref<2x128xf32, #tpu.memory_space<vmem>>, vector<2x128xf32>
    %78 = arith.index_cast %74 : i32 to index
    %c0_32 = arith.constant 0 : index
    %c0_33 = arith.constant 0 : index
    %79 = vector.load %arg2[%78, %c0_32, %c0_33] : memref<8x2x512xbf16, #tpu.memory_space<vmem>>, vector<1x2x512xbf16>
    %80 = vector.shape_cast %79 : vector<1x2x512xbf16> to vector<2x512xbf16>
    %81 = arith.extf %80 : vector<2x512xbf16> to vector<2x512xf32>
    %82 = arith.truncf %76 : vector<2x128xf32> to vector<2x128xbf16>
    %cst_34 = arith.constant dense<0.000000e+00> : vector<2x512xf32>
    %83 = tpu.matmul %82, %11, %cst_34 {dimension_numbers = #tpu.dot_dimension_numbers<[1], [0], [0], [1], [0, 0, 1, 1], [], []>} : vector<2x128xbf16>, vector<128x512xbf16>, vector<2x512xf32> -> vector<2x512xf32>
    %84 = arith.addf %81, %83 : vector<2x512xf32>
    %85 = vector.extract_strided_slice %84 {offsets = [0, 0], sizes = [2, 128], strides = [1, 1]} : vector<2x512xf32> to vector<2x128xf32>
    %86 = arith.negf %85 : vector<2x128xf32>
    %87 = math.exp %86 : vector<2x128xf32>
    %cst_35 = arith.constant 1.000000e+00 : f32
    %88 = vector.broadcast %cst_35 : f32 to vector<2x128xf32>
    %89 = arith.addf %88, %87 : vector<2x128xf32>
    %90 = arith.divf %88, %89 : vector<2x128xf32>
    %91 = vector.extract_strided_slice %84 {offsets = [0, 128], sizes = [2, 128], strides = [1, 1]} : vector<2x512xf32> to vector<2x128xf32>
    %92 = arith.negf %91 : vector<2x128xf32>
    %93 = math.exp %92 : vector<2x128xf32>
    %cst_36 = arith.constant 1.000000e+00 : f32
    %94 = vector.broadcast %cst_36 : f32 to vector<2x128xf32>
    %95 = arith.addf %94, %93 : vector<2x128xf32>
    %96 = arith.divf %94, %95 : vector<2x128xf32>
    %97 = vector.extract_strided_slice %84 {offsets = [0, 256], sizes = [2, 128], strides = [1, 1]} : vector<2x512xf32> to vector<2x128xf32>
    %98 = math.tanh %97 : vector<2x128xf32>
    %99 = vector.extract_strided_slice %84 {offsets = [0, 384], sizes = [2, 128], strides = [1, 1]} : vector<2x512xf32> to vector<2x128xf32>
    %100 = arith.negf %99 : vector<2x128xf32>
    %101 = math.exp %100 : vector<2x128xf32>
    %cst_37 = arith.constant 1.000000e+00 : f32
    %102 = vector.broadcast %cst_37 : f32 to vector<2x128xf32>
    %103 = arith.addf %102, %101 : vector<2x128xf32>
    %104 = arith.divf %102, %103 : vector<2x128xf32>
    %105 = arith.mulf %96, %77 : vector<2x128xf32>
    %106 = arith.mulf %90, %98 : vector<2x128xf32>
    %107 = arith.addf %105, %106 : vector<2x128xf32>
    %108 = math.tanh %107 : vector<2x128xf32>
    %109 = arith.mulf %104, %108 : vector<2x128xf32>
    %110 = vector.broadcast %75 : i32 to vector<2x1xi32>
    %111 = arith.cmpi sgt, %9, %110 : vector<2x1xi32>
    %112 = vector.shape_cast %111 : vector<2x1xi1> to vector<2x1xi1>
    %113 = vector.broadcast %112 : vector<2x1xi1> to vector<2x128xi1>
    %114 = arith.select %113, %109, %76 : vector<2x128xi1>, vector<2x128xf32>
    %c0_38 = arith.constant 0 : index
    %c0_39 = arith.constant 0 : index
    %115 = vector.load %arg6[%c0_38, %c0_39] : memref<2x128xf32, #tpu.memory_space<vmem>>, vector<2x128xf32>
    tpu.vector_store %arg6[%c0_38, %c0_39], %114 {strides = array<i32>} : memref<2x128xf32, #tpu.memory_space<vmem>>, vector<2x128xf32>,
    %116 = vector.shape_cast %111 : vector<2x1xi1> to vector<2x1xi1>
    %117 = vector.broadcast %116 : vector<2x1xi1> to vector<2x128xi1>
    %118 = arith.select %117, %107, %77 : vector<2x128xi1>, vector<2x128xf32>
    %c0_40 = arith.constant 0 : index
    %c0_41 = arith.constant 0 : index
    %119 = vector.load %arg7[%c0_40, %c0_41] : memref<2x128xf32, #tpu.memory_space<vmem>>, vector<2x128xf32>
    tpu.vector_store %arg7[%c0_40, %c0_41], %118 {strides = array<i32>} : memref<2x128xf32, #tpu.memory_space<vmem>>, vector<2x128xf32>,
    %cst_42 = arith.constant 0.000000e+00 : f32
    %120 = vector.shape_cast %111 : vector<2x1xi1> to vector<2x1xi1>
    %121 = vector.broadcast %120 : vector<2x1xi1> to vector<2x128xi1>
    %122 = vector.broadcast %cst_42 : f32 to vector<2x128xf32>
    %123 = arith.select %121, %109, %122 : vector<2x128xi1>, vector<2x128xf32>
    %c0_43 = arith.constant 0 : index
    %124 = arith.index_cast %74 : i32 to index
    %c0_44 = arith.constant 0 : index
    %c0_45 = arith.constant 0 : index
    %125 = vector.load %arg5[%c0_43, %124, %c0_44, %c0_45] : memref<1x8x2x128xf32, #tpu.memory_space<vmem>>, vector<1x1x2x128xf32>
    %126 = vector.shape_cast %125 : vector<1x1x2x128xf32> to vector<2x128xf32>
    %127 = vector.shape_cast %123 : vector<2x128xf32> to vector<1x1x2x128xf32>
    tpu.vector_store %arg5[%c0_43, %124, %c0_44, %c0_45], %127 {strides = array<i32>} : memref<1x8x2x128xf32, #tpu.memory_space<vmem>>, vector<1x1x2x128xf32>,
    %c2_i32 = arith.constant 2 : i32
    %c1_i32_46 = arith.constant 1 : i32
    %128 = arith.subi %c1_i32_46, %arg0 : i32
    %129 = arith.muli %128, %c2_i32 : i32
    %c7_i32_47 = arith.constant 7 : i32
    %130 = arith.subi %c7_i32_47, %c2_i32 : i32
    %131 = arith.muli %arg0, %130 : i32
    %132 = arith.addi %129, %131 : i32
    %133 = arith.addi %8, %132 : i32
    %c0_48 = arith.constant 0 : index
    %c0_49 = arith.constant 0 : index
    %134 = vector.load %arg6[%c0_48, %c0_49] : memref<2x128xf32, #tpu.memory_space<vmem>>, vector<2x128xf32>
    %c0_50 = arith.constant 0 : index
    %c0_51 = arith.constant 0 : index
    %135 = vector.load %arg7[%c0_50, %c0_51] : memref<2x128xf32, #tpu.memory_space<vmem>>, vector<2x128xf32>
    %136 = arith.index_cast %132 : i32 to index
    %c0_52 = arith.constant 0 : index
    %c0_53 = arith.constant 0 : index
    %137 = vector.load %arg2[%136, %c0_52, %c0_53] : memref<8x2x512xbf16, #tpu.memory_space<vmem>>, vector<1x2x512xbf16>
    %138 = vector.shape_cast %137 : vector<1x2x512xbf16> to vector<2x512xbf16>
    %139 = arith.extf %138 : vector<2x512xbf16> to vector<2x512xf32>
    %140 = arith.truncf %134 : vector<2x128xf32> to vector<2x128xbf16>
    %cst_54 = arith.constant dense<0.000000e+00> : vector<2x512xf32>
    %141 = tpu.matmul %140, %11, %cst_54 {dimension_numbers = #tpu.dot_dimension_numbers<[1], [0], [0], [1], [0, 0, 1, 1], [], []>} : vector<2x128xbf16>, vector<128x512xbf16>, vector<2x512xf32> -> vector<2x512xf32>
    %142 = arith.addf %139, %141 : vector<2x512xf32>
    %143 = vector.extract_strided_slice %142 {offsets = [0, 0], sizes = [2, 128], strides = [1, 1]} : vector<2x512xf32> to vector<2x128xf32>
    %144 = arith.negf %143 : vector<2x128xf32>
    %145 = math.exp %144 : vector<2x128xf32>
    %cst_55 = arith.constant 1.000000e+00 : f32
    %146 = vector.broadcast %cst_55 : f32 to vector<2x128xf32>
    %147 = arith.addf %146, %145 : vector<2x128xf32>
    %148 = arith.divf %146, %147 : vector<2x128xf32>
    %149 = vector.extract_strided_slice %142 {offsets = [0, 128], sizes = [2, 128], strides = [1, 1]} : vector<2x512xf32> to vector<2x128xf32>
    %150 = arith.negf %149 : vector<2x128xf32>
    %151 = math.exp %150 : vector<2x128xf32>
    %cst_56 = arith.constant 1.000000e+00 : f32
    %152 = vector.broadcast %cst_56 : f32 to vector<2x128xf32>
    %153 = arith.addf %152, %151 : vector<2x128xf32>
    %154 = arith.divf %152, %153 : vector<2x128xf32>
    %155 = vector.extract_strided_slice %142 {offsets = [0, 256], sizes = [2, 128], strides = [1, 1]} : vector<2x512xf32> to vector<2x128xf32>
    %156 = math.tanh %155 : vector<2x128xf32>
    %157 = vector.extract_strided_slice %142 {offsets = [0, 384], sizes = [2, 128], strides = [1, 1]} : vector<2x512xf32> to vector<2x128xf32>
    %158 = arith.negf %157 : vector<2x128xf32>
    %159 = math.exp %158 : vector<2x128xf32>
    %cst_57 = arith.constant 1.000000e+00 : f32
    %160 = vector.broadcast %cst_57 : f32 to vector<2x128xf32>
    %161 = arith.addf %160, %159 : vector<2x128xf32>
    %162 = arith.divf %160, %161 : vector<2x128xf32>
    %163 = arith.mulf %154, %135 : vector<2x128xf32>
    %164 = arith.mulf %148, %156 : vector<2x128xf32>
    %165 = arith.addf %163, %164 : vector<2x128xf32>
    %166 = math.tanh %165 : vector<2x128xf32>
    %167 = arith.mulf %162, %166 : vector<2x128xf32>
    %168 = vector.broadcast %133 : i32 to vector<2x1xi32>
    %169 = arith.cmpi sgt, %9, %168 : vector<2x1xi32>
    %170 = vector.shape_cast %169 : vector<2x1xi1> to vector<2x1xi1>
    %171 = vector.broadcast %170 : vector<2x1xi1> to vector<2x128xi1>
    %172 = arith.select %171, %167, %134 : vector<2x128xi1>, vector<2x128xf32>
    %c0_58 = arith.constant 0 : index
    %c0_59 = arith.constant 0 : index
    %173 = vector.load %arg6[%c0_58, %c0_59] : memref<2x128xf32, #tpu.memory_space<vmem>>, vector<2x128xf32>
    tpu.vector_store %arg6[%c0_58, %c0_59], %172 {strides = array<i32>} : memref<2x128xf32, #tpu.memory_space<vmem>>, vector<2x128xf32>,
    %174 = vector.shape_cast %169 : vector<2x1xi1> to vector<2x1xi1>
    %175 = vector.broadcast %174 : vector<2x1xi1> to vector<2x128xi1>
    %176 = arith.select %175, %165, %135 : vector<2x128xi1>, vector<2x128xf32>
    %c0_60 = arith.constant 0 : index
    %c0_61 = arith.constant 0 : index
    %177 = vector.load %arg7[%c0_60, %c0_61] : memref<2x128xf32, #tpu.memory_space<vmem>>, vector<2x128xf32>
    tpu.vector_store %arg7[%c0_60, %c0_61], %176 {strides = array<i32>} : memref<2x128xf32, #tpu.memory_space<vmem>>, vector<2x128xf32>,
    %cst_62 = arith.constant 0.000000e+00 : f32
    %178 = vector.shape_cast %169 : vector<2x1xi1> to vector<2x1xi1>
    %179 = vector.broadcast %178 : vector<2x1xi1> to vector<2x128xi1>
    %180 = vector.broadcast %cst_62 : f32 to vector<2x128xf32>
    %181 = arith.select %179, %167, %180 : vector<2x128xi1>, vector<2x128xf32>
    %c0_63 = arith.constant 0 : index
    %182 = arith.index_cast %132 : i32 to index
    %c0_64 = arith.constant 0 : index
    %c0_65 = arith.constant 0 : index
    %183 = vector.load %arg5[%c0_63, %182, %c0_64, %c0_65] : memref<1x8x2x128xf32, #tpu.memory_space<vmem>>, vector<1x1x2x128xf32>
    %184 = vector.shape_cast %183 : vector<1x1x2x128xf32> to vector<2x128xf32>
    %185 = vector.shape_cast %181 : vector<2x128xf32> to vector<1x1x2x128xf32>
    tpu.vector_store %arg5[%c0_63, %182, %c0_64, %c0_65], %185 {strides = array<i32>} : memref<1x8x2x128xf32, #tpu.memory_space<vmem>>, vector<1x1x2x128xf32>,
    %c3_i32 = arith.constant 3 : i32
    %c1_i32_66 = arith.constant 1 : i32
    %186 = arith.subi %c1_i32_66, %arg0 : i32
    %187 = arith.muli %186, %c3_i32 : i32
    %c7_i32_67 = arith.constant 7 : i32
    %188 = arith.subi %c7_i32_67, %c3_i32 : i32
    %189 = arith.muli %arg0, %188 : i32
    %190 = arith.addi %187, %189 : i32
    %191 = arith.addi %8, %190 : i32
    %c0_68 = arith.constant 0 : index
    %c0_69 = arith.constant 0 : index
    %192 = vector.load %arg6[%c0_68, %c0_69] : memref<2x128xf32, #tpu.memory_space<vmem>>, vector<2x128xf32>
    %c0_70 = arith.constant 0 : index
    %c0_71 = arith.constant 0 : index
    %193 = vector.load %arg7[%c0_70, %c0_71] : memref<2x128xf32, #tpu.memory_space<vmem>>, vector<2x128xf32>
    %194 = arith.index_cast %190 : i32 to index
    %c0_72 = arith.constant 0 : index
    %c0_73 = arith.constant 0 : index
    %195 = vector.load %arg2[%194, %c0_72, %c0_73] : memref<8x2x512xbf16, #tpu.memory_space<vmem>>, vector<1x2x512xbf16>
    %196 = vector.shape_cast %195 : vector<1x2x512xbf16> to vector<2x512xbf16>
    %197 = arith.extf %196 : vector<2x512xbf16> to vector<2x512xf32>
    %198 = arith.truncf %192 : vector<2x128xf32> to vector<2x128xbf16>
    %cst_74 = arith.constant dense<0.000000e+00> : vector<2x512xf32>
    %199 = tpu.matmul %198, %11, %cst_74 {dimension_numbers = #tpu.dot_dimension_numbers<[1], [0], [0], [1], [0, 0, 1, 1], [], []>} : vector<2x128xbf16>, vector<128x512xbf16>, vector<2x512xf32> -> vector<2x512xf32>
    %200 = arith.addf %197, %199 : vector<2x512xf32>
    %201 = vector.extract_strided_slice %200 {offsets = [0, 0], sizes = [2, 128], strides = [1, 1]} : vector<2x512xf32> to vector<2x128xf32>
    %202 = arith.negf %201 : vector<2x128xf32>
    %203 = math.exp %202 : vector<2x128xf32>
    %cst_75 = arith.constant 1.000000e+00 : f32
    %204 = vector.broadcast %cst_75 : f32 to vector<2x128xf32>
    %205 = arith.addf %204, %203 : vector<2x128xf32>
    %206 = arith.divf %204, %205 : vector<2x128xf32>
    %207 = vector.extract_strided_slice %200 {offsets = [0, 128], sizes = [2, 128], strides = [1, 1]} : vector<2x512xf32> to vector<2x128xf32>
    %208 = arith.negf %207 : vector<2x128xf32>
    %209 = math.exp %208 : vector<2x128xf32>
    %cst_76 = arith.constant 1.000000e+00 : f32
    %210 = vector.broadcast %cst_76 : f32 to vector<2x128xf32>
    %211 = arith.addf %210, %209 : vector<2x128xf32>
    %212 = arith.divf %210, %211 : vector<2x128xf32>
    %213 = vector.extract_strided_slice %200 {offsets = [0, 256], sizes = [2, 128], strides = [1, 1]} : vector<2x512xf32> to vector<2x128xf32>
    %214 = math.tanh %213 : vector<2x128xf32>
    %215 = vector.extract_strided_slice %200 {offsets = [0, 384], sizes = [2, 128], strides = [1, 1]} : vector<2x512xf32> to vector<2x128xf32>
    %216 = arith.negf %215 : vector<2x128xf32>
    %217 = math.exp %216 : vector<2x128xf32>
    %cst_77 = arith.constant 1.000000e+00 : f32
    %218 = vector.broadcast %cst_77 : f32 to vector<2x128xf32>
    %219 = arith.addf %218, %217 : vector<2x128xf32>
    %220 = arith.divf %218, %219 : vector<2x128xf32>
    %221 = arith.mulf %212, %193 : vector<2x128xf32>
    %222 = arith.mulf %206, %214 : vector<2x128xf32>
    %223 = arith.addf %221, %222 : vector<2x128xf32>
    %224 = math.tanh %223 : vector<2x128xf32>
    %225 = arith.mulf %220, %224 : vector<2x128xf32>
    %226 = vector.broadcast %191 : i32 to vector<2x1xi32>
    %227 = arith.cmpi sgt, %9, %226 : vector<2x1xi32>
    %228 = vector.shape_cast %227 : vector<2x1xi1> to vector<2x1xi1>
    %229 = vector.broadcast %228 : vector<2x1xi1> to vector<2x128xi1>
    %230 = arith.select %229, %225, %192 : vector<2x128xi1>, vector<2x128xf32>
    %c0_78 = arith.constant 0 : index
    %c0_79 = arith.constant 0 : index
    %231 = vector.load %arg6[%c0_78, %c0_79] : memref<2x128xf32, #tpu.memory_space<vmem>>, vector<2x128xf32>
    tpu.vector_store %arg6[%c0_78, %c0_79], %230 {strides = array<i32>} : memref<2x128xf32, #tpu.memory_space<vmem>>, vector<2x128xf32>,
    %232 = vector.shape_cast %227 : vector<2x1xi1> to vector<2x1xi1>
    %233 = vector.broadcast %232 : vector<2x1xi1> to vector<2x128xi1>
    %234 = arith.select %233, %223, %193 : vector<2x128xi1>, vector<2x128xf32>
    %c0_80 = arith.constant 0 : index
    %c0_81 = arith.constant 0 : index
    %235 = vector.load %arg7[%c0_80, %c0_81] : memref<2x128xf32, #tpu.memory_space<vmem>>, vector<2x128xf32>
    tpu.vector_store %arg7[%c0_80, %c0_81], %234 {strides = array<i32>} : memref<2x128xf32, #tpu.memory_space<vmem>>, vector<2x128xf32>,
    %cst_82 = arith.constant 0.000000e+00 : f32
    %236 = vector.shape_cast %227 : vector<2x1xi1> to vector<2x1xi1>
    %237 = vector.broadcast %236 : vector<2x1xi1> to vector<2x128xi1>
    %238 = vector.broadcast %cst_82 : f32 to vector<2x128xf32>
    %239 = arith.select %237, %225, %238 : vector<2x128xi1>, vector<2x128xf32>
    %c0_83 = arith.constant 0 : index
    %240 = arith.index_cast %190 : i32 to index
    %c0_84 = arith.constant 0 : index
    %c0_85 = arith.constant 0 : index
    %241 = vector.load %arg5[%c0_83, %240, %c0_84, %c0_85] : memref<1x8x2x128xf32, #tpu.memory_space<vmem>>, vector<1x1x2x128xf32>
    %242 = vector.shape_cast %241 : vector<1x1x2x128xf32> to vector<2x128xf32>
    %243 = vector.shape_cast %239 : vector<2x128xf32> to vector<1x1x2x128xf32>
    tpu.vector_store %arg5[%c0_83, %240, %c0_84, %c0_85], %243 {strides = array<i32>} : memref<1x8x2x128xf32, #tpu.memory_space<vmem>>, vector<1x1x2x128xf32>,
    %c4_i32 = arith.constant 4 : i32
    %c1_i32_86 = arith.constant 1 : i32
    %244 = arith.subi %c1_i32_86, %arg0 : i32
    %245 = arith.muli %244, %c4_i32 : i32
    %c7_i32_87 = arith.constant 7 : i32
    %246 = arith.subi %c7_i32_87, %c4_i32 : i32
    %247 = arith.muli %arg0, %246 : i32
    %248 = arith.addi %245, %247 : i32
    %249 = arith.addi %8, %248 : i32
    %c0_88 = arith.constant 0 : index
    %c0_89 = arith.constant 0 : index
    %250 = vector.load %arg6[%c0_88, %c0_89] : memref<2x128xf32, #tpu.memory_space<vmem>>, vector<2x128xf32>
    %c0_90 = arith.constant 0 : index
    %c0_91 = arith.constant 0 : index
    %251 = vector.load %arg7[%c0_90, %c0_91] : memref<2x128xf32, #tpu.memory_space<vmem>>, vector<2x128xf32>
    %252 = arith.index_cast %248 : i32 to index
    %c0_92 = arith.constant 0 : index
    %c0_93 = arith.constant 0 : index
    %253 = vector.load %arg2[%252, %c0_92, %c0_93] : memref<8x2x512xbf16, #tpu.memory_space<vmem>>, vector<1x2x512xbf16>
    %254 = vector.shape_cast %253 : vector<1x2x512xbf16> to vector<2x512xbf16>
    %255 = arith.extf %254 : vector<2x512xbf16> to vector<2x512xf32>
    %256 = arith.truncf %250 : vector<2x128xf32> to vector<2x128xbf16>
    %cst_94 = arith.constant dense<0.000000e+00> : vector<2x512xf32>
    %257 = tpu.matmul %256, %11, %cst_94 {dimension_numbers = #tpu.dot_dimension_numbers<[1], [0], [0], [1], [0, 0, 1, 1], [], []>} : vector<2x128xbf16>, vector<128x512xbf16>, vector<2x512xf32> -> vector<2x512xf32>
    %258 = arith.addf %255, %257 : vector<2x512xf32>
    %259 = vector.extract_strided_slice %258 {offsets = [0, 0], sizes = [2, 128], strides = [1, 1]} : vector<2x512xf32> to vector<2x128xf32>
    %260 = arith.negf %259 : vector<2x128xf32>
    %261 = math.exp %260 : vector<2x128xf32>
    %cst_95 = arith.constant 1.000000e+00 : f32
    %262 = vector.broadcast %cst_95 : f32 to vector<2x128xf32>
    %263 = arith.addf %262, %261 : vector<2x128xf32>
    %264 = arith.divf %262, %263 : vector<2x128xf32>
    %265 = vector.extract_strided_slice %258 {offsets = [0, 128], sizes = [2, 128], strides = [1, 1]} : vector<2x512xf32> to vector<2x128xf32>
    %266 = arith.negf %265 : vector<2x128xf32>
    %267 = math.exp %266 : vector<2x128xf32>
    %cst_96 = arith.constant 1.000000e+00 : f32
    %268 = vector.broadcast %cst_96 : f32 to vector<2x128xf32>
    %269 = arith.addf %268, %267 : vector<2x128xf32>
    %270 = arith.divf %268, %269 : vector<2x128xf32>
    %271 = vector.extract_strided_slice %258 {offsets = [0, 256], sizes = [2, 128], strides = [1, 1]} : vector<2x512xf32> to vector<2x128xf32>
    %272 = math.tanh %271 : vector<2x128xf32>
    %273 = vector.extract_strided_slice %258 {offsets = [0, 384], sizes = [2, 128], strides = [1, 1]} : vector<2x512xf32> to vector<2x128xf32>
    %274 = arith.negf %273 : vector<2x128xf32>
    %275 = math.exp %274 : vector<2x128xf32>
    %cst_97 = arith.constant 1.000000e+00 : f32
    %276 = vector.broadcast %cst_97 : f32 to vector<2x128xf32>
    %277 = arith.addf %276, %275 : vector<2x128xf32>
    %278 = arith.divf %276, %277 : vector<2x128xf32>
    %279 = arith.mulf %270, %251 : vector<2x128xf32>
    %280 = arith.mulf %264, %272 : vector<2x128xf32>
    %281 = arith.addf %279, %280 : vector<2x128xf32>
    %282 = math.tanh %281 : vector<2x128xf32>
    %283 = arith.mulf %278, %282 : vector<2x128xf32>
    %284 = vector.broadcast %249 : i32 to vector<2x1xi32>
    %285 = arith.cmpi sgt, %9, %284 : vector<2x1xi32>
    %286 = vector.shape_cast %285 : vector<2x1xi1> to vector<2x1xi1>
    %287 = vector.broadcast %286 : vector<2x1xi1> to vector<2x128xi1>
    %288 = arith.select %287, %283, %250 : vector<2x128xi1>, vector<2x128xf32>
    %c0_98 = arith.constant 0 : index
    %c0_99 = arith.constant 0 : index
    %289 = vector.load %arg6[%c0_98, %c0_99] : memref<2x128xf32, #tpu.memory_space<vmem>>, vector<2x128xf32>
    tpu.vector_store %arg6[%c0_98, %c0_99], %288 {strides = array<i32>} : memref<2x128xf32, #tpu.memory_space<vmem>>, vector<2x128xf32>,
    %290 = vector.shape_cast %285 : vector<2x1xi1> to vector<2x1xi1>
    %291 = vector.broadcast %290 : vector<2x1xi1> to vector<2x128xi1>
    %292 = arith.select %291, %281, %251 : vector<2x128xi1>, vector<2x128xf32>
    %c0_100 = arith.constant 0 : index
    %c0_101 = arith.constant 0 : index
    %293 = vector.load %arg7[%c0_100, %c0_101] : memref<2x128xf32, #tpu.memory_space<vmem>>, vector<2x128xf32>
    tpu.vector_store %arg7[%c0_100, %c0_101], %292 {strides = array<i32>} : memref<2x128xf32, #tpu.memory_space<vmem>>, vector<2x128xf32>,
    %cst_102 = arith.constant 0.000000e+00 : f32
    %294 = vector.shape_cast %285 : vector<2x1xi1> to vector<2x1xi1>
    %295 = vector.broadcast %294 : vector<2x1xi1> to vector<2x128xi1>
    %296 = vector.broadcast %cst_102 : f32 to vector<2x128xf32>
    %297 = arith.select %295, %283, %296 : vector<2x128xi1>, vector<2x128xf32>
    %c0_103 = arith.constant 0 : index
    %298 = arith.index_cast %248 : i32 to index
    %c0_104 = arith.constant 0 : index
    %c0_105 = arith.constant 0 : index
    %299 = vector.load %arg5[%c0_103, %298, %c0_104, %c0_105] : memref<1x8x2x128xf32, #tpu.memory_space<vmem>>, vector<1x1x2x128xf32>
    %300 = vector.shape_cast %299 : vector<1x1x2x128xf32> to vector<2x128xf32>
    %301 = vector.shape_cast %297 : vector<2x128xf32> to vector<1x1x2x128xf32>
    tpu.vector_store %arg5[%c0_103, %298, %c0_104, %c0_105], %301 {strides = array<i32>} : memref<1x8x2x128xf32, #tpu.memory_space<vmem>>, vector<1x1x2x128xf32>,
    %c5_i32 = arith.constant 5 : i32
    %c1_i32_106 = arith.constant 1 : i32
    %302 = arith.subi %c1_i32_106, %arg0 : i32
    %303 = arith.muli %302, %c5_i32 : i32
    %c7_i32_107 = arith.constant 7 : i32
    %304 = arith.subi %c7_i32_107, %c5_i32 : i32
    %305 = arith.muli %arg0, %304 : i32
    %306 = arith.addi %303, %305 : i32
    %307 = arith.addi %8, %306 : i32
    %c0_108 = arith.constant 0 : index
    %c0_109 = arith.constant 0 : index
    %308 = vector.load %arg6[%c0_108, %c0_109] : memref<2x128xf32, #tpu.memory_space<vmem>>, vector<2x128xf32>
    %c0_110 = arith.constant 0 : index
    %c0_111 = arith.constant 0 : index
    %309 = vector.load %arg7[%c0_110, %c0_111] : memref<2x128xf32, #tpu.memory_space<vmem>>, vector<2x128xf32>
    %310 = arith.index_cast %306 : i32 to index
    %c0_112 = arith.constant 0 : index
    %c0_113 = arith.constant 0 : index
    %311 = vector.load %arg2[%310, %c0_112, %c0_113] : memref<8x2x512xbf16, #tpu.memory_space<vmem>>, vector<1x2x512xbf16>
    %312 = vector.shape_cast %311 : vector<1x2x512xbf16> to vector<2x512xbf16>
    %313 = arith.extf %312 : vector<2x512xbf16> to vector<2x512xf32>
    %314 = arith.truncf %308 : vector<2x128xf32> to vector<2x128xbf16>
    %cst_114 = arith.constant dense<0.000000e+00> : vector<2x512xf32>
    %315 = tpu.matmul %314, %11, %cst_114 {dimension_numbers = #tpu.dot_dimension_numbers<[1], [0], [0], [1], [0, 0, 1, 1], [], []>} : vector<2x128xbf16>, vector<128x512xbf16>, vector<2x512xf32> -> vector<2x512xf32>
    %316 = arith.addf %313, %315 : vector<2x512xf32>
    %317 = vector.extract_strided_slice %316 {offsets = [0, 0], sizes = [2, 128], strides = [1, 1]} : vector<2x512xf32> to vector<2x128xf32>
    %318 = arith.negf %317 : vector<2x128xf32>
    %319 = math.exp %318 : vector<2x128xf32>
    %cst_115 = arith.constant 1.000000e+00 : f32
    %320 = vector.broadcast %cst_115 : f32 to vector<2x128xf32>
    %321 = arith.addf %320, %319 : vector<2x128xf32>
    %322 = arith.divf %320, %321 : vector<2x128xf32>
    %323 = vector.extract_strided_slice %316 {offsets = [0, 128], sizes = [2, 128], strides = [1, 1]} : vector<2x512xf32> to vector<2x128xf32>
    %324 = arith.negf %323 : vector<2x128xf32>
    %325 = math.exp %324 : vector<2x128xf32>
    %cst_116 = arith.constant 1.000000e+00 : f32
    %326 = vector.broadcast %cst_116 : f32 to vector<2x128xf32>
    %327 = arith.addf %326, %325 : vector<2x128xf32>
    %328 = arith.divf %326, %327 : vector<2x128xf32>
    %329 = vector.extract_strided_slice %316 {offsets = [0, 256], sizes = [2, 128], strides = [1, 1]} : vector<2x512xf32> to vector<2x128xf32>
    %330 = math.tanh %329 : vector<2x128xf32>
    %331 = vector.extract_strided_slice %316 {offsets = [0, 384], sizes = [2, 128], strides = [1, 1]} : vector<2x512xf32> to vector<2x128xf32>
    %332 = arith.negf %331 : vector<2x128xf32>
    %333 = math.exp %332 : vector<2x128xf32>
    %cst_117 = arith.constant 1.000000e+00 : f32
    %334 = vector.broadcast %cst_117 : f32 to vector<2x128xf32>
    %335 = arith.addf %334, %333 : vector<2x128xf32>
    %336 = arith.divf %334, %335 : vector<2x128xf32>
    %337 = arith.mulf %328, %309 : vector<2x128xf32>
    %338 = arith.mulf %322, %330 : vector<2x128xf32>
    %339 = arith.addf %337, %338 : vector<2x128xf32>
    %340 = math.tanh %339 : vector<2x128xf32>
    %341 = arith.mulf %336, %340 : vector<2x128xf32>
    %342 = vector.broadcast %307 : i32 to vector<2x1xi32>
    %343 = arith.cmpi sgt, %9, %342 : vector<2x1xi32>
    %344 = vector.shape_cast %343 : vector<2x1xi1> to vector<2x1xi1>
    %345 = vector.broadcast %344 : vector<2x1xi1> to vector<2x128xi1>
    %346 = arith.select %345, %341, %308 : vector<2x128xi1>, vector<2x128xf32>
    %c0_118 = arith.constant 0 : index
    %c0_119 = arith.constant 0 : index
    %347 = vector.load %arg6[%c0_118, %c0_119] : memref<2x128xf32, #tpu.memory_space<vmem>>, vector<2x128xf32>
    tpu.vector_store %arg6[%c0_118, %c0_119], %346 {strides = array<i32>} : memref<2x128xf32, #tpu.memory_space<vmem>>, vector<2x128xf32>,
    %348 = vector.shape_cast %343 : vector<2x1xi1> to vector<2x1xi1>
    %349 = vector.broadcast %348 : vector<2x1xi1> to vector<2x128xi1>
    %350 = arith.select %349, %339, %309 : vector<2x128xi1>, vector<2x128xf32>
    %c0_120 = arith.constant 0 : index
    %c0_121 = arith.constant 0 : index
    %351 = vector.load %arg7[%c0_120, %c0_121] : memref<2x128xf32, #tpu.memory_space<vmem>>, vector<2x128xf32>
    tpu.vector_store %arg7[%c0_120, %c0_121], %350 {strides = array<i32>} : memref<2x128xf32, #tpu.memory_space<vmem>>, vector<2x128xf32>,
    %cst_122 = arith.constant 0.000000e+00 : f32
    %352 = vector.shape_cast %343 : vector<2x1xi1> to vector<2x1xi1>
    %353 = vector.broadcast %352 : vector<2x1xi1> to vector<2x128xi1>
    %354 = vector.broadcast %cst_122 : f32 to vector<2x128xf32>
    %355 = arith.select %353, %341, %354 : vector<2x128xi1>, vector<2x128xf32>
    %c0_123 = arith.constant 0 : index
    %356 = arith.index_cast %306 : i32 to index
    %c0_124 = arith.constant 0 : index
    %c0_125 = arith.constant 0 : index
    %357 = vector.load %arg5[%c0_123, %356, %c0_124, %c0_125] : memref<1x8x2x128xf32, #tpu.memory_space<vmem>>, vector<1x1x2x128xf32>
    %358 = vector.shape_cast %357 : vector<1x1x2x128xf32> to vector<2x128xf32>
    %359 = vector.shape_cast %355 : vector<2x128xf32> to vector<1x1x2x128xf32>
    tpu.vector_store %arg5[%c0_123, %356, %c0_124, %c0_125], %359 {strides = array<i32>} : memref<1x8x2x128xf32, #tpu.memory_space<vmem>>, vector<1x1x2x128xf32>,
    %c6_i32 = arith.constant 6 : i32
    %c1_i32_126 = arith.constant 1 : i32
    %360 = arith.subi %c1_i32_126, %arg0 : i32
    %361 = arith.muli %360, %c6_i32 : i32
    %c7_i32_127 = arith.constant 7 : i32
    %362 = arith.subi %c7_i32_127, %c6_i32 : i32
    %363 = arith.muli %arg0, %362 : i32
    %364 = arith.addi %361, %363 : i32
    %365 = arith.addi %8, %364 : i32
    %c0_128 = arith.constant 0 : index
    %c0_129 = arith.constant 0 : index
    %366 = vector.load %arg6[%c0_128, %c0_129] : memref<2x128xf32, #tpu.memory_space<vmem>>, vector<2x128xf32>
    %c0_130 = arith.constant 0 : index
    %c0_131 = arith.constant 0 : index
    %367 = vector.load %arg7[%c0_130, %c0_131] : memref<2x128xf32, #tpu.memory_space<vmem>>, vector<2x128xf32>
    %368 = arith.index_cast %364 : i32 to index
    %c0_132 = arith.constant 0 : index
    %c0_133 = arith.constant 0 : index
    %369 = vector.load %arg2[%368, %c0_132, %c0_133] : memref<8x2x512xbf16, #tpu.memory_space<vmem>>, vector<1x2x512xbf16>
    %370 = vector.shape_cast %369 : vector<1x2x512xbf16> to vector<2x512xbf16>
    %371 = arith.extf %370 : vector<2x512xbf16> to vector<2x512xf32>
    %372 = arith.truncf %366 : vector<2x128xf32> to vector<2x128xbf16>
    %cst_134 = arith.constant dense<0.000000e+00> : vector<2x512xf32>
    %373 = tpu.matmul %372, %11, %cst_134 {dimension_numbers = #tpu.dot_dimension_numbers<[1], [0], [0], [1], [0, 0, 1, 1], [], []>} : vector<2x128xbf16>, vector<128x512xbf16>, vector<2x512xf32> -> vector<2x512xf32>
    %374 = arith.addf %371, %373 : vector<2x512xf32>
    %375 = vector.extract_strided_slice %374 {offsets = [0, 0], sizes = [2, 128], strides = [1, 1]} : vector<2x512xf32> to vector<2x128xf32>
    %376 = arith.negf %375 : vector<2x128xf32>
    %377 = math.exp %376 : vector<2x128xf32>
    %cst_135 = arith.constant 1.000000e+00 : f32
    %378 = vector.broadcast %cst_135 : f32 to vector<2x128xf32>
    %379 = arith.addf %378, %377 : vector<2x128xf32>
    %380 = arith.divf %378, %379 : vector<2x128xf32>
    %381 = vector.extract_strided_slice %374 {offsets = [0, 128], sizes = [2, 128], strides = [1, 1]} : vector<2x512xf32> to vector<2x128xf32>
    %382 = arith.negf %381 : vector<2x128xf32>
    %383 = math.exp %382 : vector<2x128xf32>
    %cst_136 = arith.constant 1.000000e+00 : f32
    %384 = vector.broadcast %cst_136 : f32 to vector<2x128xf32>
    %385 = arith.addf %384, %383 : vector<2x128xf32>
    %386 = arith.divf %384, %385 : vector<2x128xf32>
    %387 = vector.extract_strided_slice %374 {offsets = [0, 256], sizes = [2, 128], strides = [1, 1]} : vector<2x512xf32> to vector<2x128xf32>
    %388 = math.tanh %387 : vector<2x128xf32>
    %389 = vector.extract_strided_slice %374 {offsets = [0, 384], sizes = [2, 128], strides = [1, 1]} : vector<2x512xf32> to vector<2x128xf32>
    %390 = arith.negf %389 : vector<2x128xf32>
    %391 = math.exp %390 : vector<2x128xf32>
    %cst_137 = arith.constant 1.000000e+00 : f32
    %392 = vector.broadcast %cst_137 : f32 to vector<2x128xf32>
    %393 = arith.addf %392, %391 : vector<2x128xf32>
    %394 = arith.divf %392, %393 : vector<2x128xf32>
    %395 = arith.mulf %386, %367 : vector<2x128xf32>
    %396 = arith.mulf %380, %388 : vector<2x128xf32>
    %397 = arith.addf %395, %396 : vector<2x128xf32>
    %398 = math.tanh %397 : vector<2x128xf32>
    %399 = arith.mulf %394, %398 : vector<2x128xf32>
    %400 = vector.broadcast %365 : i32 to vector<2x1xi32>
    %401 = arith.cmpi sgt, %9, %400 : vector<2x1xi32>
    %402 = vector.shape_cast %401 : vector<2x1xi1> to vector<2x1xi1>
    %403 = vector.broadcast %402 : vector<2x1xi1> to vector<2x128xi1>
    %404 = arith.select %403, %399, %366 : vector<2x128xi1>, vector<2x128xf32>
    %c0_138 = arith.constant 0 : index
    %c0_139 = arith.constant 0 : index
    %405 = vector.load %arg6[%c0_138, %c0_139] : memref<2x128xf32, #tpu.memory_space<vmem>>, vector<2x128xf32>
    tpu.vector_store %arg6[%c0_138, %c0_139], %404 {strides = array<i32>} : memref<2x128xf32, #tpu.memory_space<vmem>>, vector<2x128xf32>,
    %406 = vector.shape_cast %401 : vector<2x1xi1> to vector<2x1xi1>
    %407 = vector.broadcast %406 : vector<2x1xi1> to vector<2x128xi1>
    %408 = arith.select %407, %397, %367 : vector<2x128xi1>, vector<2x128xf32>
    %c0_140 = arith.constant 0 : index
    %c0_141 = arith.constant 0 : index
    %409 = vector.load %arg7[%c0_140, %c0_141] : memref<2x128xf32, #tpu.memory_space<vmem>>, vector<2x128xf32>
    tpu.vector_store %arg7[%c0_140, %c0_141], %408 {strides = array<i32>} : memref<2x128xf32, #tpu.memory_space<vmem>>, vector<2x128xf32>,
    %cst_142 = arith.constant 0.000000e+00 : f32
    %410 = vector.shape_cast %401 : vector<2x1xi1> to vector<2x1xi1>
    %411 = vector.broadcast %410 : vector<2x1xi1> to vector<2x128xi1>
    %412 = vector.broadcast %cst_142 : f32 to vector<2x128xf32>
    %413 = arith.select %411, %399, %412 : vector<2x128xi1>, vector<2x128xf32>
    %c0_143 = arith.constant 0 : index
    %414 = arith.index_cast %364 : i32 to index
    %c0_144 = arith.constant 0 : index
    %c0_145 = arith.constant 0 : index
    %415 = vector.load %arg5[%c0_143, %414, %c0_144, %c0_145] : memref<1x8x2x128xf32, #tpu.memory_space<vmem>>, vector<1x1x2x128xf32>
    %416 = vector.shape_cast %415 : vector<1x1x2x128xf32> to vector<2x128xf32>
    %417 = vector.shape_cast %413 : vector<2x128xf32> to vector<1x1x2x128xf32>
    tpu.vector_store %arg5[%c0_143, %414, %c0_144, %c0_145], %417 {strides = array<i32>} : memref<1x8x2x128xf32, #tpu.memory_space<vmem>>, vector<1x1x2x128xf32>,
    %c7_i32_146 = arith.constant 7 : i32
    %c1_i32_147 = arith.constant 1 : i32
    %418 = arith.subi %c1_i32_147, %arg0 : i32
    %419 = arith.muli %418, %c7_i32_146 : i32
    %c7_i32_148 = arith.constant 7 : i32
    %420 = arith.subi %c7_i32_148, %c7_i32_146 : i32
    %421 = arith.muli %arg0, %420 : i32
    %422 = arith.addi %419, %421 : i32
    %423 = arith.addi %8, %422 : i32
    %c0_149 = arith.constant 0 : index
    %c0_150 = arith.constant 0 : index
    %424 = vector.load %arg6[%c0_149, %c0_150] : memref<2x128xf32, #tpu.memory_space<vmem>>, vector<2x128xf32>
    %c0_151 = arith.constant 0 : index
    %c0_152 = arith.constant 0 : index
    %425 = vector.load %arg7[%c0_151, %c0_152] : memref<2x128xf32, #tpu.memory_space<vmem>>, vector<2x128xf32>
    %426 = arith.index_cast %422 : i32 to index
    %c0_153 = arith.constant 0 : index
    %c0_154 = arith.constant 0 : index
    %427 = vector.load %arg2[%426, %c0_153, %c0_154] : memref<8x2x512xbf16, #tpu.memory_space<vmem>>, vector<1x2x512xbf16>
    %428 = vector.shape_cast %427 : vector<1x2x512xbf16> to vector<2x512xbf16>
    %429 = arith.extf %428 : vector<2x512xbf16> to vector<2x512xf32>
    %430 = arith.truncf %424 : vector<2x128xf32> to vector<2x128xbf16>
    %cst_155 = arith.constant dense<0.000000e+00> : vector<2x512xf32>
    %431 = tpu.matmul %430, %11, %cst_155 {dimension_numbers = #tpu.dot_dimension_numbers<[1], [0], [0], [1], [0, 0, 1, 1], [], []>} : vector<2x128xbf16>, vector<128x512xbf16>, vector<2x512xf32> -> vector<2x512xf32>
    %432 = arith.addf %429, %431 : vector<2x512xf32>
    %433 = vector.extract_strided_slice %432 {offsets = [0, 0], sizes = [2, 128], strides = [1, 1]} : vector<2x512xf32> to vector<2x128xf32>
    %434 = arith.negf %433 : vector<2x128xf32>
    %435 = math.exp %434 : vector<2x128xf32>
    %cst_156 = arith.constant 1.000000e+00 : f32
    %436 = vector.broadcast %cst_156 : f32 to vector<2x128xf32>
    %437 = arith.addf %436, %435 : vector<2x128xf32>
    %438 = arith.divf %436, %437 : vector<2x128xf32>
    %439 = vector.extract_strided_slice %432 {offsets = [0, 128], sizes = [2, 128], strides = [1, 1]} : vector<2x512xf32> to vector<2x128xf32>
    %440 = arith.negf %439 : vector<2x128xf32>
    %441 = math.exp %440 : vector<2x128xf32>
    %cst_157 = arith.constant 1.000000e+00 : f32
    %442 = vector.broadcast %cst_157 : f32 to vector<2x128xf32>
    %443 = arith.addf %442, %441 : vector<2x128xf32>
    %444 = arith.divf %442, %443 : vector<2x128xf32>
    %445 = vector.extract_strided_slice %432 {offsets = [0, 256], sizes = [2, 128], strides = [1, 1]} : vector<2x512xf32> to vector<2x128xf32>
    %446 = math.tanh %445 : vector<2x128xf32>
    %447 = vector.extract_strided_slice %432 {offsets = [0, 384], sizes = [2, 128], strides = [1, 1]} : vector<2x512xf32> to vector<2x128xf32>
    %448 = arith.negf %447 : vector<2x128xf32>
    %449 = math.exp %448 : vector<2x128xf32>
    %cst_158 = arith.constant 1.000000e+00 : f32
    %450 = vector.broadcast %cst_158 : f32 to vector<2x128xf32>
    %451 = arith.addf %450, %449 : vector<2x128xf32>
    %452 = arith.divf %450, %451 : vector<2x128xf32>
    %453 = arith.mulf %444, %425 : vector<2x128xf32>
    %454 = arith.mulf %438, %446 : vector<2x128xf32>
    %455 = arith.addf %453, %454 : vector<2x128xf32>
    %456 = math.tanh %455 : vector<2x128xf32>
    %457 = arith.mulf %452, %456 : vector<2x128xf32>
    %458 = vector.broadcast %423 : i32 to vector<2x1xi32>
    %459 = arith.cmpi sgt, %9, %458 : vector<2x1xi32>
    %460 = vector.shape_cast %459 : vector<2x1xi1> to vector<2x1xi1>
    %461 = vector.broadcast %460 : vector<2x1xi1> to vector<2x128xi1>
    %462 = arith.select %461, %457, %424 : vector<2x128xi1>, vector<2x128xf32>
    %c0_159 = arith.constant 0 : index
    %c0_160 = arith.constant 0 : index
    %463 = vector.load %arg6[%c0_159, %c0_160] : memref<2x128xf32, #tpu.memory_space<vmem>>, vector<2x128xf32>
    tpu.vector_store %arg6[%c0_159, %c0_160], %462 {strides = array<i32>} : memref<2x128xf32, #tpu.memory_space<vmem>>, vector<2x128xf32>,
    %464 = vector.shape_cast %459 : vector<2x1xi1> to vector<2x1xi1>
    %465 = vector.broadcast %464 : vector<2x1xi1> to vector<2x128xi1>
    %466 = arith.select %465, %455, %425 : vector<2x128xi1>, vector<2x128xf32>
    %c0_161 = arith.constant 0 : index
    %c0_162 = arith.constant 0 : index
    %467 = vector.load %arg7[%c0_161, %c0_162] : memref<2x128xf32, #tpu.memory_space<vmem>>, vector<2x128xf32>
    tpu.vector_store %arg7[%c0_161, %c0_162], %466 {strides = array<i32>} : memref<2x128xf32, #tpu.memory_space<vmem>>, vector<2x128xf32>,
    %cst_163 = arith.constant 0.000000e+00 : f32
    %468 = vector.shape_cast %459 : vector<2x1xi1> to vector<2x1xi1>
    %469 = vector.broadcast %468 : vector<2x1xi1> to vector<2x128xi1>
    %470 = vector.broadcast %cst_163 : f32 to vector<2x128xf32>
    %471 = arith.select %469, %457, %470 : vector<2x128xi1>, vector<2x128xf32>
    %c0_164 = arith.constant 0 : index
    %472 = arith.index_cast %422 : i32 to index
    %c0_165 = arith.constant 0 : index
    %c0_166 = arith.constant 0 : index
    %473 = vector.load %arg5[%c0_164, %472, %c0_165, %c0_166] : memref<1x8x2x128xf32, #tpu.memory_space<vmem>>, vector<1x1x2x128xf32>
    %474 = vector.shape_cast %473 : vector<1x1x2x128xf32> to vector<2x128xf32>
    %475 = vector.shape_cast %471 : vector<2x128xf32> to vector<1x1x2x128xf32>
    tpu.vector_store %arg5[%c0_164, %472, %c0_165, %c0_166], %475 {strides = array<i32>} : memref<1x8x2x128xf32, #tpu.memory_space<vmem>>, vector<1x1x2x128xf32>,
    %c8_i32_167 = arith.constant 8 : i32
    return
  }
  func.func @transform_0(%arg0: i32, %arg1: i32) -> (i32, i32, i32) {
    %c1_i32 = arith.constant 1 : i32
    %0 = arith.subi %c1_i32, %arg0 : i32
    %1 = arith.muli %0, %arg1 : i32
    %c0_i32 = arith.constant 0 : i32
    %2 = arith.subi %c0_i32, %arg1 : i32
    %3 = arith.muli %arg0, %2 : i32
    %4 = arith.addi %1, %3 : i32
    %c0_i32_0 = arith.constant 0 : i32
    %c0_i32_1 = arith.constant 0 : i32
    return %4, %c0_i32_0, %arg0 : i32, i32, i32
  }
  func.func @transform_1(%arg0: i32, %arg1: i32) -> (i32, i32, i32) {
    %c0_i32 = arith.constant 0 : i32
    %c0_i32_0 = arith.constant 0 : i32
    %c0_i32_1 = arith.constant 0 : i32
    return %arg0, %c0_i32, %c0_i32_0 : i32, i32, i32
  }
  func.func @transform_2(%arg0: i32, %arg1: i32) -> (i32, i32) {
    %c0_i32 = arith.constant 0 : i32
    %c0_i32_0 = arith.constant 0 : i32
    %c0_i32_1 = arith.constant 0 : i32
    return %c0_i32, %c0_i32_0 : i32, i32
  }
  func.func @transform_3(%arg0: i32, %arg1: i32) -> (i32, i32, i32, i32) {
    %c1_i32 = arith.constant 1 : i32
    %0 = arith.subi %c1_i32, %arg0 : i32
    %1 = arith.muli %0, %arg1 : i32
    %c0_i32 = arith.constant 0 : i32
    %2 = arith.subi %c0_i32, %arg1 : i32
    %3 = arith.muli %arg0, %2 : i32
    %4 = arith.addi %1, %3 : i32
    %c0_i32_0 = arith.constant 0 : i32
    %c0_i32_1 = arith.constant 0 : i32
    %c0_i32_2 = arith.constant 0 : i32
    return %arg0, %4, %c0_i32_0, %c0_i32_1 : i32, i32, i32, i32
  }
}

module attributes {stable_mosaic.version = 11 : i64} {
  func.func @_linear_kernel(%arg0: i32, %arg1: i32, %arg2: memref<2x256xf32, #tpu.memory_space<vmem>>, %arg3: memref<256x512xbf16, #tpu.memory_space<vmem>>, %arg4: memref<1x512xf32, #tpu.memory_space<vmem>>, %arg5: memref<2x512xf32, #tpu.memory_space<vmem>>) attributes {dimension_semantics = [#tpu.dimension_semantics<parallel>, #tpu.dimension_semantics<parallel>], iteration_bounds = array<i64: 1, 1>, scalar_prefetch = 0 : i64, scratch_operands = 0 : i64, tpu.core_type = #tpu.core_type<tc>, window_params = [{transform_indices = @transform_0, window_bounds = array<i64: 2, 256>}, {transform_indices = @transform_1, window_bounds = array<i64: 256, 512>}, {transform_indices = @transform_2, window_bounds = array<i64: 1, 512>}, {transform_indices = @transform_3, window_bounds = array<i64: 2, 512>}]} {
    %c0 = arith.constant 0 : index
    %c0_0 = arith.constant 0 : index
    %0 = vector.load %arg2[%c0, %c0_0] : memref<2x256xf32, #tpu.memory_space<vmem>>, vector<2x256xf32>
    %1 = arith.truncf %0 : vector<2x256xf32> to vector<2x256xbf16>
    %c0_1 = arith.constant 0 : index
    %c0_2 = arith.constant 0 : index
    %2 = vector.load %arg3[%c0_1, %c0_2] : memref<256x512xbf16, #tpu.memory_space<vmem>>, vector<256x512xbf16>
    %cst = arith.constant dense<0.000000e+00> : vector<2x512xf32>
    %3 = tpu.matmul %1, %2, %cst {dimension_numbers = #tpu.dot_dimension_numbers<[1], [0], [0], [1], [0, 0, 1, 1], [], []>} : vector<2x256xbf16>, vector<256x512xbf16>, vector<2x512xf32> -> vector<2x512xf32>
    %c0_3 = arith.constant 0 : index
    %c0_4 = arith.constant 0 : index
    %4 = vector.load %arg4[%c0_3, %c0_4] : memref<1x512xf32, #tpu.memory_space<vmem>>, vector<1x512xf32>
    %5 = vector.broadcast %4 : vector<1x512xf32> to vector<2x512xf32>
    %6 = arith.addf %3, %5 : vector<2x512xf32>
    %c0_5 = arith.constant 0 : index
    %c0_6 = arith.constant 0 : index
    %7 = vector.load %arg5[%c0_5, %c0_6] : memref<2x512xf32, #tpu.memory_space<vmem>>, vector<2x512xf32>
    tpu.vector_store %arg5[%c0_5, %c0_6], %6 {strides = array<i32>} : memref<2x512xf32, #tpu.memory_space<vmem>>, vector<2x512xf32>,
    return
  }
  func.func @transform_0(%arg0: i32, %arg1: i32) -> (i32, i32) {
    %c0_i32 = arith.constant 0 : i32
    %c0_i32_0 = arith.constant 0 : i32
    return %arg0, %c0_i32 : i32, i32
  }
  func.func @transform_1(%arg0: i32, %arg1: i32) -> (i32, i32) {
    %c0_i32 = arith.constant 0 : i32
    %c0_i32_0 = arith.constant 0 : i32
    return %c0_i32, %arg1 : i32, i32
  }
  func.func @transform_2(%arg0: i32, %arg1: i32) -> (i32, i32) {
    %c0_i32 = arith.constant 0 : i32
    %c0_i32_0 = arith.constant 0 : i32
    return %c0_i32, %arg1 : i32, i32
  }
  func.func @transform_3(%arg0: i32, %arg1: i32) -> (i32, i32) {
    %c0_i32 = arith.constant 0 : i32
    return %arg0, %arg1 : i32, i32
  }
}

module attributes {stable_mosaic.version = 11 : i64} {
  func.func @_span_scores_kernel(%arg0: i32, %arg1: memref<2x12x2x128xf32, #tpu.memory_space<vmem>>, %arg2: memref<2x2x2x128xf32, #tpu.memory_space<vmem>>, %arg3: memref<2x12xf32, #tpu.memory_space<vmem>>, %arg4: memref<2x12xf32, #tpu.memory_space<vmem>>) attributes {dimension_semantics = [#tpu.dimension_semantics<parallel>], iteration_bounds = array<i64: 1>, scalar_prefetch = 0 : i64, scratch_operands = 0 : i64, tpu.core_type = #tpu.core_type<tc>, window_params = [{transform_indices = @transform_0, window_bounds = array<i64: 2, 12, 2, 128>}, {pipeline_mode = #tpu.pipeline_mode<synchronous>, transform_indices = @transform_1, window_bounds = array<i64: 2, 2, 2, 128>}, {transform_indices = @transform_2, window_bounds = array<i64: 2, 12>}, {transform_indices = @transform_3, window_bounds = array<i64: 2, 12>}]} {
    %c0 = arith.constant 0 : index
    %c0_0 = arith.constant 0 : index
    %c0_1 = arith.constant 0 : index
    %c0_2 = arith.constant 0 : index
    %0 = vector.load %arg1[%c0, %c0_0, %c0_1, %c0_2] : memref<2x12x2x128xf32, #tpu.memory_space<vmem>>, vector<2x12x2x128xf32>
    %c0_3 = arith.constant 0 : index
    %c0_4 = arith.constant 0 : index
    %c0_5 = arith.constant 0 : index
    %c0_6 = arith.constant 0 : index
    %1 = vector.load %arg2[%c0_3, %c0_4, %c0_5, %c0_6] : memref<2x2x2x128xf32, #tpu.memory_space<vmem>>, vector<2x2x2x128xf32>
    %2 = vector.extract_strided_slice %1 {offsets = [0, 0, 0, 0], sizes = [1, 2, 2, 128], strides = [1, 1, 1, 1]} : vector<2x2x2x128xf32> to vector<1x2x2x128xf32>
    %3 = vector.shape_cast %2 : vector<1x2x2x128xf32> to vector<2x2x128xf32>
    %4 = vector.shape_cast %3 : vector<2x2x128xf32> to vector<2x1x2x128xf32>
    %5 = vector.broadcast %4 : vector<2x1x2x128xf32> to vector<2x12x2x128xf32>
    %6 = arith.mulf %0, %5 : vector<2x12x2x128xf32>
    %cst = arith.constant dense<0.000000e+00> : vector<12x2xf32>
    %7 = vector.multi_reduction <add>, %6, %cst [0, 3] : vector<2x12x2x128xf32> to vector<12x2xf32>
    %8 = vector.extract_strided_slice %1 {offsets = [1, 0, 0, 0], sizes = [1, 2, 2, 128], strides = [1, 1, 1, 1]} : vector<2x2x2x128xf32> to vector<1x2x2x128xf32>
    %9 = vector.shape_cast %8 : vector<1x2x2x128xf32> to vector<2x2x128xf32>
    %10 = vector.shape_cast %9 : vector<2x2x128xf32> to vector<2x1x2x128xf32>
    %11 = vector.broadcast %10 : vector<2x1x2x128xf32> to vector<2x12x2x128xf32>
    %12 = arith.mulf %0, %11 : vector<2x12x2x128xf32>
    %cst_7 = arith.constant dense<0.000000e+00> : vector<12x2xf32>
    %13 = vector.multi_reduction <add>, %12, %cst_7 [0, 3] : vector<2x12x2x128xf32> to vector<12x2xf32>
    %14 = tpu.transpose %7, [1, 0] : vector<12x2xf32> -> vector<2x12xf32>
    %c0_8 = arith.constant 0 : index
    %c0_9 = arith.constant 0 : index
    %15 = vector.load %arg3[%c0_8, %c0_9] : memref<2x12xf32, #tpu.memory_space<vmem>>, vector<2x12xf32>
    tpu.vector_store %arg3[%c0_8, %c0_9], %14 {strides = array<i32>} : memref<2x12xf32, #tpu.memory_space<vmem>>, vector<2x12xf32>,
    %16 = tpu.transpose %13, [1, 0] : vector<12x2xf32> -> vector<2x12xf32>
    %c0_10 = arith.constant 0 : index
    %c0_11 = arith.constant 0 : index
    %17 = vector.load %arg4[%c0_10, %c0_11] : memref<2x12xf32, #tpu.memory_space<vmem>>, vector<2x12xf32>
    tpu.vector_store %arg4[%c0_10, %c0_11], %16 {strides = array<i32>} : memref<2x12xf32, #tpu.memory_space<vmem>>, vector<2x12xf32>,
    return
  }
  func.func @transform_0(%arg0: i32) -> (i32, i32, i32, i32) {
    %c0_i32 = arith.constant 0 : i32
    %c0_i32_0 = arith.constant 0 : i32
    %c0_i32_1 = arith.constant 0 : i32
    %c0_i32_2 = arith.constant 0 : i32
    return %c0_i32, %arg0, %c0_i32_0, %c0_i32_1 : i32, i32, i32, i32
  }
  func.func @transform_1(%arg0: i32) -> (i32, i32, i32, i32) {
    %c0_i32 = arith.constant 0 : i32
    %c0_i32_0 = arith.constant 0 : i32
    %c0_i32_1 = arith.constant 0 : i32
    %c0_i32_2 = arith.constant 0 : i32
    %c0_i32_3 = arith.constant 0 : i32
    return %c0_i32, %c0_i32_0, %c0_i32_1, %c0_i32_2 : i32, i32, i32, i32
  }
  func.func @transform_2(%arg0: i32) -> (i32, i32) {
    %c0_i32 = arith.constant 0 : i32
    %c0_i32_0 = arith.constant 0 : i32
    return %c0_i32, %arg0 : i32, i32
  }
  func.func @transform_3(%arg0: i32) -> (i32, i32) {
    %c0_i32 = arith.constant 0 : i32
    %c0_i32_0 = arith.constant 0 : i32
    return %c0_i32, %arg0 : i32, i32
  }
}

module attributes {stable_mosaic.version = 11 : i64} {
  func.func @_span_logsoftmax_kernel(%arg0: memref<2x12xf32, #tpu.memory_space<vmem>>, %arg1: memref<2x12xf32, #tpu.memory_space<vmem>>, %arg2: memref<2x1xi32, #tpu.memory_space<vmem>>, %arg3: memref<1x1xf32, #tpu.memory_space<vmem>>, %arg4: memref<2x13xf32, #tpu.memory_space<vmem>>, %arg5: memref<2x13xf32, #tpu.memory_space<vmem>>) attributes {dimension_semantics = [], scalar_prefetch = 0 : i64, scratch_operands = 0 : i64, tpu.core_type = #tpu.core_type<tc>} {
    %c0 = arith.constant 0 : index
    %c0_0 = arith.constant 0 : index
    %0 = vector.load %arg3[%c0, %c0_0] : memref<1x1xf32, #tpu.memory_space<vmem>>, vector<1x1xf32>
    %1 = vector.extract %0[0, 0] : f32 from vector<1x1xf32>
    %2 = tpu.iota {dimensions = array<i32: 1>} : vector<2x13xi32>
    %c0_i32 = arith.constant 0 : i32
    %3 = vector.broadcast %c0_i32 : i32 to vector<2x13xi32>
    %4 = arith.cmpi eq, %2, %3 : vector<2x13xi32>
    %c1_i32 = arith.constant 1 : i32
    %5 = vector.broadcast %c1_i32 : i32 to vector<2x13xi32>
    %6 = arith.subi %2, %5 : vector<2x13xi32>
    %c0_1 = arith.constant 0 : index
    %c0_2 = arith.constant 0 : index
    %7 = vector.load %arg2[%c0_1, %c0_2] : memref<2x1xi32, #tpu.memory_space<vmem>>, vector<2x1xi32>
    %8 = vector.broadcast %7 : vector<2x1xi32> to vector<2x13xi32>
    %9 = arith.cmpi slt, %6, %8 : vector<2x13xi32>
    %10 = arith.ori %4, %9 : vector<2x13xi1>
    %c0_3 = arith.constant 0 : index
    %c0_4 = arith.constant 0 : index
    %11 = vector.load %arg0[%c0_3, %c0_4] : memref<2x12xf32, #tpu.memory_space<vmem>>, vector<2x12xf32>
    %12 = vector.broadcast %1 : f32 to vector<2x1xf32>
    %13 = tpu.concatenate %12, %11 in 1 : vector<2x1xf32>, vector<2x12xf32> -> vector<2x13xf32>
    %cst = arith.constant 0xFF800000 : f32
    %14 = vector.broadcast %cst : f32 to vector<2x13xf32>
    %15 = arith.select %10, %13, %14 : vector<2x13xi1>, vector<2x13xf32>
    %cst_5 = arith.constant dense<0xFF800000> : vector<2xf32>
    %16 = vector.multi_reduction <maximumf>, %15, %cst_5 [1] : vector<2x13xf32> to vector<2xf32>
    %17 = vector.shape_cast %16 : vector<2xf32> to vector<2x1xf32>
    %18 = vector.broadcast %17 : vector<2x1xf32> to vector<2x13xf32>
    %19 = arith.subf %15, %18 : vector<2x13xf32>
    %20 = math.exp %19 : vector<2x13xf32>
    %cst_6 = arith.constant dense<0.000000e+00> : vector<2xf32>
    %21 = vector.multi_reduction <add>, %20, %cst_6 [1] : vector<2x13xf32> to vector<2xf32>
    %22 = vector.shape_cast %21 : vector<2xf32> to vector<2x1xf32>
    %23 = math.log %22 : vector<2x1xf32>
    %24 = vector.broadcast %23 : vector<2x1xf32> to vector<2x13xf32>
    %25 = arith.subf %19, %24 : vector<2x13xf32>
    %c0_7 = arith.constant 0 : index
    %c0_8 = arith.constant 0 : index
    %26 = vector.load %arg4[%c0_7, %c0_8] : memref<2x13xf32, #tpu.memory_space<vmem>>, vector<2x13xf32>
    tpu.vector_store %arg4[%c0_7, %c0_8], %25 {strides = array<i32>} : memref<2x13xf32, #tpu.memory_space<vmem>>, vector<2x13xf32>,
    %c0_9 = arith.constant 0 : index
    %c0_10 = arith.constant 0 : index
    %27 = vector.load %arg1[%c0_9, %c0_10] : memref<2x12xf32, #tpu.memory_space<vmem>>, vector<2x12xf32>
    %28 = vector.broadcast %1 : f32 to vector<2x1xf32>
    %29 = tpu.concatenate %28, %27 in 1 : vector<2x1xf32>, vector<2x12xf32> -> vector<2x13xf32>
    %cst_11 = arith.constant 0xFF800000 : f32
    %30 = vector.broadcast %cst_11 : f32 to vector<2x13xf32>
    %31 = arith.select %10, %29, %30 : vector<2x13xi1>, vector<2x13xf32>
    %cst_12 = arith.constant dense<0xFF800000> : vector<2xf32>
    %32 = vector.multi_reduction <maximumf>, %31, %cst_12 [1] : vector<2x13xf32> to vector<2xf32>
    %33 = vector.shape_cast %32 : vector<2xf32> to vector<2x1xf32>
    %34 = vector.broadcast %33 : vector<2x1xf32> to vector<2x13xf32>
    %35 = arith.subf %31, %34 : vector<2x13xf32>
    %36 = math.exp %35 : vector<2x13xf32>
    %cst_13 = arith.constant dense<0.000000e+00> : vector<2xf32>
    %37 = vector.multi_reduction <add>, %36, %cst_13 [1] : vector<2x13xf32> to vector<2xf32>
    %38 = vector.shape_cast %37 : vector<2xf32> to vector<2x1xf32>
    %39 = math.log %38 : vector<2x1xf32>
    %40 = vector.broadcast %39 : vector<2x1xf32> to vector<2x13xf32>
    %41 = arith.subf %35, %40 : vector<2x13xf32>
    %c0_14 = arith.constant 0 : index
    %c0_15 = arith.constant 0 : index
    %42 = vector.load %arg5[%c0_14, %c0_15] : memref<2x13xf32, #tpu.memory_space<vmem>>, vector<2x13xf32>
    tpu.vector_store %arg5[%c0_14, %c0_15], %41 {strides = array<i32>} : memref<2x13xf32, #tpu.memory_space<vmem>>, vector<2x13xf32>,
    return
  }
}

</mosaic_0001>

<llo_original>
// kernel: drqa_forward.15
$region0: #{drqa_forward.15}
  #allocation0 [shape = 'u32[]', space=smem, size = 0x4, offset = 0x4, fixed_abs, tag = 'smem constant byte address 0x4 - core index']
  #allocation1 [shape = 'u32[144,128]{1,0:T(1,128)}', space=vmem, size = 0x12000, scoped, tag = 'internal scratch']
  %s0 = inlined_call_operand.vmem [shape: f32[16,16], index: 0, kind: input, shape index: {}]
  %s1 = inlined_call_operand.vmem [shape: bf16[16,128], index: 1, kind: input, shape index: {}]
  %s2 = inlined_call_operand.vmem [shape: f32[1,128], index: 2, kind: input, shape index: {}]
  %s3 = inlined_call_operand.vmem [shape: bf16[16,128], index: 3, kind: output, shape index: {}]
  %s4 = sld [smem:[#allocation0]]
  $region22: #{drqa_forward.15} parent=0
    _
  %s6 = ssub.s32 1, %s4
  %s7 = scalar_select 0, %s6, %s4
  // Predicated region
  $region2: #{drqa_forward.15} parent=0 // pred_check
    _
  $region3: #{drqa_forward.15} parent=0 // pred_check_branch
    %9 = sbr.rel (0) target = $region5
  $region4: #{drqa_forward.15} parent=0 // pred_region
    _
  $region5: #{drqa_forward.15} parent=0 // pred_fallthru
    _
  // Predicated region
  $region6: #{drqa_forward.15} parent=0 // pred_check
    _
  $region7: #{drqa_forward.15} parent=0 // pred_check_branch
    %11 = sbr.rel (0) target = $region9
  $region8: #{drqa_forward.15} parent=0 // pred_region
    _
  $region9: #{drqa_forward.15} parent=0 // pred_fallthru
    _
  // Predicated region
  $region10: #{drqa_forward.15} parent=0 // pred_check
    _
  $region11: #{drqa_forward.15} parent=0 // pred_check_branch
    %13 = sbr.rel (0) target = $region13
  $region12: #{drqa_forward.15} parent=0 // pred_region
    _
  $region13: #{drqa_forward.15} parent=0 // pred_fallthru
    _
  %v15 = vld [vmem:[%s0] sm:$0xff]
  %v16 = vld [vmem:[%s0 + $0x8] sm:$0xff]
  %v17 = vpack.c.bf16 %v16, %v15
  %v18 = vld [vmem:[%s1] sm:$0xf]
  %v19 = vld [vmem:[%s1 + $0x4] sm:$0xf]
  %v20 = vld [vmem:[%s2] sm:$0x1]
  %v22 = vlaneseq
  %v23 = vshrl.u32 %v22, 7
  %v24 = vsub.s32 0, %v23
  %v25 = vrot.slane %v20, %v24
  %v29 = vunpack.c.l.b16 %v18
  %v30 = vunpack.c.l.b16 %v19
  %v31 = vpack.c.b16 %v30, %v29
  %vm33 = vcmask 130048
  %v35 = vsel %vm33, %v17, 0
  %37 = vmatprep.subr.bf16.mxu0 0
  %38 = vmatpush1.bf16.msra.mxu0 %v31
  %39 = vmatprep.subr.bf16.mxu0 0
  %40 = vmatpush1.bf16.msra.mxu0 0
  %41 = vmatprep.subr.bf16.mxu0 0
  %42 = vmatpush1.bf16.msra.mxu0 0
  %43 = vmatprep.subr.bf16.mxu0 0
  %44 = vmatpush1.bf16.msra.mxu0 0
  %45 = vmatprep.subr.bf16.mxu0 0
  %46 = vmatpush1.bf16.msra.mxu0 0
  %47 = vmatprep.subr.bf16.mxu0 0
  %48 = vmatpush1.bf16.msra.mxu0 0
  %49 = vmatprep.subr.bf16.mxu0 0
  %50 = vmatpush1.bf16.msra.mxu0 0
  %51 = vmatprep.subr.bf16.mxu0 0
  %52 = vmatpush1.bf16.msra.mxu0 0
  %53 = vmatprep.subr.bf16.mxu0 0
  %54 = vmatpush1.bf16.msra.mxu0 0
  %55 = vmatprep.subr.bf16.mxu0 0
  %56 = vmatpush1.bf16.msra.mxu0 0
  %57 = vmatprep.subr.bf16.mxu0 0
  %58 = vmatpush1.bf16.msra.mxu0 0
  %59 = vmatprep.subr.bf16.mxu0 0
  %60 = vmatpush1.bf16.msra.mxu0 0
  %61 = vmatprep.subr.bf16.mxu0 0
  %62 = vmatpush1.bf16.msra.mxu0 0
  %63 = vmatprep.subr.bf16.mxu0 0
  %64 = vmatpush1.bf16.msra.mxu0 0
  %65 = vmatprep.subr.bf16.mxu0 0
  %66 = vmatpush1.bf16.msra.mxu0 0
  %67 = vmatprep.subr.bf16.mxu0 0
  %68 = vmatpush1.bf16.msra.mxu0 0
  %69 = vmatprep.mubr.bf16.mxu0 0
  %70 = vmatmul.mubr.bf16.gmra.mrb[0].mxu0 %v35
  %v71 = vpop.f32.mrb[0].mxu0
  %v72 = vadd.f32 %v25, %v71
  %v73 = vpop.f32.mrb[0].mxu0
  %v74 = vpop.f32.mrb[0].mxu0
  %v75 = vadd.f32 %v25, %v74
  %v76 = vpop.f32.mrb[0].mxu0
  %77 = vdwg.mxu0
  %v78 = vmax.f32 %v72, 0.0
  %v79 = vmax.f32 %v75, 0.0
  %v80 = vpack.c.bf16 %v79, %v78
  %v82 = vunpack.c.l.b16 %v80
  %v83 = vunpack.c.h.b16 %v80
  %v84 = vpack.c.b16 %v82, %v82
  %v85 = vpack.c.b16 %v83, %v83
  %88 = vst [vmem:[%s3] sm:$0xf] %v84
  %89 = vst [vmem:[%s3 + $0x4] sm:$0xf] %v85
  // Predicated region
  $region14: #{drqa_forward.15} parent=0 // pred_check
    _
  $region15: #{drqa_forward.15} parent=0 // pred_check_branch
    %91 = sbr.rel (0) target = $region17
  $region16: #{drqa_forward.15} parent=0 // pred_region
    _
  $region17: #{drqa_forward.15} parent=0 // pred_fallthru
    _
  // Predicated region
  $region18: #{drqa_forward.15} parent=0 // pred_check
    _
  $region19: #{drqa_forward.15} parent=0 // pred_check_branch
    %93 = sbr.rel (0) target = $region21
  $region20: #{drqa_forward.15} parent=0 // pred_region
    _
  $region21: #{drqa_forward.15} parent=0 // pred_fallthru
    _

// kernel: drqa_forward.14
$region0: #{drqa_forward.14}
  #allocation0 [shape = 'u32[]', space=smem, size = 0x4, offset = 0x4, fixed_abs, tag = 'smem constant byte address 0x4 - core index']
  #allocation1 [shape = 'u32[144,128]{1,0:T(1,128)}', space=vmem, size = 0x12000, scoped, tag = 'internal scratch']
  %s0 = inlined_call_operand.vmem [shape: f32[24,20], index: 0, kind: input, shape index: {}]
  %s1 = inlined_call_operand.vmem [shape: bf16[20,128], index: 1, kind: input, shape index: {}]
  %s2 = inlined_call_operand.vmem [shape: f32[1,128], index: 2, kind: input, shape index: {}]
  %s3 = inlined_call_operand.vmem [shape: bf16[24,128], index: 3, kind: output, shape index: {}]
  %s4 = sld [smem:[#allocation0]]
  $region22: #{drqa_forward.14} parent=0
    _
  %s6 = ssub.s32 1, %s4
  %s7 = scalar_select 0, %s6, %s4
  // Predicated region
  $region2: #{drqa_forward.14} parent=0 // pred_check
    _
  $region3: #{drqa_forward.14} parent=0 // pred_check_branch
    %9 = sbr.rel (0) target = $region5
  $region4: #{drqa_forward.14} parent=0 // pred_region
    _
  $region5: #{drqa_forward.14} parent=0 // pred_fallthru
    _
  // Predicated region
  $region6: #{drqa_forward.14} parent=0 // pred_check
    _
  $region7: #{drqa_forward.14} parent=0 // pred_check_branch
    %11 = sbr.rel (0) target = $region9
  $region8: #{drqa_forward.14} parent=0 // pred_region
    _
  $region9: #{drqa_forward.14} parent=0 // pred_fallthru
    _
  // Predicated region
  $region10: #{drqa_forward.14} parent=0 // pred_check
    _
  $region11: #{drqa_forward.14} parent=0 // pred_check_branch
    %13 = sbr.rel (0) target = $region13
  $region12: #{drqa_forward.14} parent=0 // pred_region
    _
  $region13: #{drqa_forward.14} parent=0 // pred_fallthru
    _
  %v15 = vld [vmem:[%s0] sm:$0xff]
  %v16 = vld [vmem:[%s0 + $0x8] sm:$0xff]
  %v17 = vld [vmem:[%s0 + $0x10] sm:$0xff]
  %v18 = vpack.c.bf16 %v16, %v15
  %v19 = vpack.c.bf16 %v17, %v17
  %v20 = vld [vmem:[%s1] sm:$0xf]
  %v21 = vld [vmem:[%s1 + $0x4] sm:$0xf]
  %v22 = vld [vmem:[%s1 + $0x8] sm:$0x3]
  %v23 = vld [vmem:[%s2] sm:$0x1]
  %v25 = vlaneseq
  %v26 = vshrl.u32 %v25, 7
  %v27 = vsub.s32 0, %v26
  %v28 = vrot.slane %v23, %v27
  %v33 = vunpack.c.l.b16 %v20
  %v34 = vunpack.c.l.b16 %v21
  %v35 = vunpack.c.l.b16 %v22
  %v36 = vpack.c.b16 %v34, %v33
  %v37 = vpack.c.b16 %v35, %v35
  %vm39 = vcmask 162816
  %v41 = vsel %vm39, %v18, 0
  %v44 = vsel %vm39, %v19, 0
  %vm46 = vcmask 1041408
  %v48 = vsel %vm46, %v37, 0
  %50 = vmatprep.subr.bf16.mxu0 0
  %51 = vmatpush1.bf16.msra.mxu0 %v36
  %52 = vmatprep.subr.bf16.mxu0 0
  %53 = vmatpush1.bf16.msra.mxu0 %v48
  %54 = vmatprep.subr.bf16.mxu0 0
  %55 = vmatpush1.bf16.msra.mxu0 0
  %56 = vmatprep.subr.bf16.mxu0 0
  %57 = vmatpush1.bf16.msra.mxu0 0
  %58 = vmatprep.subr.bf16.mxu0 0
  %59 = vmatpush1.bf16.msra.mxu0 0
  %60 = vmatprep.subr.bf16.mxu0 0
  %61 = vmatpush1.bf16.msra.mxu0 0
  %62 = vmatprep.subr.bf16.mxu0 0
  %63 = vmatpush1.bf16.msra.mxu0 0
  %64 = vmatprep.subr.bf16.mxu0 0
  %65 = vmatpush1.bf16.msra.mxu0 0
  %66 = vmatprep.subr.bf16.mxu0 0
  %67 = vmatpush1.bf16.msra.mxu0 0
  %68 = vmatprep.subr.bf16.mxu0 0
  %69 = vmatpush1.bf16.msra.mxu0 0
  %70 = vmatprep.subr.bf16.mxu0 0
  %71 = vmatpush1.bf16.msra.mxu0 0
  %72 = vmatprep.subr.bf16.mxu0 0
  %73 = vmatpush1.bf16.msra.mxu0 0
  %74 = vmatprep.subr.bf16.mxu0 0
  %75 = vmatpush1.bf16.msra.mxu0 0
  %76 = vmatprep.subr.bf16.mxu0 0
  %77 = vmatpush1.bf16.msra.mxu0 0
  %78 = vmatprep.subr.bf16.mxu0 0
  %79 = vmatpush1.bf16.msra.mxu0 0
  %80 = vmatprep.subr.bf16.mxu0 0
  %81 = vmatpush1.bf16.msra.mxu0 0
  %82 = vmatprep.mubr.bf16.mxu0 0
  %83 = vmatmul.mubr.bf16.gmra.mrb[0].mxu0 %v41
  %v84 = vpop.f32.mrb[0].mxu0
  %v85 = vadd.f32 %v28, %v84
  %v86 = vpop.f32.mrb[0].mxu0
  %v87 = vpop.f32.mrb[0].mxu0
  %v88 = vadd.f32 %v28, %v87
  %v89 = vpop.f32.mrb[0].mxu0
  %90 = vmatprep.mubr.bf16.mxu0 0
  %91 = vmatmul.mubr.bf16.gmra.mrb[0].mxu0 %v44
  %v92 = vpop.f32.mrb[0].mxu0
  %v93 = vadd.f32 %v28, %v92
  %v94 = vpop.f32.mrb[0].mxu0
  %v95 = vpop.f32.mrb[0].mxu0
  %v96 = vpop.f32.mrb[0].mxu0
  %97 = vdwg.mxu0
  %v98 = vmax.f32 %v85, 0.0
  %v99 = vmax.f32 %v88, 0.0
  %v100 = vmax.f32 %v93, 0.0
  %v101 = vpack.c.bf16 %v99, %v98
  %v102 = vpack.c.bf16 %v100, %v100
  %v105 = vunpack.c.l.b16 %v101
  %v106 = vunpack.c.h.b16 %v101
  %v107 = vunpack.c.l.b16 %v102
  %v108 = vpack.c.b16 %v105, %v105
  %v109 = vpack.c.b16 %v106, %v106
  %v110 = vpack.c.b16 %v107, %v107
  %114 = vst [vmem:[%s3] sm:$0xf] %v108
  %115 = vst [vmem:[%s3 + $0x4] sm:$0xf] %v109
  %116 = vst [vmem:[%s3 + $0x8] sm:$0xf] %v110
  // Predicated region
  $region14: #{drqa_forward.14} parent=0 // pred_check
    _
  $region15: #{drqa_forward.14} parent=0 // pred_check_branch
    %118 = sbr.rel (0) target = $region17
  $region16: #{drqa_forward.14} parent=0 // pred_region
    _
  $region17: #{drqa_forward.14} parent=0 // pred_fallthru
    _
  // Predicated region
  $region18: #{drqa_forward.14} parent=0 // pred_check
    _
  $region19: #{drqa_forward.14} parent=0 // pred_check_branch
    %120 = sbr.rel (0) target = $region21
  $region20: #{drqa_forward.14} parent=0 // pred_region
    _
  $region21: #{drqa_forward.14} parent=0 // pred_fallthru
    _

// kernel: drqa_forward.16
$region0: #{drqa_forward.16}
  #allocation0 [shape = 'u32[]', space=smem, size = 0x4, offset = 0x4, fixed_abs, tag = 'smem constant byte address 0x4 - core index']
  #allocation1 [shape = 'u32[144,128]{1,0:T(1,128)}', space=vmem, size = 0x12000, scoped, tag = 'internal scratch']
  %s0 = inlined_call_operand.vmem [shape: bf16[2,12,128], index: 0, kind: input, shape index: {}]
  %s1 = inlined_call_operand.vmem [shape: bf16[2,8,128], index: 1, kind: input, shape index: {}]
  %s2 = inlined_call_operand.vmem [shape: bf16[2,8,16], index: 2, kind: input, shape index: {}]
  %s3 = inlined_call_operand.vmem [shape: bf16[2,12,16], index: 3, kind: output, shape index: {}]
  %s4 = sld [smem:[#allocation0]]
  $region22: #{drqa_forward.16} parent=0
    _
  %s6 = ssub.s32 1, %s4
  %s7 = scalar_select 0, %s6, %s4
  // Predicated region
  $region2: #{drqa_forward.16} parent=0 // pred_check
    _
  $region3: #{drqa_forward.16} parent=0 // pred_check_branch
    %9 = sbr.rel (0) target = $region5
  $region4: #{drqa_forward.16} parent=0 // pred_region
    _
  $region5: #{drqa_forward.16} parent=0 // pred_fallthru
    _
  // Predicated region
  $region6: #{drqa_forward.16} parent=0 // pred_check
    _
  $region7: #{drqa_forward.16} parent=0 // pred_check_branch
    %11 = sbr.rel (0) target = $region9
  $region8: #{drqa_forward.16} parent=0 // pred_region
    _
  $region9: #{drqa_forward.16} parent=0 // pred_fallthru
    _
  // Predicated region
  $region10: #{drqa_forward.16} parent=0 // pred_check
    _
  $region11: #{drqa_forward.16} parent=0 // pred_check_branch
    %13 = sbr.rel (0) target = $region13
  $region12: #{drqa_forward.16} parent=0 // pred_region
    _
  $region13: #{drqa_forward.16} parent=0 // pred_fallthru
    _
  %v15 = vld [vmem:[%s0] sm:$0xf]
  %v16 = vld [vmem:[%s0 + $0x4] sm:$0x3]
  %v17 = vld [vmem:[%s0 + $0x8] sm:$0xf]
  %v18 = vld [vmem:[%s0 + $0xc] sm:$0x3]
  %v19 = vld [vmem:[%s1] sm:$0xf]
  %v20 = vld [vmem:[%s1 + $0x4] sm:$0xf]
  %v23 = vunpack.c.l.b16 %v15
  %v24 = vunpack.c.l.b16 %v16
  %v25 = vpack.c.b16 %v24, %v23
  %27 = vmatprep.subr.bf16.mxu0 0
  %28 = vmatpush1.bf16.xpose.msra.mxu0 %v19
  %29 = vmatprep.subr.bf16.mxu0 0
  %30 = vmatpush1.bf16.xpose.msra.mxu0 0
  %31 = vmatprep.subr.bf16.mxu0 0
  %32 = vmatpush1.bf16.xpose.msra.mxu0 0
  %33 = vmatprep.subr.bf16.mxu0 0
  %34 = vmatpush1.bf16.xpose.msra.mxu0 0
  %35 = vmatprep.subr.bf16.mxu0 0
  %36 = vmatpush1.bf16.xpose.msra.mxu0 0
  %37 = vmatprep.subr.bf16.mxu0 0
  %38 = vmatpush1.bf16.xpose.msra.mxu0 0
  %39 = vmatprep.subr.bf16.mxu0 0
  %40 = vmatpush1.bf16.xpose.msra.mxu0 0
  %41 = vmatprep.subr.bf16.mxu0 0
  %42 = vmatpush1.bf16.xpose.msra.mxu0 0
  %43 = vmatprep.subr.bf16.mxu0 0
  %44 = vmatpush1.bf16.xpose.msra.mxu0 0
  %45 = vmatprep.subr.bf16.mxu0 0
  %46 = vmatpush1.bf16.xpose.msra.mxu0 0
  %47 = vmatprep.subr.bf16.mxu0 0
  %48 = vmatpush1.bf16.xpose.msra.mxu0 0
  %49 = vmatprep.subr.bf16.mxu0 0
  %50 = vmatpush1.bf16.xpose.msra.mxu0 0
  %51 = vmatprep.subr.bf16.mxu0 0
  %52 = vmatpush1.bf16.xpose.msra.mxu0 0
  %53 = vmatprep.subr.bf16.mxu0 0
  %54 = vmatpush1.bf16.xpose.msra.mxu0 0
  %55 = vmatprep.subr.bf16.mxu0 0
  %56 = vmatpush1.bf16.xpose.msra.mxu0 0
  %57 = vmatprep.subr.bf16.mxu0 0
  %58 = vmatpush1.bf16.xpose.msra.mxu0 0
  %59 = vmatprep.mubr.bf16.mxu0 0
  %60 = vmatmul.mubr.bf16.gmra.mrb[0].mxu0 %v25
  %v61 = vpop.f32.mrb[0].mxu0
  %v62 = vadd.f32 0.0, %v61
  %v63 = vpop.f32.mrb[0].mxu0
  %v64 = vpop.f32.mrb[0].mxu0
  %v65 = vadd.f32 0.0, %v64
  %v66 = vpop.f32.mrb[0].mxu0
  %67 = vdwg.mxu0
  %v70 = vunpack.c.l.b16 %v17
  %v71 = vunpack.c.l.b16 %v18
  %v72 = vpack.c.b16 %v71, %v70
  %74 = vmatprep.subr.bf16.mxu0 0
  %75 = vmatpush1.bf16.xpose.msra.mxu0 %v20
  %76 = vmatprep.subr.bf16.mxu0 0
  %77 = vmatpush1.bf16.xpose.msra.mxu0 0
  %78 = vmatprep.subr.bf16.mxu0 0
  %79 = vmatpush1.bf16.xpose.msra.mxu0 0
  %80 = vmatprep.subr.bf16.mxu0 0
  %81 = vmatpush1.bf16.xpose.msra.mxu0 0
  %82 = vmatprep.subr.bf16.mxu0 0
  %83 = vmatpush1.bf16.xpose.msra.mxu0 0
  %84 = vmatprep.subr.bf16.mxu0 0
  %85 = vmatpush1.bf16.xpose.msra.mxu0 0
  %86 = vmatprep.subr.bf16.mxu0 0
  %87 = vmatpush1.bf16.xpose.msra.mxu0 0
  %88 = vmatprep.subr.bf16.mxu0 0
  %89 = vmatpush1.bf16.xpose.msra.mxu0 0
  %90 = vmatprep.subr.bf16.mxu0 0
  %91 = vmatpush1.bf16.xpose.msra.mxu0 0
  %92 = vmatprep.subr.bf16.mxu0 0
  %93 = vmatpush1.bf16.xpose.msra.mxu0 0
  %94 = vmatprep.subr.bf16.mxu0 0
  %95 = vmatpush1.bf16.xpose.msra.mxu0 0
  %96 = vmatprep.subr.bf16.mxu0 0
  %97 = vmatpush1.bf16.xpose.msra.mxu0 0
  %98 = vmatprep.subr.bf16.mxu0 0
  %99 = vmatpush1.bf16.xpose.msra.mxu0 0
  %100 = vmatprep.subr.bf16.mxu0 0
  %101 = vmatpush1.bf16.xpose.msra.mxu0 0
  %102 = vmatprep.subr.bf16.mxu0 0
  %103 = vmatpush1.bf16.xpose.msra.mxu0 0
  %104 = vmatprep.subr.bf16.mxu0 0
  %105 = vmatpush1.bf16.xpose.msra.mxu0 0
  %106 = vmatprep.mubr.bf16.mxu0 0
  %107 = vmatmul.mubr.bf16.gmra.mrb[0].mxu0 %v72
  %v108 = vpop.f32.mrb[0].mxu0
  %v109 = vadd.f32 0.0, %v108
  %v110 = vpop.f32.mrb[0].mxu0
  %v111 = vpop.f32.mrb[0].mxu0
  %v112 = vadd.f32 0.0, %v111
  %v113 = vpop.f32.mrb[0].mxu0
  %114 = vdwg.mxu0
  %vm115 = vcmask 64512
  %v116 = vsel %vm115, %v62, -inf
  %117 = vmax.xlane.f32.xlu0 %v116
  %v118 = vpop.xlane.xlu0 %117
  %vm119 = vcmask 60416
  %v120 = vsel %vm119, %v65, -inf
  %121 = vmax.xlane.f32.xlu0 %v120
  %v122 = vpop.xlane.xlu0 %121
  %v123 = vsel %vm115, %v109, -inf
  %124 = vmax.xlane.f32.xlu0 %v123
  %v125 = vpop.xlane.xlu0 %124
  %v126 = vsel %vm119, %v112, -inf
  %127 = vmax.xlane.f32.xlu0 %v126
  %v128 = vpop.xlane.xlu0 %127
  %v129 = vsub.f32 %v62, %v118
  %v130 = vsub.f32 %v65, %v122
  %v131 = vsub.f32 %v109, %v125
  %v132 = vsub.f32 %v112, %v128
  %v133 = vmul.f32 %v129, 1.442695
  %v134 = vpow.pop %v133
  %v135 = vmul.f32 %v130, 1.442695
  %v136 = vpow.pop %v135
  %v137 = vmul.f32 %v131, 1.442695
  %v138 = vpow.pop %v137
  %v139 = vmul.f32 %v132, 1.442695
  %v140 = vpow.pop %v139
  %v141 = vsel %vm115, %v134, 0.0
  %142 = vadd.xlane.f32.xlu0 %v141
  %v143 = vpop.xlane.xlu0 %142
  %v144 = vsel %vm119, %v136, 0.0
  %145 = vadd.xlane.f32.xlu0 %v144
  %v146 = vpop.xlane.xlu0 %145
  %v147 = vsel %vm115, %v138, 0.0
  %148 = vadd.xlane.f32.xlu0 %v147
  %v149 = vpop.xlane.xlu0 %148
  %v150 = vsel %vm119, %v140, 0.0
  %151 = vadd.xlane.f32.xlu0 %v150
  %v152 = vpop.xlane.xlu0 %151
  %v153 = vrcp.pop %v143
  %v154 = vrcp.pop %v146
  %v155 = vrcp.pop %v149
  %v156 = vrcp.pop %v152
  %v157 = vmul.f32 %v134, %v153
  %v158 = vmul.f32 %v136, %v154
  %v159 = vmul.f32 %v138, %v155
  %v160 = vmul.f32 %v140, %v156
  %v161 = vpack.c.bf16 %v158, %v157
  %v162 = vpack.c.bf16 %v160, %v159
  %v163 = vld [vmem:[%s2] sm:$0xf]
  %v164 = vld [vmem:[%s2 + $0x4] sm:$0xf]
  %v166 = vsel %vm115, %v161, 0
  %vm168 = vcmask 1043456
  %v170 = vsel %vm168, %v163, 0
  %172 = vmatprep.subr.bf16.mxu0 0
  %173 = vmatpush1.bf16.msra.mxu0 %v170
  %174 = vmatprep.subr.bf16.mxu0 0
  %175 = vmatpush1.bf16.msra.mxu0 0
  %176 = vmatprep.subr.bf16.mxu0 0
  %177 = vmatpush1.bf16.msra.mxu0 0
  %178 = vmatprep.subr.bf16.mxu0 0
  %179 = vmatpush1.bf16.msra.mxu0 0
  %180 = vmatprep.subr.bf16.mxu0 0
  %181 = vmatpush1.bf16.msra.mxu0 0
  %182 = vmatprep.subr.bf16.mxu0 0
  %183 = vmatpush1.bf16.msra.mxu0 0
  %184 = vmatprep.subr.bf16.mxu0 0
  %185 = vmatpush1.bf16.msra.mxu0 0
  %186 = vmatprep.subr.bf16.mxu0 0
  %187 = vmatpush1.bf16.msra.mxu0 0
  %188 = vmatprep.subr.bf16.mxu0 0
  %189 = vmatpush1.bf16.msra.mxu0 0
  %190 = vmatprep.subr.bf16.mxu0 0
  %191 = vmatpush1.bf16.msra.mxu0 0
  %192 = vmatprep.subr.bf16.mxu0 0
  %193 = vmatpush1.bf16.msra.mxu0 0
  %194 = vmatprep.subr.bf16.mxu0 0
  %195 = vmatpush1.bf16.msra.mxu0 0
  %196 = vmatprep.subr.bf16.mxu0 0
  %197 = vmatpush1.bf16.msra.mxu0 0
  %198 = vmatprep.subr.bf16.mxu0 0
  %199 = vmatpush1.bf16.msra.mxu0 0
  %200 = vmatprep.subr.bf16.mxu0 0
  %201 = vmatpush1.bf16.msra.mxu0 0
  %202 = vmatprep.subr.bf16.mxu0 0
  %203 = vmatpush1.bf16.msra.mxu0 0
  %204 = vmatprep.mubr.bf16.mxu0 0
  %205 = vmatmul.mubr.bf16.gmra.mrb[0].mxu0 %v166
  %v206 = vpop.f32.mrb[0].mxu0
  %v207 = vadd.f32 0.0, %v206
  %v208 = vpop.f32.mrb[0].mxu0
  %v209 = vpop.f32.mrb[0].mxu0
  %v210 = vadd.f32 0.0, %v209
  %v211 = vpop.f32.mrb[0].mxu0
  %212 = vdwg.mxu0
  %v214 = vsel %vm115, %v162, 0
  %v217 = vsel %vm168, %v164, 0
  %219 = vmatprep.subr.bf16.mxu0 0
  %220 = vmatpush1.bf16.msra.mxu0 %v217
  %221 = vmatprep.subr.bf16.mxu0 0
  %222 = vmatpush1.bf16.msra.mxu0 0
  %223 = vmatprep.subr.bf16.mxu0 0
  %224 = vmatpush1.bf16.msra.mxu0 0
  %225 = vmatprep.subr.bf16.mxu0 0
  %226 = vmatpush1.bf16.msra.mxu0 0
  %227 = vmatprep.subr.bf16.mxu0 0
  %228 = vmatpush1.bf16.msra.mxu0 0
  %229 = vmatprep.subr.bf16.mxu0 0
  %230 = vmatpush1.bf16.msra.mxu0 0
  %231 = vmatprep.subr.bf16.mxu0 0
  %232 = vmatpush1.bf16.msra.mxu0 0
  %233 = vmatprep.subr.bf16.mxu0 0
  %234 = vmatpush1.bf16.msra.mxu0 0
  %235 = vmatprep.subr.bf16.mxu0 0
  %236 = vmatpush1.bf16.msra.mxu0 0
  %237 = vmatprep.subr.bf16.mxu0 0
  %238 = vmatpush1.bf16.msra.mxu0 0
  %239 = vmatprep.subr.bf16.mxu0 0
  %240 = vmatpush1.bf16.msra.mxu0 0
  %241 = vmatprep.subr.bf16.mxu0 0
  %242 = vmatpush1.bf16.msra.mxu0 0
  %243 = vmatprep.subr.bf16.mxu0 0
  %244 = vmatpush1.bf16.msra.mxu0 0
  %245 = vmatprep.subr.bf16.mxu0 0
  %246 = vmatpush1.bf16.msra.mxu0 0
  %247 = vmatprep.subr.bf16.mxu0 0
  %248 = vmatpush1.bf16.msra.mxu0 0
  %249 = vmatprep.subr.bf16.mxu0 0
  %250 = vmatpush1.bf16.msra.mxu0 0
  %251 = vmatprep.mubr.bf16.mxu0 0
  %252 = vmatmul.mubr.bf16.gmra.mrb[0].mxu0 %v214
  %v253 = vpop.f32.mrb[0].mxu0
  %v254 = vadd.f32 0.0, %v253
  %v255 = vpop.f32.mrb[0].mxu0
  %v256 = vpop.f32.mrb[0].mxu0
  %v257 = vadd.f32 0.0, %v256
  %v258 = vpop.f32.mrb[0].mxu0
  %259 = vdwg.mxu0
  %v260 = vpack.c.bf16 %v210, %v207
  %v261 = vpack.c.bf16 %v257, %v254
  %v264 = vunpack.c.l.b16 %v260
  %v265 = vunpack.c.h.b16 %v260
  %v266 = vunpack.c.l.b16 %v261
  %v267 = vunpack.c.h.b16 %v261
  %v268 = vpack.c.b16 %v264, %v264
  %v269 = vpack.c.b16 %v265, %v265
  %v270 = vpack.c.b16 %v266, %v266
  %v271 = vpack.c.b16 %v267, %v267
  %vm276 = vcmask 125952
  %277 = vst.msk [vmem:[%s3] sm:$0xf] %vm276, %v268
  %vm278 = vcmask 123904
  %279 = vst.msk [vmem:[%s3 + $0x4] sm:$0x3] %vm278, %v269
  %280 = vst.msk [vmem:[%s3 + $0x8] sm:$0xf] %vm276, %v270
  %281 = vst.msk [vmem:[%s3 + $0xc] sm:$0x3] %vm278, %v271
  // Predicated region
  $region14: #{drqa_forward.16} parent=0 // pred_check
    _
  $region15: #{drqa_forward.16} parent=0 // pred_check_branch
    %283 = sbr.rel (0) target = $region17
  $region16: #{drqa_forward.16} parent=0 // pred_region
    _
  $region17: #{drqa_forward.16} parent=0 // pred_fallthru
    _
  // Predicated region
  $region18: #{drqa_forward.16} parent=0 // pred_check
    _
  $region19: #{drqa_forward.16} parent=0 // pred_check_branch
    %285 = sbr.rel (0) target = $region21
  $region20: #{drqa_forward.16} parent=0 // pred_region
    _
  $region21: #{drqa_forward.16} parent=0 // pred_fallthru
    _

// kernel: drqa_forward.17
$region0: #{drqa_forward.17}
  #allocation0 [shape = 'u32[]', space=smem, size = 0x4, offset = 0x4, fixed_abs, tag = 'smem constant byte address 0x4 - core index']
  #allocation1 [shape = 'u32[144,128]{1,0:T(1,128)}', space=vmem, size = 0x12000, scoped, tag = 'internal scratch']
  %s0 = inlined_call_operand.vmem [shape: f32[24,20], index: 0, kind: input, shape index: {}]
  %s1 = inlined_call_operand.vmem [shape: bf16[20,1024], index: 1, kind: input, shape index: {}]
  %s2 = inlined_call_operand.vmem [shape: bf16[24,16], index: 2, kind: input, shape index: {}]
  %s3 = inlined_call_operand.vmem [shape: bf16[16,1024], index: 3, kind: input, shape index: {}]
  %s4 = inlined_call_operand.vmem [shape: f32[1,1024], index: 4, kind: input, shape index: {}]
  %s5 = inlined_call_operand.vmem [shape: bf16[24,1024], index: 5, kind: output, shape index: {}]
  %s6 = sld [smem:[#allocation0]]
  $region118: #{drqa_forward.17} parent=0
    _
  %s8 = ssub.s32 1, %s6
  %s9 = scalar_select 0, %s8, %s6
  $region1: #{drqa_forward.17} parent=0
    #allocation2 [shape = 'u8[49152]{0}', space=vmem, size = 0xc000, scoped, tag = 'input window, operand 1']
    #allocation3 [shape = 'u8[32768]{0}', space=vmem, size = 0x8000, scoped, tag = 'input window, operand 3']
    #allocation4 [shape = 'u8[49152]{0}', space=vmem, size = 0xc000, scoped, tag = 'output window, operand 0']
    loop: start=0, step=1, limit=4
    $region2: #{drqa_forward.17} parent=1 // loop_pre_header
      _
    $region3: #{drqa_forward.17} parent=1 // loop_header
      %s11 = sphi 0, %s15
      %p12 = scmp.ge.s32.totalorder %s11, 4
      %s18 = sphi 0, %s30
      %s19 = sphi 0, %s26
      %s20 = sphi 0, %s18
      %s21 = sphi 0, %s19
      %s22 = sphi 0, %s20
      %s23 = sphi 0, %s21
      %s33 = sphi 0, %s35
      %s36 = sphi 0, %s33
      %s37 = sphi 0, %s36
      %s53 = sphi 0, %s37
      %s59 = sphi 0, %s61
      %s62 = sphi 0, %s59
      %s63 = sphi 0, %s62
      %s79 = sphi 0, %s63
      %s85 = sphi 0, %s87
      %s88 = sphi 0, %s85
      %s89 = sphi 0, %s88
      %s105 = sphi 0, %s89
      %s111 = sphi 0, %s113
      %s114 = sphi 0, %s111
      %s115 = sphi 0, %s114
      %s131 = sphi 0, %s115
      %s137 = sphi 0, %s139
      %s140 = sphi 0, %s137
      %s141 = sphi 0, %s140
      %s157 = sphi 0, %s141
      %s165 = sphi 0, %s167
      %s168 = sphi 0, %s165
      %s169 = sphi 0, %s168
      %s185 = sphi 0, %s169
    $region4: #{drqa_forward.17} parent=1 // loop_header_branch
      %14 = sbr.rel (%p12) target = $region8
    $region5: #{drqa_forward.17} parent=1 // loop_body
      %s16 = ssub.s32 %s11, 1
      %s17 = ssub.s32 %s11, 2
      %s24 = sadd.s32 1, %s19
      %p25 = scmp.ge.s32.totalorder %s24, 2
      %s26 = scalar_select %p25, 0, %s24
      %s27 = sadd.s32 1, %s18
      %s28 = scalar_select %p25, %s27, %s18
      %p29 = scmp.ge.s32.totalorder %s28, 1
      %s30 = scalar_select %p29, 0, %s28
      %s31 = ssub.s32 %s18, %s30
      %p32 = scmp.eq.s32.totalorder %s31, 0
      %s34 = sadd.s32 %s33, 1
      %s35 = scalar_select %p32, %s33, %s34
      %p38 = pneg %p32
      %p39 = scmp.eq.s32.totalorder %s11, 1
      %p40 = por %p38, %p39
      %p41 = scmp.ne.s32.totalorder %s33, %s36
      %p42 = scmp.eq.s32.totalorder %s11, 0
      %p43 = por %p41, %p42
      %p44 = scmp.ne.s32.totalorder %s33, %s36
      %p45 = scmp.eq.s32.totalorder %s16, 1
      %p46 = por %p44, %p45
      %p47 = scmp.ne.s32.totalorder %s36, %s37
      %p48 = scmp.eq.s32.totalorder %s16, 0
      %p49 = por %p47, %p48
      %p50 = scmp.ne.s32.totalorder %s36, %s37
      %p51 = scmp.eq.s32.totalorder %s17, 1
      %p52 = por %p50, %p51
      %p54 = scmp.ne.s32.totalorder %s37, %s53
      %p55 = scmp.eq.s32.totalorder %s17, 0
      %p56 = por %p54, %p55
      %s57 = ssub.s32 %s19, %s26
      %p58 = scmp.eq.s32.totalorder %s57, 0
      %s60 = sadd.s32 %s59, 1
      %s61 = scalar_select %p58, %s59, %s60
      %p64 = pneg %p58
      %p65 = scmp.eq.s32.totalorder %s11, 1
      %p66 = por %p64, %p65
      %p67 = scmp.ne.s32.totalorder %s59, %s62
      %p68 = scmp.eq.s32.totalorder %s11, 0
      %p69 = por %p67, %p68
      %p70 = scmp.ne.s32.totalorder %s59, %s62
      %p71 = scmp.eq.s32.totalorder %s16, 1
      %p72 = por %p70, %p71
      %p73 = scmp.ne.s32.totalorder %s62, %s63
      %p74 = scmp.eq.s32.totalorder %s16, 0
      %p75 = por %p73, %p74
      %p76 = scmp.ne.s32.totalorder %s62, %s63
      %p77 = scmp.eq.s32.totalorder %s17, 1
      %p78 = por %p76, %p77
      %p80 = scmp.ne.s32.totalorder %s63, %s79
      %p81 = scmp.eq.s32.totalorder %s17, 0
      %p82 = por %p80, %p81
      %s83 = ssub.s32 %s18, %s30
      %p84 = scmp.eq.s32.totalorder %s83, 0
      %s86 = sadd.s32 %s85, 1
      %s87 = scalar_select %p84, %s85, %s86
      %p90 = pneg %p84
      %p91 = scmp.eq.s32.totalorder %s11, 1
      %p92 = por %p90, %p91
      %p93 = scmp.ne.s32.totalorder %s85, %s88
      %p94 = scmp.eq.s32.totalorder %s11, 0
      %p95 = por %p93, %p94
      %p96 = scmp.ne.s32.totalorder %s85, %s88
      %p97 = scmp.eq.s32.totalorder %s16, 1
      %p98 = por %p96, %p97
      %p99 = scmp.ne.s32.totalorder %s88, %s89
      %p100 = scmp.eq.s32.totalorder %s16, 0
      %p101 = por %p99, %p100
      %p102 = scmp.ne.s32.totalorder %s88, %s89
      %p103 = scmp.eq.s32.totalorder %s17, 1
      %p104 = por %p102, %p103
      %p106 = scmp.ne.s32.totalorder %s89, %s105
      %p107 = scmp.eq.s32.totalorder %s17, 0
      %p108 = por %p106, %p107
      %s109 = ssub.s32 %s19, %s26
      %p110 = scmp.eq.s32.totalorder %s109, 0
      %s112 = sadd.s32 %s111, 1
      %s113 = scalar_select %p110, %s111, %s112
      %p116 = pneg %p110
      %p117 = scmp.eq.s32.totalorder %s11, 1
      %p118 = por %p116, %p117
      %p119 = scmp.ne.s32.totalorder %s111, %s114
      %p120 = scmp.eq.s32.totalorder %s11, 0
      %p121 = por %p119, %p120
      %p122 = scmp.ne.s32.totalorder %s111, %s114
      %p123 = scmp.eq.s32.totalorder %s16, 1
      %p124 = por %p122, %p123
      %p125 = scmp.ne.s32.totalorder %s114, %s115
      %p126 = scmp.eq.s32.totalorder %s16, 0
      %p127 = por %p125, %p126
      %p128 = scmp.ne.s32.totalorder %s114, %s115
      %p129 = scmp.eq.s32.totalorder %s17, 1
      %p130 = por %p128, %p129
      %p132 = scmp.ne.s32.totalorder %s115, %s131
      %p133 = scmp.eq.s32.totalorder %s17, 0
      %p134 = por %p132, %p133
      %s135 = ssub.s32 %s19, %s26
      %p136 = scmp.eq.s32.totalorder %s135, 0
      %s138 = sadd.s32 %s137, 1
      %s139 = scalar_select %p136, %s137, %s138
      %p142 = pneg %p136
      %p143 = scmp.eq.s32.totalorder %s11, 1
      %p144 = por %p142, %p143
      %p145 = scmp.ne.s32.totalorder %s137, %s140
      %p146 = scmp.eq.s32.totalorder %s11, 0
      %p147 = por %p145, %p146
      %p148 = scmp.ne.s32.totalorder %s137, %s140
      %p149 = scmp.eq.s32.totalorder %s16, 1
      %p150 = por %p148, %p149
      %p151 = scmp.ne.s32.totalorder %s140, %s141
      %p152 = scmp.eq.s32.totalorder %s16, 0
      %p153 = por %p151, %p152
      %p154 = scmp.ne.s32.totalorder %s140, %s141
      %p155 = scmp.eq.s32.totalorder %s17, 1
      %p156 = por %p154, %p155
      %p158 = scmp.ne.s32.totalorder %s141, %s157
      %p159 = scmp.eq.s32.totalorder %s17, 0
      %p160 = por %p158, %p159
      %s161 = ssub.s32 %s18, %s30
      %s162 = ssub.s32 %s19, %s26
      %s163 = sor.u32 %s161, %s162
      %p164 = scmp.eq.s32.totalorder %s163, 0
      %s166 = sadd.s32 %s165, 1
      %s167 = scalar_select %p164, %s165, %s166
      %p170 = pneg %p164
      %p171 = scmp.eq.s32.totalorder %s11, 1
      %p172 = por %p170, %p171
      %p173 = scmp.ne.s32.totalorder %s165, %s168
      %p174 = scmp.eq.s32.totalorder %s11, 0
      %p175 = por %p173, %p174
      %p176 = scmp.ne.s32.totalorder %s165, %s168
      %p177 = scmp.eq.s32.totalorder %s16, 1
      %p178 = por %p176, %p177
      %p179 = scmp.ne.s32.totalorder %s168, %s169
      %p180 = scmp.eq.s32.totalorder %s16, 0
      %p181 = por %p179, %p180
      %p182 = scmp.ne.s32.totalorder %s168, %s169
      %p183 = scmp.eq.s32.totalorder %s17, 1
      %p184 = por %p182, %p183
      %p186 = scmp.ne.s32.totalorder %s169, %s185
      %p187 = scmp.eq.s32.totalorder %s17, 0
      %p188 = por %p186, %p187
      %p189 = scmp.le.s32.totalorder 1, %s11
      %p190 = scmp.lt.s32.totalorder %s11, 3
      %p191 = pnand %p189, %p190
      %p192 = pneg %p191
      // Predicated region
      $region9: #{drqa_forward.17} parent=5 // pred_check
        _
      $region10: #{drqa_forward.17} parent=5 // pred_check_branch
        %194 = sbr.rel (%p191) target = $region12
      $region11: #{drqa_forward.17} parent=5 // pred_region
        %s195 = ssub.s32 %s11, 1
        // Predicated region
        $region13: #{drqa_forward.17} parent=11 // pred_check
          %p196 = pneg %p49
        $region14: #{drqa_forward.17} parent=11 // pred_check_branch
          %198 = sbr.rel (%p196) target = $region16
        $region15: #{drqa_forward.17} parent=11 // pred_region
          %s199 = smul.u32 3, %s20
          %p200 = scmp.lt.s32.totalorder %s199, 2
          %s201 = scalar_select %p200, %s199, 2
          %s202 = smul.addr %s201, 8
          %s203 = scalar_lea.vmem %s0, %s202
          %s204 = smul.u32 3, %s20
        $region16: #{drqa_forward.17} parent=11 // pred_fallthru
          _
        // Predicated region
        $region17: #{drqa_forward.17} parent=11 // pred_check
          %p205 = pneg %p101
        $region18: #{drqa_forward.17} parent=11 // pred_check_branch
          %207 = sbr.rel (%p205) target = $region20
        $region19: #{drqa_forward.17} parent=11 // pred_region
          %s208 = smul.u32 3, %s20
          %p209 = scmp.lt.s32.totalorder %s208, 2
          %s210 = scalar_select %p209, %s208, 2
          %s211 = smul.addr %s210, 4
          %s212 = scalar_lea.vmem %s2, %s211
          %s213 = smul.u32 3, %s20
        $region20: #{drqa_forward.17} parent=11 // pred_fallthru
          _
      $region12: #{drqa_forward.17} parent=5 // pred_fallthru
        _
      %p214 = scmp.lt.s32.totalorder %s11, 2
      // Predicated region
      $region21: #{drqa_forward.17} parent=5 // pred_check
        %p215 = pneg %p214
      $region22: #{drqa_forward.17} parent=5 // pred_check_branch
        %217 = sbr.rel (%p215) target = $region24
      $region23: #{drqa_forward.17} parent=5 // pred_region
        // Predicated region
        $region25: #{drqa_forward.17} parent=23 // pred_check
          %p218 = pneg %p69
        $region26: #{drqa_forward.17} parent=23 // pred_check_branch
          %220 = sbr.rel (%p218) target = $region28
        $region27: #{drqa_forward.17} parent=23 // pred_region
          %s221 = sand.u32 %s59, 1
          %s222 = sand.u32 %s59, 1
          %s223 = smul.addr %s222, 48
          %s224 = scalar_lea.vmem [#allocation2], %s223
          %s225 = smul.u32 4, %s19
          %s226 = smul.addr %s225, 4
          %s227 = scalar_lea.vmem %s1, %s226
          // Predicated region
          $region29: #{drqa_forward.17} parent=27 // pred_check
            _
          $region30: #{drqa_forward.17} parent=27 // pred_check_branch
            %229 = sbr.rel (0) target = $region32
          $region31: #{drqa_forward.17} parent=27 // pred_region
            // Predicated region
            $region33: #{drqa_forward.17} parent=31 // pred_check
              _
            $region34: #{drqa_forward.17} parent=31 // pred_check_branch
              %231 = sbr.rel (0) target = $region36
            $region35: #{drqa_forward.17} parent=31 // pred_region
              loop: start=0, step=1, limit=1
              $region37: #{drqa_forward.17} parent=35 // loop_pre_header
                _
              $region38: #{drqa_forward.17} parent=35 // loop_header
                %s233 = sphi 0, %s237
                %p234 = scmp.ge.s32.totalorder %s233, 1
                %s238 = sphi %s227, %s227
                %s239 = sphi %s224, %s224
              $region39: #{drqa_forward.17} parent=35 // loop_header_branch
                %236 = sbr.rel (%p234) target = $region43
              $region40: #{drqa_forward.17} parent=35 // loop_body
                %v240 = vld [vmem:[%s238] sm:$0xff]
                %241 = vst [vmem:[%s239] sm:$0xff] %v240
                %v242 = vld [vmem:[%s238 + $0x8] sm:$0xff]
                %243 = vst [vmem:[%s239 + $0x8] sm:$0xff] %v242
                %v244 = vld [vmem:[%s238 + $0x20] sm:$0xff]
                %245 = vst [vmem:[%s239 + $0x10] sm:$0xff] %v244
                %v246 = vld [vmem:[%s238 + $0x28] sm:$0xff]
                %247 = vst [vmem:[%s239 + $0x18] sm:$0xff] %v246
                %v248 = vld [vmem:[%s238 + $0x40] sm:$0xff]
                %249 = vst [vmem:[%s239 + $0x20] sm:$0xff] %v248
                %v250 = vld [vmem:[%s238 + $0x48] sm:$0xff]
                %251 = vst [vmem:[%s239 + $0x28] sm:$0xff] %v250
              $region41: #{drqa_forward.17} parent=35 // loop_footer
                %s237 = sadd.s32 1, %s233
              $region42: #{drqa_forward.17} parent=35 // loop_footer_branch
                %232 = sbr.rel target = $region38
              $region43: #{drqa_forward.17} parent=35 // loop_exit
                _
            $region36: #{drqa_forward.17} parent=31 // pred_fallthru
              _
            // Predicated region
            $region44: #{drqa_forward.17} parent=31 // pred_check
              _
            $region45: #{drqa_forward.17} parent=31 // pred_check_branch
              %253 = sbr.rel target = $region47
            $region46: #{drqa_forward.17} parent=31 // pred_region
              _
            $region47: #{drqa_forward.17} parent=31 // pred_fallthru
              _
          $region32: #{drqa_forward.17} parent=27 // pred_fallthru
            _
          %254 = vnop
        $region28: #{drqa_forward.17} parent=23 // pred_fallthru
          _
        // Predicated region
        $region48: #{drqa_forward.17} parent=23 // pred_check
          %p255 = pneg %p121
        $region49: #{drqa_forward.17} parent=23 // pred_check_branch
          %257 = sbr.rel (%p255) target = $region51
        $region50: #{drqa_forward.17} parent=23 // pred_region
          %s258 = sand.u32 %s111, 1
          %s259 = sand.u32 %s111, 1
          %s260 = smul.addr %s259, 32
          %s261 = scalar_lea.vmem [#allocation3], %s260
          %s262 = smul.u32 4, %s19
          %s263 = smul.addr %s262, 4
          %s264 = scalar_lea.vmem %s3, %s263
          // Predicated region
          $region52: #{drqa_forward.17} parent=50 // pred_check
            _
          $region53: #{drqa_forward.17} parent=50 // pred_check_branch
            %266 = sbr.rel (0) target = $region55
          $region54: #{drqa_forward.17} parent=50 // pred_region
            // Predicated region
            $region56: #{drqa_forward.17} parent=54 // pred_check
              _
            $region57: #{drqa_forward.17} parent=54 // pred_check_branch
              %268 = sbr.rel (0) target = $region59
            $region58: #{drqa_forward.17} parent=54 // pred_region
              loop: start=0, step=1, limit=1
              $region60: #{drqa_forward.17} parent=58 // loop_pre_header
                _
              $region61: #{drqa_forward.17} parent=58 // loop_header
                %s270 = sphi 0, %s274
                %p271 = scmp.ge.s32.totalorder %s270, 1
                %s275 = sphi %s264, %s264
                %s276 = sphi %s261, %s261
              $region62: #{drqa_forward.17} parent=58 // loop_header_branch
                %273 = sbr.rel (%p271) target = $region66
              $region63: #{drqa_forward.17} parent=58 // loop_body
                %v277 = vld [vmem:[%s275] sm:$0xff]
                %278 = vst [vmem:[%s276] sm:$0xff] %v277
                %v279 = vld [vmem:[%s275 + $0x8] sm:$0xff]
                %280 = vst [vmem:[%s276 + $0x8] sm:$0xff] %v279
                %v281 = vld [vmem:[%s275 + $0x20] sm:$0xff]
                %282 = vst [vmem:[%s276 + $0x10] sm:$0xff] %v281
                %v283 = vld [vmem:[%s275 + $0x28] sm:$0xff]
                %284 = vst [vmem:[%s276 + $0x18] sm:$0xff] %v283
              $region64: #{drqa_forward.17} parent=58 // loop_footer
                %s274 = sadd.s32 1, %s270
              $region65: #{drqa_forward.17} parent=58 // loop_footer_branch
                %269 = sbr.rel target = $region61
              $region66: #{drqa_forward.17} parent=58 // loop_exit
                _
            $region59: #{drqa_forward.17} parent=54 // pred_fallthru
              _
            // Predicated region
            $region67: #{drqa_forward.17} parent=54 // pred_check
              _
            $region68: #{drqa_forward.17} parent=54 // pred_check_branch
              %286 = sbr.rel target = $region70
            $region69: #{drqa_forward.17} parent=54 // pred_region
              _
            $region70: #{drqa_forward.17} parent=54 // pred_fallthru
              _
          $region55: #{drqa_forward.17} parent=50 // pred_fallthru
            _
          %287 = vnop
        $region51: #{drqa_forward.17} parent=23 // pred_fallthru
          _
        // Predicated region
        $region71: #{drqa_forward.17} parent=23 // pred_check
          %p288 = pneg %p147
        $region72: #{drqa_forward.17} parent=23 // pred_check_branch
          %290 = sbr.rel (%p288) target = $region74
        $region73: #{drqa_forward.17} parent=23 // pred_region
          %s291 = smul.u32 4, %s19
          %p292 = scmp.lt.s32.totalorder %s291, 7
          %s293 = scalar_select %p292, %s291, 7
          %s294 = scalar_lea.vmem %s4, %s293
          %s295 = smul.u32 4, %s19
        $region74: #{drqa_forward.17} parent=23 // pred_fallthru
          _
      $region24: #{drqa_forward.17} parent=5 // pred_fallthru
        _
      %p296 = scmp.le.s32.totalorder 1, %s11
      %p297 = scmp.lt.s32.totalorder %s11, 3
      %p298 = pnand %p296, %p297
      %p299 = pneg %p298
      // Predicated region
      $region75: #{drqa_forward.17} parent=5 // pred_check
        _
      $region76: #{drqa_forward.17} parent=5 // pred_check_branch
        %301 = sbr.rel (%p298) target = $region78
      $region77: #{drqa_forward.17} parent=5 // pred_region
        %s302 = ssub.s32 %s11, 1
        %s303 = sand.u32 %s62, 1
        %s304 = sand.u32 %s62, 1
        %s305 = smul.addr %s304, 48
        %s306 = scalar_lea.vmem [#allocation2], %s305
        // Predicated region
        $region79: #{drqa_forward.17} parent=77 // pred_check
          %p307 = pneg %p75
        $region80: #{drqa_forward.17} parent=77 // pred_check_branch
          %309 = sbr.rel (%p307) target = $region82
        $region81: #{drqa_forward.17} parent=77 // pred_region
          _
        $region82: #{drqa_forward.17} parent=77 // pred_fallthru
          _
        %s310 = sand.u32 %s114, 1
        %s311 = sand.u32 %s114, 1
        %s312 = smul.addr %s311, 32
        %s313 = scalar_lea.vmem [#allocation3], %s312
        // Predicated region
        $region83: #{drqa_forward.17} parent=77 // pred_check
          %p314 = pneg %p127
        $region84: #{drqa_forward.17} parent=77 // pred_check_branch
          %316 = sbr.rel (%p314) target = $region86
        $region85: #{drqa_forward.17} parent=77 // pred_region
          _
        $region86: #{drqa_forward.17} parent=77 // pred_fallthru
          _
        %s317 = smul.u32 3, %s20
        %p318 = scmp.lt.s32.totalorder %s317, 2
        %s319 = scalar_select %p318, %s317, 2
        %s320 = smul.addr %s319, 8
        %s321 = scalar_lea.vmem %s0, %s320
        %p322 = pneg %p49
        %p323 = pneg %p46
        %s324 = sand.u32 %s62, 1
        %s325 = sand.u32 %s62, 1
        %s326 = smul.addr %s325, 48
        %s327 = scalar_lea.vmem [#allocation2], %s326
        %p328 = pneg %p75
        %p329 = pneg %p72
        %s330 = smul.u32 3, %s20
        %p331 = scmp.lt.s32.totalorder %s330, 2
        %s332 = scalar_select %p331, %s330, 2
        %s333 = smul.addr %s332, 4
        %s334 = scalar_lea.vmem %s2, %s333
        %p335 = pneg %p101
        %p336 = pneg %p98
        %s337 = sand.u32 %s114, 1
        %s338 = sand.u32 %s114, 1
        %s339 = smul.addr %s338, 32
        %s340 = scalar_lea.vmem [#allocation3], %s339
        %p341 = pneg %p127
        %p342 = pneg %p124
        %s343 = smul.u32 4, %s21
        %p344 = scmp.lt.s32.totalorder %s343, 7
        %s345 = scalar_select %p344, %s343, 7
        %s346 = scalar_lea.vmem %s4, %s345
        %p347 = pneg %p153
        %p348 = pneg %p150
        %p349 = pneg %p181
        %p350 = pneg %p178
        %s351 = sand.u32 %s168, 1
        %s352 = sand.u32 %s168, 1
        %s353 = smul.addr %s352, 48
        %s354 = scalar_lea.vmem [#allocation4], %s353
        %s355 = smul.u32 3, %s20
        %p356 = scmp.lt.s32.totalorder %s355, 2
        %s357 = scalar_select %p356, %s355, 2
        %s358 = smul.addr %s357, 8
        %s359 = scalar_lea.vmem %s0, %s358
        %s360 = smul.u32 3, %s20
        %s361 = smul.u32 4, %s21
        %s362 = smul.u32 3, %s20
        %p363 = scmp.lt.s32.totalorder %s362, 2
        %s364 = scalar_select %p363, %s362, 2
        %s365 = smul.addr %s364, 4
        %s366 = scalar_lea.vmem %s2, %s365
        %s367 = smul.u32 3, %s20
        %s368 = smul.u32 4, %s21
        %s369 = smul.u32 4, %s21
        %p370 = scmp.lt.s32.totalorder %s369, 7
        %s371 = scalar_select %p370, %s369, 7
        %s372 = scalar_lea.vmem %s4, %s371
        %s373 = smul.u32 4, %s21
        %s374 = smul.u32 3, %s20
        %s375 = smul.u32 4, %s21
        %v377 = vld [vmem:[%s359] sm:$0xff]
        %v378 = vld [vmem:[%s359 + $0x8] sm:$0xff]
        %v379 = vld [vmem:[%s359 + $0x10] sm:$0xff]
        %v380 = vpack.c.bf16 %v378, %v377
        %v381 = vpack.c.bf16 %v379, %v379
        %v382 = vld [vmem:[%s306] sm:$0xff]
        %v383 = vld [vmem:[%s306 + $0x8] sm:$0xff]
        %v384 = vld [vmem:[%s306 + $0x10] sm:$0xff]
        %v385 = vld [vmem:[%s306 + $0x18] sm:$0xff]
        %v386 = vld [vmem:[%s306 + $0x20] sm:$0x33]
        %v387 = vld [vmem:[%s306 + $0x28] sm:$0x33]
        %v388 = vld [vmem:[%s366] sm:$0xf]
        %v389 = vld [vmem:[%s366 + $0x4] sm:$0xf]
        %v390 = vld [vmem:[%s366 + $0x8] sm:$0xf]
        %v391 = vld [vmem:[%s313] sm:$0xff]
        %v392 = vld [vmem:[%s313 + $0x8] sm:$0xff]
        %v393 = vld [vmem:[%s313 + $0x10] sm:$0xff]
        %v394 = vld [vmem:[%s313 + $0x18] sm:$0xff]
        %v398 = vunpack.c.l.b16 %v388
        %v399 = vunpack.c.l.b16 %v389
        %v400 = vunpack.c.l.b16 %v390
        %v401 = vpack.c.b16 %v399, %v398
        %v402 = vpack.c.b16 %v400, %v400
        %v407 = vunpack.c.l.b16 %v391
        %v408 = vunpack.c.h.b16 %v391
        %v409 = vunpack.c.l.b16 %v392
        %v410 = vunpack.c.h.b16 %v392
        %v411 = vunpack.c.l.b16 %v393
        %v412 = vunpack.c.h.b16 %v393
        %v413 = vunpack.c.l.b16 %v394
        %v414 = vunpack.c.h.b16 %v394
        %v415 = vpack.c.b16 %v411, %v407
        %v416 = vpack.c.b16 %v412, %v408
        %v417 = vpack.c.b16 %v413, %v409
        %v418 = vpack.c.b16 %v414, %v410
        %vm423 = vcmask 130048
        %v425 = vsel %vm423, %v401, 0
        %v428 = vsel %vm423, %v402, 0
        %430 = vmatprep.subr.bf16.mxu0 %v416
        %431 = vmatpush1.bf16.msra.mxu0 %v415
        %432 = vmatprep.subr.bf16.mxu0 0
        %433 = vmatpush1.bf16.msra.mxu0 0
        %434 = vmatprep.subr.bf16.mxu0 0
        %435 = vmatpush1.bf16.msra.mxu0 0
        %436 = vmatprep.subr.bf16.mxu0 0
        %437 = vmatpush1.bf16.msra.mxu0 0
        %438 = vmatprep.subr.bf16.mxu0 0
        %439 = vmatpush1.bf16.msra.mxu0 0
        %440 = vmatprep.subr.bf16.mxu0 0
        %441 = vmatpush1.bf16.msra.mxu0 0
        %442 = vmatprep.subr.bf16.mxu0 0
        %443 = vmatpush1.bf16.msra.mxu0 0
        %444 = vmatprep.subr.bf16.mxu0 0
        %445 = vmatpush1.bf16.msra.mxu0 0
        %446 = vmatprep.subr.bf16.mxu0 0
        %447 = vmatpush1.bf16.msra.mxu0 0
        %448 = vmatprep.subr.bf16.mxu0 0
        %449 = vmatpush1.bf16.msra.mxu0 0
        %450 = vmatprep.subr.bf16.mxu0 0
        %451 = vmatpush1.bf16.msra.mxu0 0
        %452 = vmatprep.subr.bf16.mxu0 0
        %453 = vmatpush1.bf16.msra.mxu0 0
        %454 = vmatprep.subr.bf16.mxu0 0
        %455 = vmatpush1.bf16.msra.mxu0 0
        %456 = vmatprep.subr.bf16.mxu0 0
        %457 = vmatpush1.bf16.msra.mxu0 0
        %458 = vmatprep.subr.bf16.mxu0 0
        %459 = vmatpush1.bf16.msra.mxu0 0
        %460 = vmatprep.subr.bf16.mxu0 0
        %461 = vmatpush1.bf16.msra.mxu0 0
        %462 = vmatprep.mubr.bf16.mxu0 0
        %463 = vmatmul.mubr.bf16.gmra.mrb[0].mxu0 %v425
        %v464 = vpop.f32.mrb[0].mxu0
        %v465 = vadd.f32 0.0, %v464
        %v466 = vpop.f32.mrb[0].mxu0
        %v467 = vadd.f32 0.0, %v466
        %v468 = vpop.f32.mrb[0].mxu0
        %v469 = vadd.f32 0.0, %v468
        %v470 = vpop.f32.mrb[0].mxu0
        %v471 = vadd.f32 0.0, %v470
        %472 = vmatprep.mubr.bf16.mxu0 0
        %473 = vmatmul.mubr.bf16.gmra.mrb[0].mxu0 %v428
        %v474 = vpop.f32.mrb[0].mxu0
        %v475 = vadd.f32 0.0, %v474
        %v476 = vpop.f32.mrb[0].mxu0
        %v477 = vadd.f32 0.0, %v476
        %v478 = vpop.f32.mrb[0].mxu0
        %v479 = vpop.f32.mrb[0].mxu0
        %480 = vdwg.mxu0
        %481 = vmatprep.subr.bf16.mxu0 %v418
        %482 = vmatpush1.bf16.msra.mxu0 %v417
        %483 = vmatprep.subr.bf16.mxu0 0
        %484 = vmatpush1.bf16.msra.mxu0 0
        %485 = vmatprep.subr.bf16.mxu0 0
        %486 = vmatpush1.bf16.msra.mxu0 0
        %487 = vmatprep.subr.bf16.mxu0 0
        %488 = vmatpush1.bf16.msra.mxu0 0
        %489 = vmatprep.subr.bf16.mxu0 0
        %490 = vmatpush1.bf16.msra.mxu0 0
        %491 = vmatprep.subr.bf16.mxu0 0
        %492 = vmatpush1.bf16.msra.mxu0 0
        %493 = vmatprep.subr.bf16.mxu0 0
        %494 = vmatpush1.bf16.msra.mxu0 0
        %495 = vmatprep.subr.bf16.mxu0 0
        %496 = vmatpush1.bf16.msra.mxu0 0
        %497 = vmatprep.subr.bf16.mxu0 0
        %498 = vmatpush1.bf16.msra.mxu0 0
        %499 = vmatprep.subr.bf16.mxu0 0
        %500 = vmatpush1.bf16.msra.mxu0 0
        %501 = vmatprep.subr.bf16.mxu0 0
        %502 = vmatpush1.bf16.msra.mxu0 0
        %503 = vmatprep.subr.bf16.mxu0 0
        %504 = vmatpush1.bf16.msra.mxu0 0
        %505 = vmatprep.subr.bf16.mxu0 0
        %506 = vmatpush1.bf16.msra.mxu0 0
        %507 = vmatprep.subr.bf16.mxu0 0
        %508 = vmatpush1.bf16.msra.mxu0 0
        %509 = vmatprep.subr.bf16.mxu0 0
        %510 = vmatpush1.bf16.msra.mxu0 0
        %511 = vmatprep.subr.bf16.mxu0 0
        %512 = vmatpush1.bf16.msra.mxu0 0
        %513 = vmatprep.mubr.bf16.mxu0 0
        %514 = vmatmul.mubr.bf16.gmra.mrb[0].mxu0 %v425
        %v515 = vpop.f32.mrb[0].mxu0
        %v516 = vadd.f32 0.0, %v515
        %v517 = vpop.f32.mrb[0].mxu0
        %v518 = vadd.f32 0.0, %v517
        %v519 = vpop.f32.mrb[0].mxu0
        %v520 = vadd.f32 0.0, %v519
        %v521 = vpop.f32.mrb[0].mxu0
        %v522 = vadd.f32 0.0, %v521
        %523 = vmatprep.mubr.bf16.mxu0 0
        %524 = vmatmul.mubr.bf16.gmra.mrb[0].mxu0 %v428
        %v525 = vpop.f32.mrb[0].mxu0
        %v526 = vadd.f32 0.0, %v525
        %v527 = vpop.f32.mrb[0].mxu0
        %v528 = vadd.f32 0.0, %v527
        %v529 = vpop.f32.mrb[0].mxu0
        %v530 = vpop.f32.mrb[0].mxu0
        %531 = vdwg.mxu0
        %v538 = vunpack.c.l.b16 %v382
        %v539 = vunpack.c.h.b16 %v382
        %v540 = vunpack.c.l.b16 %v383
        %v541 = vunpack.c.h.b16 %v383
        %v542 = vunpack.c.l.b16 %v384
        %v543 = vunpack.c.h.b16 %v384
        %v544 = vunpack.c.l.b16 %v385
        %v545 = vunpack.c.h.b16 %v385
        %v546 = vunpack.c.l.b16 %v386
        %v547 = vunpack.c.h.b16 %v386
        %v548 = vunpack.c.l.b16 %v387
        %v549 = vunpack.c.h.b16 %v387
        %v550 = vpack.c.b16 %v542, %v538
        %v551 = vpack.c.b16 %v543, %v539
        %v552 = vpack.c.b16 %v544, %v540
        %v553 = vpack.c.b16 %v545, %v541
        %v554 = vpack.c.b16 %v546, %v546
        %v555 = vpack.c.b16 %v547, %v547
        %v556 = vpack.c.b16 %v548, %v548
        %v557 = vpack.c.b16 %v549, %v549
        %vm562 = vcmask 162816
        %v564 = vsel %vm562, %v380, 0
        %v567 = vsel %vm562, %v381, 0
        %vm569 = vcmask 1041408
        %v571 = vsel %vm569, %v554, 0
        %v574 = vsel %vm569, %v555, 0
        %v577 = vsel %vm569, %v556, 0
        %v580 = vsel %vm569, %v557, 0
        %582 = vmatprep.subr.bf16.mxu0 %v551
        %583 = vmatpush1.bf16.msra.mxu0 %v550
        %584 = vmatprep.subr.bf16.mxu0 %v574
        %585 = vmatpush1.bf16.msra.mxu0 %v571
        %586 = vmatprep.subr.bf16.mxu0 0
        %587 = vmatpush1.bf16.msra.mxu0 0
        %588 = vmatprep.subr.bf16.mxu0 0
        %589 = vmatpush1.bf16.msra.mxu0 0
        %590 = vmatprep.subr.bf16.mxu0 0
        %591 = vmatpush1.bf16.msra.mxu0 0
        %592 = vmatprep.subr.bf16.mxu0 0
        %593 = vmatpush1.bf16.msra.mxu0 0
        %594 = vmatprep.subr.bf16.mxu0 0
        %595 = vmatpush1.bf16.msra.mxu0 0
        %596 = vmatprep.subr.bf16.mxu0 0
        %597 = vmatpush1.bf16.msra.mxu0 0
        %598 = vmatprep.subr.bf16.mxu0 0
        %599 = vmatpush1.bf16.msra.mxu0 0
        %600 = vmatprep.subr.bf16.mxu0 0
        %601 = vmatpush1.bf16.msra.mxu0 0
        %602 = vmatprep.subr.bf16.mxu0 0
        %603 = vmatpush1.bf16.msra.mxu0 0
        %604 = vmatprep.subr.bf16.mxu0 0
        %605 = vmatpush1.bf16.msra.mxu0 0
        %606 = vmatprep.subr.bf16.mxu0 0
        %607 = vmatpush1.bf16.msra.mxu0 0
        %608 = vmatprep.subr.bf16.mxu0 0
        %609 = vmatpush1.bf16.msra.mxu0 0
        %610 = vmatprep.subr.bf16.mxu0 0
        %611 = vmatpush1.bf16.msra.mxu0 0
        %612 = vmatprep.subr.bf16.mxu0 0
        %613 = vmatpush1.bf16.msra.mxu0 0
        %614 = vmatprep.mubr.bf16.mxu0 0
        %615 = vmatmul.mubr.bf16.gmra.mrb[0].mxu0 %v564
        %v616 = vpop.f32.mrb[0].mxu0
        %v617 = vadd.f32 %v465, %v616
        %v618 = vpop.f32.mrb[0].mxu0
        %v619 = vadd.f32 %v467, %v618
        %v620 = vpop.f32.mrb[0].mxu0
        %v621 = vadd.f32 %v469, %v620
        %v622 = vpop.f32.mrb[0].mxu0
        %v623 = vadd.f32 %v471, %v622
        %624 = vmatprep.mubr.bf16.mxu0 0
        %625 = vmatmul.mubr.bf16.gmra.mrb[0].mxu0 %v567
        %v626 = vpop.f32.mrb[0].mxu0
        %v627 = vadd.f32 %v475, %v626
        %v628 = vpop.f32.mrb[0].mxu0
        %v629 = vadd.f32 %v477, %v628
        %v630 = vpop.f32.mrb[0].mxu0
        %v631 = vpop.f32.mrb[0].mxu0
        %632 = vdwg.mxu0
        %633 = vmatprep.subr.bf16.mxu0 %v553
        %634 = vmatpush1.bf16.msra.mxu0 %v552
        %635 = vmatprep.subr.bf16.mxu0 %v580
        %636 = vmatpush1.bf16.msra.mxu0 %v577
        %637 = vmatprep.subr.bf16.mxu0 0
        %638 = vmatpush1.bf16.msra.mxu0 0
        %639 = vmatprep.subr.bf16.mxu0 0
        %640 = vmatpush1.bf16.msra.mxu0 0
        %641 = vmatprep.subr.bf16.mxu0 0
        %642 = vmatpush1.bf16.msra.mxu0 0
        %643 = vmatprep.subr.bf16.mxu0 0
        %644 = vmatpush1.bf16.msra.mxu0 0
        %645 = vmatprep.subr.bf16.mxu0 0
        %646 = vmatpush1.bf16.msra.mxu0 0
        %647 = vmatprep.subr.bf16.mxu0 0
        %648 = vmatpush1.bf16.msra.mxu0 0
        %649 = vmatprep.subr.bf16.mxu0 0
        %650 = vmatpush1.bf16.msra.mxu0 0
        %651 = vmatprep.subr.bf16.mxu0 0
        %652 = vmatpush1.bf16.msra.mxu0 0
        %653 = vmatprep.subr.bf16.mxu0 0
        %654 = vmatpush1.bf16.msra.mxu0 0
        %655 = vmatprep.subr.bf16.mxu0 0
        %656 = vmatpush1.bf16.msra.mxu0 0
        %657 = vmatprep.subr.bf16.mxu0 0
        %658 = vmatpush1.bf16.msra.mxu0 0
        %659 = vmatprep.subr.bf16.mxu0 0
        %660 = vmatpush1.bf16.msra.mxu0 0
        %661 = vmatprep.subr.bf16.mxu0 0
        %662 = vmatpush1.bf16.msra.mxu0 0
        %663 = vmatprep.subr.bf16.mxu0 0
        %664 = vmatpush1.bf16.msra.mxu0 0
        %665 = vmatprep.mubr.bf16.mxu0 0
        %666 = vmatmul.mubr.bf16.gmra.mrb[0].mxu0 %v564
        %v667 = vpop.f32.mrb[0].mxu0
        %v668 = vadd.f32 %v516, %v667
        %v669 = vpop.f32.mrb[0].mxu0
        %v670 = vadd.f32 %v518, %v669
        %v671 = vpop.f32.mrb[0].mxu0
        %v672 = vadd.f32 %v520, %v671
        %v673 = vpop.f32.mrb[0].mxu0
        %v674 = vadd.f32 %v522, %v673
        %675 = vmatprep.mubr.bf16.mxu0 0
        %676 = vmatmul.mubr.bf16.gmra.mrb[0].mxu0 %v567
        %v677 = vpop.f32.mrb[0].mxu0
        %v678 = vadd.f32 %v526, %v677
        %v679 = vpop.f32.mrb[0].mxu0
        %v680 = vadd.f32 %v528, %v679
        %v681 = vpop.f32.mrb[0].mxu0
        %v682 = vpop.f32.mrb[0].mxu0
        %683 = vdwg.mxu0
        %v684 = vld [vmem:[%s372] sm:$0xf]
        %v686 = vlaneseq
        %v687 = vshrl.u32 %v686, 7
        %v688 = vsub.s32 0, %v687
        %v689 = vrot.slane %v684, %v688
        %v690 = vlaneseq
        %v691 = vshrl.u32 %v690, 7
        %v692 = vsub.s32 1, %v691
        %v693 = vrot.slane %v684, %v692
        %v694 = vlaneseq
        %v695 = vshrl.u32 %v694, 7
        %v696 = vsub.s32 2, %v695
        %v697 = vrot.slane %v684, %v696
        %v698 = vlaneseq
        %v699 = vshrl.u32 %v698, 7
        %v700 = vsub.s32 3, %v699
        %v701 = vrot.slane %v684, %v700
        %v706 = vadd.f32 %v617, %v689
        %v707 = vadd.f32 %v619, %v693
        %v708 = vadd.f32 %v668, %v697
        %v709 = vadd.f32 %v670, %v701
        %v710 = vadd.f32 %v621, %v689
        %v711 = vadd.f32 %v623, %v693
        %v712 = vadd.f32 %v672, %v697
        %v713 = vadd.f32 %v674, %v701
        %v714 = vadd.f32 %v627, %v689
        %v715 = vadd.f32 %v629, %v693
        %v716 = vadd.f32 %v678, %v697
        %v717 = vadd.f32 %v680, %v701
        %v718 = vpack.c.bf16 %v710, %v706
        %v719 = vpack.c.bf16 %v711, %v707
        %v720 = vpack.c.bf16 %v712, %v708
        %v721 = vpack.c.bf16 %v713, %v709
        %v722 = vpack.c.bf16 %v714, %v714
        %v723 = vpack.c.bf16 %v715, %v715
        %v724 = vpack.c.bf16 %v716, %v716
        %v725 = vpack.c.bf16 %v717, %v717
        %v734 = vunpack.c.l.b16 %v718
        %v735 = vunpack.c.l.b16 %v719
        %v736 = vunpack.c.l.b16 %v720
        %v737 = vunpack.c.l.b16 %v721
        %v738 = vunpack.c.h.b16 %v718
        %v739 = vunpack.c.h.b16 %v719
        %v740 = vunpack.c.h.b16 %v720
        %v741 = vunpack.c.h.b16 %v721
        %v742 = vunpack.c.l.b16 %v722
        %v743 = vunpack.c.l.b16 %v723
        %v744 = vunpack.c.l.b16 %v724
        %v745 = vunpack.c.l.b16 %v725
        %v746 = vpack.c.b16 %v735, %v734
        %v747 = vpack.c.b16 %v737, %v736
        %v748 = vpack.c.b16 %v739, %v738
        %v749 = vpack.c.b16 %v741, %v740
        %v750 = vpack.c.b16 %v743, %v742
        %v751 = vpack.c.b16 %v745, %v744
        %758 = vst [vmem:[%s354] sm:$0xff] %v746
        %759 = vst [vmem:[%s354 + $0x8] sm:$0xff] %v747
        %760 = vst [vmem:[%s354 + $0x10] sm:$0xff] %v748
        %761 = vst [vmem:[%s354 + $0x18] sm:$0xff] %v749
        %762 = vst [vmem:[%s354 + $0x20] sm:$0xff] %v750
        %763 = vst [vmem:[%s354 + $0x28] sm:$0xff] %v751
        %s764 = sand.u32 %s168, 1
        %s765 = sand.u32 %s168, 1
        %s766 = smul.addr %s765, 48
        %s767 = scalar_lea.vmem [#allocation4], %s766
        // Predicated region
        $region87: #{drqa_forward.17} parent=77 // pred_check
          %p768 = pneg %p178
        $region88: #{drqa_forward.17} parent=77 // pred_check_branch
          %770 = sbr.rel (%p768) target = $region90
        $region89: #{drqa_forward.17} parent=77 // pred_region
          %s771 = smul.u32 3, %s20
          %s772 = smul.u32 4, %s21
          %s773 = smul.addr %s771, 8
          %s774 = sadd.s32 %s772, %s773
          %s775 = smul.addr %s774, 4
          %s776 = scalar_lea.vmem %s5, %s775
          // Predicated region
          $region91: #{drqa_forward.17} parent=89 // pred_check
            _
          $region92: #{drqa_forward.17} parent=89 // pred_check_branch
            %778 = sbr.rel (0) target = $region94
          $region93: #{drqa_forward.17} parent=89 // pred_region
            // Predicated region
            $region95: #{drqa_forward.17} parent=93 // pred_check
              _
            $region96: #{drqa_forward.17} parent=93 // pred_check_branch
              %780 = sbr.rel (0) target = $region98
            $region97: #{drqa_forward.17} parent=93 // pred_region
              loop: start=0, step=1, limit=1
              $region99: #{drqa_forward.17} parent=97 // loop_pre_header
                _
              $region100: #{drqa_forward.17} parent=97 // loop_header
                %s782 = sphi 0, %s786
                %p783 = scmp.ge.s32.totalorder %s782, 1
                %s787 = sphi %s767, %s767
                %s788 = sphi %s776, %s776
              $region101: #{drqa_forward.17} parent=97 // loop_header_branch
                %785 = sbr.rel (%p783) target = $region105
              $region102: #{drqa_forward.17} parent=97 // loop_body
                %v789 = vld [vmem:[%s787] sm:$0xff]
                %790 = vst [vmem:[%s788] sm:$0xff] %v789
                %v791 = vld [vmem:[%s787 + $0x8] sm:$0xff]
                %792 = vst [vmem:[%s788 + $0x8] sm:$0xff] %v791
                %v793 = vld [vmem:[%s787 + $0x10] sm:$0xff]
                %794 = vst [vmem:[%s788 + $0x20] sm:$0xff] %v793
                %v795 = vld [vmem:[%s787 + $0x18] sm:$0xff]
                %796 = vst [vmem:[%s788 + $0x28] sm:$0xff] %v795
                %v797 = vld [vmem:[%s787 + $0x20] sm:$0xff]
                %798 = vst [vmem:[%s788 + $0x40] sm:$0xff] %v797
                %v799 = vld [vmem:[%s787 + $0x28] sm:$0xff]
                %800 = vst [vmem:[%s788 + $0x48] sm:$0xff] %v799
              $region103: #{drqa_forward.17} parent=97 // loop_footer
                %s786 = sadd.s32 1, %s782
              $region104: #{drqa_forward.17} parent=97 // loop_footer_branch
                %781 = sbr.rel target = $region100
              $region105: #{drqa_forward.17} parent=97 // loop_exit
                _
            $region98: #{drqa_forward.17} parent=93 // pred_fallthru
              _
            // Predicated region
            $region106: #{drqa_forward.17} parent=93 // pred_check
              _
            $region107: #{drqa_forward.17} parent=93 // pred_check_branch
              %802 = sbr.rel target = $region109
            $region108: #{drqa_forward.17} parent=93 // pred_region
              _
            $region109: #{drqa_forward.17} parent=93 // pred_fallthru
              _
          $region94: #{drqa_forward.17} parent=89 // pred_fallthru
            _
          %803 = vnop
        $region90: #{drqa_forward.17} parent=77 // pred_fallthru
          _
      $region78: #{drqa_forward.17} parent=5 // pred_fallthru
        _
      %p804 = scmp.le.s32.totalorder 2, %s11
      // Predicated region
      $region110: #{drqa_forward.17} parent=5 // pred_check
        %p805 = pneg %p804
      $region111: #{drqa_forward.17} parent=5 // pred_check_branch
        %807 = sbr.rel (%p805) target = $region113
      $region112: #{drqa_forward.17} parent=5 // pred_region
        %s808 = ssub.s32 %s11, 2
        // Predicated region
        $region114: #{drqa_forward.17} parent=112 // pred_check
          %p809 = pneg %p184
        $region115: #{drqa_forward.17} parent=112 // pred_check_branch
          %811 = sbr.rel (%p809) target = $region117
        $region116: #{drqa_forward.17} parent=112 // pred_region
          %s812 = sand.u32 %s169, 1
          %s813 = sand.u32 %s169, 1
          %s814 = smul.addr %s813, 48
          %s815 = scalar_lea.vmem [#allocation4], %s814
        $region117: #{drqa_forward.17} parent=112 // pred_fallthru
          _
      $region113: #{drqa_forward.17} parent=5 // pred_fallthru
        _
    $region6: #{drqa_forward.17} parent=1 // loop_footer
      %s15 = sadd.s32 1, %s11
    $region7: #{drqa_forward.17} parent=1 // loop_footer_branch
      %10 = sbr.rel target = $region3
    $region8: #{drqa_forward.17} parent=1 // loop_exit
      _

// kernel: drqa_forward.11
$region0: #{drqa_forward.11}
  #allocation0 [shape = 'u32[]', space=smem, size = 0x4, offset = 0x4, fixed_abs, tag = 'smem constant byte address 0x4 - core index']
  #allocation1 [shape = 'u32[144,128]{1,0:T(1,128)}', space=vmem, size = 0x12000, scoped, tag = 'internal scratch']
  %s0 = inlined_call_operand.vmem [shape: f32[16,16], index: 0, kind: input, shape index: {}]
  %s1 = inlined_call_operand.vmem [shape: bf16[16,1024], index: 1, kind: input, shape index: {}]
  %s2 = inlined_call_operand.vmem [shape: f32[1,1024], index: 2, kind: input, shape index: {}]
  %s3 = inlined_call_operand.vmem [shape: bf16[16,1024], index: 3, kind: output, shape index: {}]
  %s4 = sld [smem:[#allocation0]]
  $region87: #{drqa_forward.11} parent=0
    _
  %s6 = ssub.s32 1, %s4
  %s7 = scalar_select 0, %s6, %s4
  $region1: #{drqa_forward.11} parent=0
    #allocation2 [shape = 'u8[32768]{0}', space=vmem, size = 0x8000, scoped, tag = 'input window, operand 1']
    #allocation3 [shape = 'u8[32768]{0}', space=vmem, size = 0x8000, scoped, tag = 'output window, operand 0']
    loop: start=0, step=1, limit=4
    $region2: #{drqa_forward.11} parent=1 // loop_pre_header
      _
    $region3: #{drqa_forward.11} parent=1 // loop_header
      %s9 = sphi 0, %s13
      %p10 = scmp.ge.s32.totalorder %s9, 4
      %s16 = sphi 0, %s28
      %s17 = sphi 0, %s24
      %s18 = sphi 0, %s16
      %s19 = sphi 0, %s17
      %s20 = sphi 0, %s18
      %s21 = sphi 0, %s19
      %s31 = sphi 0, %s33
      %s34 = sphi 0, %s31
      %s35 = sphi 0, %s34
      %s51 = sphi 0, %s35
      %s57 = sphi 0, %s59
      %s60 = sphi 0, %s57
      %s61 = sphi 0, %s60
      %s77 = sphi 0, %s61
      %s83 = sphi 0, %s85
      %s86 = sphi 0, %s83
      %s87 = sphi 0, %s86
      %s103 = sphi 0, %s87
      %s111 = sphi 0, %s113
      %s114 = sphi 0, %s111
      %s115 = sphi 0, %s114
      %s131 = sphi 0, %s115
    $region4: #{drqa_forward.11} parent=1 // loop_header_branch
      %12 = sbr.rel (%p10) target = $region8
    $region5: #{drqa_forward.11} parent=1 // loop_body
      %s14 = ssub.s32 %s9, 1
      %s15 = ssub.s32 %s9, 2
      %s22 = sadd.s32 1, %s17
      %p23 = scmp.ge.s32.totalorder %s22, 2
      %s24 = scalar_select %p23, 0, %s22
      %s25 = sadd.s32 1, %s16
      %s26 = scalar_select %p23, %s25, %s16
      %p27 = scmp.ge.s32.totalorder %s26, 1
      %s28 = scalar_select %p27, 0, %s26
      %s29 = ssub.s32 %s16, %s28
      %p30 = scmp.eq.s32.totalorder %s29, 0
      %s32 = sadd.s32 %s31, 1
      %s33 = scalar_select %p30, %s31, %s32
      %p36 = pneg %p30
      %p37 = scmp.eq.s32.totalorder %s9, 1
      %p38 = por %p36, %p37
      %p39 = scmp.ne.s32.totalorder %s31, %s34
      %p40 = scmp.eq.s32.totalorder %s9, 0
      %p41 = por %p39, %p40
      %p42 = scmp.ne.s32.totalorder %s31, %s34
      %p43 = scmp.eq.s32.totalorder %s14, 1
      %p44 = por %p42, %p43
      %p45 = scmp.ne.s32.totalorder %s34, %s35
      %p46 = scmp.eq.s32.totalorder %s14, 0
      %p47 = por %p45, %p46
      %p48 = scmp.ne.s32.totalorder %s34, %s35
      %p49 = scmp.eq.s32.totalorder %s15, 1
      %p50 = por %p48, %p49
      %p52 = scmp.ne.s32.totalorder %s35, %s51
      %p53 = scmp.eq.s32.totalorder %s15, 0
      %p54 = por %p52, %p53
      %s55 = ssub.s32 %s17, %s24
      %p56 = scmp.eq.s32.totalorder %s55, 0
      %s58 = sadd.s32 %s57, 1
      %s59 = scalar_select %p56, %s57, %s58
      %p62 = pneg %p56
      %p63 = scmp.eq.s32.totalorder %s9, 1
      %p64 = por %p62, %p63
      %p65 = scmp.ne.s32.totalorder %s57, %s60
      %p66 = scmp.eq.s32.totalorder %s9, 0
      %p67 = por %p65, %p66
      %p68 = scmp.ne.s32.totalorder %s57, %s60
      %p69 = scmp.eq.s32.totalorder %s14, 1
      %p70 = por %p68, %p69
      %p71 = scmp.ne.s32.totalorder %s60, %s61
      %p72 = scmp.eq.s32.totalorder %s14, 0
      %p73 = por %p71, %p72
      %p74 = scmp.ne.s32.totalorder %s60, %s61
      %p75 = scmp.eq.s32.totalorder %s15, 1
      %p76 = por %p74, %p75
      %p78 = scmp.ne.s32.totalorder %s61, %s77
      %p79 = scmp.eq.s32.totalorder %s15, 0
      %p80 = por %p78, %p79
      %s81 = ssub.s32 %s17, %s24
      %p82 = scmp.eq.s32.totalorder %s81, 0
      %s84 = sadd.s32 %s83, 1
      %s85 = scalar_select %p82, %s83, %s84
      %p88 = pneg %p82
      %p89 = scmp.eq.s32.totalorder %s9, 1
      %p90 = por %p88, %p89
      %p91 = scmp.ne.s32.totalorder %s83, %s86
      %p92 = scmp.eq.s32.totalorder %s9, 0
      %p93 = por %p91, %p92
      %p94 = scmp.ne.s32.totalorder %s83, %s86
      %p95 = scmp.eq.s32.totalorder %s14, 1
      %p96 = por %p94, %p95
      %p97 = scmp.ne.s32.totalorder %s86, %s87
      %p98 = scmp.eq.s32.totalorder %s14, 0
      %p99 = por %p97, %p98
      %p100 = scmp.ne.s32.totalorder %s86, %s87
      %p101 = scmp.eq.s32.totalorder %s15, 1
      %p102 = por %p100, %p101
      %p104 = scmp.ne.s32.totalorder %s87, %s103
      %p105 = scmp.eq.s32.totalorder %s15, 0
      %p106 = por %p104, %p105
      %s107 = ssub.s32 %s16, %s28
      %s108 = ssub.s32 %s17, %s24
      %s109 = sor.u32 %s107, %s108
      %p110 = scmp.eq.s32.totalorder %s109, 0
      %s112 = sadd.s32 %s111, 1
      %s113 = scalar_select %p110, %s111, %s112
      %p116 = pneg %p110
      %p117 = scmp.eq.s32.totalorder %s9, 1
      %p118 = por %p116, %p117
      %p119 = scmp.ne.s32.totalorder %s111, %s114
      %p120 = scmp.eq.s32.totalorder %s9, 0
      %p121 = por %p119, %p120
      %p122 = scmp.ne.s32.totalorder %s111, %s114
      %p123 = scmp.eq.s32.totalorder %s14, 1
      %p124 = por %p122, %p123
      %p125 = scmp.ne.s32.totalorder %s114, %s115
      %p126 = scmp.eq.s32.totalorder %s14, 0
      %p127 = por %p125, %p126
      %p128 = scmp.ne.s32.totalorder %s114, %s115
      %p129 = scmp.eq.s32.totalorder %s15, 1
      %p130 = por %p128, %p129
      %p132 = scmp.ne.s32.totalorder %s115, %s131
      %p133 = scmp.eq.s32.totalorder %s15, 0
      %p134 = por %p132, %p133
      %p135 = scmp.le.s32.totalorder 1, %s9
      %p136 = scmp.lt.s32.totalorder %s9, 3
      %p137 = pnand %p135, %p136
      %p138 = pneg %p137
      // Predicated region
      $region9: #{drqa_forward.11} parent=5 // pred_check
        _
      $region10: #{drqa_forward.11} parent=5 // pred_check_branch
        %140 = sbr.rel (%p137) target = $region12
      $region11: #{drqa_forward.11} parent=5 // pred_region
        %s141 = ssub.s32 %s9, 1
        // Predicated region
        $region13: #{drqa_forward.11} parent=11 // pred_check
          %p142 = pneg %p47
        $region14: #{drqa_forward.11} parent=11 // pred_check_branch
          %144 = sbr.rel (%p142) target = $region16
        $region15: #{drqa_forward.11} parent=11 // pred_region
          %s145 = smul.u32 2, %s18
          %p146 = scmp.lt.s32.totalorder %s145, 1
          %s147 = scalar_select %p146, %s145, 1
          %s148 = smul.addr %s147, 8
          %s149 = scalar_lea.vmem %s0, %s148
          %s150 = smul.u32 2, %s18
        $region16: #{drqa_forward.11} parent=11 // pred_fallthru
          _
      $region12: #{drqa_forward.11} parent=5 // pred_fallthru
        _
      %p151 = scmp.lt.s32.totalorder %s9, 2
      // Predicated region
      $region17: #{drqa_forward.11} parent=5 // pred_check
        %p152 = pneg %p151
      $region18: #{drqa_forward.11} parent=5 // pred_check_branch
        %154 = sbr.rel (%p152) target = $region20
      $region19: #{drqa_forward.11} parent=5 // pred_region
        // Predicated region
        $region21: #{drqa_forward.11} parent=19 // pred_check
          %p155 = pneg %p67
        $region22: #{drqa_forward.11} parent=19 // pred_check_branch
          %157 = sbr.rel (%p155) target = $region24
        $region23: #{drqa_forward.11} parent=19 // pred_region
          %s158 = sand.u32 %s57, 1
          %s159 = sand.u32 %s57, 1
          %s160 = smul.addr %s159, 32
          %s161 = scalar_lea.vmem [#allocation2], %s160
          %s162 = smul.u32 4, %s17
          %s163 = smul.addr %s162, 4
          %s164 = scalar_lea.vmem %s1, %s163
          // Predicated region
          $region25: #{drqa_forward.11} parent=23 // pred_check
            _
          $region26: #{drqa_forward.11} parent=23 // pred_check_branch
            %166 = sbr.rel (0) target = $region28
          $region27: #{drqa_forward.11} parent=23 // pred_region
            // Predicated region
            $region29: #{drqa_forward.11} parent=27 // pred_check
              _
            $region30: #{drqa_forward.11} parent=27 // pred_check_branch
              %168 = sbr.rel (0) target = $region32
            $region31: #{drqa_forward.11} parent=27 // pred_region
              loop: start=0, step=1, limit=1
              $region33: #{drqa_forward.11} parent=31 // loop_pre_header
                _
              $region34: #{drqa_forward.11} parent=31 // loop_header
                %s170 = sphi 0, %s174
                %p171 = scmp.ge.s32.totalorder %s170, 1
                %s175 = sphi %s164, %s164
                %s176 = sphi %s161, %s161
              $region35: #{drqa_forward.11} parent=31 // loop_header_branch
                %173 = sbr.rel (%p171) target = $region39
              $region36: #{drqa_forward.11} parent=31 // loop_body
                %v177 = vld [vmem:[%s175] sm:$0xff]
                %178 = vst [vmem:[%s176] sm:$0xff] %v177
                %v179 = vld [vmem:[%s175 + $0x8] sm:$0xff]
                %180 = vst [vmem:[%s176 + $0x8] sm:$0xff] %v179
                %v181 = vld [vmem:[%s175 + $0x20] sm:$0xff]
                %182 = vst [vmem:[%s176 + $0x10] sm:$0xff] %v181
                %v183 = vld [vmem:[%s175 + $0x28] sm:$0xff]
                %184 = vst [vmem:[%s176 + $0x18] sm:$0xff] %v183
              $region37: #{drqa_forward.11} parent=31 // loop_footer
                %s174 = sadd.s32 1, %s170
              $region38: #{drqa_forward.11} parent=31 // loop_footer_branch
                %169 = sbr.rel target = $region34
              $region39: #{drqa_forward.11} parent=31 // loop_exit
                _
            $region32: #{drqa_forward.11} parent=27 // pred_fallthru
              _
            // Predicated region
            $region40: #{drqa_forward.11} parent=27 // pred_check
              _
            $region41: #{drqa_forward.11} parent=27 // pred_check_branch
              %186 = sbr.rel target = $region43
            $region42: #{drqa_forward.11} parent=27 // pred_region
              _
            $region43: #{drqa_forward.11} parent=27 // pred_fallthru
              _
          $region28: #{drqa_forward.11} parent=23 // pred_fallthru
            _
          %187 = vnop
        $region24: #{drqa_forward.11} parent=19 // pred_fallthru
          _
        // Predicated region
        $region44: #{drqa_forward.11} parent=19 // pred_check
          %p188 = pneg %p93
        $region45: #{drqa_forward.11} parent=19 // pred_check_branch
          %190 = sbr.rel (%p188) target = $region47
        $region46: #{drqa_forward.11} parent=19 // pred_region
          %s191 = smul.u32 4, %s17
          %p192 = scmp.lt.s32.totalorder %s191, 7
          %s193 = scalar_select %p192, %s191, 7
          %s194 = scalar_lea.vmem %s2, %s193
          %s195 = smul.u32 4, %s17
        $region47: #{drqa_forward.11} parent=19 // pred_fallthru
          _
      $region20: #{drqa_forward.11} parent=5 // pred_fallthru
        _
      %p196 = scmp.le.s32.totalorder 1, %s9
      %p197 = scmp.lt.s32.totalorder %s9, 3
      %p198 = pnand %p196, %p197
      %p199 = pneg %p198
      // Predicated region
      $region48: #{drqa_forward.11} parent=5 // pred_check
        _
      $region49: #{drqa_forward.11} parent=5 // pred_check_branch
        %201 = sbr.rel (%p198) target = $region51
      $region50: #{drqa_forward.11} parent=5 // pred_region
        %s202 = ssub.s32 %s9, 1
        %s203 = sand.u32 %s60, 1
        %s204 = sand.u32 %s60, 1
        %s205 = smul.addr %s204, 32
        %s206 = scalar_lea.vmem [#allocation2], %s205
        // Predicated region
        $region52: #{drqa_forward.11} parent=50 // pred_check
          %p207 = pneg %p73
        $region53: #{drqa_forward.11} parent=50 // pred_check_branch
          %209 = sbr.rel (%p207) target = $region55
        $region54: #{drqa_forward.11} parent=50 // pred_region
          _
        $region55: #{drqa_forward.11} parent=50 // pred_fallthru
          _
        %s210 = smul.u32 2, %s18
        %p211 = scmp.lt.s32.totalorder %s210, 1
        %s212 = scalar_select %p211, %s210, 1
        %s213 = smul.addr %s212, 8
        %s214 = scalar_lea.vmem %s0, %s213
        %p215 = pneg %p47
        %p216 = pneg %p44
        %s217 = sand.u32 %s60, 1
        %s218 = sand.u32 %s60, 1
        %s219 = smul.addr %s218, 32
        %s220 = scalar_lea.vmem [#allocation2], %s219
        %p221 = pneg %p73
        %p222 = pneg %p70
        %s223 = smul.u32 4, %s19
        %p224 = scmp.lt.s32.totalorder %s223, 7
        %s225 = scalar_select %p224, %s223, 7
        %s226 = scalar_lea.vmem %s2, %s225
        %p227 = pneg %p99
        %p228 = pneg %p96
        %p229 = pneg %p127
        %p230 = pneg %p124
        %s231 = sand.u32 %s114, 1
        %s232 = sand.u32 %s114, 1
        %s233 = smul.addr %s232, 32
        %s234 = scalar_lea.vmem [#allocation3], %s233
        %s235 = smul.u32 2, %s18
        %p236 = scmp.lt.s32.totalorder %s235, 1
        %s237 = scalar_select %p236, %s235, 1
        %s238 = smul.addr %s237, 8
        %s239 = scalar_lea.vmem %s0, %s238
        %s240 = smul.u32 2, %s18
        %s241 = smul.u32 4, %s19
        %s242 = smul.u32 4, %s19
        %p243 = scmp.lt.s32.totalorder %s242, 7
        %s244 = scalar_select %p243, %s242, 7
        %s245 = scalar_lea.vmem %s2, %s244
        %s246 = smul.u32 4, %s19
        %s247 = smul.u32 2, %s18
        %s248 = smul.u32 4, %s19
        %v250 = vld [vmem:[%s239] sm:$0xff]
        %v251 = vld [vmem:[%s239 + $0x8] sm:$0xff]
        %v252 = vpack.c.bf16 %v251, %v250
        %v253 = vld [vmem:[%s206] sm:$0xff]
        %v254 = vld [vmem:[%s206 + $0x8] sm:$0xff]
        %v255 = vld [vmem:[%s206 + $0x10] sm:$0xff]
        %v256 = vld [vmem:[%s206 + $0x18] sm:$0xff]
        %v257 = vld [vmem:[%s245] sm:$0xf]
        %v259 = vlaneseq
        %v260 = vshrl.u32 %v259, 7
        %v261 = vsub.s32 0, %v260
        %v262 = vrot.slane %v257, %v261
        %v263 = vlaneseq
        %v264 = vshrl.u32 %v263, 7
        %v265 = vsub.s32 1, %v264
        %v266 = vrot.slane %v257, %v265
        %v267 = vlaneseq
        %v268 = vshrl.u32 %v267, 7
        %v269 = vsub.s32 2, %v268
        %v270 = vrot.slane %v257, %v269
        %v271 = vlaneseq
        %v272 = vshrl.u32 %v271, 7
        %v273 = vsub.s32 3, %v272
        %v274 = vrot.slane %v257, %v273
        %v283 = vunpack.c.l.b16 %v253
        %v284 = vunpack.c.h.b16 %v253
        %v285 = vunpack.c.l.b16 %v254
        %v286 = vunpack.c.h.b16 %v254
        %v287 = vunpack.c.l.b16 %v255
        %v288 = vunpack.c.h.b16 %v255
        %v289 = vunpack.c.l.b16 %v256
        %v290 = vunpack.c.h.b16 %v256
        %v291 = vpack.c.b16 %v287, %v283
        %v292 = vpack.c.b16 %v288, %v284
        %v293 = vpack.c.b16 %v289, %v285
        %v294 = vpack.c.b16 %v290, %v286
        %vm299 = vcmask 130048
        %v301 = vsel %vm299, %v252, 0
        %303 = vmatprep.subr.bf16.mxu0 %v292
        %304 = vmatpush1.bf16.msra.mxu0 %v291
        %305 = vmatprep.subr.bf16.mxu0 0
        %306 = vmatpush1.bf16.msra.mxu0 0
        %307 = vmatprep.subr.bf16.mxu0 0
        %308 = vmatpush1.bf16.msra.mxu0 0
        %309 = vmatprep.subr.bf16.mxu0 0
        %310 = vmatpush1.bf16.msra.mxu0 0
        %311 = vmatprep.subr.bf16.mxu0 0
        %312 = vmatpush1.bf16.msra.mxu0 0
        %313 = vmatprep.subr.bf16.mxu0 0
        %314 = vmatpush1.bf16.msra.mxu0 0
        %315 = vmatprep.subr.bf16.mxu0 0
        %316 = vmatpush1.bf16.msra.mxu0 0
        %317 = vmatprep.subr.bf16.mxu0 0
        %318 = vmatpush1.bf16.msra.mxu0 0
        %319 = vmatprep.subr.bf16.mxu0 0
        %320 = vmatpush1.bf16.msra.mxu0 0
        %321 = vmatprep.subr.bf16.mxu0 0
        %322 = vmatpush1.bf16.msra.mxu0 0
        %323 = vmatprep.subr.bf16.mxu0 0
        %324 = vmatpush1.bf16.msra.mxu0 0
        %325 = vmatprep.subr.bf16.mxu0 0
        %326 = vmatpush1.bf16.msra.mxu0 0
        %327 = vmatprep.subr.bf16.mxu0 0
        %328 = vmatpush1.bf16.msra.mxu0 0
        %329 = vmatprep.subr.bf16.mxu0 0
        %330 = vmatpush1.bf16.msra.mxu0 0
        %331 = vmatprep.subr.bf16.mxu0 0
        %332 = vmatpush1.bf16.msra.mxu0 0
        %333 = vmatprep.subr.bf16.mxu0 0
        %334 = vmatpush1.bf16.msra.mxu0 0
        %335 = vmatprep.mubr.bf16.mxu0 0
        %336 = vmatmul.mubr.bf16.gmra.mrb[0].mxu0 %v301
        %v337 = vpop.f32.mrb[0].mxu0
        %v338 = vadd.f32 %v262, %v337
        %v339 = vpop.f32.mrb[0].mxu0
        %v340 = vadd.f32 %v266, %v339
        %v341 = vpop.f32.mrb[0].mxu0
        %v342 = vadd.f32 %v262, %v341
        %v343 = vpop.f32.mrb[0].mxu0
        %v344 = vadd.f32 %v266, %v343
        %345 = vdwg.mxu0
        %346 = vmatprep.subr.bf16.mxu0 %v294
        %347 = vmatpush1.bf16.msra.mxu0 %v293
        %348 = vmatprep.subr.bf16.mxu0 0
        %349 = vmatpush1.bf16.msra.mxu0 0
        %350 = vmatprep.subr.bf16.mxu0 0
        %351 = vmatpush1.bf16.msra.mxu0 0
        %352 = vmatprep.subr.bf16.mxu0 0
        %353 = vmatpush1.bf16.msra.mxu0 0
        %354 = vmatprep.subr.bf16.mxu0 0
        %355 = vmatpush1.bf16.msra.mxu0 0
        %356 = vmatprep.subr.bf16.mxu0 0
        %357 = vmatpush1.bf16.msra.mxu0 0
        %358 = vmatprep.subr.bf16.mxu0 0
        %359 = vmatpush1.bf16.msra.mxu0 0
        %360 = vmatprep.subr.bf16.mxu0 0
        %361 = vmatpush1.bf16.msra.mxu0 0
        %362 = vmatprep.subr.bf16.mxu0 0
        %363 = vmatpush1.bf16.msra.mxu0 0
        %364 = vmatprep.subr.bf16.mxu0 0
        %365 = vmatpush1.bf16.msra.mxu0 0
        %366 = vmatprep.subr.bf16.mxu0 0
        %367 = vmatpush1.bf16.msra.mxu0 0
        %368 = vmatprep.subr.bf16.mxu0 0
        %369 = vmatpush1.bf16.msra.mxu0 0
        %370 = vmatprep.subr.bf16.mxu0 0
        %371 = vmatpush1.bf16.msra.mxu0 0
        %372 = vmatprep.subr.bf16.mxu0 0
        %373 = vmatpush1.bf16.msra.mxu0 0
        %374 = vmatprep.subr.bf16.mxu0 0
        %375 = vmatpush1.bf16.msra.mxu0 0
        %376 = vmatprep.subr.bf16.mxu0 0
        %377 = vmatpush1.bf16.msra.mxu0 0
        %378 = vmatprep.mubr.bf16.mxu0 0
        %379 = vmatmul.mubr.bf16.gmra.mrb[0].mxu0 %v301
        %v380 = vpop.f32.mrb[0].mxu0
        %v381 = vadd.f32 %v270, %v380
        %v382 = vpop.f32.mrb[0].mxu0
        %v383 = vadd.f32 %v274, %v382
        %v384 = vpop.f32.mrb[0].mxu0
        %v385 = vadd.f32 %v270, %v384
        %v386 = vpop.f32.mrb[0].mxu0
        %v387 = vadd.f32 %v274, %v386
        %388 = vdwg.mxu0
        %v389 = vpack.c.bf16 %v342, %v338
        %v390 = vpack.c.bf16 %v344, %v340
        %v391 = vpack.c.bf16 %v385, %v381
        %v392 = vpack.c.bf16 %v387, %v383
        %v397 = vunpack.c.l.b16 %v389
        %v398 = vunpack.c.l.b16 %v390
        %v399 = vunpack.c.l.b16 %v391
        %v400 = vunpack.c.l.b16 %v392
        %v401 = vunpack.c.h.b16 %v389
        %v402 = vunpack.c.h.b16 %v390
        %v403 = vunpack.c.h.b16 %v391
        %v404 = vunpack.c.h.b16 %v392
        %v405 = vpack.c.b16 %v398, %v397
        %v406 = vpack.c.b16 %v400, %v399
        %v407 = vpack.c.b16 %v402, %v401
        %v408 = vpack.c.b16 %v404, %v403
        %413 = vst [vmem:[%s234] sm:$0xff] %v405
        %414 = vst [vmem:[%s234 + $0x8] sm:$0xff] %v406
        %415 = vst [vmem:[%s234 + $0x10] sm:$0xff] %v407
        %416 = vst [vmem:[%s234 + $0x18] sm:$0xff] %v408
        %s417 = sand.u32 %s114, 1
        %s418 = sand.u32 %s114, 1
        %s419 = smul.addr %s418, 32
        %s420 = scalar_lea.vmem [#allocation3], %s419
        // Predicated region
        $region56: #{drqa_forward.11} parent=50 // pred_check
          %p421 = pneg %p124
        $region57: #{drqa_forward.11} parent=50 // pred_check_branch
          %423 = sbr.rel (%p421) target = $region59
        $region58: #{drqa_forward.11} parent=50 // pred_region
          %s424 = smul.u32 2, %s18
          %s425 = smul.u32 4, %s19
          %s426 = smul.addr %s424, 8
          %s427 = sadd.s32 %s425, %s426
          %s428 = smul.addr %s427, 4
          %s429 = scalar_lea.vmem %s3, %s428
          // Predicated region
          $region60: #{drqa_forward.11} parent=58 // pred_check
            _
          $region61: #{drqa_forward.11} parent=58 // pred_check_branch
            %431 = sbr.rel (0) target = $region63
          $region62: #{drqa_forward.11} parent=58 // pred_region
            // Predicated region
            $region64: #{drqa_forward.11} parent=62 // pred_check
              _
            $region65: #{drqa_forward.11} parent=62 // pred_check_branch
              %433 = sbr.rel (0) target = $region67
            $region66: #{drqa_forward.11} parent=62 // pred_region
              loop: start=0, step=1, limit=1
              $region68: #{drqa_forward.11} parent=66 // loop_pre_header
                _
              $region69: #{drqa_forward.11} parent=66 // loop_header
                %s435 = sphi 0, %s439
                %p436 = scmp.ge.s32.totalorder %s435, 1
                %s440 = sphi %s420, %s420
                %s441 = sphi %s429, %s429
              $region70: #{drqa_forward.11} parent=66 // loop_header_branch
                %438 = sbr.rel (%p436) target = $region74
              $region71: #{drqa_forward.11} parent=66 // loop_body
                %v442 = vld [vmem:[%s440] sm:$0xff]
                %443 = vst [vmem:[%s441] sm:$0xff] %v442
                %v444 = vld [vmem:[%s440 + $0x8] sm:$0xff]
                %445 = vst [vmem:[%s441 + $0x8] sm:$0xff] %v444
                %v446 = vld [vmem:[%s440 + $0x10] sm:$0xff]
                %447 = vst [vmem:[%s441 + $0x20] sm:$0xff] %v446
                %v448 = vld [vmem:[%s440 + $0x18] sm:$0xff]
                %449 = vst [vmem:[%s441 + $0x28] sm:$0xff] %v448
              $region72: #{drqa_forward.11} parent=66 // loop_footer
                %s439 = sadd.s32 1, %s435
              $region73: #{drqa_forward.11} parent=66 // loop_footer_branch
                %434 = sbr.rel target = $region69
              $region74: #{drqa_forward.11} parent=66 // loop_exit
                _
            $region67: #{drqa_forward.11} parent=62 // pred_fallthru
              _
            // Predicated region
            $region75: #{drqa_forward.11} parent=62 // pred_check
              _
            $region76: #{drqa_forward.11} parent=62 // pred_check_branch
              %451 = sbr.rel target = $region78
            $region77: #{drqa_forward.11} parent=62 // pred_region
              _
            $region78: #{drqa_forward.11} parent=62 // pred_fallthru
              _
          $region63: #{drqa_forward.11} parent=58 // pred_fallthru
            _
          %452 = vnop
        $region59: #{drqa_forward.11} parent=50 // pred_fallthru
          _
      $region51: #{drqa_forward.11} parent=5 // pred_fallthru
        _
      %p453 = scmp.le.s32.totalorder 2, %s9
      // Predicated region
      $region79: #{drqa_forward.11} parent=5 // pred_check
        %p454 = pneg %p453
      $region80: #{drqa_forward.11} parent=5 // pred_check_branch
        %456 = sbr.rel (%p454) target = $region82
      $region81: #{drqa_forward.11} parent=5 // pred_region
        %s457 = ssub.s32 %s9, 2
        // Predicated region
        $region83: #{drqa_forward.11} parent=81 // pred_check
          %p458 = pneg %p130
        $region84: #{drqa_forward.11} parent=81 // pred_check_branch
          %460 = sbr.rel (%p458) target = $region86
        $region85: #{drqa_forward.11} parent=81 // pred_region
          %s461 = sand.u32 %s115, 1
          %s462 = sand.u32 %s115, 1
          %s463 = smul.addr %s462, 32
          %s464 = scalar_lea.vmem [#allocation3], %s463
        $region86: #{drqa_forward.11} parent=81 // pred_fallthru
          _
      $region82: #{drqa_forward.11} parent=5 // pred_fallthru
        _
    $region6: #{drqa_forward.11} parent=1 // loop_footer
      %s13 = sadd.s32 1, %s9
    $region7: #{drqa_forward.11} parent=1 // loop_footer_branch
      %8 = sbr.rel target = $region3
    $region8: #{drqa_forward.11} parent=1 // loop_exit
      _

// kernel: drqa_forward.13
$region0: #{drqa_forward.13}
  #allocation0 [shape = 'u32[]', space=smem, size = 0x4, offset = 0x4, fixed_abs, tag = 'smem constant byte address 0x4 - core index']
  #allocation1 [shape = 'u32[144,128]{1,0:T(1,128)}', space=vmem, size = 0x12000, scoped, tag = 'internal scratch']
  %s0 = inlined_call_operand.vmem [shape: f32[2,8,2,128], index: 0, kind: input, shape index: {}]
  %s1 = inlined_call_operand.vmem [shape: f32[2,128], index: 1, kind: input, shape index: {}]
  %s2 = inlined_call_operand.vmem [shape: s32[1,2], index: 2, kind: input, shape index: {}]
  %s3 = inlined_call_operand.vmem [shape: f32[2,256], index: 3, kind: output, shape index: {}]
  %s4 = sld [smem:[#allocation0]]
  $region22: #{drqa_forward.13} parent=0
    _
  %s6 = ssub.s32 1, %s4
  %s7 = scalar_select 0, %s6, %s4
  // Predicated region
  $region2: #{drqa_forward.13} parent=0 // pred_check
    _
  $region3: #{drqa_forward.13} parent=0 // pred_check_branch
    %9 = sbr.rel (0) target = $region5
  $region4: #{drqa_forward.13} parent=0 // pred_region
    _
  $region5: #{drqa_forward.13} parent=0 // pred_fallthru
    _
  // Predicated region
  $region6: #{drqa_forward.13} parent=0 // pred_check
    _
  $region7: #{drqa_forward.13} parent=0 // pred_check_branch
    %11 = sbr.rel (0) target = $region9
  $region8: #{drqa_forward.13} parent=0 // pred_region
    _
  $region9: #{drqa_forward.13} parent=0 // pred_fallthru
    _
  // Predicated region
  $region10: #{drqa_forward.13} parent=0 // pred_check
    _
  $region11: #{drqa_forward.13} parent=0 // pred_check_branch
    %13 = sbr.rel (0) target = $region13
  $region12: #{drqa_forward.13} parent=0 // pred_region
    _
  $region13: #{drqa_forward.13} parent=0 // pred_fallthru
    _
  %v14 = vld [vmem:[%s0] sm:$0x3]
  %v15 = vld [vmem:[%s0 + $0x2] sm:$0x3]
  %v16 = vld [vmem:[%s0 + $0x4] sm:$0x3]
  %v17 = vld [vmem:[%s0 + $0x6] sm:$0x3]
  %v18 = vld [vmem:[%s0 + $0x8] sm:$0x3]
  %v19 = vld [vmem:[%s0 + $0xa] sm:$0x3]
  %v20 = vld [vmem:[%s0 + $0xc] sm:$0x3]
  %v21 = vld [vmem:[%s0 + $0xe] sm:$0x3]
  %v22 = vld [vmem:[%s0 + $0x10] sm:$0x3]
  %v23 = vld [vmem:[%s0 + $0x12] sm:$0x3]
  %v24 = vld [vmem:[%s0 + $0x14] sm:$0x3]
  %v25 = vld [vmem:[%s0 + $0x16] sm:$0x3]
  %v26 = vld [vmem:[%s0 + $0x18] sm:$0x3]
  %v27 = vld [vmem:[%s0 + $0x1a] sm:$0x3]
  %v28 = vld [vmem:[%s0 + $0x1c] sm:$0x3]
  %v29 = vld [vmem:[%s0 + $0x1e] sm:$0x3]
  %v30 = vld [vmem:[%s1] sm:$0x3]
  %v33 = vunpack.c.l.s4 1966171168
  %v34 = vunpack.c.0.s8 %v33
  %v35 = vlaneseq
  %v36 = vshrl.u32 %v35, 7
  %v37 = vsub.s32 %v34, %v36
  %v38 = vrot.slane %v30, %v37
  %v39 = vcombine.high %v38, %v38
  %v41 = vunpack.c.l.s4 1966171168
  %v42 = vunpack.c.0.s8 %v41
  %v43 = vlaneseq
  %v44 = vshrl.u32 %v43, 7
  %v45 = vsub.s32 %v42, %v44
  %v46 = vrot.slane %v38, %v45
  %v48 = vunpack.c.l.s4 1966171168
  %v49 = vunpack.c.0.s8 %v48
  %v50 = vlaneseq
  %v51 = vshrl.u32 %v50, 7
  %v52 = vsub.s32 %v49, %v51
  %v53 = vrot.slane %v39, %v52
  %v54 = vlaneseq
  %v55 = vshrl.u32 %v54, 7
  %v56 = vsub.s32 0, %v55
  %v57 = vrot.slane %v46, %v56
  %v58 = vlaneseq
  %v59 = vshrl.u32 %v58, 7
  %v60 = vsub.s32 0, %v59
  %v61 = vrot.slane %v53, %v60
  %v64 = vmul.f32 %v14, %v57
  %v65 = vmul.f32 %v15, %v57
  %v66 = vmul.f32 %v16, %v57
  %v67 = vmul.f32 %v17, %v57
  %v68 = vmul.f32 %v18, %v57
  %v69 = vmul.f32 %v19, %v57
  %v70 = vmul.f32 %v20, %v57
  %v71 = vmul.f32 %v21, %v57
  %v72 = vmul.f32 %v22, %v61
  %v73 = vmul.f32 %v23, %v61
  %v74 = vmul.f32 %v24, %v61
  %v75 = vmul.f32 %v25, %v61
  %v76 = vmul.f32 %v26, %v61
  %v77 = vmul.f32 %v27, %v61
  %v78 = vmul.f32 %v28, %v61
  %v79 = vmul.f32 %v29, %v61
  %vm80 = vcmask 1041408
  %v81 = vsel %vm80, %v64, 0.0
  %v82 = vsel %vm80, %v72, 0.0
  %v83 = vadd.f32 %v81, %v82
  %84 = vadd.xlane.f32.xlu0 %v83
  %v85 = vpop.xlane.xlu0 %84
  %v86 = vsel %vm80, %v65, 0.0
  %v87 = vsel %vm80, %v73, 0.0
  %v88 = vadd.f32 %v86, %v87
  %89 = vadd.xlane.f32.xlu0 %v88
  %v90 = vpop.xlane.xlu0 %89
  %v91 = vsel %vm80, %v66, 0.0
  %v92 = vsel %vm80, %v74, 0.0
  %v93 = vadd.f32 %v91, %v92
  %94 = vadd.xlane.f32.xlu0 %v93
  %v95 = vpop.xlane.xlu0 %94
  %v96 = vsel %vm80, %v67, 0.0
  %v97 = vsel %vm80, %v75, 0.0
  %v98 = vadd.f32 %v96, %v97
  %99 = vadd.xlane.f32.xlu0 %v98
  %v100 = vpop.xlane.xlu0 %99
  %v101 = vsel %vm80, %v68, 0.0
  %v102 = vsel %vm80, %v76, 0.0
  %v103 = vadd.f32 %v101, %v102
  %104 = vadd.xlane.f32.xlu0 %v103
  %v105 = vpop.xlane.xlu0 %104
  %v106 = vsel %vm80, %v69, 0.0
  %v107 = vsel %vm80, %v77, 0.0
  %v108 = vadd.f32 %v106, %v107
  %109 = vadd.xlane.f32.xlu0 %v108
  %v110 = vpop.xlane.xlu0 %109
  %v111 = vsel %vm80, %v70, 0.0
  %v112 = vsel %vm80, %v78, 0.0
  %v113 = vadd.f32 %v111, %v112
  %114 = vadd.xlane.f32.xlu0 %v113
  %v115 = vpop.xlane.xlu0 %114
  %v116 = vsel %vm80, %v71, 0.0
  %v117 = vsel %vm80, %v79, 0.0
  %v118 = vadd.f32 %v116, %v117
  %119 = vadd.xlane.f32.xlu0 %v118
  %v120 = vpop.xlane.xlu0 %119
  %v121 = vlaneseq
  %v122 = vshrl.u32 %v121, 7
  %v123 = vld [vmem:[%s2] sm:$0x1]
  %v124 = vlaneseq
  %v125 = vshrl.u32 %v124, 7
  %v126 = vsub.s32 0, %v125
  %v127 = vrot.slane %v123, %v126
  %vm128 = vcmp.lt.s32.totalorder %v122, %v127
  %v137 = vlaneseq
  %v138 = vand.u32 %v137, 127
  %v139 = vlaneseq
  %v140 = vshrl.u32 %v139, 7
  %v141 = vsub.s32 %v138, %v140
  %v142 = vrot.slane %v85, %v141
  %v143 = vlaneseq
  %v144 = vshrl.u32 %v143, 7
  %v145 = vsub.s32 %v138, %v144
  %v146 = vrot.slane %v90, %v145
  %v147 = vlaneseq
  %v148 = vshrl.u32 %v147, 7
  %v149 = vsub.s32 %v138, %v148
  %v150 = vrot.slane %v95, %v149
  %v151 = vlaneseq
  %v152 = vshrl.u32 %v151, 7
  %v153 = vsub.s32 %v138, %v152
  %v154 = vrot.slane %v100, %v153
  %v155 = vlaneseq
  %v156 = vshrl.u32 %v155, 7
  %v157 = vsub.s32 %v138, %v156
  %v158 = vrot.slane %v105, %v157
  %v159 = vlaneseq
  %v160 = vshrl.u32 %v159, 7
  %v161 = vsub.s32 %v138, %v160
  %v162 = vrot.slane %v110, %v161
  %v163 = vlaneseq
  %v164 = vshrl.u32 %v163, 7
  %v165 = vsub.s32 %v138, %v164
  %v166 = vrot.slane %v115, %v165
  %v167 = vlaneseq
  %v168 = vshrl.u32 %v167, 7
  %v169 = vsub.s32 %v138, %v168
  %v170 = vrot.slane %v120, %v169
  %vm171 = vcmask 1041409
  %v172 = vsel %vm171, %v146, %v142
  %vm173 = vcmask 1042434
  %v174 = vsel %vm173, %v150, %v172
  %vm175 = vcmask 1043459
  %v176 = vsel %vm175, %v154, %v174
  %vm177 = vcmask 1044484
  %v178 = vsel %vm177, %v158, %v176
  %vm179 = vcmask 1045509
  %v180 = vsel %vm179, %v162, %v178
  %vm181 = vcmask 1046534
  %v182 = vsel %vm181, %v166, %v180
  %vm183 = vcmask 1047559
  %v184 = vsel %vm183, %v170, %v182
  %v186 = vsel %vm128, %v184, -inf
  %vm187 = vcmask 15360
  %v188 = vsel %vm187, %v186, -inf
  %v189 = vrot.slane %v188, 4
  %v190 = vmax.f32 %v188, %v189
  %v191 = vrot.slane %v190, 2
  %v192 = vmax.f32 %v190, %v191
  %v193 = vrot.slane %v192, 1
  %v194 = vmax.f32 %v192, %v193
  %v195 = vsub.f32 %v186, %v194
  %v196 = vmul.f32 %v195, 1.442695
  %v197 = vpow.pop %v196
  %v198 = vsel %vm187, %v197, 0.0
  %v199 = vrot.slane %v198, 4
  %v200 = vadd.f32 %v198, %v199
  %v201 = vrot.slane %v200, 2
  %v202 = vadd.f32 %v200, %v201
  %v203 = vrot.slane %v202, 1
  %v204 = vadd.f32 %v202, %v203
  %v205 = vrcp.pop %v204
  %v206 = vmul.f32 %v197, %v205
  %v207 = vlaneseq
  %v208 = vshrl.u32 %v207, 7
  %v209 = vsub.s32 0, %v208
  %v210 = vrot.slane %v206, %v209
  %212 = vbcast.lane.b32.xlu0 %v210, 256
  %v213 = vpop.permute.xlu0 %212
  %v214 = vlaneseq
  %v215 = vshrl.u32 %v214, 7
  %v216 = vsub.s32 1, %v215
  %v217 = vrot.slane %v206, %v216
  %219 = vbcast.lane.b32.xlu0 %v217, 256
  %v220 = vpop.permute.xlu0 %219
  %v221 = vlaneseq
  %v222 = vshrl.u32 %v221, 7
  %v223 = vsub.s32 2, %v222
  %v224 = vrot.slane %v206, %v223
  %226 = vbcast.lane.b32.xlu0 %v224, 256
  %v227 = vpop.permute.xlu0 %226
  %v228 = vlaneseq
  %v229 = vshrl.u32 %v228, 7
  %v230 = vsub.s32 3, %v229
  %v231 = vrot.slane %v206, %v230
  %233 = vbcast.lane.b32.xlu0 %v231, 256
  %v234 = vpop.permute.xlu0 %233
  %v235 = vlaneseq
  %v236 = vshrl.u32 %v235, 7
  %v237 = vsub.s32 4, %v236
  %v238 = vrot.slane %v206, %v237
  %240 = vbcast.lane.b32.xlu0 %v238, 256
  %v241 = vpop.permute.xlu0 %240
  %v242 = vlaneseq
  %v243 = vshrl.u32 %v242, 7
  %v244 = vsub.s32 5, %v243
  %v245 = vrot.slane %v206, %v244
  %247 = vbcast.lane.b32.xlu0 %v245, 256
  %v248 = vpop.permute.xlu0 %247
  %v249 = vlaneseq
  %v250 = vshrl.u32 %v249, 7
  %v251 = vsub.s32 6, %v250
  %v252 = vrot.slane %v206, %v251
  %254 = vbcast.lane.b32.xlu0 %v252, 256
  %v255 = vpop.permute.xlu0 %254
  %v256 = vlaneseq
  %v257 = vshrl.u32 %v256, 7
  %v258 = vsub.s32 7, %v257
  %v259 = vrot.slane %v206, %v258
  %261 = vbcast.lane.b32.xlu0 %v259, 256
  %v262 = vpop.permute.xlu0 %261
  %v263 = vmul.f32 %v213, %v14
  %v264 = vmul.f32 %v220, %v15
  %v265 = vmul.f32 %v227, %v16
  %v266 = vmul.f32 %v234, %v17
  %v267 = vmul.f32 %v241, %v18
  %v268 = vmul.f32 %v248, %v19
  %v269 = vmul.f32 %v255, %v20
  %v270 = vmul.f32 %v262, %v21
  %v271 = vmul.f32 %v213, %v22
  %v272 = vmul.f32 %v220, %v23
  %v273 = vmul.f32 %v227, %v24
  %v274 = vmul.f32 %v234, %v25
  %v275 = vmul.f32 %v241, %v26
  %v276 = vmul.f32 %v248, %v27
  %v277 = vmul.f32 %v255, %v28
  %v278 = vmul.f32 %v262, %v29
  %v279 = vsel %vm80, %v263, 0.0
  %v280 = vsel %vm80, %v264, 0.0
  %v281 = vadd.f32 %v279, %v280
  %v282 = vsel %vm80, %v265, 0.0
  %v283 = vadd.f32 %v281, %v282
  %v284 = vsel %vm80, %v266, 0.0
  %v285 = vadd.f32 %v283, %v284
  %v286 = vsel %vm80, %v267, 0.0
  %v287 = vadd.f32 %v285, %v286
  %v288 = vsel %vm80, %v268, 0.0
  %v289 = vadd.f32 %v287, %v288
  %v290 = vsel %vm80, %v269, 0.0
  %v291 = vadd.f32 %v289, %v290
  %v292 = vsel %vm80, %v270, 0.0
  %v293 = vadd.f32 %v291, %v292
  %v294 = vsel %vm80, %v271, 0.0
  %v295 = vsel %vm80, %v272, 0.0
  %v296 = vadd.f32 %v294, %v295
  %v297 = vsel %vm80, %v273, 0.0
  %v298 = vadd.f32 %v296, %v297
  %v299 = vsel %vm80, %v274, 0.0
  %v300 = vadd.f32 %v298, %v299
  %v301 = vsel %vm80, %v275, 0.0
  %v302 = vadd.f32 %v300, %v301
  %v303 = vsel %vm80, %v276, 0.0
  %v304 = vadd.f32 %v302, %v303
  %v305 = vsel %vm80, %v277, 0.0
  %v306 = vadd.f32 %v304, %v305
  %v307 = vsel %vm80, %v278, 0.0
  %v308 = vadd.f32 %v306, %v307
  %v311 = vcombine.low %v293, %v308
  %v313 = vunpack.c.l.s4 1983009808
  %v314 = vunpack.c.0.s8 %v313
  %v315 = vlaneseq
  %v316 = vshrl.u32 %v315, 7
  %v317 = vsub.s32 %v314, %v316
  %v318 = vrot.slane %v311, %v317
  %320 = vst [vmem:[%s3] sm:$0xf] %v318
  // Predicated region
  $region14: #{drqa_forward.13} parent=0 // pred_check
    _
  $region15: #{drqa_forward.13} parent=0 // pred_check_branch
    %322 = sbr.rel (0) target = $region17
  $region16: #{drqa_forward.13} parent=0 // pred_region
    _
  $region17: #{drqa_forward.13} parent=0 // pred_fallthru
    _
  // Predicated region
  $region18: #{drqa_forward.13} parent=0 // pred_check
    _
  $region19: #{drqa_forward.13} parent=0 // pred_check_branch
    %324 = sbr.rel (0) target = $region21
  $region20: #{drqa_forward.13} parent=0 // pred_region
    _
  $region21: #{drqa_forward.13} parent=0 // pred_fallthru
    _

// kernel: drqa_forward.19
$region0: #{drqa_forward.19}
  #allocation0 [shape = 'u32[]', space=smem, size = 0x4, offset = 0x4, fixed_abs, tag = 'smem constant byte address 0x4 - core index']
  #allocation1 [shape = 'u32[144,128]{1,0:T(1,128)}', space=vmem, size = 0x12000, scoped, tag = 'internal scratch']
  %s0 = inlined_call_operand.vmem [shape: f32[2,256], index: 0, kind: input, shape index: {}]
  %s1 = inlined_call_operand.vmem [shape: bf16[256,512], index: 1, kind: input, shape index: {}]
  %s2 = inlined_call_operand.vmem [shape: f32[1,512], index: 2, kind: input, shape index: {}]
  %s3 = inlined_call_operand.vmem [shape: f32[2,512], index: 3, kind: output, shape index: {}]
  %s4 = sld [smem:[#allocation0]]
  $region22: #{drqa_forward.19} parent=0
    _
  %s6 = ssub.s32 1, %s4
  %s7 = scalar_select 0, %s6, %s4
  // Predicated region
  $region2: #{drqa_forward.19} parent=0 // pred_check
    _
  $region3: #{drqa_forward.19} parent=0 // pred_check_branch
    %9 = sbr.rel (0) target = $region5
  $region4: #{drqa_forward.19} parent=0 // pred_region
    _
  $region5: #{drqa_forward.19} parent=0 // pred_fallthru
    _
  // Predicated region
  $region6: #{drqa_forward.19} parent=0 // pred_check
    _
  $region7: #{drqa_forward.19} parent=0 // pred_check_branch
    %11 = sbr.rel (0) target = $region9
  $region8: #{drqa_forward.19} parent=0 // pred_region
    _
  $region9: #{drqa_forward.19} parent=0 // pred_fallthru
    _
  // Predicated region
  $region10: #{drqa_forward.19} parent=0 // pred_check
    _
  $region11: #{drqa_forward.19} parent=0 // pred_check_branch
    %13 = sbr.rel (0) target = $region13
  $region12: #{drqa_forward.19} parent=0 // pred_region
    _
  $region13: #{drqa_forward.19} parent=0 // pred_fallthru
    _
  %v14 = vld [vmem:[%s0] sm:$0xf]
  %v17 = vunpack.c.l.s4 1983009808
  %v18 = vunpack.c.0.s8 %v17
  %v19 = vlaneseq
  %v20 = vshrl.u32 %v19, 7
  %v21 = vsub.s32 %v18, %v20
  %v22 = vrot.slane %v14, %v21
  %v23 = vcombine.high %v22, %v22
  %v26 = vpack.c.bf16 %v22, %v22
  %v27 = vpack.c.bf16 %v23, %v23
  %v28 = vld [vmem:[%s1] sm:$0xff]
  %v29 = vld [vmem:[%s1 + $0x8] sm:$0xff]
  %v30 = vld [vmem:[%s1 + $0x10] sm:$0xff]
  %v31 = vld [vmem:[%s1 + $0x18] sm:$0xff]
  %v32 = vld [vmem:[%s1 + $0x20] sm:$0xff]
  %v33 = vld [vmem:[%s1 + $0x28] sm:$0xff]
  %v34 = vld [vmem:[%s1 + $0x30] sm:$0xff]
  %v35 = vld [vmem:[%s1 + $0x38] sm:$0xff]
  %v36 = vld [vmem:[%s1 + $0x40] sm:$0xff]
  %v37 = vld [vmem:[%s1 + $0x48] sm:$0xff]
  %v38 = vld [vmem:[%s1 + $0x50] sm:$0xff]
  %v39 = vld [vmem:[%s1 + $0x58] sm:$0xff]
  %v40 = vld [vmem:[%s1 + $0x60] sm:$0xff]
  %v41 = vld [vmem:[%s1 + $0x68] sm:$0xff]
  %v42 = vld [vmem:[%s1 + $0x70] sm:$0xff]
  %v43 = vld [vmem:[%s1 + $0x78] sm:$0xff]
  %v44 = vld [vmem:[%s1 + $0x80] sm:$0xff]
  %v45 = vld [vmem:[%s1 + $0x88] sm:$0xff]
  %v46 = vld [vmem:[%s1 + $0x90] sm:$0xff]
  %v47 = vld [vmem:[%s1 + $0x98] sm:$0xff]
  %v48 = vld [vmem:[%s1 + $0xa0] sm:$0xff]
  %v49 = vld [vmem:[%s1 + $0xa8] sm:$0xff]
  %v50 = vld [vmem:[%s1 + $0xb0] sm:$0xff]
  %v51 = vld [vmem:[%s1 + $0xb8] sm:$0xff]
  %v52 = vld [vmem:[%s1 + $0xc0] sm:$0xff]
  %v53 = vld [vmem:[%s1 + $0xc8] sm:$0xff]
  %v54 = vld [vmem:[%s1 + $0xd0] sm:$0xff]
  %v55 = vld [vmem:[%s1 + $0xd8] sm:$0xff]
  %v56 = vld [vmem:[%s1 + $0xe0] sm:$0xff]
  %v57 = vld [vmem:[%s1 + $0xe8] sm:$0xff]
  %v58 = vld [vmem:[%s1 + $0xf0] sm:$0xff]
  %v59 = vld [vmem:[%s1 + $0xf8] sm:$0xff]
  %v60 = vld [vmem:[%s1 + $0x100] sm:$0xff]
  %v61 = vld [vmem:[%s1 + $0x108] sm:$0xff]
  %v62 = vld [vmem:[%s1 + $0x110] sm:$0xff]
  %v63 = vld [vmem:[%s1 + $0x118] sm:$0xff]
  %v64 = vld [vmem:[%s1 + $0x120] sm:$0xff]
  %v65 = vld [vmem:[%s1 + $0x128] sm:$0xff]
  %v66 = vld [vmem:[%s1 + $0x130] sm:$0xff]
  %v67 = vld [vmem:[%s1 + $0x138] sm:$0xff]
  %v68 = vld [vmem:[%s1 + $0x140] sm:$0xff]
  %v69 = vld [vmem:[%s1 + $0x148] sm:$0xff]
  %v70 = vld [vmem:[%s1 + $0x150] sm:$0xff]
  %v71 = vld [vmem:[%s1 + $0x158] sm:$0xff]
  %v72 = vld [vmem:[%s1 + $0x160] sm:$0xff]
  %v73 = vld [vmem:[%s1 + $0x168] sm:$0xff]
  %v74 = vld [vmem:[%s1 + $0x170] sm:$0xff]
  %v75 = vld [vmem:[%s1 + $0x178] sm:$0xff]
  %v76 = vld [vmem:[%s1 + $0x180] sm:$0xff]
  %v77 = vld [vmem:[%s1 + $0x188] sm:$0xff]
  %v78 = vld [vmem:[%s1 + $0x190] sm:$0xff]
  %v79 = vld [vmem:[%s1 + $0x198] sm:$0xff]
  %v80 = vld [vmem:[%s1 + $0x1a0] sm:$0xff]
  %v81 = vld [vmem:[%s1 + $0x1a8] sm:$0xff]
  %v82 = vld [vmem:[%s1 + $0x1b0] sm:$0xff]
  %v83 = vld [vmem:[%s1 + $0x1b8] sm:$0xff]
  %v84 = vld [vmem:[%s1 + $0x1c0] sm:$0xff]
  %v85 = vld [vmem:[%s1 + $0x1c8] sm:$0xff]
  %v86 = vld [vmem:[%s1 + $0x1d0] sm:$0xff]
  %v87 = vld [vmem:[%s1 + $0x1d8] sm:$0xff]
  %v88 = vld [vmem:[%s1 + $0x1e0] sm:$0xff]
  %v89 = vld [vmem:[%s1 + $0x1e8] sm:$0xff]
  %v90 = vld [vmem:[%s1 + $0x1f0] sm:$0xff]
  %v91 = vld [vmem:[%s1 + $0x1f8] sm:$0xff]
  %v92 = vld [vmem:[%s2] sm:$0xf]
  %v94 = vlaneseq
  %v95 = vshrl.u32 %v94, 7
  %v96 = vsub.s32 0, %v95
  %v97 = vrot.slane %v92, %v96
  %v98 = vlaneseq
  %v99 = vshrl.u32 %v98, 7
  %v100 = vsub.s32 1, %v99
  %v101 = vrot.slane %v92, %v100
  %v102 = vlaneseq
  %v103 = vshrl.u32 %v102, 7
  %v104 = vsub.s32 2, %v103
  %v105 = vrot.slane %v92, %v104
  %v106 = vlaneseq
  %v107 = vshrl.u32 %v106, 7
  %v108 = vsub.s32 3, %v107
  %v109 = vrot.slane %v92, %v108
  %v178 = vunpack.c.l.b16 %v28
  %v179 = vunpack.c.h.b16 %v28
  %v180 = vunpack.c.l.b16 %v29
  %v181 = vunpack.c.h.b16 %v29
  %v182 = vunpack.c.l.b16 %v30
  %v183 = vunpack.c.h.b16 %v30
  %v184 = vunpack.c.l.b16 %v31
  %v185 = vunpack.c.h.b16 %v31
  %v186 = vunpack.c.l.b16 %v32
  %v187 = vunpack.c.h.b16 %v32
  %v188 = vunpack.c.l.b16 %v33
  %v189 = vunpack.c.h.b16 %v33
  %v190 = vunpack.c.l.b16 %v34
  %v191 = vunpack.c.h.b16 %v34
  %v192 = vunpack.c.l.b16 %v35
  %v193 = vunpack.c.h.b16 %v35
  %v194 = vunpack.c.l.b16 %v36
  %v195 = vunpack.c.h.b16 %v36
  %v196 = vunpack.c.l.b16 %v37
  %v197 = vunpack.c.h.b16 %v37
  %v198 = vunpack.c.l.b16 %v38
  %v199 = vunpack.c.h.b16 %v38
  %v200 = vunpack.c.l.b16 %v39
  %v201 = vunpack.c.h.b16 %v39
  %v202 = vunpack.c.l.b16 %v40
  %v203 = vunpack.c.h.b16 %v40
  %v204 = vunpack.c.l.b16 %v41
  %v205 = vunpack.c.h.b16 %v41
  %v206 = vunpack.c.l.b16 %v42
  %v207 = vunpack.c.h.b16 %v42
  %v208 = vunpack.c.l.b16 %v43
  %v209 = vunpack.c.h.b16 %v43
  %v210 = vunpack.c.l.b16 %v44
  %v211 = vunpack.c.h.b16 %v44
  %v212 = vunpack.c.l.b16 %v45
  %v213 = vunpack.c.h.b16 %v45
  %v214 = vunpack.c.l.b16 %v46
  %v215 = vunpack.c.h.b16 %v46
  %v216 = vunpack.c.l.b16 %v47
  %v217 = vunpack.c.h.b16 %v47
  %v218 = vunpack.c.l.b16 %v48
  %v219 = vunpack.c.h.b16 %v48
  %v220 = vunpack.c.l.b16 %v49
  %v221 = vunpack.c.h.b16 %v49
  %v222 = vunpack.c.l.b16 %v50
  %v223 = vunpack.c.h.b16 %v50
  %v224 = vunpack.c.l.b16 %v51
  %v225 = vunpack.c.h.b16 %v51
  %v226 = vunpack.c.l.b16 %v52
  %v227 = vunpack.c.h.b16 %v52
  %v228 = vunpack.c.l.b16 %v53
  %v229 = vunpack.c.h.b16 %v53
  %v230 = vunpack.c.l.b16 %v54
  %v231 = vunpack.c.h.b16 %v54
  %v232 = vunpack.c.l.b16 %v55
  %v233 = vunpack.c.h.b16 %v55
  %v234 = vunpack.c.l.b16 %v56
  %v235 = vunpack.c.h.b16 %v56
  %v236 = vunpack.c.l.b16 %v57
  %v237 = vunpack.c.h.b16 %v57
  %v238 = vunpack.c.l.b16 %v58
  %v239 = vunpack.c.h.b16 %v58
  %v240 = vunpack.c.l.b16 %v59
  %v241 = vunpack.c.h.b16 %v59
  %v242 = vunpack.c.l.b16 %v60
  %v243 = vunpack.c.h.b16 %v60
  %v244 = vunpack.c.l.b16 %v61
  %v245 = vunpack.c.h.b16 %v61
  %v246 = vunpack.c.l.b16 %v62
  %v247 = vunpack.c.h.b16 %v62
  %v248 = vunpack.c.l.b16 %v63
  %v249 = vunpack.c.h.b16 %v63
  %v250 = vunpack.c.l.b16 %v64
  %v251 = vunpack.c.h.b16 %v64
  %v252 = vunpack.c.l.b16 %v65
  %v253 = vunpack.c.h.b16 %v65
  %v254 = vunpack.c.l.b16 %v66
  %v255 = vunpack.c.h.b16 %v66
  %v256 = vunpack.c.l.b16 %v67
  %v257 = vunpack.c.h.b16 %v67
  %v258 = vunpack.c.l.b16 %v68
  %v259 = vunpack.c.h.b16 %v68
  %v260 = vunpack.c.l.b16 %v69
  %v261 = vunpack.c.h.b16 %v69
  %v262 = vunpack.c.l.b16 %v70
  %v263 = vunpack.c.h.b16 %v70
  %v264 = vunpack.c.l.b16 %v71
  %v265 = vunpack.c.h.b16 %v71
  %v266 = vunpack.c.l.b16 %v72
  %v267 = vunpack.c.h.b16 %v72
  %v268 = vunpack.c.l.b16 %v73
  %v269 = vunpack.c.h.b16 %v73
  %v270 = vunpack.c.l.b16 %v74
  %v271 = vunpack.c.h.b16 %v74
  %v272 = vunpack.c.l.b16 %v75
  %v273 = vunpack.c.h.b16 %v75
  %v274 = vunpack.c.l.b16 %v76
  %v275 = vunpack.c.h.b16 %v76
  %v276 = vunpack.c.l.b16 %v77
  %v277 = vunpack.c.h.b16 %v77
  %v278 = vunpack.c.l.b16 %v78
  %v279 = vunpack.c.h.b16 %v78
  %v280 = vunpack.c.l.b16 %v79
  %v281 = vunpack.c.h.b16 %v79
  %v282 = vunpack.c.l.b16 %v80
  %v283 = vunpack.c.h.b16 %v80
  %v284 = vunpack.c.l.b16 %v81
  %v285 = vunpack.c.h.b16 %v81
  %v286 = vunpack.c.l.b16 %v82
  %v287 = vunpack.c.h.b16 %v82
  %v288 = vunpack.c.l.b16 %v83
  %v289 = vunpack.c.h.b16 %v83
  %v290 = vunpack.c.l.b16 %v84
  %v291 = vunpack.c.h.b16 %v84
  %v292 = vunpack.c.l.b16 %v85
  %v293 = vunpack.c.h.b16 %v85
  %v294 = vunpack.c.l.b16 %v86
  %v295 = vunpack.c.h.b16 %v86
  %v296 = vunpack.c.l.b16 %v87
  %v297 = vunpack.c.h.b16 %v87
  %v298 = vunpack.c.l.b16 %v88
  %v299 = vunpack.c.h.b16 %v88
  %v300 = vunpack.c.l.b16 %v89
  %v301 = vunpack.c.h.b16 %v89
  %v302 = vunpack.c.l.b16 %v90
  %v303 = vunpack.c.h.b16 %v90
  %v304 = vunpack.c.l.b16 %v91
  %v305 = vunpack.c.h.b16 %v91
  %v306 = vpack.c.b16 %v182, %v178
  %v307 = vpack.c.b16 %v183, %v179
  %v308 = vpack.c.b16 %v184, %v180
  %v309 = vpack.c.b16 %v185, %v181
  %v310 = vpack.c.b16 %v190, %v186
  %v311 = vpack.c.b16 %v191, %v187
  %v312 = vpack.c.b16 %v192, %v188
  %v313 = vpack.c.b16 %v193, %v189
  %v314 = vpack.c.b16 %v198, %v194
  %v315 = vpack.c.b16 %v199, %v195
  %v316 = vpack.c.b16 %v200, %v196
  %v317 = vpack.c.b16 %v201, %v197
  %v318 = vpack.c.b16 %v206, %v202
  %v319 = vpack.c.b16 %v207, %v203
  %v320 = vpack.c.b16 %v208, %v204
  %v321 = vpack.c.b16 %v209, %v205
  %v322 = vpack.c.b16 %v214, %v210
  %v323 = vpack.c.b16 %v215, %v211
  %v324 = vpack.c.b16 %v216, %v212
  %v325 = vpack.c.b16 %v217, %v213
  %v326 = vpack.c.b16 %v222, %v218
  %v327 = vpack.c.b16 %v223, %v219
  %v328 = vpack.c.b16 %v224, %v220
  %v329 = vpack.c.b16 %v225, %v221
  %v330 = vpack.c.b16 %v230, %v226
  %v331 = vpack.c.b16 %v231, %v227
  %v332 = vpack.c.b16 %v232, %v228
  %v333 = vpack.c.b16 %v233, %v229
  %v334 = vpack.c.b16 %v238, %v234
  %v335 = vpack.c.b16 %v239, %v235
  %v336 = vpack.c.b16 %v240, %v236
  %v337 = vpack.c.b16 %v241, %v237
  %v338 = vpack.c.b16 %v246, %v242
  %v339 = vpack.c.b16 %v247, %v243
  %v340 = vpack.c.b16 %v248, %v244
  %v341 = vpack.c.b16 %v249, %v245
  %v342 = vpack.c.b16 %v254, %v250
  %v343 = vpack.c.b16 %v255, %v251
  %v344 = vpack.c.b16 %v256, %v252
  %v345 = vpack.c.b16 %v257, %v253
  %v346 = vpack.c.b16 %v262, %v258
  %v347 = vpack.c.b16 %v263, %v259
  %v348 = vpack.c.b16 %v264, %v260
  %v349 = vpack.c.b16 %v265, %v261
  %v350 = vpack.c.b16 %v270, %v266
  %v351 = vpack.c.b16 %v271, %v267
  %v352 = vpack.c.b16 %v272, %v268
  %v353 = vpack.c.b16 %v273, %v269
  %v354 = vpack.c.b16 %v278, %v274
  %v355 = vpack.c.b16 %v279, %v275
  %v356 = vpack.c.b16 %v280, %v276
  %v357 = vpack.c.b16 %v281, %v277
  %v358 = vpack.c.b16 %v286, %v282
  %v359 = vpack.c.b16 %v287, %v283
  %v360 = vpack.c.b16 %v288, %v284
  %v361 = vpack.c.b16 %v289, %v285
  %v362 = vpack.c.b16 %v294, %v290
  %v363 = vpack.c.b16 %v295, %v291
  %v364 = vpack.c.b16 %v296, %v292
  %v365 = vpack.c.b16 %v297, %v293
  %v366 = vpack.c.b16 %v302, %v298
  %v367 = vpack.c.b16 %v303, %v299
  %v368 = vpack.c.b16 %v304, %v300
  %v369 = vpack.c.b16 %v305, %v301
  %434 = vmatprep.subr.bf16.mxu0 %v307
  %435 = vmatpush1.bf16.msra.mxu0 %v306
  %436 = vmatprep.subr.bf16.mxu0 %v311
  %437 = vmatpush1.bf16.msra.mxu0 %v310
  %438 = vmatprep.subr.bf16.mxu0 %v315
  %439 = vmatpush1.bf16.msra.mxu0 %v314
  %440 = vmatprep.subr.bf16.mxu0 %v319
  %441 = vmatpush1.bf16.msra.mxu0 %v318
  %442 = vmatprep.subr.bf16.mxu0 %v323
  %443 = vmatpush1.bf16.msra.mxu0 %v322
  %444 = vmatprep.subr.bf16.mxu0 %v327
  %445 = vmatpush1.bf16.msra.mxu0 %v326
  %446 = vmatprep.subr.bf16.mxu0 %v331
  %447 = vmatpush1.bf16.msra.mxu0 %v330
  %448 = vmatprep.subr.bf16.mxu0 %v335
  %449 = vmatpush1.bf16.msra.mxu0 %v334
  %450 = vmatprep.subr.bf16.mxu0 %v339
  %451 = vmatpush1.bf16.msra.mxu0 %v338
  %452 = vmatprep.subr.bf16.mxu0 %v343
  %453 = vmatpush1.bf16.msra.mxu0 %v342
  %454 = vmatprep.subr.bf16.mxu0 %v347
  %455 = vmatpush1.bf16.msra.mxu0 %v346
  %456 = vmatprep.subr.bf16.mxu0 %v351
  %457 = vmatpush1.bf16.msra.mxu0 %v350
  %458 = vmatprep.subr.bf16.mxu0 %v355
  %459 = vmatpush1.bf16.msra.mxu0 %v354
  %460 = vmatprep.subr.bf16.mxu0 %v359
  %461 = vmatpush1.bf16.msra.mxu0 %v358
  %462 = vmatprep.subr.bf16.mxu0 %v363
  %463 = vmatpush1.bf16.msra.mxu0 %v362
  %464 = vmatprep.subr.bf16.mxu0 %v367
  %465 = vmatpush1.bf16.msra.mxu0 %v366
  %466 = vmatprep.mubr.bf16.mxu0 %v27
  %467 = vmatmul.mubr.bf16.gmra.mrb[0].mxu0 %v26
  %v468 = vpop.f32.mrb[0].mxu0
  %v469 = vadd.f32 %v97, %v468
  %v470 = vpop.f32.mrb[0].mxu0
  %v471 = vadd.f32 %v101, %v470
  %v472 = vpop.f32.mrb[0].mxu0
  %v473 = vpop.f32.mrb[0].mxu0
  %474 = vdwg.mxu0
  %475 = vmatprep.subr.bf16.mxu0 %v309
  %476 = vmatpush1.bf16.msra.mxu0 %v308
  %477 = vmatprep.subr.bf16.mxu0 %v313
  %478 = vmatpush1.bf16.msra.mxu0 %v312
  %479 = vmatprep.subr.bf16.mxu0 %v317
  %480 = vmatpush1.bf16.msra.mxu0 %v316
  %481 = vmatprep.subr.bf16.mxu0 %v321
  %482 = vmatpush1.bf16.msra.mxu0 %v320
  %483 = vmatprep.subr.bf16.mxu0 %v325
  %484 = vmatpush1.bf16.msra.mxu0 %v324
  %485 = vmatprep.subr.bf16.mxu0 %v329
  %486 = vmatpush1.bf16.msra.mxu0 %v328
  %487 = vmatprep.subr.bf16.mxu0 %v333
  %488 = vmatpush1.bf16.msra.mxu0 %v332
  %489 = vmatprep.subr.bf16.mxu0 %v337
  %490 = vmatpush1.bf16.msra.mxu0 %v336
  %491 = vmatprep.subr.bf16.mxu0 %v341
  %492 = vmatpush1.bf16.msra.mxu0 %v340
  %493 = vmatprep.subr.bf16.mxu0 %v345
  %494 = vmatpush1.bf16.msra.mxu0 %v344
  %495 = vmatprep.subr.bf16.mxu0 %v349
  %496 = vmatpush1.bf16.msra.mxu0 %v348
  %497 = vmatprep.subr.bf16.mxu0 %v353
  %498 = vmatpush1.bf16.msra.mxu0 %v352
  %499 = vmatprep.subr.bf16.mxu0 %v357
  %500 = vmatpush1.bf16.msra.mxu0 %v356
  %501 = vmatprep.subr.bf16.mxu0 %v361
  %502 = vmatpush1.bf16.msra.mxu0 %v360
  %503 = vmatprep.subr.bf16.mxu0 %v365
  %504 = vmatpush1.bf16.msra.mxu0 %v364
  %505 = vmatprep.subr.bf16.mxu0 %v369
  %506 = vmatpush1.bf16.msra.mxu0 %v368
  %507 = vmatprep.mubr.bf16.mxu0 %v27
  %508 = vmatmul.mubr.bf16.gmra.mrb[0].mxu0 %v26
  %v509 = vpop.f32.mrb[0].mxu0
  %v510 = vadd.f32 %v105, %v509
  %v511 = vpop.f32.mrb[0].mxu0
  %v512 = vadd.f32 %v109, %v511
  %v513 = vpop.f32.mrb[0].mxu0
  %v514 = vpop.f32.mrb[0].mxu0
  %515 = vdwg.mxu0
  %v520 = vcombine.low %v469, %v471
  %v521 = vcombine.low %v510, %v512
  %v523 = vunpack.c.l.s4 1983009808
  %v524 = vunpack.c.0.s8 %v523
  %v525 = vlaneseq
  %v526 = vshrl.u32 %v525, 7
  %v527 = vsub.s32 %v524, %v526
  %v528 = vrot.slane %v520, %v527
  %v530 = vunpack.c.l.s4 1983009808
  %v531 = vunpack.c.0.s8 %v530
  %v532 = vlaneseq
  %v533 = vshrl.u32 %v532, 7
  %v534 = vsub.s32 %v531, %v533
  %v535 = vrot.slane %v521, %v534
  %v536 = vcombine.low %v528, %v535
  %538 = vst [vmem:[%s3] sm:$0xff] %v536
  // Predicated region
  $region14: #{drqa_forward.19} parent=0 // pred_check
    _
  $region15: #{drqa_forward.19} parent=0 // pred_check_branch
    %540 = sbr.rel (0) target = $region17
  $region16: #{drqa_forward.19} parent=0 // pred_region
    _
  $region17: #{drqa_forward.19} parent=0 // pred_fallthru
    _
  // Predicated region
  $region18: #{drqa_forward.19} parent=0 // pred_check
    _
  $region19: #{drqa_forward.19} parent=0 // pred_check_branch
    %542 = sbr.rel (0) target = $region21
  $region20: #{drqa_forward.19} parent=0 // pred_region
    _
  $region21: #{drqa_forward.19} parent=0 // pred_fallthru
    _

// kernel: drqa_forward.20
$region0: #{drqa_forward.20}
  #allocation0 [shape = 'u32[]', space=smem, size = 0x4, offset = 0x4, fixed_abs, tag = 'smem constant byte address 0x4 - core index']
  #allocation1 [shape = 'u32[144,128]{1,0:T(1,128)}', space=vmem, size = 0x12000, scoped, tag = 'internal scratch']
  %s0 = inlined_call_operand.vmem [shape: f32[2,12,2,128], index: 0, kind: input, shape index: {}]
  %s1 = inlined_call_operand.vmem [shape: f32[2,2,2,128], index: 1, kind: input, shape index: {}]
  %s2 = inlined_call_operand.vmem [shape: f32[2,12], index: 2, kind: output, shape index: {0}]
  %s3 = inlined_call_operand.vmem [shape: f32[2,12], index: 3, kind: output, shape index: {1}]
  %4 = xla_tuple %s2, %s3
  %s5 = sld [smem:[#allocation0]]
  $region26: #{drqa_forward.20} parent=0
    _
  %s7 = ssub.s32 1, %s5
  %s8 = scalar_select 0, %s7, %s5
  // Predicated region
  $region2: #{drqa_forward.20} parent=0 // pred_check
    _
  $region3: #{drqa_forward.20} parent=0 // pred_check_branch
    %10 = sbr.rel (0) target = $region5
  $region4: #{drqa_forward.20} parent=0 // pred_region
    _
  $region5: #{drqa_forward.20} parent=0 // pred_fallthru
    _
  // Predicated region
  $region6: #{drqa_forward.20} parent=0 // pred_check
    _
  $region7: #{drqa_forward.20} parent=0 // pred_check_branch
    %12 = sbr.rel (0) target = $region9
  $region8: #{drqa_forward.20} parent=0 // pred_region
    _
  $region9: #{drqa_forward.20} parent=0 // pred_fallthru
    _
  %v13 = vld [vmem:[%s0] sm:$0x3]
  %v14 = vld [vmem:[%s0 + $0x2] sm:$0x3]
  %v15 = vld [vmem:[%s0 + $0x4] sm:$0x3]
  %v16 = vld [vmem:[%s0 + $0x6] sm:$0x3]
  %v17 = vld [vmem:[%s0 + $0x8] sm:$0x3]
  %v18 = vld [vmem:[%s0 + $0xa] sm:$0x3]
  %v19 = vld [vmem:[%s0 + $0xc] sm:$0x3]
  %v20 = vld [vmem:[%s0 + $0xe] sm:$0x3]
  %v21 = vld [vmem:[%s0 + $0x10] sm:$0x3]
  %v22 = vld [vmem:[%s0 + $0x12] sm:$0x3]
  %v23 = vld [vmem:[%s0 + $0x14] sm:$0x3]
  %v24 = vld [vmem:[%s0 + $0x16] sm:$0x3]
  %v25 = vld [vmem:[%s0 + $0x18] sm:$0x3]
  %v26 = vld [vmem:[%s0 + $0x1a] sm:$0x3]
  %v27 = vld [vmem:[%s0 + $0x1c] sm:$0x3]
  %v28 = vld [vmem:[%s0 + $0x1e] sm:$0x3]
  %v29 = vld [vmem:[%s0 + $0x20] sm:$0x3]
  %v30 = vld [vmem:[%s0 + $0x22] sm:$0x3]
  %v31 = vld [vmem:[%s0 + $0x24] sm:$0x3]
  %v32 = vld [vmem:[%s0 + $0x26] sm:$0x3]
  %v33 = vld [vmem:[%s0 + $0x28] sm:$0x3]
  %v34 = vld [vmem:[%s0 + $0x2a] sm:$0x3]
  %v35 = vld [vmem:[%s0 + $0x2c] sm:$0x3]
  %v36 = vld [vmem:[%s0 + $0x2e] sm:$0x3]
  %v37 = vld [vmem:[%s1] sm:$0x3]
  %v38 = vld [vmem:[%s1 + $0x2] sm:$0x3]
  %v39 = vld [vmem:[%s1 + $0x4] sm:$0x3]
  %v40 = vld [vmem:[%s1 + $0x6] sm:$0x3]
  %v41 = vmul.f32 %v13, %v37
  %v42 = vmul.f32 %v14, %v37
  %v43 = vmul.f32 %v15, %v37
  %v44 = vmul.f32 %v16, %v37
  %v45 = vmul.f32 %v17, %v37
  %v46 = vmul.f32 %v18, %v37
  %v47 = vmul.f32 %v19, %v37
  %v48 = vmul.f32 %v20, %v37
  %v49 = vmul.f32 %v21, %v37
  %v50 = vmul.f32 %v22, %v37
  %v51 = vmul.f32 %v23, %v37
  %v52 = vmul.f32 %v24, %v37
  %v53 = vmul.f32 %v25, %v38
  %v54 = vmul.f32 %v26, %v38
  %v55 = vmul.f32 %v27, %v38
  %v56 = vmul.f32 %v28, %v38
  %v57 = vmul.f32 %v29, %v38
  %v58 = vmul.f32 %v30, %v38
  %v59 = vmul.f32 %v31, %v38
  %v60 = vmul.f32 %v32, %v38
  %v61 = vmul.f32 %v33, %v38
  %v62 = vmul.f32 %v34, %v38
  %v63 = vmul.f32 %v35, %v38
  %v64 = vmul.f32 %v36, %v38
  %vm65 = vcmask 1041408
  %v66 = vsel %vm65, %v41, 0.0
  %v67 = vsel %vm65, %v53, 0.0
  %v68 = vadd.f32 %v66, %v67
  %69 = vadd.xlane.f32.xlu0 %v68
  %v70 = vpop.xlane.xlu0 %69
  %v71 = vsel %vm65, %v42, 0.0
  %v72 = vsel %vm65, %v54, 0.0
  %v73 = vadd.f32 %v71, %v72
  %74 = vadd.xlane.f32.xlu0 %v73
  %v75 = vpop.xlane.xlu0 %74
  %v76 = vsel %vm65, %v43, 0.0
  %v77 = vsel %vm65, %v55, 0.0
  %v78 = vadd.f32 %v76, %v77
  %79 = vadd.xlane.f32.xlu0 %v78
  %v80 = vpop.xlane.xlu0 %79
  %v81 = vsel %vm65, %v44, 0.0
  %v82 = vsel %vm65, %v56, 0.0
  %v83 = vadd.f32 %v81, %v82
  %84 = vadd.xlane.f32.xlu0 %v83
  %v85 = vpop.xlane.xlu0 %84
  %v86 = vsel %vm65, %v45, 0.0
  %v87 = vsel %vm65, %v57, 0.0
  %v88 = vadd.f32 %v86, %v87
  %89 = vadd.xlane.f32.xlu0 %v88
  %v90 = vpop.xlane.xlu0 %89
  %v91 = vsel %vm65, %v46, 0.0
  %v92 = vsel %vm65, %v58, 0.0
  %v93 = vadd.f32 %v91, %v92
  %94 = vadd.xlane.f32.xlu0 %v93
  %v95 = vpop.xlane.xlu0 %94
  %v96 = vsel %vm65, %v47, 0.0
  %v97 = vsel %vm65, %v59, 0.0
  %v98 = vadd.f32 %v96, %v97
  %99 = vadd.xlane.f32.xlu0 %v98
  %v100 = vpop.xlane.xlu0 %99
  %v101 = vsel %vm65, %v48, 0.0
  %v102 = vsel %vm65, %v60, 0.0
  %v103 = vadd.f32 %v101, %v102
  %104 = vadd.xlane.f32.xlu0 %v103
  %v105 = vpop.xlane.xlu0 %104
  %v106 = vsel %vm65, %v49, 0.0
  %v107 = vsel %vm65, %v61, 0.0
  %v108 = vadd.f32 %v106, %v107
  %109 = vadd.xlane.f32.xlu0 %v108
  %v110 = vpop.xlane.xlu0 %109
  %v111 = vsel %vm65, %v50, 0.0
  %v112 = vsel %vm65, %v62, 0.0
  %v113 = vadd.f32 %v111, %v112
  %114 = vadd.xlane.f32.xlu0 %v113
  %v115 = vpop.xlane.xlu0 %114
  %v116 = vsel %vm65, %v51, 0.0
  %v117 = vsel %vm65, %v63, 0.0
  %v118 = vadd.f32 %v116, %v117
  %119 = vadd.xlane.f32.xlu0 %v118
  %v120 = vpop.xlane.xlu0 %119
  %v121 = vsel %vm65, %v52, 0.0
  %v122 = vsel %vm65, %v64, 0.0
  %v123 = vadd.f32 %v121, %v122
  %124 = vadd.xlane.f32.xlu0 %v123
  %v125 = vpop.xlane.xlu0 %124
  %v126 = vmul.f32 %v13, %v39
  %v127 = vmul.f32 %v14, %v39
  %v128 = vmul.f32 %v15, %v39
  %v129 = vmul.f32 %v16, %v39
  %v130 = vmul.f32 %v17, %v39
  %v131 = vmul.f32 %v18, %v39
  %v132 = vmul.f32 %v19, %v39
  %v133 = vmul.f32 %v20, %v39
  %v134 = vmul.f32 %v21, %v39
  %v135 = vmul.f32 %v22, %v39
  %v136 = vmul.f32 %v23, %v39
  %v137 = vmul.f32 %v24, %v39
  %v138 = vmul.f32 %v25, %v40
  %v139 = vmul.f32 %v26, %v40
  %v140 = vmul.f32 %v27, %v40
  %v141 = vmul.f32 %v28, %v40
  %v142 = vmul.f32 %v29, %v40
  %v143 = vmul.f32 %v30, %v40
  %v144 = vmul.f32 %v31, %v40
  %v145 = vmul.f32 %v32, %v40
  %v146 = vmul.f32 %v33, %v40
  %v147 = vmul.f32 %v34, %v40
  %v148 = vmul.f32 %v35, %v40
  %v149 = vmul.f32 %v36, %v40
  %v150 = vsel %vm65, %v126, 0.0
  %v151 = vsel %vm65, %v138, 0.0
  %v152 = vadd.f32 %v150, %v151
  %153 = vadd.xlane.f32.xlu0 %v152
  %v154 = vpop.xlane.xlu0 %153
  %v155 = vsel %vm65, %v127, 0.0
  %v156 = vsel %vm65, %v139, 0.0
  %v157 = vadd.f32 %v155, %v156
  %158 = vadd.xlane.f32.xlu0 %v157
  %v159 = vpop.xlane.xlu0 %158
  %v160 = vsel %vm65, %v128, 0.0
  %v161 = vsel %vm65, %v140, 0.0
  %v162 = vadd.f32 %v160, %v161
  %163 = vadd.xlane.f32.xlu0 %v162
  %v164 = vpop.xlane.xlu0 %163
  %v165 = vsel %vm65, %v129, 0.0
  %v166 = vsel %vm65, %v141, 0.0
  %v167 = vadd.f32 %v165, %v166
  %168 = vadd.xlane.f32.xlu0 %v167
  %v169 = vpop.xlane.xlu0 %168
  %v170 = vsel %vm65, %v130, 0.0
  %v171 = vsel %vm65, %v142, 0.0
  %v172 = vadd.f32 %v170, %v171
  %173 = vadd.xlane.f32.xlu0 %v172
  %v174 = vpop.xlane.xlu0 %173
  %v175 = vsel %vm65, %v131, 0.0
  %v176 = vsel %vm65, %v143, 0.0
  %v177 = vadd.f32 %v175, %v176
  %178 = vadd.xlane.f32.xlu0 %v177
  %v179 = vpop.xlane.xlu0 %178
  %v180 = vsel %vm65, %v132, 0.0
  %v181 = vsel %vm65, %v144, 0.0
  %v182 = vadd.f32 %v180, %v181
  %183 = vadd.xlane.f32.xlu0 %v182
  %v184 = vpop.xlane.xlu0 %183
  %v185 = vsel %vm65, %v133, 0.0
  %v186 = vsel %vm65, %v145, 0.0
  %v187 = vadd.f32 %v185, %v186
  %188 = vadd.xlane.f32.xlu0 %v187
  %v189 = vpop.xlane.xlu0 %188
  %v190 = vsel %vm65, %v134, 0.0
  %v191 = vsel %vm65, %v146, 0.0
  %v192 = vadd.f32 %v190, %v191
  %193 = vadd.xlane.f32.xlu0 %v192
  %v194 = vpop.xlane.xlu0 %193
  %v195 = vsel %vm65, %v135, 0.0
  %v196 = vsel %vm65, %v147, 0.0
  %v197 = vadd.f32 %v195, %v196
  %198 = vadd.xlane.f32.xlu0 %v197
  %v199 = vpop.xlane.xlu0 %198
  %v200 = vsel %vm65, %v136, 0.0
  %v201 = vsel %vm65, %v148, 0.0
  %v202 = vadd.f32 %v200, %v201
  %203 = vadd.xlane.f32.xlu0 %v202
  %v204 = vpop.xlane.xlu0 %203
  %v205 = vsel %vm65, %v137, 0.0
  %v206 = vsel %vm65, %v149, 0.0
  %v207 = vadd.f32 %v205, %v206
  %208 = vadd.xlane.f32.xlu0 %v207
  %v209 = vpop.xlane.xlu0 %208
  %v222 = vlaneseq
  %v223 = vand.u32 %v222, 127
  %v224 = vlaneseq
  %v225 = vshrl.u32 %v224, 7
  %v226 = vsub.s32 %v223, %v225
  %v227 = vrot.slane %v70, %v226
  %v228 = vlaneseq
  %v229 = vshrl.u32 %v228, 7
  %v230 = vsub.s32 %v223, %v229
  %v231 = vrot.slane %v75, %v230
  %v232 = vlaneseq
  %v233 = vshrl.u32 %v232, 7
  %v234 = vsub.s32 %v223, %v233
  %v235 = vrot.slane %v80, %v234
  %v236 = vlaneseq
  %v237 = vshrl.u32 %v236, 7
  %v238 = vsub.s32 %v223, %v237
  %v239 = vrot.slane %v85, %v238
  %v240 = vlaneseq
  %v241 = vshrl.u32 %v240, 7
  %v242 = vsub.s32 %v223, %v241
  %v243 = vrot.slane %v90, %v242
  %v244 = vlaneseq
  %v245 = vshrl.u32 %v244, 7
  %v246 = vsub.s32 %v223, %v245
  %v247 = vrot.slane %v95, %v246
  %v248 = vlaneseq
  %v249 = vshrl.u32 %v248, 7
  %v250 = vsub.s32 %v223, %v249
  %v251 = vrot.slane %v100, %v250
  %v252 = vlaneseq
  %v253 = vshrl.u32 %v252, 7
  %v254 = vsub.s32 %v223, %v253
  %v255 = vrot.slane %v105, %v254
  %v256 = vlaneseq
  %v257 = vshrl.u32 %v256, 7
  %v258 = vsub.s32 %v223, %v257
  %v259 = vrot.slane %v110, %v258
  %v260 = vlaneseq
  %v261 = vshrl.u32 %v260, 7
  %v262 = vsub.s32 %v223, %v261
  %v263 = vrot.slane %v115, %v262
  %v264 = vlaneseq
  %v265 = vshrl.u32 %v264, 7
  %v266 = vsub.s32 %v223, %v265
  %v267 = vrot.slane %v120, %v266
  %v268 = vlaneseq
  %v269 = vshrl.u32 %v268, 7
  %v270 = vsub.s32 %v223, %v269
  %v271 = vrot.slane %v125, %v270
  %vm272 = vcmask 1041409
  %v273 = vsel %vm272, %v231, %v227
  %vm274 = vcmask 1042434
  %v275 = vsel %vm274, %v235, %v273
  %vm276 = vcmask 1043459
  %v277 = vsel %vm276, %v239, %v275
  %vm278 = vcmask 1044484
  %v279 = vsel %vm278, %v243, %v277
  %vm280 = vcmask 1045509
  %v281 = vsel %vm280, %v247, %v279
  %vm282 = vcmask 1046534
  %v283 = vsel %vm282, %v251, %v281
  %vm284 = vcmask 1047559
  %v285 = vsel %vm284, %v255, %v283
  %v286 = vsel %vm272, %v263, %v259
  %v287 = vsel %vm274, %v267, %v286
  %v288 = vsel %vm276, %v271, %v287
  %291 = vxpose.xlu0.b32.start [1/16] %v285, 128
  %292 = vxpose.xlu0.b32.cont [2/16] %v288, 128
  %293 = vxpose.xlu0.b32.cont [3/16] 0.0, 128
  %294 = vxpose.xlu0.b32.cont [4/16] 0.0, 128
  %295 = vxpose.xlu0.b32.cont [5/16] 0.0, 128
  %296 = vxpose.xlu0.b32.cont [6/16] 0.0, 128
  %297 = vxpose.xlu0.b32.cont [7/16] 0.0, 128
  %298 = vxpose.xlu0.b32.cont [8/16] 0.0, 128
  %299 = vxpose.xlu0.b32.cont [9/16] 0.0, 128
  %300 = vxpose.xlu0.b32.cont [10/16] 0.0, 128
  %301 = vxpose.xlu0.b32.cont [11/16] 0.0, 128
  %302 = vxpose.xlu0.b32.cont [12/16] 0.0, 128
  %303 = vxpose.xlu0.b32.cont [13/16] 0.0, 128
  %304 = vxpose.xlu0.b32.cont [14/16] 0.0, 128
  %305 = vxpose.xlu0.b32.cont [15/16] 0.0, 128
  %306 = vxpose.xlu0.b32.end [16/16] 0.0, 128
  %v307 = vpop.trf.xlu0
  %v308 = vpop.trf.xlu0
  %v309 = vpop.trf.xlu0
  %v310 = vpop.trf.xlu0
  %v311 = vpop.trf.xlu0
  %v312 = vpop.trf.xlu0
  %v313 = vpop.trf.xlu0
  %v314 = vpop.trf.xlu0
  %v315 = vpop.trf.xlu0
  %v316 = vpop.trf.xlu0
  %v317 = vpop.trf.xlu0
  %v318 = vpop.trf.xlu0
  %v319 = vpop.trf.xlu0
  %v320 = vpop.trf.xlu0
  %v321 = vpop.trf.xlu0
  %v322 = vpop.trf.xlu0
  %vm323 = vcmask 91136
  %324 = vst.msk [vmem:[%s2] sm:$0x3] %vm323, %v307
  %v337 = vlaneseq
  %v338 = vshrl.u32 %v337, 7
  %v339 = vsub.s32 %v223, %v338
  %v340 = vrot.slane %v154, %v339
  %v341 = vlaneseq
  %v342 = vshrl.u32 %v341, 7
  %v343 = vsub.s32 %v223, %v342
  %v344 = vrot.slane %v159, %v343
  %v345 = vlaneseq
  %v346 = vshrl.u32 %v345, 7
  %v347 = vsub.s32 %v223, %v346
  %v348 = vrot.slane %v164, %v347
  %v349 = vlaneseq
  %v350 = vshrl.u32 %v349, 7
  %v351 = vsub.s32 %v223, %v350
  %v352 = vrot.slane %v169, %v351
  %v353 = vlaneseq
  %v354 = vshrl.u32 %v353, 7
  %v355 = vsub.s32 %v223, %v354
  %v356 = vrot.slane %v174, %v355
  %v357 = vlaneseq
  %v358 = vshrl.u32 %v357, 7
  %v359 = vsub.s32 %v223, %v358
  %v360 = vrot.slane %v179, %v359
  %v361 = vlaneseq
  %v362 = vshrl.u32 %v361, 7
  %v363 = vsub.s32 %v223, %v362
  %v364 = vrot.slane %v184, %v363
  %v365 = vlaneseq
  %v366 = vshrl.u32 %v365, 7
  %v367 = vsub.s32 %v223, %v366
  %v368 = vrot.slane %v189, %v367
  %v369 = vlaneseq
  %v370 = vshrl.u32 %v369, 7
  %v371 = vsub.s32 %v223, %v370
  %v372 = vrot.slane %v194, %v371
  %v373 = vlaneseq
  %v374 = vshrl.u32 %v373, 7
  %v375 = vsub.s32 %v223, %v374
  %v376 = vrot.slane %v199, %v375
  %v377 = vlaneseq
  %v378 = vshrl.u32 %v377, 7
  %v379 = vsub.s32 %v223, %v378
  %v380 = vrot.slane %v204, %v379
  %v381 = vlaneseq
  %v382 = vshrl.u32 %v381, 7
  %v383 = vsub.s32 %v223, %v382
  %v384 = vrot.slane %v209, %v383
  %v385 = vsel %vm272, %v344, %v340
  %v386 = vsel %vm274, %v348, %v385
  %v387 = vsel %vm276, %v352, %v386
  %v388 = vsel %vm278, %v356, %v387
  %v389 = vsel %vm280, %v360, %v388
  %v390 = vsel %vm282, %v364, %v389
  %v391 = vsel %vm284, %v368, %v390
  %v392 = vsel %vm272, %v376, %v372
  %v393 = vsel %vm274, %v380, %v392
  %v394 = vsel %vm276, %v384, %v393
  %397 = vxpose.xlu0.b32.start [1/16] %v391, 128
  %398 = vxpose.xlu0.b32.cont [2/16] %v394, 128
  %399 = vxpose.xlu0.b32.cont [3/16] 0.0, 128
  %400 = vxpose.xlu0.b32.cont [4/16] 0.0, 128
  %401 = vxpose.xlu0.b32.cont [5/16] 0.0, 128
  %402 = vxpose.xlu0.b32.cont [6/16] 0.0, 128
  %403 = vxpose.xlu0.b32.cont [7/16] 0.0, 128
  %404 = vxpose.xlu0.b32.cont [8/16] 0.0, 128
  %405 = vxpose.xlu0.b32.cont [9/16] 0.0, 128
  %406 = vxpose.xlu0.b32.cont [10/16] 0.0, 128
  %407 = vxpose.xlu0.b32.cont [11/16] 0.0, 128
  %408 = vxpose.xlu0.b32.cont [12/16] 0.0, 128
  %409 = vxpose.xlu0.b32.cont [13/16] 0.0, 128
  %410 = vxpose.xlu0.b32.cont [14/16] 0.0, 128
  %411 = vxpose.xlu0.b32.cont [15/16] 0.0, 128
  %412 = vxpose.xlu0.b32.end [16/16] 0.0, 128
  %v413 = vpop.trf.xlu0
  %v414 = vpop.trf.xlu0
  %v415 = vpop.trf.xlu0
  %v416 = vpop.trf.xlu0
  %v417 = vpop.trf.xlu0
  %v418 = vpop.trf.xlu0
  %v419 = vpop.trf.xlu0
  %v420 = vpop.trf.xlu0
  %v421 = vpop.trf.xlu0
  %v422 = vpop.trf.xlu0
  %v423 = vpop.trf.xlu0
  %v424 = vpop.trf.xlu0
  %v425 = vpop.trf.xlu0
  %v426 = vpop.trf.xlu0
  %v427 = vpop.trf.xlu0
  %v428 = vpop.trf.xlu0
  %429 = vst.msk [vmem:[%s3] sm:$0x3] %vm323, %v413
  // Predicated region
  $region10: #{drqa_forward.20} parent=0 // pred_check
    _
  $region11: #{drqa_forward.20} parent=0 // pred_check_branch
    %431 = sbr.rel (0) target = $region13
  $region12: #{drqa_forward.20} parent=0 // pred_region
    _
  $region13: #{drqa_forward.20} parent=0 // pred_fallthru
    _
  // Predicated region
  $region14: #{drqa_forward.20} parent=0 // pred_check
    _
  $region15: #{drqa_forward.20} parent=0 // pred_check_branch
    %433 = sbr.rel (0) target = $region17
  $region16: #{drqa_forward.20} parent=0 // pred_region
    _
  $region17: #{drqa_forward.20} parent=0 // pred_fallthru
    _
  // Predicated region
  $region18: #{drqa_forward.20} parent=0 // pred_check
    _
  $region19: #{drqa_forward.20} parent=0 // pred_check_branch
    %435 = sbr.rel (0) target = $region21
  $region20: #{drqa_forward.20} parent=0 // pred_region
    _
  $region21: #{drqa_forward.20} parent=0 // pred_fallthru
    _
  // Predicated region
  $region22: #{drqa_forward.20} parent=0 // pred_check
    _
  $region23: #{drqa_forward.20} parent=0 // pred_check_branch
    %437 = sbr.rel (0) target = $region25
  $region24: #{drqa_forward.20} parent=0 // pred_region
    _
  $region25: #{drqa_forward.20} parent=0 // pred_fallthru
    _

// kernel: drqa_forward.12
$region0: #{drqa_forward.12}
  #allocation0 [shape = 'u32[]', space=smem, size = 0x4, offset = 0x4, fixed_abs, tag = 'smem constant byte address 0x4 - core index']
  #allocation1 [shape = 'u32[144,128]{1,0:T(1,128)}', space=vmem, size = 0x12000, scoped, tag = 'internal scratch']
  #allocation2 [shape = 'f32[2,128]{1,0:T(2,128)}', space=vmem, size = 0x400, scoped, tag = 'scratch operand']
  #allocation3 [shape = 'f32[2,128]{1,0:T(2,128)}', space=vmem, size = 0x400, scoped, tag = 'scratch operand']
  %s0 = inlined_call_operand.vmem [shape: bf16[8,2,1024], index: 0, kind: input, shape index: {}]
  %s1 = inlined_call_operand.vmem [shape: bf16[2,128,512], index: 1, kind: input, shape index: {}]
  %s2 = inlined_call_operand.vmem [shape: s32[2,1], index: 2, kind: input, shape index: {}]
  %s3 = inlined_call_operand.vmem [shape: f32[2,8,2,128], index: 3, kind: output, shape index: {}]
  %s4 = sld [smem:[#allocation0]]
  $region90: #{drqa_forward.12} parent=0
    _
  %s6 = ssub.s32 1, %s4
  %s7 = scalar_select 0, %s6, %s4
  $region1: #{drqa_forward.12} parent=0
    #allocation4 [shape = 'u8[32768]{0}', space=vmem, size = 0x8000, scoped, tag = 'input window, operand 0']
    loop: start=0, step=1, limit=4
    $region2: #{drqa_forward.12} parent=1 // loop_pre_header
      _
    $region3: #{drqa_forward.12} parent=1 // loop_header
      %s9 = sphi 0, %s13
      %p10 = scmp.ge.s32.totalorder %s9, 4
      %s16 = sphi 0, %s28
      %s17 = sphi 0, %s24
      %s18 = sphi 0, %s16
      %s19 = sphi 0, %s17
      %s20 = sphi 0, %s18
      %s21 = sphi 0, %s19
      %s43 = sphi 0, %s45
      %s46 = sphi 0, %s43
      %s47 = sphi 0, %s46
      %s63 = sphi 0, %s47
      %s69 = sphi 0, %s71
      %s72 = sphi 0, %s69
      %s73 = sphi 0, %s72
      %s89 = sphi 0, %s73
      %s93 = sphi 0, %s93
      %s95 = sphi 0, %s93
      %s96 = sphi 0, %s95
      %s110 = sphi 0, %s96
      %s128 = sphi 0, %s130
      %s131 = sphi 0, %s128
      %s132 = sphi 0, %s131
      %s148 = sphi 0, %s132
    $region4: #{drqa_forward.12} parent=1 // loop_header_branch
      %12 = sbr.rel (%p10) target = $region8
    $region5: #{drqa_forward.12} parent=1 // loop_body
      %s14 = ssub.s32 %s9, 1
      %s15 = ssub.s32 %s9, 2
      %s22 = sadd.s32 1, %s17
      %p23 = scmp.ge.s32.totalorder %s22, 1
      %s24 = scalar_select %p23, 0, %s22
      %s25 = sadd.s32 1, %s16
      %s26 = scalar_select %p23, %s25, %s16
      %p27 = scmp.ge.s32.totalorder %s26, 2
      %s28 = scalar_select %p27, 0, %s26
      %s29 = ssub.s32 1, %s16
      %s30 = smul.u32 %s29, %s17
      %s31 = ssub.s32 0, %s17
      %s32 = smul.u32 %s16, %s31
      %s33 = sadd.s32 %s30, %s32
      %s34 = ssub.s32 1, %s28
      %s35 = smul.u32 %s34, %s24
      %s36 = ssub.s32 0, %s24
      %s37 = smul.u32 %s28, %s36
      %s38 = sadd.s32 %s35, %s37
      %s39 = ssub.s32 %s33, %s38
      %s40 = ssub.s32 %s16, %s28
      %s41 = sor.u32 %s39, %s40
      %p42 = scmp.eq.s32.totalorder %s41, 0
      %s44 = sadd.s32 %s43, 1
      %s45 = scalar_select %p42, %s43, %s44
      %p48 = pneg %p42
      %p49 = scmp.eq.s32.totalorder %s9, 1
      %p50 = por %p48, %p49
      %p51 = scmp.ne.s32.totalorder %s43, %s46
      %p52 = scmp.eq.s32.totalorder %s9, 0
      %p53 = por %p51, %p52
      %p54 = scmp.ne.s32.totalorder %s43, %s46
      %p55 = scmp.eq.s32.totalorder %s14, 1
      %p56 = por %p54, %p55
      %p57 = scmp.ne.s32.totalorder %s46, %s47
      %p58 = scmp.eq.s32.totalorder %s14, 0
      %p59 = por %p57, %p58
      %p60 = scmp.ne.s32.totalorder %s46, %s47
      %p61 = scmp.eq.s32.totalorder %s15, 1
      %p62 = por %p60, %p61
      %p64 = scmp.ne.s32.totalorder %s47, %s63
      %p65 = scmp.eq.s32.totalorder %s15, 0
      %p66 = por %p64, %p65
      %s67 = ssub.s32 %s16, %s28
      %p68 = scmp.eq.s32.totalorder %s67, 0
      %s70 = sadd.s32 %s69, 1
      %s71 = scalar_select %p68, %s69, %s70
      %p74 = pneg %p68
      %p75 = scmp.eq.s32.totalorder %s9, 1
      %p76 = por %p74, %p75
      %p77 = scmp.ne.s32.totalorder %s69, %s72
      %p78 = scmp.eq.s32.totalorder %s9, 0
      %p79 = por %p77, %p78
      %p80 = scmp.ne.s32.totalorder %s69, %s72
      %p81 = scmp.eq.s32.totalorder %s14, 1
      %p82 = por %p80, %p81
      %p83 = scmp.ne.s32.totalorder %s72, %s73
      %p84 = scmp.eq.s32.totalorder %s14, 0
      %p85 = por %p83, %p84
      %p86 = scmp.ne.s32.totalorder %s72, %s73
      %p87 = scmp.eq.s32.totalorder %s15, 1
      %p88 = por %p86, %p87
      %p90 = scmp.ne.s32.totalorder %s73, %s89
      %p91 = scmp.eq.s32.totalorder %s15, 0
      %p92 = por %p90, %p91
      %s94 = sadd.s32 %s93, 1
      %p97 = scmp.eq.s32.totalorder %s9, 1
      %p98 = scmp.ne.s32.totalorder %s93, %s95
      %p99 = scmp.eq.s32.totalorder %s9, 0
      %p100 = por %p98, %p99
      %p101 = scmp.ne.s32.totalorder %s93, %s95
      %p102 = scmp.eq.s32.totalorder %s14, 1
      %p103 = por %p101, %p102
      %p104 = scmp.ne.s32.totalorder %s95, %s96
      %p105 = scmp.eq.s32.totalorder %s14, 0
      %p106 = por %p104, %p105
      %p107 = scmp.ne.s32.totalorder %s95, %s96
      %p108 = scmp.eq.s32.totalorder %s15, 1
      %p109 = por %p107, %p108
      %p111 = scmp.ne.s32.totalorder %s96, %s110
      %p112 = scmp.eq.s32.totalorder %s15, 0
      %p113 = por %p111, %p112
      %s114 = ssub.s32 1, %s16
      %s115 = smul.u32 %s114, %s17
      %s116 = ssub.s32 0, %s17
      %s117 = smul.u32 %s16, %s116
      %s118 = sadd.s32 %s115, %s117
      %s119 = ssub.s32 1, %s28
      %s120 = smul.u32 %s119, %s24
      %s121 = ssub.s32 0, %s24
      %s122 = smul.u32 %s28, %s121
      %s123 = sadd.s32 %s120, %s122
      %s124 = ssub.s32 %s16, %s28
      %s125 = ssub.s32 %s118, %s123
      %s126 = sor.u32 %s124, %s125
      %p127 = scmp.eq.s32.totalorder %s126, 0
      %s129 = sadd.s32 %s128, 1
      %s130 = scalar_select %p127, %s128, %s129
      %p133 = pneg %p127
      %p134 = scmp.eq.s32.totalorder %s9, 1
      %p135 = por %p133, %p134
      %p136 = scmp.ne.s32.totalorder %s128, %s131
      %p137 = scmp.eq.s32.totalorder %s9, 0
      %p138 = por %p136, %p137
      %p139 = scmp.ne.s32.totalorder %s128, %s131
      %p140 = scmp.eq.s32.totalorder %s14, 1
      %p141 = por %p139, %p140
      %p142 = scmp.ne.s32.totalorder %s131, %s132
      %p143 = scmp.eq.s32.totalorder %s14, 0
      %p144 = por %p142, %p143
      %p145 = scmp.ne.s32.totalorder %s131, %s132
      %p146 = scmp.eq.s32.totalorder %s15, 1
      %p147 = por %p145, %p146
      %p149 = scmp.ne.s32.totalorder %s132, %s148
      %p150 = scmp.eq.s32.totalorder %s15, 0
      %p151 = por %p149, %p150
      %p152 = scmp.le.s32.totalorder 1, %s9
      %p153 = scmp.lt.s32.totalorder %s9, 3
      %p154 = pnand %p152, %p153
      %p155 = pneg %p154
      // Predicated region
      $region9: #{drqa_forward.12} parent=5 // pred_check
        _
      $region10: #{drqa_forward.12} parent=5 // pred_check_branch
        %157 = sbr.rel (%p154) target = $region12
      $region11: #{drqa_forward.12} parent=5 // pred_region
        %s158 = ssub.s32 %s9, 1
        // Predicated region
        $region13: #{drqa_forward.12} parent=11 // pred_check
          %p159 = pneg %p106
        $region14: #{drqa_forward.12} parent=11 // pred_check_branch
          %161 = sbr.rel (%p159) target = $region16
        $region15: #{drqa_forward.12} parent=11 // pred_region
          _
        $region16: #{drqa_forward.12} parent=11 // pred_fallthru
          _
      $region12: #{drqa_forward.12} parent=5 // pred_fallthru
        _
      %p162 = scmp.lt.s32.totalorder %s9, 2
      // Predicated region
      $region17: #{drqa_forward.12} parent=5 // pred_check
        %p163 = pneg %p162
      $region18: #{drqa_forward.12} parent=5 // pred_check_branch
        %165 = sbr.rel (%p163) target = $region20
      $region19: #{drqa_forward.12} parent=5 // pred_region
        // Predicated region
        $region21: #{drqa_forward.12} parent=19 // pred_check
          %p166 = pneg %p53
        $region22: #{drqa_forward.12} parent=19 // pred_check_branch
          %168 = sbr.rel (%p166) target = $region24
        $region23: #{drqa_forward.12} parent=19 // pred_region
          %s169 = sand.u32 %s43, 1
          %s170 = sand.u32 %s43, 1
          %s171 = smul.addr %s170, 32
          %s172 = scalar_lea.vmem [#allocation4], %s171
          %s173 = ssub.s32 1, %s16
          %s174 = smul.u32 %s173, %s17
          %s175 = ssub.s32 0, %s17
          %s176 = smul.u32 %s16, %s175
          %s177 = sadd.s32 %s174, %s176
          %s178 = smul.u32 8, %s177
          %s179 = smul.u32 4, %s16
          %s180 = smul.addr %s178, 8
          %s181 = sadd.s32 %s179, %s180
          %s182 = scalar_lea.vmem %s0, %s181
          // Predicated region
          $region25: #{drqa_forward.12} parent=23 // pred_check
            _
          $region26: #{drqa_forward.12} parent=23 // pred_check_branch
            %184 = sbr.rel (0) target = $region28
          $region27: #{drqa_forward.12} parent=23 // pred_region
            // Predicated region
            $region29: #{drqa_forward.12} parent=27 // pred_check
              _
            $region30: #{drqa_forward.12} parent=27 // pred_check_branch
              %186 = sbr.rel target = $region32
            $region31: #{drqa_forward.12} parent=27 // pred_region
              // Predicated region
              $region44: #{drqa_forward.12} parent=31 // pred_check
                _
              $region45: #{drqa_forward.12} parent=31 // pred_check_branch
                %215 = sbr.rel (0) target = $region47
              $region46: #{drqa_forward.12} parent=31 // pred_region
                loop: start=0, step=1, limit=1
                $region48: #{drqa_forward.12} parent=46 // loop_pre_header
                  _
                $region49: #{drqa_forward.12} parent=46 // loop_header
                  %s217 = sphi 0, %s221
                  %p218 = scmp.ge.s32.totalorder %s217, 1
                  %s222 = sphi %s182, %s182
                  %s223 = sphi %s172, %s172
                $region50: #{drqa_forward.12} parent=46 // loop_header_branch
                  %220 = sbr.rel (%p218) target = $region54
                $region51: #{drqa_forward.12} parent=46 // loop_body
                  _
                $region52: #{drqa_forward.12} parent=46 // loop_footer
                  %s221 = sadd.s32 1, %s217
                $region53: #{drqa_forward.12} parent=46 // loop_footer_branch
                  %216 = sbr.rel target = $region49
                $region54: #{drqa_forward.12} parent=46 // loop_exit
                  _
                loop: start=0, step=1, limit=1
                $region55: #{drqa_forward.12} parent=46 // loop_pre_header
                  _
                $region56: #{drqa_forward.12} parent=46 // loop_header
                  %s226 = sphi 0, %s230
                  %p227 = scmp.ge.s32.totalorder %s226, 1
                  %s231 = sphi %s182, %s182
                  %s232 = sphi %s172, %s172
                $region57: #{drqa_forward.12} parent=46 // loop_header_branch
                  %229 = sbr.rel (%p227) target = $region61
                $region58: #{drqa_forward.12} parent=46 // loop_body
                  %v233 = vld [vmem:[%s231] sm:$0xf]
                  %234 = vst [vmem:[%s232] sm:$0xf] %v233
                  %v235 = vld [vmem:[%s231 + $0x8] sm:$0xf]
                  %236 = vst [vmem:[%s232 + $0x4] sm:$0xf] %v235
                  %v237 = vld [vmem:[%s231 + $0x10] sm:$0xf]
                  %238 = vst [vmem:[%s232 + $0x8] sm:$0xf] %v237
                  %v239 = vld [vmem:[%s231 + $0x18] sm:$0xf]
                  %240 = vst [vmem:[%s232 + $0xc] sm:$0xf] %v239
                  %v241 = vld [vmem:[%s231 + $0x20] sm:$0xf]
                  %242 = vst [vmem:[%s232 + $0x10] sm:$0xf] %v241
                  %v243 = vld [vmem:[%s231 + $0x28] sm:$0xf]
                  %244 = vst [vmem:[%s232 + $0x14] sm:$0xf] %v243
                  %v245 = vld [vmem:[%s231 + $0x30] sm:$0xf]
                  %246 = vst [vmem:[%s232 + $0x18] sm:$0xf] %v245
                  %v247 = vld [vmem:[%s231 + $0x38] sm:$0xf]
                  %248 = vst [vmem:[%s232 + $0x1c] sm:$0xf] %v247
                $region59: #{drqa_forward.12} parent=46 // loop_footer
                  %s230 = sadd.s32 1, %s226
                $region60: #{drqa_forward.12} parent=46 // loop_footer_branch
                  %225 = sbr.rel target = $region56
                $region61: #{drqa_forward.12} parent=46 // loop_exit
                  _
              $region47: #{drqa_forward.12} parent=31 // pred_fallthru
                _
            $region32: #{drqa_forward.12} parent=27 // pred_fallthru
              _
            // Predicated region
            $region33: #{drqa_forward.12} parent=27 // pred_check
              _
            $region34: #{drqa_forward.12} parent=27 // pred_check_branch
              %188 = sbr.rel (0) target = $region36
            $region35: #{drqa_forward.12} parent=27 // pred_region
              loop: start=0, step=1, limit=1
              $region37: #{drqa_forward.12} parent=35 // loop_pre_header
                _
              $region38: #{drqa_forward.12} parent=35 // loop_header
                %s191 = sphi 0, %s195
                %p192 = scmp.ge.s32.totalorder %s191, 1
                %s196 = sphi %s182, %s182
                %s197 = sphi %s172, %s172
              $region39: #{drqa_forward.12} parent=35 // loop_header_branch
                %194 = sbr.rel (%p192) target = $region43
              $region40: #{drqa_forward.12} parent=35 // loop_body
                %v198 = vld [vmem:[%s196] sm:$0xf]
                %199 = vst [vmem:[%s197] sm:$0xf] %v198
                %v200 = vld [vmem:[%s196 + $0x8] sm:$0xf]
                %201 = vst [vmem:[%s197 + $0x4] sm:$0xf] %v200
                %v202 = vld [vmem:[%s196 + $0x10] sm:$0xf]
                %203 = vst [vmem:[%s197 + $0x8] sm:$0xf] %v202
                %v204 = vld [vmem:[%s196 + $0x18] sm:$0xf]
                %205 = vst [vmem:[%s197 + $0xc] sm:$0xf] %v204
                %v206 = vld [vmem:[%s196 + $0x20] sm:$0xf]
                %207 = vst [vmem:[%s197 + $0x10] sm:$0xf] %v206
                %v208 = vld [vmem:[%s196 + $0x28] sm:$0xf]
                %209 = vst [vmem:[%s197 + $0x14] sm:$0xf] %v208
                %v210 = vld [vmem:[%s196 + $0x30] sm:$0xf]
                %211 = vst [vmem:[%s197 + $0x18] sm:$0xf] %v210
                %v212 = vld [vmem:[%s196 + $0x38] sm:$0xf]
                %213 = vst [vmem:[%s197 + $0x1c] sm:$0xf] %v212
              $region41: #{drqa_forward.12} parent=35 // loop_footer
                %s195 = sadd.s32 1, %s191
              $region42: #{drqa_forward.12} parent=35 // loop_footer_branch
                %190 = sbr.rel target = $region38
              $region43: #{drqa_forward.12} parent=35 // loop_exit
                _
            $region36: #{drqa_forward.12} parent=27 // pred_fallthru
              _
          $region28: #{drqa_forward.12} parent=23 // pred_fallthru
            _
          %249 = vnop
        $region24: #{drqa_forward.12} parent=19 // pred_fallthru
          _
        // Predicated region
        $region62: #{drqa_forward.12} parent=19 // pred_check
          %p250 = pneg %p79
        $region63: #{drqa_forward.12} parent=19 // pred_check_branch
          %252 = sbr.rel (%p250) target = $region65
        $region64: #{drqa_forward.12} parent=19 // pred_region
          %p253 = scmp.lt.s32.totalorder %s16, 1
          %s254 = scalar_select %p253, %s16, 1
          %s255 = smul.addr %s254, 64
          %s256 = smul.addr %s255, 4
          %s257 = scalar_lea.vmem %s1, %s256
        $region65: #{drqa_forward.12} parent=19 // pred_fallthru
          _
      $region20: #{drqa_forward.12} parent=5 // pred_fallthru
        _
      %p258 = scmp.le.s32.totalorder 1, %s9
      %p259 = scmp.lt.s32.totalorder %s9, 3
      %p260 = pnand %p258, %p259
      %p261 = pneg %p260
      // Predicated region
      $region66: #{drqa_forward.12} parent=5 // pred_check
        _
      $region67: #{drqa_forward.12} parent=5 // pred_check_branch
        %263 = sbr.rel (%p260) target = $region69
      $region68: #{drqa_forward.12} parent=5 // pred_region
        %s264 = ssub.s32 %s9, 1
        %s265 = sand.u32 %s46, 1
        %s266 = sand.u32 %s46, 1
        %s267 = smul.addr %s266, 32
        %s268 = scalar_lea.vmem [#allocation4], %s267
        // Predicated region
        $region70: #{drqa_forward.12} parent=68 // pred_check
          %p269 = pneg %p59
        $region71: #{drqa_forward.12} parent=68 // pred_check_branch
          %271 = sbr.rel (%p269) target = $region73
        $region72: #{drqa_forward.12} parent=68 // pred_region
          _
        $region73: #{drqa_forward.12} parent=68 // pred_fallthru
          _
        %s272 = sand.u32 %s46, 1
        %s273 = sand.u32 %s46, 1
        %s274 = smul.addr %s273, 32
        %s275 = scalar_lea.vmem [#allocation4], %s274
        %p276 = pneg %p59
        %p277 = pneg %p56
        %p278 = scmp.lt.s32.totalorder %s18, 1
        %s279 = scalar_select %p278, %s18, 1
        %s280 = smul.addr %s279, 64
        %s281 = smul.addr %s280, 4
        %s282 = scalar_lea.vmem %s1, %s281
        %p283 = pneg %p85
        %p284 = pneg %p82
        %p285 = pneg %p106
        %p286 = pneg %p103
        %p287 = pneg %p144
        %p288 = pneg %p141
        %s289 = ssub.s32 1, %s18
        %s290 = smul.u32 %s289, %s19
        %s291 = ssub.s32 0, %s19
        %s292 = smul.u32 %s18, %s291
        %s293 = sadd.s32 %s290, %s292
        %s294 = smul.u32 8, %s293
        %p295 = scmp.lt.s32.totalorder %s18, 1
        %s296 = scalar_select %p295, %s18, 1
        %p297 = scmp.lt.s32.totalorder %s294, 7
        %s298 = scalar_select %p297, %s294, 7
        %s299 = smul.addr %s296, 8
        %s300 = sadd.s32 %s298, %s299
        %s301 = smul.addr %s300, 2
        %s302 = scalar_lea.vmem %s3, %s301
        %s303 = ssub.s32 1, %s18
        %s304 = smul.u32 %s303, %s19
        %s305 = ssub.s32 0, %s19
        %s306 = smul.u32 %s18, %s305
        %s307 = sadd.s32 %s304, %s306
        %s308 = smul.u32 8, %s307
        %s309 = smul.u32 4, %s18
        %p310 = scmp.lt.s32.totalorder %s18, 1
        %s311 = scalar_select %p310, %s18, 1
        %s312 = smul.addr %s311, 64
        %s313 = smul.addr %s312, 4
        %s314 = scalar_lea.vmem %s1, %s313
        %s315 = ssub.s32 1, %s18
        %s316 = smul.u32 %s315, %s19
        %s317 = ssub.s32 0, %s19
        %s318 = smul.u32 %s18, %s317
        %s319 = sadd.s32 %s316, %s318
        %s320 = smul.u32 8, %s319
        %p321 = scmp.lt.s32.totalorder %s18, 1
        %s322 = scalar_select %p321, %s18, 1
        %p323 = scmp.lt.s32.totalorder %s320, 7
        %s324 = scalar_select %p323, %s320, 7
        %s325 = smul.addr %s322, 8
        %s326 = sadd.s32 %s324, %s325
        %s327 = smul.addr %s326, 2
        %s328 = scalar_lea.vmem %s3, %s327
        %s329 = ssub.s32 1, %s18
        %s330 = smul.u32 %s329, %s19
        %s331 = ssub.s32 0, %s19
        %s332 = smul.u32 %s18, %s331
        %s333 = sadd.s32 %s330, %s332
        %s334 = smul.u32 8, %s333
        %p336 = scmp.eq.s32.totalorder %s19, 0
        // Predicated region
        $region74: #{drqa_forward.12} parent=68 // pred_check
          %p337 = pneg %p336
        $region75: #{drqa_forward.12} parent=68 // pred_check_branch
          %339 = sbr.rel (%p337) target = $region77
        $region76: #{drqa_forward.12} parent=68 // pred_region
          %340 = vst [vmem:[#allocation2] sm:$0x3] 0.0
          %341 = vst [vmem:[#allocation3] sm:$0x3] 0.0
        $region77: #{drqa_forward.12} parent=68 // pred_fallthru
          _
        %s342 = ssub.s32 1, %s18
        %s343 = smul.u32 %s342, %s19
        %s344 = ssub.s32 0, %s19
        %s345 = smul.u32 %s18, %s344
        %s346 = sadd.s32 %s343, %s345
        %s347 = smul.u32 %s346, 8
        %v348 = vld [vmem:[%s2] sm:$0x3]
        %v349 = vld [vmem:[%s314] sm:$0xff]
        %v350 = vld [vmem:[%s314 + $0x8] sm:$0xff]
        %v351 = vld [vmem:[%s314 + $0x10] sm:$0xff]
        %v352 = vld [vmem:[%s314 + $0x18] sm:$0xff]
        %v353 = vld [vmem:[%s314 + $0x20] sm:$0xff]
        %v354 = vld [vmem:[%s314 + $0x28] sm:$0xff]
        %v355 = vld [vmem:[%s314 + $0x30] sm:$0xff]
        %v356 = vld [vmem:[%s314 + $0x38] sm:$0xff]
        %v357 = vld [vmem:[%s314 + $0x40] sm:$0xff]
        %v358 = vld [vmem:[%s314 + $0x48] sm:$0xff]
        %v359 = vld [vmem:[%s314 + $0x50] sm:$0xff]
        %v360 = vld [vmem:[%s314 + $0x58] sm:$0xff]
        %v361 = vld [vmem:[%s314 + $0x60] sm:$0xff]
        %v362 = vld [vmem:[%s314 + $0x68] sm:$0xff]
        %v363 = vld [vmem:[%s314 + $0x70] sm:$0xff]
        %v364 = vld [vmem:[%s314 + $0x78] sm:$0xff]
        %v365 = vld [vmem:[%s314 + $0x80] sm:$0xff]
        %v366 = vld [vmem:[%s314 + $0x88] sm:$0xff]
        %v367 = vld [vmem:[%s314 + $0x90] sm:$0xff]
        %v368 = vld [vmem:[%s314 + $0x98] sm:$0xff]
        %v369 = vld [vmem:[%s314 + $0xa0] sm:$0xff]
        %v370 = vld [vmem:[%s314 + $0xa8] sm:$0xff]
        %v371 = vld [vmem:[%s314 + $0xb0] sm:$0xff]
        %v372 = vld [vmem:[%s314 + $0xb8] sm:$0xff]
        %v373 = vld [vmem:[%s314 + $0xc0] sm:$0xff]
        %v374 = vld [vmem:[%s314 + $0xc8] sm:$0xff]
        %v375 = vld [vmem:[%s314 + $0xd0] sm:$0xff]
        %v376 = vld [vmem:[%s314 + $0xd8] sm:$0xff]
        %v377 = vld [vmem:[%s314 + $0xe0] sm:$0xff]
        %v378 = vld [vmem:[%s314 + $0xe8] sm:$0xff]
        %v379 = vld [vmem:[%s314 + $0xf0] sm:$0xff]
        %v380 = vld [vmem:[%s314 + $0xf8] sm:$0xff]
        %s381 = smul.u32 %s18, 7
        %s382 = sadd.s32 %s347, %s381
        %v383 = vld [vmem:[#allocation2] sm:$0x3]
        %v384 = vld [vmem:[#allocation3] sm:$0x3]
        %s385 = smul.u32 %s381, 4
        %s386 = scalar_lea.vmem %s268, %s385 [#allocation4]
        %v387 = vld [vmem:[%s386] sm:$0xf]
        %v388 = vunpack.c.l.bf16 %v387
        %v389 = vpack.c.bf16 %v383, %v383
        %v422 = vunpack.c.l.b16 %v349
        %v423 = vunpack.c.h.b16 %v349
        %v424 = vunpack.c.l.b16 %v350
        %v425 = vunpack.c.h.b16 %v350
        %v426 = vunpack.c.l.b16 %v351
        %v427 = vunpack.c.h.b16 %v351
        %v428 = vunpack.c.l.b16 %v352
        %v429 = vunpack.c.h.b16 %v352
        %v430 = vunpack.c.l.b16 %v353
        %v431 = vunpack.c.h.b16 %v353
        %v432 = vunpack.c.l.b16 %v354
        %v433 = vunpack.c.h.b16 %v354
        %v434 = vunpack.c.l.b16 %v355
        %v435 = vunpack.c.h.b16 %v355
        %v436 = vunpack.c.l.b16 %v356
        %v437 = vunpack.c.h.b16 %v356
        %v438 = vunpack.c.l.b16 %v357
        %v439 = vunpack.c.h.b16 %v357
        %v440 = vunpack.c.l.b16 %v358
        %v441 = vunpack.c.h.b16 %v358
        %v442 = vunpack.c.l.b16 %v359
        %v443 = vunpack.c.h.b16 %v359
        %v444 = vunpack.c.l.b16 %v360
        %v445 = vunpack.c.h.b16 %v360
        %v446 = vunpack.c.l.b16 %v361
        %v447 = vunpack.c.h.b16 %v361
        %v448 = vunpack.c.l.b16 %v362
        %v449 = vunpack.c.h.b16 %v362
        %v450 = vunpack.c.l.b16 %v363
        %v451 = vunpack.c.h.b16 %v363
        %v452 = vunpack.c.l.b16 %v364
        %v453 = vunpack.c.h.b16 %v364
        %v454 = vunpack.c.l.b16 %v365
        %v455 = vunpack.c.h.b16 %v365
        %v456 = vunpack.c.l.b16 %v366
        %v457 = vunpack.c.h.b16 %v366
        %v458 = vunpack.c.l.b16 %v367
        %v459 = vunpack.c.h.b16 %v367
        %v460 = vunpack.c.l.b16 %v368
        %v461 = vunpack.c.h.b16 %v368
        %v462 = vunpack.c.l.b16 %v369
        %v463 = vunpack.c.h.b16 %v369
        %v464 = vunpack.c.l.b16 %v370
        %v465 = vunpack.c.h.b16 %v370
        %v466 = vunpack.c.l.b16 %v371
        %v467 = vunpack.c.h.b16 %v371
        %v468 = vunpack.c.l.b16 %v372
        %v469 = vunpack.c.h.b16 %v372
        %v470 = vunpack.c.l.b16 %v373
        %v471 = vunpack.c.h.b16 %v373
        %v472 = vunpack.c.l.b16 %v374
        %v473 = vunpack.c.h.b16 %v374
        %v474 = vunpack.c.l.b16 %v375
        %v475 = vunpack.c.h.b16 %v375
        %v476 = vunpack.c.l.b16 %v376
        %v477 = vunpack.c.h.b16 %v376
        %v478 = vunpack.c.l.b16 %v377
        %v479 = vunpack.c.h.b16 %v377
        %v480 = vunpack.c.l.b16 %v378
        %v481 = vunpack.c.h.b16 %v378
        %v482 = vunpack.c.l.b16 %v379
        %v483 = vunpack.c.h.b16 %v379
        %v484 = vunpack.c.l.b16 %v380
        %v485 = vunpack.c.h.b16 %v380
        %v486 = vpack.c.b16 %v426, %v422
        %v487 = vpack.c.b16 %v427, %v423
        %v488 = vpack.c.b16 %v428, %v424
        %v489 = vpack.c.b16 %v429, %v425
        %v490 = vpack.c.b16 %v434, %v430
        %v491 = vpack.c.b16 %v435, %v431
        %v492 = vpack.c.b16 %v436, %v432
        %v493 = vpack.c.b16 %v437, %v433
        %v494 = vpack.c.b16 %v442, %v438
        %v495 = vpack.c.b16 %v443, %v439
        %v496 = vpack.c.b16 %v444, %v440
        %v497 = vpack.c.b16 %v445, %v441
        %v498 = vpack.c.b16 %v450, %v446
        %v499 = vpack.c.b16 %v451, %v447
        %v500 = vpack.c.b16 %v452, %v448
        %v501 = vpack.c.b16 %v453, %v449
        %v502 = vpack.c.b16 %v458, %v454
        %v503 = vpack.c.b16 %v459, %v455
        %v504 = vpack.c.b16 %v460, %v456
        %v505 = vpack.c.b16 %v461, %v457
        %v506 = vpack.c.b16 %v466, %v462
        %v507 = vpack.c.b16 %v467, %v463
        %v508 = vpack.c.b16 %v468, %v464
        %v509 = vpack.c.b16 %v469, %v465
        %v510 = vpack.c.b16 %v474, %v470
        %v511 = vpack.c.b16 %v475, %v471
        %v512 = vpack.c.b16 %v476, %v472
        %v513 = vpack.c.b16 %v477, %v473
        %v514 = vpack.c.b16 %v482, %v478
        %v515 = vpack.c.b16 %v483, %v479
        %v516 = vpack.c.b16 %v484, %v480
        %v517 = vpack.c.b16 %v485, %v481
        %550 = vmatprep.subr.bf16.mxu0 %v487
        %551 = vmatpush1.bf16.msra.mxu0 %v486
        %552 = vmatprep.subr.bf16.mxu0 %v491
        %553 = vmatpush1.bf16.msra.mxu0 %v490
        %554 = vmatprep.subr.bf16.mxu0 %v495
        %555 = vmatpush1.bf16.msra.mxu0 %v494
        %556 = vmatprep.subr.bf16.mxu0 %v499
        %557 = vmatpush1.bf16.msra.mxu0 %v498
        %558 = vmatprep.subr.bf16.mxu0 %v503
        %559 = vmatpush1.bf16.msra.mxu0 %v502
        %560 = vmatprep.subr.bf16.mxu0 %v507
        %561 = vmatpush1.bf16.msra.mxu0 %v506
        %562 = vmatprep.subr.bf16.mxu0 %v511
        %563 = vmatpush1.bf16.msra.mxu0 %v510
        %564 = vmatprep.subr.bf16.mxu0 %v515
        %565 = vmatpush1.bf16.msra.mxu0 %v514
        %566 = vmatprep.subr.bf16.mxu0 0
        %567 = vmatpush1.bf16.msra.mxu0 0
        %568 = vmatprep.subr.bf16.mxu0 0
        %569 = vmatpush1.bf16.msra.mxu0 0
        %570 = vmatprep.subr.bf16.mxu0 0
        %571 = vmatpush1.bf16.msra.mxu0 0
        %572 = vmatprep.subr.bf16.mxu0 0
        %573 = vmatpush1.bf16.msra.mxu0 0
        %574 = vmatprep.subr.bf16.mxu0 0
        %575 = vmatpush1.bf16.msra.mxu0 0
        %576 = vmatprep.subr.bf16.mxu0 0
        %577 = vmatpush1.bf16.msra.mxu0 0
        %578 = vmatprep.subr.bf16.mxu0 0
        %579 = vmatpush1.bf16.msra.mxu0 0
        %580 = vmatprep.subr.bf16.mxu0 0
        %581 = vmatpush1.bf16.msra.mxu0 0
        %582 = vmatprep.mubr.bf16.mxu0 0
        %583 = vmatmul.mubr.bf16.gmra.mrb[0].mxu0 %v389
        %v584 = vpop.f32.mrb[0].mxu0
        %v585 = vadd.f32 0.0, %v584
        %v586 = vpop.f32.mrb[0].mxu0
        %v587 = vadd.f32 0.0, %v586
        %v588 = vpop.f32.mrb[0].mxu0
        %v589 = vpop.f32.mrb[0].mxu0
        %590 = vdwg.mxu0
        %591 = vmatprep.subr.bf16.mxu0 %v489
        %592 = vmatpush1.bf16.msra.mxu0 %v488
        %593 = vmatprep.subr.bf16.mxu0 %v493
        %594 = vmatpush1.bf16.msra.mxu0 %v492
        %595 = vmatprep.subr.bf16.mxu0 %v497
        %596 = vmatpush1.bf16.msra.mxu0 %v496
        %597 = vmatprep.subr.bf16.mxu0 %v501
        %598 = vmatpush1.bf16.msra.mxu0 %v500
        %599 = vmatprep.subr.bf16.mxu0 %v505
        %600 = vmatpush1.bf16.msra.mxu0 %v504
        %601 = vmatprep.subr.bf16.mxu0 %v509
        %602 = vmatpush1.bf16.msra.mxu0 %v508
        %603 = vmatprep.subr.bf16.mxu0 %v513
        %604 = vmatpush1.bf16.msra.mxu0 %v512
        %605 = vmatprep.subr.bf16.mxu0 %v517
        %606 = vmatpush1.bf16.msra.mxu0 %v516
        %607 = vmatprep.subr.bf16.mxu0 0
        %608 = vmatpush1.bf16.msra.mxu0 0
        %609 = vmatprep.subr.bf16.mxu0 0
        %610 = vmatpush1.bf16.msra.mxu0 0
        %611 = vmatprep.subr.bf16.mxu0 0
        %612 = vmatpush1.bf16.msra.mxu0 0
        %613 = vmatprep.subr.bf16.mxu0 0
        %614 = vmatpush1.bf16.msra.mxu0 0
        %615 = vmatprep.subr.bf16.mxu0 0
        %616 = vmatpush1.bf16.msra.mxu0 0
        %617 = vmatprep.subr.bf16.mxu0 0
        %618 = vmatpush1.bf16.msra.mxu0 0
        %619 = vmatprep.subr.bf16.mxu0 0
        %620 = vmatpush1.bf16.msra.mxu0 0
        %621 = vmatprep.subr.bf16.mxu0 0
        %622 = vmatpush1.bf16.msra.mxu0 0
        %623 = vmatprep.mubr.bf16.mxu0 0
        %624 = vmatmul.mubr.bf16.gmra.mrb[0].mxu0 %v389
        %v625 = vpop.f32.mrb[0].mxu0
        %v626 = vadd.f32 0.0, %v625
        %v627 = vpop.f32.mrb[0].mxu0
        %v628 = vadd.f32 0.0, %v627
        %v629 = vpop.f32.mrb[0].mxu0
        %v630 = vpop.f32.mrb[0].mxu0
        %631 = vdwg.mxu0
        %v636 = vcombine.low %v585, %v587
        %v637 = vcombine.low %v626, %v628
        %v639 = vunpack.c.l.s4 1983009808
        %v640 = vunpack.c.0.s8 %v639
        %v641 = vlaneseq
        %v642 = vshrl.u32 %v641, 7
        %v643 = vsub.s32 %v640, %v642
        %v644 = vrot.slane %v636, %v643
        %v646 = vunpack.c.l.s4 1983009808
        %v647 = vunpack.c.0.s8 %v646
        %v648 = vlaneseq
        %v649 = vshrl.u32 %v648, 7
        %v650 = vsub.s32 %v647, %v649
        %v651 = vrot.slane %v637, %v650
        %v652 = vcombine.low %v644, %v651
        %v654 = vadd.f32 %v388, %v652
        %v655 = vxor.u32 %v654, 2147483648
        %v656 = vmul.f32 %v655, 1.442695
        %v657 = vpow.pop %v656
        %v658 = vadd.f32 %v657, 1.0
        %v659 = vrcp.pop %v658
        %v660 = vmul.f32 1.0, %v659
        %v662 = vrot.slane %v654, 2
        %v664 = vxor.u32 %v662, 2147483648
        %v665 = vmul.f32 %v664, 1.442695
        %v666 = vpow.pop %v665
        %v667 = vadd.f32 %v666, 1.0
        %v668 = vrcp.pop %v667
        %v669 = vmul.f32 1.0, %v668
        %v670 = vrot.slane %v654, 4
        %v672 = vtanh.pop %v670
        %v673 = vrot.slane %v654, 6
        %v675 = vxor.u32 %v673, 2147483648
        %v676 = vmul.f32 %v675, 1.442695
        %v677 = vpow.pop %v676
        %v678 = vadd.f32 %v677, 1.0
        %v679 = vrcp.pop %v678
        %v680 = vmul.f32 1.0, %v679
        %v681 = vmul.f32 %v669, %v384
        %v682 = vmul.f32 %v660, %v672
        %v683 = vadd.f32 %v681, %v682
        %v684 = vtanh.pop %v683
        %v685 = vmul.f32 %v680, %v684
        %v686 = vstv %s382
        %vm687 = vcmp.gt.s32.totalorder %v348, %v686
        %v688 = vsel %vm687, 1, 0
        %689 = vset.pattern.permute.xlu0 0
        %690 = vperm.xlu0 %689, %v688
        %v691 = vpop.permute.xlu0 %690
        %vm692 = vcmp.eq.s32.totalorder %v691, 1
        %v693 = vsel %vm692, %v685, %v383
        %694 = vst [vmem:[#allocation2] sm:$0x3] %v693
        %v695 = vsel %vm692, %v683, %v384
        %696 = vst [vmem:[#allocation3] sm:$0x3] %v695
        %v697 = vsel %vm692, %v685, 0.0
        %s698 = smul.u32 %s381, 2
        %s699 = scalar_lea.vmem %s328, %s698
        %700 = vst [vmem:[%s699] sm:$0x3] %v697
        %s701 = smul.u32 %s18, 6
        %s702 = sadd.s32 %s342, %s701
        %s703 = sadd.s32 %s347, %s702
        %v704 = vld [vmem:[#allocation2] sm:$0x3]
        %v705 = vld [vmem:[#allocation3] sm:$0x3]
        %s706 = smul.u32 %s702, 4
        %s707 = scalar_lea.vmem %s268, %s706 [#allocation4]
        %v708 = vld [vmem:[%s707] sm:$0xf]
        %v709 = vunpack.c.l.bf16 %v708
        %v710 = vpack.c.bf16 %v704, %v704
        %711 = vmatprep.subr.bf16.mxu0 %v487
        %712 = vmatpush1.bf16.msra.mxu0 %v486
        %713 = vmatprep.subr.bf16.mxu0 %v491
        %714 = vmatpush1.bf16.msra.mxu0 %v490
        %715 = vmatprep.subr.bf16.mxu0 %v495
        %716 = vmatpush1.bf16.msra.mxu0 %v494
        %717 = vmatprep.subr.bf16.mxu0 %v499
        %718 = vmatpush1.bf16.msra.mxu0 %v498
        %719 = vmatprep.subr.bf16.mxu0 %v503
        %720 = vmatpush1.bf16.msra.mxu0 %v502
        %721 = vmatprep.subr.bf16.mxu0 %v507
        %722 = vmatpush1.bf16.msra.mxu0 %v506
        %723 = vmatprep.subr.bf16.mxu0 %v511
        %724 = vmatpush1.bf16.msra.mxu0 %v510
        %725 = vmatprep.subr.bf16.mxu0 %v515
        %726 = vmatpush1.bf16.msra.mxu0 %v514
        %727 = vmatprep.subr.bf16.mxu0 0
        %728 = vmatpush1.bf16.msra.mxu0 0
        %729 = vmatprep.subr.bf16.mxu0 0
        %730 = vmatpush1.bf16.msra.mxu0 0
        %731 = vmatprep.subr.bf16.mxu0 0
        %732 = vmatpush1.bf16.msra.mxu0 0
        %733 = vmatprep.subr.bf16.mxu0 0
        %734 = vmatpush1.bf16.msra.mxu0 0
        %735 = vmatprep.subr.bf16.mxu0 0
        %736 = vmatpush1.bf16.msra.mxu0 0
        %737 = vmatprep.subr.bf16.mxu0 0
        %738 = vmatpush1.bf16.msra.mxu0 0
        %739 = vmatprep.subr.bf16.mxu0 0
        %740 = vmatpush1.bf16.msra.mxu0 0
        %741 = vmatprep.subr.bf16.mxu0 0
        %742 = vmatpush1.bf16.msra.mxu0 0
        %743 = vmatprep.mubr.bf16.mxu0 0
        %744 = vmatmul.mubr.bf16.gmra.mrb[0].mxu0 %v710
        %v745 = vpop.f32.mrb[0].mxu0
        %v746 = vadd.f32 0.0, %v745
        %v747 = vpop.f32.mrb[0].mxu0
        %v748 = vadd.f32 0.0, %v747
        %v749 = vpop.f32.mrb[0].mxu0
        %v750 = vpop.f32.mrb[0].mxu0
        %751 = vdwg.mxu0
        %752 = vmatprep.subr.bf16.mxu0 %v489
        %753 = vmatpush1.bf16.msra.mxu0 %v488
        %754 = vmatprep.subr.bf16.mxu0 %v493
        %755 = vmatpush1.bf16.msra.mxu0 %v492
        %756 = vmatprep.subr.bf16.mxu0 %v497
        %757 = vmatpush1.bf16.msra.mxu0 %v496
        %758 = vmatprep.subr.bf16.mxu0 %v501
        %759 = vmatpush1.bf16.msra.mxu0 %v500
        %760 = vmatprep.subr.bf16.mxu0 %v505
        %761 = vmatpush1.bf16.msra.mxu0 %v504
        %762 = vmatprep.subr.bf16.mxu0 %v509
        %763 = vmatpush1.bf16.msra.mxu0 %v508
        %764 = vmatprep.subr.bf16.mxu0 %v513
        %765 = vmatpush1.bf16.msra.mxu0 %v512
        %766 = vmatprep.subr.bf16.mxu0 %v517
        %767 = vmatpush1.bf16.msra.mxu0 %v516
        %768 = vmatprep.subr.bf16.mxu0 0
        %769 = vmatpush1.bf16.msra.mxu0 0
        %770 = vmatprep.subr.bf16.mxu0 0
        %771 = vmatpush1.bf16.msra.mxu0 0
        %772 = vmatprep.subr.bf16.mxu0 0
        %773 = vmatpush1.bf16.msra.mxu0 0
        %774 = vmatprep.subr.bf16.mxu0 0
        %775 = vmatpush1.bf16.msra.mxu0 0
        %776 = vmatprep.subr.bf16.mxu0 0
        %777 = vmatpush1.bf16.msra.mxu0 0
        %778 = vmatprep.subr.bf16.mxu0 0
        %779 = vmatpush1.bf16.msra.mxu0 0
        %780 = vmatprep.subr.bf16.mxu0 0
        %781 = vmatpush1.bf16.msra.mxu0 0
        %782 = vmatprep.subr.bf16.mxu0 0
        %783 = vmatpush1.bf16.msra.mxu0 0
        %784 = vmatprep.mubr.bf16.mxu0 0
        %785 = vmatmul.mubr.bf16.gmra.mrb[0].mxu0 %v710
        %v786 = vpop.f32.mrb[0].mxu0
        %v787 = vadd.f32 0.0, %v786
        %v788 = vpop.f32.mrb[0].mxu0
        %v789 = vadd.f32 0.0, %v788
        %v790 = vpop.f32.mrb[0].mxu0
        %v791 = vpop.f32.mrb[0].mxu0
        %792 = vdwg.mxu0
        %v797 = vcombine.low %v746, %v748
        %v798 = vcombine.low %v787, %v789
        %v800 = vunpack.c.l.s4 1983009808
        %v801 = vunpack.c.0.s8 %v800
        %v802 = vlaneseq
        %v803 = vshrl.u32 %v802, 7
        %v804 = vsub.s32 %v801, %v803
        %v805 = vrot.slane %v797, %v804
        %v807 = vunpack.c.l.s4 1983009808
        %v808 = vunpack.c.0.s8 %v807
        %v809 = vlaneseq
        %v810 = vshrl.u32 %v809, 7
        %v811 = vsub.s32 %v808, %v810
        %v812 = vrot.slane %v798, %v811
        %v813 = vcombine.low %v805, %v812
        %v815 = vadd.f32 %v709, %v813
        %v816 = vxor.u32 %v815, 2147483648
        %v817 = vmul.f32 %v816, 1.442695
        %v818 = vpow.pop %v817
        %v819 = vadd.f32 %v818, 1.0
        %v820 = vrcp.pop %v819
        %v821 = vmul.f32 1.0, %v820
        %v823 = vrot.slane %v815, 2
        %v825 = vxor.u32 %v823, 2147483648
        %v826 = vmul.f32 %v825, 1.442695
        %v827 = vpow.pop %v826
        %v828 = vadd.f32 %v827, 1.0
        %v829 = vrcp.pop %v828
        %v830 = vmul.f32 1.0, %v829
        %v831 = vrot.slane %v815, 4
        %v833 = vtanh.pop %v831
        %v834 = vrot.slane %v815, 6
        %v836 = vxor.u32 %v834, 2147483648
        %v837 = vmul.f32 %v836, 1.442695
        %v838 = vpow.pop %v837
        %v839 = vadd.f32 %v838, 1.0
        %v840 = vrcp.pop %v839
        %v841 = vmul.f32 1.0, %v840
        %v842 = vmul.f32 %v830, %v705
        %v843 = vmul.f32 %v821, %v833
        %v844 = vadd.f32 %v842, %v843
        %v845 = vtanh.pop %v844
        %v846 = vmul.f32 %v841, %v845
        %v847 = vstv %s703
        %vm848 = vcmp.gt.s32.totalorder %v348, %v847
        %v849 = vsel %vm848, 1, 0
        %850 = vset.pattern.permute.xlu0 0
        %851 = vperm.xlu0 %850, %v849
        %v852 = vpop.permute.xlu0 %851
        %vm853 = vcmp.eq.s32.totalorder %v852, 1
        %v854 = vsel %vm853, %v846, %v704
        %855 = vst [vmem:[#allocation2] sm:$0x3] %v854
        %v856 = vsel %vm853, %v844, %v705
        %857 = vst [vmem:[#allocation3] sm:$0x3] %v856
        %v858 = vsel %vm853, %v846, 0.0
        %s859 = smul.u32 %s702, 2
        %s860 = scalar_lea.vmem %s328, %s859
        %861 = vst [vmem:[%s860] sm:$0x3] %v858
        %s862 = smul.u32 %s342, 2
        %s863 = smul.u32 %s18, 5
        %s864 = sadd.s32 %s862, %s863
        %s865 = sadd.s32 %s347, %s864
        %v866 = vld [vmem:[#allocation2] sm:$0x3]
        %v867 = vld [vmem:[#allocation3] sm:$0x3]
        %s868 = smul.u32 %s864, 4
        %s869 = scalar_lea.vmem %s268, %s868 [#allocation4]
        %v870 = vld [vmem:[%s869] sm:$0xf]
        %v871 = vunpack.c.l.bf16 %v870
        %v872 = vpack.c.bf16 %v866, %v866
        %873 = vmatprep.subr.bf16.mxu0 %v487
        %874 = vmatpush1.bf16.msra.mxu0 %v486
        %875 = vmatprep.subr.bf16.mxu0 %v491
        %876 = vmatpush1.bf16.msra.mxu0 %v490
        %877 = vmatprep.subr.bf16.mxu0 %v495
        %878 = vmatpush1.bf16.msra.mxu0 %v494
        %879 = vmatprep.subr.bf16.mxu0 %v499
        %880 = vmatpush1.bf16.msra.mxu0 %v498
        %881 = vmatprep.subr.bf16.mxu0 %v503
        %882 = vmatpush1.bf16.msra.mxu0 %v502
        %883 = vmatprep.subr.bf16.mxu0 %v507
        %884 = vmatpush1.bf16.msra.mxu0 %v506
        %885 = vmatprep.subr.bf16.mxu0 %v511
        %886 = vmatpush1.bf16.msra.mxu0 %v510
        %887 = vmatprep.subr.bf16.mxu0 %v515
        %888 = vmatpush1.bf16.msra.mxu0 %v514
        %889 = vmatprep.subr.bf16.mxu0 0
        %890 = vmatpush1.bf16.msra.mxu0 0
        %891 = vmatprep.subr.bf16.mxu0 0
        %892 = vmatpush1.bf16.msra.mxu0 0
        %893 = vmatprep.subr.bf16.mxu0 0
        %894 = vmatpush1.bf16.msra.mxu0 0
        %895 = vmatprep.subr.bf16.mxu0 0
        %896 = vmatpush1.bf16.msra.mxu0 0
        %897 = vmatprep.subr.bf16.mxu0 0
        %898 = vmatpush1.bf16.msra.mxu0 0
        %899 = vmatprep.subr.bf16.mxu0 0
        %900 = vmatpush1.bf16.msra.mxu0 0
        %901 = vmatprep.subr.bf16.mxu0 0
        %902 = vmatpush1.bf16.msra.mxu0 0
        %903 = vmatprep.subr.bf16.mxu0 0
        %904 = vmatpush1.bf16.msra.mxu0 0
        %905 = vmatprep.mubr.bf16.mxu0 0
        %906 = vmatmul.mubr.bf16.gmra.mrb[0].mxu0 %v872
        %v907 = vpop.f32.mrb[0].mxu0
        %v908 = vadd.f32 0.0, %v907
        %v909 = vpop.f32.mrb[0].mxu0
        %v910 = vadd.f32 0.0, %v909
        %v911 = vpop.f32.mrb[0].mxu0
        %v912 = vpop.f32.mrb[0].mxu0
        %913 = vdwg.mxu0
        %914 = vmatprep.subr.bf16.mxu0 %v489
        %915 = vmatpush1.bf16.msra.mxu0 %v488
        %916 = vmatprep.subr.bf16.mxu0 %v493
        %917 = vmatpush1.bf16.msra.mxu0 %v492
        %918 = vmatprep.subr.bf16.mxu0 %v497
        %919 = vmatpush1.bf16.msra.mxu0 %v496
        %920 = vmatprep.subr.bf16.mxu0 %v501
        %921 = vmatpush1.bf16.msra.mxu0 %v500
        %922 = vmatprep.subr.bf16.mxu0 %v505
        %923 = vmatpush1.bf16.msra.mxu0 %v504
        %924 = vmatprep.subr.bf16.mxu0 %v509
        %925 = vmatpush1.bf16.msra.mxu0 %v508
        %926 = vmatprep.subr.bf16.mxu0 %v513
        %927 = vmatpush1.bf16.msra.mxu0 %v512
        %928 = vmatprep.subr.bf16.mxu0 %v517
        %929 = vmatpush1.bf16.msra.mxu0 %v516
        %930 = vmatprep.subr.bf16.mxu0 0
        %931 = vmatpush1.bf16.msra.mxu0 0
        %932 = vmatprep.subr.bf16.mxu0 0
        %933 = vmatpush1.bf16.msra.mxu0 0
        %934 = vmatprep.subr.bf16.mxu0 0
        %935 = vmatpush1.bf16.msra.mxu0 0
        %936 = vmatprep.subr.bf16.mxu0 0
        %937 = vmatpush1.bf16.msra.mxu0 0
        %938 = vmatprep.subr.bf16.mxu0 0
        %939 = vmatpush1.bf16.msra.mxu0 0
        %940 = vmatprep.subr.bf16.mxu0 0
        %941 = vmatpush1.bf16.msra.mxu0 0
        %942 = vmatprep.subr.bf16.mxu0 0
        %943 = vmatpush1.bf16.msra.mxu0 0
        %944 = vmatprep.subr.bf16.mxu0 0
        %945 = vmatpush1.bf16.msra.mxu0 0
        %946 = vmatprep.mubr.bf16.mxu0 0
        %947 = vmatmul.mubr.bf16.gmra.mrb[0].mxu0 %v872
        %v948 = vpop.f32.mrb[0].mxu0
        %v949 = vadd.f32 0.0, %v948
        %v950 = vpop.f32.mrb[0].mxu0
        %v951 = vadd.f32 0.0, %v950
        %v952 = vpop.f32.mrb[0].mxu0
        %v953 = vpop.f32.mrb[0].mxu0
        %954 = vdwg.mxu0
        %v959 = vcombine.low %v908, %v910
        %v960 = vcombine.low %v949, %v951
        %v962 = vunpack.c.l.s4 1983009808
        %v963 = vunpack.c.0.s8 %v962
        %v964 = vlaneseq
        %v965 = vshrl.u32 %v964, 7
        %v966 = vsub.s32 %v963, %v965
        %v967 = vrot.slane %v959, %v966
        %v969 = vunpack.c.l.s4 1983009808
        %v970 = vunpack.c.0.s8 %v969
        %v971 = vlaneseq
        %v972 = vshrl.u32 %v971, 7
        %v973 = vsub.s32 %v970, %v972
        %v974 = vrot.slane %v960, %v973
        %v975 = vcombine.low %v967, %v974
        %v977 = vadd.f32 %v871, %v975
        %v978 = vxor.u32 %v977, 2147483648
        %v979 = vmul.f32 %v978, 1.442695
        %v980 = vpow.pop %v979
        %v981 = vadd.f32 %v980, 1.0
        %v982 = vrcp.pop %v981
        %v983 = vmul.f32 1.0, %v982
        %v985 = vrot.slane %v977, 2
        %v987 = vxor.u32 %v985, 2147483648
        %v988 = vmul.f32 %v987, 1.442695
        %v989 = vpow.pop %v988
        %v990 = vadd.f32 %v989, 1.0
        %v991 = vrcp.pop %v990
        %v992 = vmul.f32 1.0, %v991
        %v993 = vrot.slane %v977, 4
        %v995 = vtanh.pop %v993
        %v996 = vrot.slane %v977, 6
        %v998 = vxor.u32 %v996, 2147483648
        %v999 = vmul.f32 %v998, 1.442695
        %v1000 = vpow.pop %v999
        %v1001 = vadd.f32 %v1000, 1.0
        %v1002 = vrcp.pop %v1001
        %v1003 = vmul.f32 1.0, %v1002
        %v1004 = vmul.f32 %v992, %v867
        %v1005 = vmul.f32 %v983, %v995
        %v1006 = vadd.f32 %v1004, %v1005
        %v1007 = vtanh.pop %v1006
        %v1008 = vmul.f32 %v1003, %v1007
        %v1009 = vstv %s865
        %vm1010 = vcmp.gt.s32.totalorder %v348, %v1009
        %v1011 = vsel %vm1010, 1, 0
        %1012 = vset.pattern.permute.xlu0 0
        %1013 = vperm.xlu0 %1012, %v1011
        %v1014 = vpop.permute.xlu0 %1013
        %vm1015 = vcmp.eq.s32.totalorder %v1014, 1
        %v1016 = vsel %vm1015, %v1008, %v866
        %1017 = vst [vmem:[#allocation2] sm:$0x3] %v1016
        %v1018 = vsel %vm1015, %v1006, %v867
        %1019 = vst [vmem:[#allocation3] sm:$0x3] %v1018
        %v1020 = vsel %vm1015, %v1008, 0.0
        %s1021 = smul.u32 %s864, 2
        %s1022 = scalar_lea.vmem %s328, %s1021
        %1023 = vst [vmem:[%s1022] sm:$0x3] %v1020
        %s1024 = smul.u32 %s342, 3
        %s1025 = smul.u32 %s18, 4
        %s1026 = sadd.s32 %s1024, %s1025
        %s1027 = sadd.s32 %s347, %s1026
        %v1028 = vld [vmem:[#allocation2] sm:$0x3]
        %v1029 = vld [vmem:[#allocation3] sm:$0x3]
        %s1030 = smul.u32 %s1026, 4
        %s1031 = scalar_lea.vmem %s268, %s1030 [#allocation4]
        %v1032 = vld [vmem:[%s1031] sm:$0xf]
        %v1033 = vunpack.c.l.bf16 %v1032
        %v1034 = vpack.c.bf16 %v1028, %v1028
        %1035 = vmatprep.subr.bf16.mxu0 %v487
        %1036 = vmatpush1.bf16.msra.mxu0 %v486
        %1037 = vmatprep.subr.bf16.mxu0 %v491
        %1038 = vmatpush1.bf16.msra.mxu0 %v490
        %1039 = vmatprep.subr.bf16.mxu0 %v495
        %1040 = vmatpush1.bf16.msra.mxu0 %v494
        %1041 = vmatprep.subr.bf16.mxu0 %v499
        %1042 = vmatpush1.bf16.msra.mxu0 %v498
        %1043 = vmatprep.subr.bf16.mxu0 %v503
        %1044 = vmatpush1.bf16.msra.mxu0 %v502
        %1045 = vmatprep.subr.bf16.mxu0 %v507
        %1046 = vmatpush1.bf16.msra.mxu0 %v506
        %1047 = vmatprep.subr.bf16.mxu0 %v511
        %1048 = vmatpush1.bf16.msra.mxu0 %v510
        %1049 = vmatprep.subr.bf16.mxu0 %v515
        %1050 = vmatpush1.bf16.msra.mxu0 %v514
        %1051 = vmatprep.subr.bf16.mxu0 0
        %1052 = vmatpush1.bf16.msra.mxu0 0
        %1053 = vmatprep.subr.bf16.mxu0 0
        %1054 = vmatpush1.bf16.msra.mxu0 0
        %1055 = vmatprep.subr.bf16.mxu0 0
        %1056 = vmatpush1.bf16.msra.mxu0 0
        %1057 = vmatprep.subr.bf16.mxu0 0
        %1058 = vmatpush1.bf16.msra.mxu0 0
        %1059 = vmatprep.subr.bf16.mxu0 0
        %1060 = vmatpush1.bf16.msra.mxu0 0
        %1061 = vmatprep.subr.bf16.mxu0 0
        %1062 = vmatpush1.bf16.msra.mxu0 0
        %1063 = vmatprep.subr.bf16.mxu0 0
        %1064 = vmatpush1.bf16.msra.mxu0 0
        %1065 = vmatprep.subr.bf16.mxu0 0
        %1066 = vmatpush1.bf16.msra.mxu0 0
        %1067 = vmatprep.mubr.bf16.mxu0 0
        %1068 = vmatmul.mubr.bf16.gmra.mrb[0].mxu0 %v1034
        %v1069 = vpop.f32.mrb[0].mxu0
        %v1070 = vadd.f32 0.0, %v1069
        %v1071 = vpop.f32.mrb[0].mxu0
        %v1072 = vadd.f32 0.0, %v1071
        %v1073 = vpop.f32.mrb[0].mxu0
        %v1074 = vpop.f32.mrb[0].mxu0
        %1075 = vdwg.mxu0
        %1076 = vmatprep.subr.bf16.mxu0 %v489
        %1077 = vmatpush1.bf16.msra.mxu0 %v488
        %1078 = vmatprep.subr.bf16.mxu0 %v493
        %1079 = vmatpush1.bf16.msra.mxu0 %v492
        %1080 = vmatprep.subr.bf16.mxu0 %v497
        %1081 = vmatpush1.bf16.msra.mxu0 %v496
        %1082 = vmatprep.subr.bf16.mxu0 %v501
        %1083 = vmatpush1.bf16.msra.mxu0 %v500
        %1084 = vmatprep.subr.bf16.mxu0 %v505
        %1085 = vmatpush1.bf16.msra.mxu0 %v504
        %1086 = vmatprep.subr.bf16.mxu0 %v509
        %1087 = vmatpush1.bf16.msra.mxu0 %v508
        %1088 = vmatprep.subr.bf16.mxu0 %v513
        %1089 = vmatpush1.bf16.msra.mxu0 %v512
        %1090 = vmatprep.subr.bf16.mxu0 %v517
        %1091 = vmatpush1.bf16.msra.mxu0 %v516
        %1092 = vmatprep.subr.bf16.mxu0 0
        %1093 = vmatpush1.bf16.msra.mxu0 0
        %1094 = vmatprep.subr.bf16.mxu0 0
        %1095 = vmatpush1.bf16.msra.mxu0 0
        %1096 = vmatprep.subr.bf16.mxu0 0
        %1097 = vmatpush1.bf16.msra.mxu0 0
        %1098 = vmatprep.subr.bf16.mxu0 0
        %1099 = vmatpush1.bf16.msra.mxu0 0
        %1100 = vmatprep.subr.bf16.mxu0 0
        %1101 = vmatpush1.bf16.msra.mxu0 0
        %1102 = vmatprep.subr.bf16.mxu0 0
        %1103 = vmatpush1.bf16.msra.mxu0 0
        %1104 = vmatprep.subr.bf16.mxu0 0
        %1105 = vmatpush1.bf16.msra.mxu0 0
        %1106 = vmatprep.subr.bf16.mxu0 0
        %1107 = vmatpush1.bf16.msra.mxu0 0
        %1108 = vmatprep.mubr.bf16.mxu0 0
        %1109 = vmatmul.mubr.bf16.gmra.mrb[0].mxu0 %v1034
        %v1110 = vpop.f32.mrb[0].mxu0
        %v1111 = vadd.f32 0.0, %v1110
        %v1112 = vpop.f32.mrb[0].mxu0
        %v1113 = vadd.f32 0.0, %v1112
        %v1114 = vpop.f32.mrb[0].mxu0
        %v1115 = vpop.f32.mrb[0].mxu0
        %1116 = vdwg.mxu0
        %v1121 = vcombine.low %v1070, %v1072
        %v1122 = vcombine.low %v1111, %v1113
        %v1124 = vunpack.c.l.s4 1983009808
        %v1125 = vunpack.c.0.s8 %v1124
        %v1126 = vlaneseq
        %v1127 = vshrl.u32 %v1126, 7
        %v1128 = vsub.s32 %v1125, %v1127
        %v1129 = vrot.slane %v1121, %v1128
        %v1131 = vunpack.c.l.s4 1983009808
        %v1132 = vunpack.c.0.s8 %v1131
        %v1133 = vlaneseq
        %v1134 = vshrl.u32 %v1133, 7
        %v1135 = vsub.s32 %v1132, %v1134
        %v1136 = vrot.slane %v1122, %v1135
        %v1137 = vcombine.low %v1129, %v1136
        %v1139 = vadd.f32 %v1033, %v1137
        %v1140 = vxor.u32 %v1139, 2147483648
        %v1141 = vmul.f32 %v1140, 1.442695
        %v1142 = vpow.pop %v1141
        %v1143 = vadd.f32 %v1142, 1.0
        %v1144 = vrcp.pop %v1143
        %v1145 = vmul.f32 1.0, %v1144
        %v1147 = vrot.slane %v1139, 2
        %v1149 = vxor.u32 %v1147, 2147483648
        %v1150 = vmul.f32 %v1149, 1.442695
        %v1151 = vpow.pop %v1150
        %v1152 = vadd.f32 %v1151, 1.0
        %v1153 = vrcp.pop %v1152
        %v1154 = vmul.f32 1.0, %v1153
        %v1155 = vrot.slane %v1139, 4
        %v1157 = vtanh.pop %v1155
        %v1158 = vrot.slane %v1139, 6
        %v1160 = vxor.u32 %v1158, 2147483648
        %v1161 = vmul.f32 %v1160, 1.442695
        %v1162 = vpow.pop %v1161
        %v1163 = vadd.f32 %v1162, 1.0
        %v1164 = vrcp.pop %v1163
        %v1165 = vmul.f32 1.0, %v1164
        %v1166 = vmul.f32 %v1154, %v1029
        %v1167 = vmul.f32 %v1145, %v1157
        %v1168 = vadd.f32 %v1166, %v1167
        %v1169 = vtanh.pop %v1168
        %v1170 = vmul.f32 %v1165, %v1169
        %v1171 = vstv %s1027
        %vm1172 = vcmp.gt.s32.totalorder %v348, %v1171
        %v1173 = vsel %vm1172, 1, 0
        %1174 = vset.pattern.permute.xlu0 0
        %1175 = vperm.xlu0 %1174, %v1173
        %v1176 = vpop.permute.xlu0 %1175
        %vm1177 = vcmp.eq.s32.totalorder %v1176, 1
        %v1178 = vsel %vm1177, %v1170, %v1028
        %1179 = vst [vmem:[#allocation2] sm:$0x3] %v1178
        %v1180 = vsel %vm1177, %v1168, %v1029
        %1181 = vst [vmem:[#allocation3] sm:$0x3] %v1180
        %v1182 = vsel %vm1177, %v1170, 0.0
        %s1183 = smul.u32 %s1026, 2
        %s1184 = scalar_lea.vmem %s328, %s1183
        %1185 = vst [vmem:[%s1184] sm:$0x3] %v1182
        %s1186 = smul.u32 %s342, 4
        %s1187 = smul.u32 %s18, 3
        %s1188 = sadd.s32 %s1186, %s1187
        %s1189 = sadd.s32 %s347, %s1188
        %v1190 = vld [vmem:[#allocation2] sm:$0x3]
        %v1191 = vld [vmem:[#allocation3] sm:$0x3]
        %s1192 = smul.u32 %s1188, 4
        %s1193 = scalar_lea.vmem %s268, %s1192 [#allocation4]
        %v1194 = vld [vmem:[%s1193] sm:$0xf]
        %v1195 = vunpack.c.l.bf16 %v1194
        %v1196 = vpack.c.bf16 %v1190, %v1190
        %1197 = vmatprep.subr.bf16.mxu0 %v487
        %1198 = vmatpush1.bf16.msra.mxu0 %v486
        %1199 = vmatprep.subr.bf16.mxu0 %v491
        %1200 = vmatpush1.bf16.msra.mxu0 %v490
        %1201 = vmatprep.subr.bf16.mxu0 %v495
        %1202 = vmatpush1.bf16.msra.mxu0 %v494
        %1203 = vmatprep.subr.bf16.mxu0 %v499
        %1204 = vmatpush1.bf16.msra.mxu0 %v498
        %1205 = vmatprep.subr.bf16.mxu0 %v503
        %1206 = vmatpush1.bf16.msra.mxu0 %v502
        %1207 = vmatprep.subr.bf16.mxu0 %v507
        %1208 = vmatpush1.bf16.msra.mxu0 %v506
        %1209 = vmatprep.subr.bf16.mxu0 %v511
        %1210 = vmatpush1.bf16.msra.mxu0 %v510
        %1211 = vmatprep.subr.bf16.mxu0 %v515
        %1212 = vmatpush1.bf16.msra.mxu0 %v514
        %1213 = vmatprep.subr.bf16.mxu0 0
        %1214 = vmatpush1.bf16.msra.mxu0 0
        %1215 = vmatprep.subr.bf16.mxu0 0
        %1216 = vmatpush1.bf16.msra.mxu0 0
        %1217 = vmatprep.subr.bf16.mxu0 0
        %1218 = vmatpush1.bf16.msra.mxu0 0
        %1219 = vmatprep.subr.bf16.mxu0 0
        %1220 = vmatpush1.bf16.msra.mxu0 0
        %1221 = vmatprep.subr.bf16.mxu0 0
        %1222 = vmatpush1.bf16.msra.mxu0 0
        %1223 = vmatprep.subr.bf16.mxu0 0
        %1224 = vmatpush1.bf16.msra.mxu0 0
        %1225 = vmatprep.subr.bf16.mxu0 0
        %1226 = vmatpush1.bf16.msra.mxu0 0
        %1227 = vmatprep.subr.bf16.mxu0 0
        %1228 = vmatpush1.bf16.msra.mxu0 0
        %1229 = vmatprep.mubr.bf16.mxu0 0
        %1230 = vmatmul.mubr.bf16.gmra.mrb[0].mxu0 %v1196
        %v1231 = vpop.f32.mrb[0].mxu0
        %v1232 = vadd.f32 0.0, %v1231
        %v1233 = vpop.f32.mrb[0].mxu0
        %v1234 = vadd.f32 0.0, %v1233
        %v1235 = vpop.f32.mrb[0].mxu0
        %v1236 = vpop.f32.mrb[0].mxu0
        %1237 = vdwg.mxu0
        %1238 = vmatprep.subr.bf16.mxu0 %v489
        %1239 = vmatpush1.bf16.msra.mxu0 %v488
        %1240 = vmatprep.subr.bf16.mxu0 %v493
        %1241 = vmatpush1.bf16.msra.mxu0 %v492
        %1242 = vmatprep.subr.bf16.mxu0 %v497
        %1243 = vmatpush1.bf16.msra.mxu0 %v496
        %1244 = vmatprep.subr.bf16.mxu0 %v501
        %1245 = vmatpush1.bf16.msra.mxu0 %v500
        %1246 = vmatprep.subr.bf16.mxu0 %v505
        %1247 = vmatpush1.bf16.msra.mxu0 %v504
        %1248 = vmatprep.subr.bf16.mxu0 %v509
        %1249 = vmatpush1.bf16.msra.mxu0 %v508
        %1250 = vmatprep.subr.bf16.mxu0 %v513
        %1251 = vmatpush1.bf16.msra.mxu0 %v512
        %1252 = vmatprep.subr.bf16.mxu0 %v517
        %1253 = vmatpush1.bf16.msra.mxu0 %v516
        %1254 = vmatprep.subr.bf16.mxu0 0
        %1255 = vmatpush1.bf16.msra.mxu0 0
        %1256 = vmatprep.subr.bf16.mxu0 0
        %1257 = vmatpush1.bf16.msra.mxu0 0
        %1258 = vmatprep.subr.bf16.mxu0 0
        %1259 = vmatpush1.bf16.msra.mxu0 0
        %1260 = vmatprep.subr.bf16.mxu0 0
        %1261 = vmatpush1.bf16.msra.mxu0 0
        %1262 = vmatprep.subr.bf16.mxu0 0
        %1263 = vmatpush1.bf16.msra.mxu0 0
        %1264 = vmatprep.subr.bf16.mxu0 0
        %1265 = vmatpush1.bf16.msra.mxu0 0
        %1266 = vmatprep.subr.bf16.mxu0 0
        %1267 = vmatpush1.bf16.msra.mxu0 0
        %1268 = vmatprep.subr.bf16.mxu0 0
        %1269 = vmatpush1.bf16.msra.mxu0 0
        %1270 = vmatprep.mubr.bf16.mxu0 0
        %1271 = vmatmul.mubr.bf16.gmra.mrb[0].mxu0 %v1196
        %v1272 = vpop.f32.mrb[0].mxu0
        %v1273 = vadd.f32 0.0, %v1272
        %v1274 = vpop.f32.mrb[0].mxu0
        %v1275 = vadd.f32 0.0, %v1274
        %v1276 = vpop.f32.mrb[0].mxu0
        %v1277 = vpop.f32.mrb[0].mxu0
        %1278 = vdwg.mxu0
        %v1283 = vcombine.low %v1232, %v1234
        %v1284 = vcombine.low %v1273, %v1275
        %v1286 = vunpack.c.l.s4 1983009808
        %v1287 = vunpack.c.0.s8 %v1286
        %v1288 = vlaneseq
        %v1289 = vshrl.u32 %v1288, 7
        %v1290 = vsub.s32 %v1287, %v1289
        %v1291 = vrot.slane %v1283, %v1290
        %v1293 = vunpack.c.l.s4 1983009808
        %v1294 = vunpack.c.0.s8 %v1293
        %v1295 = vlaneseq
        %v1296 = vshrl.u32 %v1295, 7
        %v1297 = vsub.s32 %v1294, %v1296
        %v1298 = vrot.slane %v1284, %v1297
        %v1299 = vcombine.low %v1291, %v1298
        %v1301 = vadd.f32 %v1195, %v1299
        %v1302 = vxor.u32 %v1301, 2147483648
        %v1303 = vmul.f32 %v1302, 1.442695
        %v1304 = vpow.pop %v1303
        %v1305 = vadd.f32 %v1304, 1.0
        %v1306 = vrcp.pop %v1305
        %v1307 = vmul.f32 1.0, %v1306
        %v1309 = vrot.slane %v1301, 2
        %v1311 = vxor.u32 %v1309, 2147483648
        %v1312 = vmul.f32 %v1311, 1.442695
        %v1313 = vpow.pop %v1312
        %v1314 = vadd.f32 %v1313, 1.0
        %v1315 = vrcp.pop %v1314
        %v1316 = vmul.f32 1.0, %v1315
        %v1317 = vrot.slane %v1301, 4
        %v1319 = vtanh.pop %v1317
        %v1320 = vrot.slane %v1301, 6
        %v1322 = vxor.u32 %v1320, 2147483648
        %v1323 = vmul.f32 %v1322, 1.442695
        %v1324 = vpow.pop %v1323
        %v1325 = vadd.f32 %v1324, 1.0
        %v1326 = vrcp.pop %v1325
        %v1327 = vmul.f32 1.0, %v1326
        %v1328 = vmul.f32 %v1316, %v1191
        %v1329 = vmul.f32 %v1307, %v1319
        %v1330 = vadd.f32 %v1328, %v1329
        %v1331 = vtanh.pop %v1330
        %v1332 = vmul.f32 %v1327, %v1331
        %v1333 = vstv %s1189
        %vm1334 = vcmp.gt.s32.totalorder %v348, %v1333
        %v1335 = vsel %vm1334, 1, 0
        %1336 = vset.pattern.permute.xlu0 0
        %1337 = vperm.xlu0 %1336, %v1335
        %v1338 = vpop.permute.xlu0 %1337
        %vm1339 = vcmp.eq.s32.totalorder %v1338, 1
        %v1340 = vsel %vm1339, %v1332, %v1190
        %1341 = vst [vmem:[#allocation2] sm:$0x3] %v1340
        %v1342 = vsel %vm1339, %v1330, %v1191
        %1343 = vst [vmem:[#allocation3] sm:$0x3] %v1342
        %v1344 = vsel %vm1339, %v1332, 0.0
        %s1345 = smul.u32 %s1188, 2
        %s1346 = scalar_lea.vmem %s328, %s1345
        %1347 = vst [vmem:[%s1346] sm:$0x3] %v1344
        %s1348 = smul.u32 %s342, 5
        %s1349 = smul.u32 %s18, 2
        %s1350 = sadd.s32 %s1348, %s1349
        %s1351 = sadd.s32 %s347, %s1350
        %v1352 = vld [vmem:[#allocation2] sm:$0x3]
        %v1353 = vld [vmem:[#allocation3] sm:$0x3]
        %s1354 = smul.u32 %s1350, 4
        %s1355 = scalar_lea.vmem %s268, %s1354 [#allocation4]
        %v1356 = vld [vmem:[%s1355] sm:$0xf]
        %v1357 = vunpack.c.l.bf16 %v1356
        %v1358 = vpack.c.bf16 %v1352, %v1352
        %1359 = vmatprep.subr.bf16.mxu0 %v487
        %1360 = vmatpush1.bf16.msra.mxu0 %v486
        %1361 = vmatprep.subr.bf16.mxu0 %v491
        %1362 = vmatpush1.bf16.msra.mxu0 %v490
        %1363 = vmatprep.subr.bf16.mxu0 %v495
        %1364 = vmatpush1.bf16.msra.mxu0 %v494
        %1365 = vmatprep.subr.bf16.mxu0 %v499
        %1366 = vmatpush1.bf16.msra.mxu0 %v498
        %1367 = vmatprep.subr.bf16.mxu0 %v503
        %1368 = vmatpush1.bf16.msra.mxu0 %v502
        %1369 = vmatprep.subr.bf16.mxu0 %v507
        %1370 = vmatpush1.bf16.msra.mxu0 %v506
        %1371 = vmatprep.subr.bf16.mxu0 %v511
        %1372 = vmatpush1.bf16.msra.mxu0 %v510
        %1373 = vmatprep.subr.bf16.mxu0 %v515
        %1374 = vmatpush1.bf16.msra.mxu0 %v514
        %1375 = vmatprep.subr.bf16.mxu0 0
        %1376 = vmatpush1.bf16.msra.mxu0 0
        %1377 = vmatprep.subr.bf16.mxu0 0
        %1378 = vmatpush1.bf16.msra.mxu0 0
        %1379 = vmatprep.subr.bf16.mxu0 0
        %1380 = vmatpush1.bf16.msra.mxu0 0
        %1381 = vmatprep.subr.bf16.mxu0 0
        %1382 = vmatpush1.bf16.msra.mxu0 0
        %1383 = vmatprep.subr.bf16.mxu0 0
        %1384 = vmatpush1.bf16.msra.mxu0 0
        %1385 = vmatprep.subr.bf16.mxu0 0
        %1386 = vmatpush1.bf16.msra.mxu0 0
        %1387 = vmatprep.subr.bf16.mxu0 0
        %1388 = vmatpush1.bf16.msra.mxu0 0
        %1389 = vmatprep.subr.bf16.mxu0 0
        %1390 = vmatpush1.bf16.msra.mxu0 0
        %1391 = vmatprep.mubr.bf16.mxu0 0
        %1392 = vmatmul.mubr.bf16.gmra.mrb[0].mxu0 %v1358
        %v1393 = vpop.f32.mrb[0].mxu0
        %v1394 = vadd.f32 0.0, %v1393
        %v1395 = vpop.f32.mrb[0].mxu0
        %v1396 = vadd.f32 0.0, %v1395
        %v1397 = vpop.f32.mrb[0].mxu0
        %v1398 = vpop.f32.mrb[0].mxu0
        %1399 = vdwg.mxu0
        %1400 = vmatprep.subr.bf16.mxu0 %v489
        %1401 = vmatpush1.bf16.msra.mxu0 %v488
        %1402 = vmatprep.subr.bf16.mxu0 %v493
        %1403 = vmatpush1.bf16.msra.mxu0 %v492
        %1404 = vmatprep.subr.bf16.mxu0 %v497
        %1405 = vmatpush1.bf16.msra.mxu0 %v496
        %1406 = vmatprep.subr.bf16.mxu0 %v501
        %1407 = vmatpush1.bf16.msra.mxu0 %v500
        %1408 = vmatprep.subr.bf16.mxu0 %v505
        %1409 = vmatpush1.bf16.msra.mxu0 %v504
        %1410 = vmatprep.subr.bf16.mxu0 %v509
        %1411 = vmatpush1.bf16.msra.mxu0 %v508
        %1412 = vmatprep.subr.bf16.mxu0 %v513
        %1413 = vmatpush1.bf16.msra.mxu0 %v512
        %1414 = vmatprep.subr.bf16.mxu0 %v517
        %1415 = vmatpush1.bf16.msra.mxu0 %v516
        %1416 = vmatprep.subr.bf16.mxu0 0
        %1417 = vmatpush1.bf16.msra.mxu0 0
        %1418 = vmatprep.subr.bf16.mxu0 0
        %1419 = vmatpush1.bf16.msra.mxu0 0
        %1420 = vmatprep.subr.bf16.mxu0 0
        %1421 = vmatpush1.bf16.msra.mxu0 0
        %1422 = vmatprep.subr.bf16.mxu0 0
        %1423 = vmatpush1.bf16.msra.mxu0 0
        %1424 = vmatprep.subr.bf16.mxu0 0
        %1425 = vmatpush1.bf16.msra.mxu0 0
        %1426 = vmatprep.subr.bf16.mxu0 0
        %1427 = vmatpush1.bf16.msra.mxu0 0
        %1428 = vmatprep.subr.bf16.mxu0 0
        %1429 = vmatpush1.bf16.msra.mxu0 0
        %1430 = vmatprep.subr.bf16.mxu0 0
        %1431 = vmatpush1.bf16.msra.mxu0 0
        %1432 = vmatprep.mubr.bf16.mxu0 0
        %1433 = vmatmul.mubr.bf16.gmra.mrb[0].mxu0 %v1358
        %v1434 = vpop.f32.mrb[0].mxu0
        %v1435 = vadd.f32 0.0, %v1434
        %v1436 = vpop.f32.mrb[0].mxu0
        %v1437 = vadd.f32 0.0, %v1436
        %v1438 = vpop.f32.mrb[0].mxu0
        %v1439 = vpop.f32.mrb[0].mxu0
        %1440 = vdwg.mxu0
        %v1445 = vcombine.low %v1394, %v1396
        %v1446 = vcombine.low %v1435, %v1437
        %v1448 = vunpack.c.l.s4 1983009808
        %v1449 = vunpack.c.0.s8 %v1448
        %v1450 = vlaneseq
        %v1451 = vshrl.u32 %v1450, 7
        %v1452 = vsub.s32 %v1449, %v1451
        %v1453 = vrot.slane %v1445, %v1452
        %v1455 = vunpack.c.l.s4 1983009808
        %v1456 = vunpack.c.0.s8 %v1455
        %v1457 = vlaneseq
        %v1458 = vshrl.u32 %v1457, 7
        %v1459 = vsub.s32 %v1456, %v1458
        %v1460 = vrot.slane %v1446, %v1459
        %v1461 = vcombine.low %v1453, %v1460
        %v1463 = vadd.f32 %v1357, %v1461
        %v1464 = vxor.u32 %v1463, 2147483648
        %v1465 = vmul.f32 %v1464, 1.442695
        %v1466 = vpow.pop %v1465
        %v1467 = vadd.f32 %v1466, 1.0
        %v1468 = vrcp.pop %v1467
        %v1469 = vmul.f32 1.0, %v1468
        %v1471 = vrot.slane %v1463, 2
        %v1473 = vxor.u32 %v1471, 2147483648
        %v1474 = vmul.f32 %v1473, 1.442695
        %v1475 = vpow.pop %v1474
        %v1476 = vadd.f32 %v1475, 1.0
        %v1477 = vrcp.pop %v1476
        %v1478 = vmul.f32 1.0, %v1477
        %v1479 = vrot.slane %v1463, 4
        %v1481 = vtanh.pop %v1479
        %v1482 = vrot.slane %v1463, 6
        %v1484 = vxor.u32 %v1482, 2147483648
        %v1485 = vmul.f32 %v1484, 1.442695
        %v1486 = vpow.pop %v1485
        %v1487 = vadd.f32 %v1486, 1.0
        %v1488 = vrcp.pop %v1487
        %v1489 = vmul.f32 1.0, %v1488
        %v1490 = vmul.f32 %v1478, %v1353
        %v1491 = vmul.f32 %v1469, %v1481
        %v1492 = vadd.f32 %v1490, %v1491
        %v1493 = vtanh.pop %v1492
        %v1494 = vmul.f32 %v1489, %v1493
        %v1495 = vstv %s1351
        %vm1496 = vcmp.gt.s32.totalorder %v348, %v1495
        %v1497 = vsel %vm1496, 1, 0
        %1498 = vset.pattern.permute.xlu0 0
        %1499 = vperm.xlu0 %1498, %v1497
        %v1500 = vpop.permute.xlu0 %1499
        %vm1501 = vcmp.eq.s32.totalorder %v1500, 1
        %v1502 = vsel %vm1501, %v1494, %v1352
        %1503 = vst [vmem:[#allocation2] sm:$0x3] %v1502
        %v1504 = vsel %vm1501, %v1492, %v1353
        %1505 = vst [vmem:[#allocation3] sm:$0x3] %v1504
        %v1506 = vsel %vm1501, %v1494, 0.0
        %s1507 = smul.u32 %s1350, 2
        %s1508 = scalar_lea.vmem %s328, %s1507
        %1509 = vst [vmem:[%s1508] sm:$0x3] %v1506
        %s1510 = smul.u32 %s342, 6
        %s1511 = sadd.s32 %s1510, %s18
        %s1512 = sadd.s32 %s347, %s1511
        %v1513 = vld [vmem:[#allocation2] sm:$0x3]
        %v1514 = vld [vmem:[#allocation3] sm:$0x3]
        %s1515 = smul.u32 %s1511, 4
        %s1516 = scalar_lea.vmem %s268, %s1515 [#allocation4]
        %v1517 = vld [vmem:[%s1516] sm:$0xf]
        %v1518 = vunpack.c.l.bf16 %v1517
        %v1519 = vpack.c.bf16 %v1513, %v1513
        %1520 = vmatprep.subr.bf16.mxu0 %v487
        %1521 = vmatpush1.bf16.msra.mxu0 %v486
        %1522 = vmatprep.subr.bf16.mxu0 %v491
        %1523 = vmatpush1.bf16.msra.mxu0 %v490
        %1524 = vmatprep.subr.bf16.mxu0 %v495
        %1525 = vmatpush1.bf16.msra.mxu0 %v494
        %1526 = vmatprep.subr.bf16.mxu0 %v499
        %1527 = vmatpush1.bf16.msra.mxu0 %v498
        %1528 = vmatprep.subr.bf16.mxu0 %v503
        %1529 = vmatpush1.bf16.msra.mxu0 %v502
        %1530 = vmatprep.subr.bf16.mxu0 %v507
        %1531 = vmatpush1.bf16.msra.mxu0 %v506
        %1532 = vmatprep.subr.bf16.mxu0 %v511
        %1533 = vmatpush1.bf16.msra.mxu0 %v510
        %1534 = vmatprep.subr.bf16.mxu0 %v515
        %1535 = vmatpush1.bf16.msra.mxu0 %v514
        %1536 = vmatprep.subr.bf16.mxu0 0
        %1537 = vmatpush1.bf16.msra.mxu0 0
        %1538 = vmatprep.subr.bf16.mxu0 0
        %1539 = vmatpush1.bf16.msra.mxu0 0
        %1540 = vmatprep.subr.bf16.mxu0 0
        %1541 = vmatpush1.bf16.msra.mxu0 0
        %1542 = vmatprep.subr.bf16.mxu0 0
        %1543 = vmatpush1.bf16.msra.mxu0 0
        %1544 = vmatprep.subr.bf16.mxu0 0
        %1545 = vmatpush1.bf16.msra.mxu0 0
        %1546 = vmatprep.subr.bf16.mxu0 0
        %1547 = vmatpush1.bf16.msra.mxu0 0
        %1548 = vmatprep.subr.bf16.mxu0 0
        %1549 = vmatpush1.bf16.msra.mxu0 0
        %1550 = vmatprep.subr.bf16.mxu0 0
        %1551 = vmatpush1.bf16.msra.mxu0 0
        %1552 = vmatprep.mubr.bf16.mxu0 0
        %1553 = vmatmul.mubr.bf16.gmra.mrb[0].mxu0 %v1519
        %v1554 = vpop.f32.mrb[0].mxu0
        %v1555 = vadd.f32 0.0, %v1554
        %v1556 = vpop.f32.mrb[0].mxu0
        %v1557 = vadd.f32 0.0, %v1556
        %v1558 = vpop.f32.mrb[0].mxu0
        %v1559 = vpop.f32.mrb[0].mxu0
        %1560 = vdwg.mxu0
        %1561 = vmatprep.subr.bf16.mxu0 %v489
        %1562 = vmatpush1.bf16.msra.mxu0 %v488
        %1563 = vmatprep.subr.bf16.mxu0 %v493
        %1564 = vmatpush1.bf16.msra.mxu0 %v492
        %1565 = vmatprep.subr.bf16.mxu0 %v497
        %1566 = vmatpush1.bf16.msra.mxu0 %v496
        %1567 = vmatprep.subr.bf16.mxu0 %v501
        %1568 = vmatpush1.bf16.msra.mxu0 %v500
        %1569 = vmatprep.subr.bf16.mxu0 %v505
        %1570 = vmatpush1.bf16.msra.mxu0 %v504
        %1571 = vmatprep.subr.bf16.mxu0 %v509
        %1572 = vmatpush1.bf16.msra.mxu0 %v508
        %1573 = vmatprep.subr.bf16.mxu0 %v513
        %1574 = vmatpush1.bf16.msra.mxu0 %v512
        %1575 = vmatprep.subr.bf16.mxu0 %v517
        %1576 = vmatpush1.bf16.msra.mxu0 %v516
        %1577 = vmatprep.subr.bf16.mxu0 0
        %1578 = vmatpush1.bf16.msra.mxu0 0
        %1579 = vmatprep.subr.bf16.mxu0 0
        %1580 = vmatpush1.bf16.msra.mxu0 0
        %1581 = vmatprep.subr.bf16.mxu0 0
        %1582 = vmatpush1.bf16.msra.mxu0 0
        %1583 = vmatprep.subr.bf16.mxu0 0
        %1584 = vmatpush1.bf16.msra.mxu0 0
        %1585 = vmatprep.subr.bf16.mxu0 0
        %1586 = vmatpush1.bf16.msra.mxu0 0
        %1587 = vmatprep.subr.bf16.mxu0 0
        %1588 = vmatpush1.bf16.msra.mxu0 0
        %1589 = vmatprep.subr.bf16.mxu0 0
        %1590 = vmatpush1.bf16.msra.mxu0 0
        %1591 = vmatprep.subr.bf16.mxu0 0
        %1592 = vmatpush1.bf16.msra.mxu0 0
        %1593 = vmatprep.mubr.bf16.mxu0 0
        %1594 = vmatmul.mubr.bf16.gmra.mrb[0].mxu0 %v1519
        %v1595 = vpop.f32.mrb[0].mxu0
        %v1596 = vadd.f32 0.0, %v1595
        %v1597 = vpop.f32.mrb[0].mxu0
        %v1598 = vadd.f32 0.0, %v1597
        %v1599 = vpop.f32.mrb[0].mxu0
        %v1600 = vpop.f32.mrb[0].mxu0
        %1601 = vdwg.mxu0
        %v1606 = vcombine.low %v1555, %v1557
        %v1607 = vcombine.low %v1596, %v1598
        %v1609 = vunpack.c.l.s4 1983009808
        %v1610 = vunpack.c.0.s8 %v1609
        %v1611 = vlaneseq
        %v1612 = vshrl.u32 %v1611, 7
        %v1613 = vsub.s32 %v1610, %v1612
        %v1614 = vrot.slane %v1606, %v1613
        %v1616 = vunpack.c.l.s4 1983009808
        %v1617 = vunpack.c.0.s8 %v1616
        %v1618 = vlaneseq
        %v1619 = vshrl.u32 %v1618, 7
        %v1620 = vsub.s32 %v1617, %v1619
        %v1621 = vrot.slane %v1607, %v1620
        %v1622 = vcombine.low %v1614, %v1621
        %v1624 = vadd.f32 %v1518, %v1622
        %v1625 = vxor.u32 %v1624, 2147483648
        %v1626 = vmul.f32 %v1625, 1.442695
        %v1627 = vpow.pop %v1626
        %v1628 = vadd.f32 %v1627, 1.0
        %v1629 = vrcp.pop %v1628
        %v1630 = vmul.f32 1.0, %v1629
        %v1632 = vrot.slane %v1624, 2
        %v1634 = vxor.u32 %v1632, 2147483648
        %v1635 = vmul.f32 %v1634, 1.442695
        %v1636 = vpow.pop %v1635
        %v1637 = vadd.f32 %v1636, 1.0
        %v1638 = vrcp.pop %v1637
        %v1639 = vmul.f32 1.0, %v1638
        %v1640 = vrot.slane %v1624, 4
        %v1642 = vtanh.pop %v1640
        %v1643 = vrot.slane %v1624, 6
        %v1645 = vxor.u32 %v1643, 2147483648
        %v1646 = vmul.f32 %v1645, 1.442695
        %v1647 = vpow.pop %v1646
        %v1648 = vadd.f32 %v1647, 1.0
        %v1649 = vrcp.pop %v1648
        %v1650 = vmul.f32 1.0, %v1649
        %v1651 = vmul.f32 %v1639, %v1514
        %v1652 = vmul.f32 %v1630, %v1642
        %v1653 = vadd.f32 %v1651, %v1652
        %v1654 = vtanh.pop %v1653
        %v1655 = vmul.f32 %v1650, %v1654
        %v1656 = vstv %s1512
        %vm1657 = vcmp.gt.s32.totalorder %v348, %v1656
        %v1658 = vsel %vm1657, 1, 0
        %1659 = vset.pattern.permute.xlu0 0
        %1660 = vperm.xlu0 %1659, %v1658
        %v1661 = vpop.permute.xlu0 %1660
        %vm1662 = vcmp.eq.s32.totalorder %v1661, 1
        %v1663 = vsel %vm1662, %v1655, %v1513
        %1664 = vst [vmem:[#allocation2] sm:$0x3] %v1663
        %v1665 = vsel %vm1662, %v1653, %v1514
        %1666 = vst [vmem:[#allocation3] sm:$0x3] %v1665
        %v1667 = vsel %vm1662, %v1655, 0.0
        %s1668 = smul.u32 %s1511, 2
        %s1669 = scalar_lea.vmem %s328, %s1668
        %1670 = vst [vmem:[%s1669] sm:$0x3] %v1667
        %s1671 = smul.u32 %s342, 7
        %s1672 = sadd.s32 %s347, %s1671
        %v1673 = vld [vmem:[#allocation2] sm:$0x3]
        %v1674 = vld [vmem:[#allocation3] sm:$0x3]
        %s1675 = smul.u32 %s1671, 4
        %s1676 = scalar_lea.vmem %s268, %s1675 [#allocation4]
        %v1677 = vld [vmem:[%s1676] sm:$0xf]
        %v1678 = vunpack.c.l.bf16 %v1677
        %v1679 = vpack.c.bf16 %v1673, %v1673
        %1680 = vmatprep.subr.bf16.mxu0 %v487
        %1681 = vmatpush1.bf16.msra.mxu0 %v486
        %1682 = vmatprep.subr.bf16.mxu0 %v491
        %1683 = vmatpush1.bf16.msra.mxu0 %v490
        %1684 = vmatprep.subr.bf16.mxu0 %v495
        %1685 = vmatpush1.bf16.msra.mxu0 %v494
        %1686 = vmatprep.subr.bf16.mxu0 %v499
        %1687 = vmatpush1.bf16.msra.mxu0 %v498
        %1688 = vmatprep.subr.bf16.mxu0 %v503
        %1689 = vmatpush1.bf16.msra.mxu0 %v502
        %1690 = vmatprep.subr.bf16.mxu0 %v507
        %1691 = vmatpush1.bf16.msra.mxu0 %v506
        %1692 = vmatprep.subr.bf16.mxu0 %v511
        %1693 = vmatpush1.bf16.msra.mxu0 %v510
        %1694 = vmatprep.subr.bf16.mxu0 %v515
        %1695 = vmatpush1.bf16.msra.mxu0 %v514
        %1696 = vmatprep.subr.bf16.mxu0 0
        %1697 = vmatpush1.bf16.msra.mxu0 0
        %1698 = vmatprep.subr.bf16.mxu0 0
        %1699 = vmatpush1.bf16.msra.mxu0 0
        %1700 = vmatprep.subr.bf16.mxu0 0
        %1701 = vmatpush1.bf16.msra.mxu0 0
        %1702 = vmatprep.subr.bf16.mxu0 0
        %1703 = vmatpush1.bf16.msra.mxu0 0
        %1704 = vmatprep.subr.bf16.mxu0 0
        %1705 = vmatpush1.bf16.msra.mxu0 0
        %1706 = vmatprep.subr.bf16.mxu0 0
        %1707 = vmatpush1.bf16.msra.mxu0 0
        %1708 = vmatprep.subr.bf16.mxu0 0
        %1709 = vmatpush1.bf16.msra.mxu0 0
        %1710 = vmatprep.subr.bf16.mxu0 0
        %1711 = vmatpush1.bf16.msra.mxu0 0
        %1712 = vmatprep.mubr.bf16.mxu0 0
        %1713 = vmatmul.mubr.bf16.gmra.mrb[0].mxu0 %v1679
        %v1714 = vpop.f32.mrb[0].mxu0
        %v1715 = vadd.f32 0.0, %v1714
        %v1716 = vpop.f32.mrb[0].mxu0
        %v1717 = vadd.f32 0.0, %v1716
        %v1718 = vpop.f32.mrb[0].mxu0
        %v1719 = vpop.f32.mrb[0].mxu0
        %1720 = vdwg.mxu0
        %1721 = vmatprep.subr.bf16.mxu0 %v489
        %1722 = vmatpush1.bf16.msra.mxu0 %v488
        %1723 = vmatprep.subr.bf16.mxu0 %v493
        %1724 = vmatpush1.bf16.msra.mxu0 %v492
        %1725 = vmatprep.subr.bf16.mxu0 %v497
        %1726 = vmatpush1.bf16.msra.mxu0 %v496
        %1727 = vmatprep.subr.bf16.mxu0 %v501
        %1728 = vmatpush1.bf16.msra.mxu0 %v500
        %1729 = vmatprep.subr.bf16.mxu0 %v505
        %1730 = vmatpush1.bf16.msra.mxu0 %v504
        %1731 = vmatprep.subr.bf16.mxu0 %v509
        %1732 = vmatpush1.bf16.msra.mxu0 %v508
        %1733 = vmatprep.subr.bf16.mxu0 %v513
        %1734 = vmatpush1.bf16.msra.mxu0 %v512
        %1735 = vmatprep.subr.bf16.mxu0 %v517
        %1736 = vmatpush1.bf16.msra.mxu0 %v516
        %1737 = vmatprep.subr.bf16.mxu0 0
        %1738 = vmatpush1.bf16.msra.mxu0 0
        %1739 = vmatprep.subr.bf16.mxu0 0
        %1740 = vmatpush1.bf16.msra.mxu0 0
        %1741 = vmatprep.subr.bf16.mxu0 0
        %1742 = vmatpush1.bf16.msra.mxu0 0
        %1743 = vmatprep.subr.bf16.mxu0 0
        %1744 = vmatpush1.bf16.msra.mxu0 0
        %1745 = vmatprep.subr.bf16.mxu0 0
        %1746 = vmatpush1.bf16.msra.mxu0 0
        %1747 = vmatprep.subr.bf16.mxu0 0
        %1748 = vmatpush1.bf16.msra.mxu0 0
        %1749 = vmatprep.subr.bf16.mxu0 0
        %1750 = vmatpush1.bf16.msra.mxu0 0
        %1751 = vmatprep.subr.bf16.mxu0 0
        %1752 = vmatpush1.bf16.msra.mxu0 0
        %1753 = vmatprep.mubr.bf16.mxu0 0
        %1754 = vmatmul.mubr.bf16.gmra.mrb[0].mxu0 %v1679
        %v1755 = vpop.f32.mrb[0].mxu0
        %v1756 = vadd.f32 0.0, %v1755
        %v1757 = vpop.f32.mrb[0].mxu0
        %v1758 = vadd.f32 0.0, %v1757
        %v1759 = vpop.f32.mrb[0].mxu0
        %v1760 = vpop.f32.mrb[0].mxu0
        %1761 = vdwg.mxu0
        %v1766 = vcombine.low %v1715, %v1717
        %v1767 = vcombine.low %v1756, %v1758
        %v1769 = vunpack.c.l.s4 1983009808
        %v1770 = vunpack.c.0.s8 %v1769
        %v1771 = vlaneseq
        %v1772 = vshrl.u32 %v1771, 7
        %v1773 = vsub.s32 %v1770, %v1772
        %v1774 = vrot.slane %v1766, %v1773
        %v1776 = vunpack.c.l.s4 1983009808
        %v1777 = vunpack.c.0.s8 %v1776
        %v1778 = vlaneseq
        %v1779 = vshrl.u32 %v1778, 7
        %v1780 = vsub.s32 %v1777, %v1779
        %v1781 = vrot.slane %v1767, %v1780
        %v1782 = vcombine.low %v1774, %v1781
        %v1784 = vadd.f32 %v1678, %v1782
        %v1785 = vxor.u32 %v1784, 2147483648
        %v1786 = vmul.f32 %v1785, 1.442695
        %v1787 = vpow.pop %v1786
        %v1788 = vadd.f32 %v1787, 1.0
        %v1789 = vrcp.pop %v1788
        %v1790 = vmul.f32 1.0, %v1789
        %v1792 = vrot.slane %v1784, 2
        %v1794 = vxor.u32 %v1792, 2147483648
        %v1795 = vmul.f32 %v1794, 1.442695
        %v1796 = vpow.pop %v1795
        %v1797 = vadd.f32 %v1796, 1.0
        %v1798 = vrcp.pop %v1797
        %v1799 = vmul.f32 1.0, %v1798
        %v1800 = vrot.slane %v1784, 4
        %v1802 = vtanh.pop %v1800
        %v1803 = vrot.slane %v1784, 6
        %v1805 = vxor.u32 %v1803, 2147483648
        %v1806 = vmul.f32 %v1805, 1.442695
        %v1807 = vpow.pop %v1806
        %v1808 = vadd.f32 %v1807, 1.0
        %v1809 = vrcp.pop %v1808
        %v1810 = vmul.f32 1.0, %v1809
        %v1811 = vmul.f32 %v1799, %v1674
        %v1812 = vmul.f32 %v1790, %v1802
        %v1813 = vadd.f32 %v1811, %v1812
        %v1814 = vtanh.pop %v1813
        %v1815 = vmul.f32 %v1810, %v1814
        %v1816 = vstv %s1672
        %vm1817 = vcmp.gt.s32.totalorder %v348, %v1816
        %v1818 = vsel %vm1817, 1, 0
        %1819 = vset.pattern.permute.xlu0 0
        %1820 = vperm.xlu0 %1819, %v1818
        %v1821 = vpop.permute.xlu0 %1820
        %vm1822 = vcmp.eq.s32.totalorder %v1821, 1
        %v1823 = vsel %vm1822, %v1815, %v1673
        %1824 = vst [vmem:[#allocation2] sm:$0x3] %v1823
        %v1825 = vsel %vm1822, %v1813, %v1674
        %1826 = vst [vmem:[#allocation3] sm:$0x3] %v1825
        %v1827 = vsel %vm1822, %v1815, 0.0
        %s1828 = smul.u32 %s1671, 2
        %s1829 = scalar_lea.vmem %s328, %s1828
        %1830 = vst [vmem:[%s1829] sm:$0x3] %v1827
        %s1831 = ssub.s32 1, %s18
        %s1832 = smul.u32 %s1831, %s19
        %s1833 = ssub.s32 0, %s19
        %s1834 = smul.u32 %s18, %s1833
        %s1835 = sadd.s32 %s1832, %s1834
        %s1836 = smul.u32 8, %s1835
        %p1837 = scmp.lt.s32.totalorder %s18, 1
        %s1838 = scalar_select %p1837, %s18, 1
        %p1839 = scmp.lt.s32.totalorder %s1836, 7
        %s1840 = scalar_select %p1839, %s1836, 7
        %s1841 = smul.addr %s1838, 8
        %s1842 = sadd.s32 %s1840, %s1841
        %s1843 = smul.addr %s1842, 2
        %s1844 = scalar_lea.vmem %s3, %s1843
        // Predicated region
        $region78: #{drqa_forward.12} parent=68 // pred_check
          %p1845 = pneg %p141
        $region79: #{drqa_forward.12} parent=68 // pred_check_branch
          %1847 = sbr.rel (%p1845) target = $region81
        $region80: #{drqa_forward.12} parent=68 // pred_region
          %s1848 = ssub.s32 1, %s18
          %s1849 = smul.u32 %s1848, %s19
          %s1850 = ssub.s32 0, %s19
          %s1851 = smul.u32 %s18, %s1850
          %s1852 = sadd.s32 %s1849, %s1851
          %s1853 = smul.u32 8, %s1852
        $region81: #{drqa_forward.12} parent=68 // pred_fallthru
          _
      $region69: #{drqa_forward.12} parent=5 // pred_fallthru
        _
      %p1854 = scmp.le.s32.totalorder 2, %s9
      // Predicated region
      $region82: #{drqa_forward.12} parent=5 // pred_check
        %p1855 = pneg %p1854
      $region83: #{drqa_forward.12} parent=5 // pred_check_branch
        %1857 = sbr.rel (%p1855) target = $region85
      $region84: #{drqa_forward.12} parent=5 // pred_region
        %s1858 = ssub.s32 %s9, 2
        // Predicated region
        $region86: #{drqa_forward.12} parent=84 // pred_check
          %p1859 = pneg %p147
        $region87: #{drqa_forward.12} parent=84 // pred_check_branch
          %1861 = sbr.rel (%p1859) target = $region89
        $region88: #{drqa_forward.12} parent=84 // pred_region
          %s1862 = ssub.s32 1, %s20
          %s1863 = smul.u32 %s1862, %s21
          %s1864 = ssub.s32 0, %s21
          %s1865 = smul.u32 %s20, %s1864
          %s1866 = sadd.s32 %s1863, %s1865
          %s1867 = smul.u32 8, %s1866
          %p1868 = scmp.lt.s32.totalorder %s20, 1
          %s1869 = scalar_select %p1868, %s20, 1
          %p1870 = scmp.lt.s32.totalorder %s1867, 7
          %s1871 = scalar_select %p1870, %s1867, 7
          %s1872 = smul.addr %s1869, 8
          %s1873 = sadd.s32 %s1871, %s1872
          %s1874 = smul.addr %s1873, 2
          %s1875 = scalar_lea.vmem %s3, %s1874
        $region89: #{drqa_forward.12} parent=84 // pred_fallthru
          _
      $region85: #{drqa_forward.12} parent=5 // pred_fallthru
        _
    $region6: #{drqa_forward.12} parent=1 // loop_footer
      %s13 = sadd.s32 1, %s9
    $region7: #{drqa_forward.12} parent=1 // loop_footer_branch
      %8 = sbr.rel target = $region3
    $region8: #{drqa_forward.12} parent=1 // loop_exit
      _

// kernel: drqa_forward.21
$region0: #{drqa_forward.21}
  #allocation0 [shape = 'u32[]', space=smem, size = 0x4, offset = 0x4, fixed_abs, tag = 'smem constant byte address 0x4 - core index']
  #allocation1 [shape = 'u32[144,128]{1,0:T(1,128)}', space=vmem, size = 0x12000, scoped, tag = 'internal scratch']
  #allocation2 [shape = 'f32[1,1]{1,0:T(1,128)S(1)}', space=vmem, size = 0x200, scoped, tag = 'scoped memory for drqa_forward.21']
  %s0 = inlined_call_operand.vmem [shape: f32[2,12], index: 0, kind: input, shape index: {}]
  %s1 = inlined_call_operand.vmem [shape: f32[2,12], index: 1, kind: input, shape index: {}]
  %s2 = inlined_call_operand.vmem [shape: s32[2,1], index: 2, kind: input, shape index: {}]
  %s3 = inlined_call_operand.<no memory space> [shape: f32[1,1], index: 3, kind: input, shape index: {}]
  %s4 = inlined_call_operand.hbm [shape: f32[2,13], index: 4, kind: output, shape index: {0}]
  %s5 = inlined_call_operand.hbm [shape: f32[2,13], index: 5, kind: output, shape index: {1}]
  %6 = xla_tuple %s4, %s5
  %s7 = sld [smem:[#allocation0]]
  $region34: #{drqa_forward.21} parent=0
    _
  %s9 = ssub.s32 1, %s7
  %s10 = scalar_select 0, %s9, %s7
  %v11 = vstv %s3
  %12 = vst [vmem:[#allocation2] sm:$0x1] %v11
  $region1: #{drqa_forward.21} parent=0
    #allocation3 [shape = 'u8[1024]{0}', space=vmem, size = 0x400, scoped, tag = 'output window, operand 0, single buffered']
    #allocation4 [shape = 's32[1]{0}', space=sflag, size = 0x4, scoped, tag = 'scoped memory for drqa_forward.21']
    #allocation5 [shape = 'u8[1024]{0}', space=vmem, size = 0x400, scoped, tag = 'output window, operand 1, single buffered']
    #allocation6 [shape = 's32[1]{0}', space=sflag, size = 0x4, scoped, tag = 'scoped memory for drqa_forward.21']
    %13 = vsyncpa [#allocation4], 0
    %14 = vsyncpa [#allocation6], 0
    // Predicated region
    $region2: #{drqa_forward.21} parent=1 // pred_check
      _
    $region3: #{drqa_forward.21} parent=1 // pred_check_branch
      %16 = sbr.rel (0) target = $region5
    $region4: #{drqa_forward.21} parent=1 // pred_region
      _
    $region5: #{drqa_forward.21} parent=1 // pred_fallthru
      _
    // Predicated region
    $region6: #{drqa_forward.21} parent=1 // pred_check
      _
    $region7: #{drqa_forward.21} parent=1 // pred_check_branch
      %18 = sbr.rel (0) target = $region9
    $region8: #{drqa_forward.21} parent=1 // pred_region
      _
    $region9: #{drqa_forward.21} parent=1 // pred_fallthru
      _
    // Predicated region
    $region10: #{drqa_forward.21} parent=1 // pred_check
      _
    $region11: #{drqa_forward.21} parent=1 // pred_check_branch
      %20 = sbr.rel (0) target = $region13
    $region12: #{drqa_forward.21} parent=1 // pred_region
      _
    $region13: #{drqa_forward.21} parent=1 // pred_fallthru
      _
    // Predicated region
    $region14: #{drqa_forward.21} parent=1 // pred_check
      _
    $region15: #{drqa_forward.21} parent=1 // pred_check_branch
      %22 = sbr.rel (0) target = $region17
    $region16: #{drqa_forward.21} parent=1 // pred_region
      _
    $region17: #{drqa_forward.21} parent=1 // pred_fallthru
      _
    %v23 = vld [vmem:[#allocation2] sm:$0x1]
    %s24 = vtos %v23
    %v25 = vlaneseq
    %v26 = vand.u32 %v25, 127
    %vm27 = vcmp.eq.s32.totalorder %v26, 0
    %v28 = vsub.s32 %v26, 1
    %v29 = vld [vmem:[%s2] sm:$0x3]
    %30 = vset.pattern.permute.xlu0 0
    %31 = vperm.xlu0 %30, %v29
    %v32 = vpop.permute.xlu0 %31
    %vm33 = vcmp.lt.s32.totalorder %v28, %v32
    %vm34 = vmor %vm27, %vm33
    %v35 = vld [vmem:[%s0] sm:$0x3]
    %v36 = vstv %s24
    %38 = vrot.lane.b32.xlu0 %v35, 1
    %v39 = vpop.permute.xlu0 %38
    %vm41 = vcmask 7168
    %v42 = vsel %vm41, %v36, %v39
    %v43 = vsel %vm34, %v42, -inf
    %vm44 = vcmask 99328
    %v45 = vsel %vm44, %v43, -inf
    %46 = vmax.xlane.f32.xlu0 %v45
    %v47 = vpop.xlane.xlu0 %46
    %v48 = vsub.f32 %v43, %v47
    %v49 = vmul.f32 %v48, 1.442695
    %v50 = vpow.pop %v49
    %v51 = vsel %vm44, %v50, 0.0
    %52 = vadd.xlane.f32.xlu0 %v51
    %v53 = vpop.xlane.xlu0 %52
    %v54 = vlog2.pop %v53
    %v55 = vmul.f32 %v54, 0.6931472
    %v56 = vsub.f32 %v48, %v55
    %57 = vst.msk [vmem:[#allocation3] sm:$0x3] %vm44, %v56
    %v58 = vld [vmem:[%s1] sm:$0x3]
    %60 = vrot.lane.b32.xlu0 %v58, 1
    %v61 = vpop.permute.xlu0 %60
    %v63 = vsel %vm41, %v36, %v61
    %v64 = vsel %vm34, %v63, -inf
    %v65 = vsel %vm44, %v64, -inf
    %66 = vmax.xlane.f32.xlu0 %v65
    %v67 = vpop.xlane.xlu0 %66
    %v68 = vsub.f32 %v64, %v67
    %v69 = vmul.f32 %v68, 1.442695
    %v70 = vpow.pop %v69
    %v71 = vsel %vm44, %v70, 0.0
    %72 = vadd.xlane.f32.xlu0 %v71
    %v73 = vpop.xlane.xlu0 %72
    %v74 = vlog2.pop %v73
    %v75 = vmul.f32 %v74, 0.6931472
    %v76 = vsub.f32 %v68, %v75
    %77 = vst.msk [vmem:[#allocation5] sm:$0x3] %vm44, %v76
    // Predicated region
    $region18: #{drqa_forward.21} parent=1 // pred_check
      _
    $region19: #{drqa_forward.21} parent=1 // pred_check_branch
      %79 = sbr.rel (0) target = $region21
    $region20: #{drqa_forward.21} parent=1 // pred_region
      %s81 = ssub.s32 32, 32
      %82 = vsyncadd [#allocation4], %s81
      %s84 = sshll.u32 [#allocation3], 4
      %s85 = int_to_ptr.vmem [resolvable:$true] %s84
      %87 = dma.vmem_to_hbm [thread:$0]  %s85, 32, %s4, [#allocation4]
    $region21: #{drqa_forward.21} parent=1 // pred_fallthru
      _
    // Predicated region
    $region22: #{drqa_forward.21} parent=1 // pred_check
      _
    $region23: #{drqa_forward.21} parent=1 // pred_check_branch
      %89 = sbr.rel (0) target = $region25
    $region24: #{drqa_forward.21} parent=1 // pred_region
      %s91 = ssub.s32 32, 32
      %92 = vsyncadd [#allocation6], %s91
      %s94 = sshll.u32 [#allocation5], 4
      %s95 = int_to_ptr.vmem [resolvable:$true] %s94
      %97 = dma.vmem_to_hbm [thread:$0]  %s95, 32, %s5, [#allocation6]
    $region25: #{drqa_forward.21} parent=1 // pred_fallthru
      _
    // Predicated region
    $region26: #{drqa_forward.21} parent=1 // pred_check
      _
    $region27: #{drqa_forward.21} parent=1 // pred_check_branch
      %99 = sbr.rel (0) target = $region29
    $region28: #{drqa_forward.21} parent=1 // pred_region
      %100 = dma.done [#allocation4], 32
    $region29: #{drqa_forward.21} parent=1 // pred_fallthru
      _
    // Predicated region
    $region30: #{drqa_forward.21} parent=1 // pred_check
      _
    $region31: #{drqa_forward.21} parent=1 // pred_check_branch
      %102 = sbr.rel (0) target = $region33
    $region32: #{drqa_forward.21} parent=1 // pred_region
      %103 = dma.done [#allocation6], 32
    $region33: #{drqa_forward.21} parent=1 // pred_fallthru
      _
    %104 = vsyncpa [#allocation4], 1
    %105 = vsyncpa [#allocation6], 1

// kernel: drqa_forward.18
$region0: #{drqa_forward.18}
  #allocation0 [shape = 'u32[]', space=smem, size = 0x4, offset = 0x4, fixed_abs, tag = 'smem constant byte address 0x4 - core index']
  #allocation1 [shape = 'u32[144,128]{1,0:T(1,128)}', space=vmem, size = 0x12000, scoped, tag = 'internal scratch']
  #allocation2 [shape = 'f32[2,128]{1,0:T(2,128)}', space=vmem, size = 0x400, scoped, tag = 'scratch operand']
  #allocation3 [shape = 'f32[2,128]{1,0:T(2,128)}', space=vmem, size = 0x400, scoped, tag = 'scratch operand']
  %s0 = inlined_call_operand.vmem [shape: bf16[12,2,1024], index: 0, kind: input, shape index: {}]
  %s1 = inlined_call_operand.vmem [shape: bf16[2,128,512], index: 1, kind: input, shape index: {}]
  %s2 = inlined_call_operand.vmem [shape: s32[2,1], index: 2, kind: input, shape index: {}]
  %s3 = inlined_call_operand.vmem [shape: f32[2,12,2,128], index: 3, kind: output, shape index: {}]
  %s4 = sld [smem:[#allocation0]]
  $region90: #{drqa_forward.18} parent=0
    _
  %s6 = ssub.s32 1, %s4
  %s7 = scalar_select 0, %s6, %s4
  $region1: #{drqa_forward.18} parent=0
    #allocation4 [shape = 'u8[49152]{0}', space=vmem, size = 0xc000, scoped, tag = 'input window, operand 0']
    loop: start=0, step=1, limit=4
    $region2: #{drqa_forward.18} parent=1 // loop_pre_header
      _
    $region3: #{drqa_forward.18} parent=1 // loop_header
      %s9 = sphi 0, %s13
      %p10 = scmp.ge.s32.totalorder %s9, 4
      %s16 = sphi 0, %s28
      %s17 = sphi 0, %s24
      %s18 = sphi 0, %s16
      %s19 = sphi 0, %s17
      %s20 = sphi 0, %s18
      %s21 = sphi 0, %s19
      %s43 = sphi 0, %s45
      %s46 = sphi 0, %s43
      %s47 = sphi 0, %s46
      %s63 = sphi 0, %s47
      %s69 = sphi 0, %s71
      %s72 = sphi 0, %s69
      %s73 = sphi 0, %s72
      %s89 = sphi 0, %s73
      %s93 = sphi 0, %s93
      %s95 = sphi 0, %s93
      %s96 = sphi 0, %s95
      %s110 = sphi 0, %s96
      %s128 = sphi 0, %s130
      %s131 = sphi 0, %s128
      %s132 = sphi 0, %s131
      %s148 = sphi 0, %s132
    $region4: #{drqa_forward.18} parent=1 // loop_header_branch
      %12 = sbr.rel (%p10) target = $region8
    $region5: #{drqa_forward.18} parent=1 // loop_body
      %s14 = ssub.s32 %s9, 1
      %s15 = ssub.s32 %s9, 2
      %s22 = sadd.s32 1, %s17
      %p23 = scmp.ge.s32.totalorder %s22, 1
      %s24 = scalar_select %p23, 0, %s22
      %s25 = sadd.s32 1, %s16
      %s26 = scalar_select %p23, %s25, %s16
      %p27 = scmp.ge.s32.totalorder %s26, 2
      %s28 = scalar_select %p27, 0, %s26
      %s29 = ssub.s32 1, %s16
      %s30 = smul.u32 %s29, %s17
      %s31 = ssub.s32 0, %s17
      %s32 = smul.u32 %s16, %s31
      %s33 = sadd.s32 %s30, %s32
      %s34 = ssub.s32 1, %s28
      %s35 = smul.u32 %s34, %s24
      %s36 = ssub.s32 0, %s24
      %s37 = smul.u32 %s28, %s36
      %s38 = sadd.s32 %s35, %s37
      %s39 = ssub.s32 %s33, %s38
      %s40 = ssub.s32 %s16, %s28
      %s41 = sor.u32 %s39, %s40
      %p42 = scmp.eq.s32.totalorder %s41, 0
      %s44 = sadd.s32 %s43, 1
      %s45 = scalar_select %p42, %s43, %s44
      %p48 = pneg %p42
      %p49 = scmp.eq.s32.totalorder %s9, 1
      %p50 = por %p48, %p49
      %p51 = scmp.ne.s32.totalorder %s43, %s46
      %p52 = scmp.eq.s32.totalorder %s9, 0
      %p53 = por %p51, %p52
      %p54 = scmp.ne.s32.totalorder %s43, %s46
      %p55 = scmp.eq.s32.totalorder %s14, 1
      %p56 = por %p54, %p55
      %p57 = scmp.ne.s32.totalorder %s46, %s47
      %p58 = scmp.eq.s32.totalorder %s14, 0
      %p59 = por %p57, %p58
      %p60 = scmp.ne.s32.totalorder %s46, %s47
      %p61 = scmp.eq.s32.totalorder %s15, 1
      %p62 = por %p60, %p61
      %p64 = scmp.ne.s32.totalorder %s47, %s63
      %p65 = scmp.eq.s32.totalorder %s15, 0
      %p66 = por %p64, %p65
      %s67 = ssub.s32 %s16, %s28
      %p68 = scmp.eq.s32.totalorder %s67, 0
      %s70 = sadd.s32 %s69, 1
      %s71 = scalar_select %p68, %s69, %s70
      %p74 = pneg %p68
      %p75 = scmp.eq.s32.totalorder %s9, 1
      %p76 = por %p74, %p75
      %p77 = scmp.ne.s32.totalorder %s69, %s72
      %p78 = scmp.eq.s32.totalorder %s9, 0
      %p79 = por %p77, %p78
      %p80 = scmp.ne.s32.totalorder %s69, %s72
      %p81 = scmp.eq.s32.totalorder %s14, 1
      %p82 = por %p80, %p81
      %p83 = scmp.ne.s32.totalorder %s72, %s73
      %p84 = scmp.eq.s32.totalorder %s14, 0
      %p85 = por %p83, %p84
      %p86 = scmp.ne.s32.totalorder %s72, %s73
      %p87 = scmp.eq.s32.totalorder %s15, 1
      %p88 = por %p86, %p87
      %p90 = scmp.ne.s32.totalorder %s73, %s89
      %p91 = scmp.eq.s32.totalorder %s15, 0
      %p92 = por %p90, %p91
      %s94 = sadd.s32 %s93, 1
      %p97 = scmp.eq.s32.totalorder %s9, 1
      %p98 = scmp.ne.s32.totalorder %s93, %s95
      %p99 = scmp.eq.s32.totalorder %s9, 0
      %p100 = por %p98, %p99
      %p101 = scmp.ne.s32.totalorder %s93, %s95
      %p102 = scmp.eq.s32.totalorder %s14, 1
      %p103 = por %p101, %p102
      %p104 = scmp.ne.s32.totalorder %s95, %s96
      %p105 = scmp.eq.s32.totalorder %s14, 0
      %p106 = por %p104, %p105
      %p107 = scmp.ne.s32.totalorder %s95, %s96
      %p108 = scmp.eq.s32.totalorder %s15, 1
      %p109 = por %p107, %p108
      %p111 = scmp.ne.s32.totalorder %s96, %s110
      %p112 = scmp.eq.s32.totalorder %s15, 0
      %p113 = por %p111, %p112
      %s114 = ssub.s32 1, %s16
      %s115 = smul.u32 %s114, %s17
      %s116 = ssub.s32 0, %s17
      %s117 = smul.u32 %s16, %s116
      %s118 = sadd.s32 %s115, %s117
      %s119 = ssub.s32 1, %s28
      %s120 = smul.u32 %s119, %s24
      %s121 = ssub.s32 0, %s24
      %s122 = smul.u32 %s28, %s121
      %s123 = sadd.s32 %s120, %s122
      %s124 = ssub.s32 %s16, %s28
      %s125 = ssub.s32 %s118, %s123
      %s126 = sor.u32 %s124, %s125
      %p127 = scmp.eq.s32.totalorder %s126, 0
      %s129 = sadd.s32 %s128, 1
      %s130 = scalar_select %p127, %s128, %s129
      %p133 = pneg %p127
      %p134 = scmp.eq.s32.totalorder %s9, 1
      %p135 = por %p133, %p134
      %p136 = scmp.ne.s32.totalorder %s128, %s131
      %p137 = scmp.eq.s32.totalorder %s9, 0
      %p138 = por %p136, %p137
      %p139 = scmp.ne.s32.totalorder %s128, %s131
      %p140 = scmp.eq.s32.totalorder %s14, 1
      %p141 = por %p139, %p140
      %p142 = scmp.ne.s32.totalorder %s131, %s132
      %p143 = scmp.eq.s32.totalorder %s14, 0
      %p144 = por %p142, %p143
      %p145 = scmp.ne.s32.totalorder %s131, %s132
      %p146 = scmp.eq.s32.totalorder %s15, 1
      %p147 = por %p145, %p146
      %p149 = scmp.ne.s32.totalorder %s132, %s148
      %p150 = scmp.eq.s32.totalorder %s15, 0
      %p151 = por %p149, %p150
      %p152 = scmp.le.s32.totalorder 1, %s9
      %p153 = scmp.lt.s32.totalorder %s9, 3
      %p154 = pnand %p152, %p153
      %p155 = pneg %p154
      // Predicated region
      $region9: #{drqa_forward.18} parent=5 // pred_check
        _
      $region10: #{drqa_forward.18} parent=5 // pred_check_branch
        %157 = sbr.rel (%p154) target = $region12
      $region11: #{drqa_forward.18} parent=5 // pred_region
        %s158 = ssub.s32 %s9, 1
        // Predicated region
        $region13: #{drqa_forward.18} parent=11 // pred_check
          %p159 = pneg %p106
        $region14: #{drqa_forward.18} parent=11 // pred_check_branch
          %161 = sbr.rel (%p159) target = $region16
        $region15: #{drqa_forward.18} parent=11 // pred_region
          _
        $region16: #{drqa_forward.18} parent=11 // pred_fallthru
          _
      $region12: #{drqa_forward.18} parent=5 // pred_fallthru
        _
      %p162 = scmp.lt.s32.totalorder %s9, 2
      // Predicated region
      $region17: #{drqa_forward.18} parent=5 // pred_check
        %p163 = pneg %p162
      $region18: #{drqa_forward.18} parent=5 // pred_check_branch
        %165 = sbr.rel (%p163) target = $region20
      $region19: #{drqa_forward.18} parent=5 // pred_region
        // Predicated region
        $region21: #{drqa_forward.18} parent=19 // pred_check
          %p166 = pneg %p53
        $region22: #{drqa_forward.18} parent=19 // pred_check_branch
          %168 = sbr.rel (%p166) target = $region24
        $region23: #{drqa_forward.18} parent=19 // pred_region
          %s169 = sand.u32 %s43, 1
          %s170 = sand.u32 %s43, 1
          %s171 = smul.addr %s170, 48
          %s172 = scalar_lea.vmem [#allocation4], %s171
          %s173 = ssub.s32 1, %s16
          %s174 = smul.u32 %s173, %s17
          %s175 = ssub.s32 0, %s17
          %s176 = smul.u32 %s16, %s175
          %s177 = sadd.s32 %s174, %s176
          %s178 = smul.u32 12, %s177
          %s179 = smul.u32 4, %s16
          %s180 = smul.addr %s178, 8
          %s181 = sadd.s32 %s179, %s180
          %s182 = scalar_lea.vmem %s0, %s181
          // Predicated region
          $region25: #{drqa_forward.18} parent=23 // pred_check
            _
          $region26: #{drqa_forward.18} parent=23 // pred_check_branch
            %184 = sbr.rel (0) target = $region28
          $region27: #{drqa_forward.18} parent=23 // pred_region
            // Predicated region
            $region29: #{drqa_forward.18} parent=27 // pred_check
              _
            $region30: #{drqa_forward.18} parent=27 // pred_check_branch
              %186 = sbr.rel target = $region32
            $region31: #{drqa_forward.18} parent=27 // pred_region
              // Predicated region
              $region44: #{drqa_forward.18} parent=31 // pred_check
                _
              $region45: #{drqa_forward.18} parent=31 // pred_check_branch
                %223 = sbr.rel (0) target = $region47
              $region46: #{drqa_forward.18} parent=31 // pred_region
                loop: start=0, step=1, limit=1
                $region48: #{drqa_forward.18} parent=46 // loop_pre_header
                  _
                $region49: #{drqa_forward.18} parent=46 // loop_header
                  %s225 = sphi 0, %s229
                  %p226 = scmp.ge.s32.totalorder %s225, 1
                  %s230 = sphi %s182, %s182
                  %s231 = sphi %s172, %s172
                $region50: #{drqa_forward.18} parent=46 // loop_header_branch
                  %228 = sbr.rel (%p226) target = $region54
                $region51: #{drqa_forward.18} parent=46 // loop_body
                  _
                $region52: #{drqa_forward.18} parent=46 // loop_footer
                  %s229 = sadd.s32 1, %s225
                $region53: #{drqa_forward.18} parent=46 // loop_footer_branch
                  %224 = sbr.rel target = $region49
                $region54: #{drqa_forward.18} parent=46 // loop_exit
                  _
                loop: start=0, step=1, limit=1
                $region55: #{drqa_forward.18} parent=46 // loop_pre_header
                  _
                $region56: #{drqa_forward.18} parent=46 // loop_header
                  %s234 = sphi 0, %s238
                  %p235 = scmp.ge.s32.totalorder %s234, 1
                  %s239 = sphi %s182, %s182
                  %s240 = sphi %s172, %s172
                $region57: #{drqa_forward.18} parent=46 // loop_header_branch
                  %237 = sbr.rel (%p235) target = $region61
                $region58: #{drqa_forward.18} parent=46 // loop_body
                  %v241 = vld [vmem:[%s239] sm:$0xf]
                  %242 = vst [vmem:[%s240] sm:$0xf] %v241
                  %v243 = vld [vmem:[%s239 + $0x8] sm:$0xf]
                  %244 = vst [vmem:[%s240 + $0x4] sm:$0xf] %v243
                  %v245 = vld [vmem:[%s239 + $0x10] sm:$0xf]
                  %246 = vst [vmem:[%s240 + $0x8] sm:$0xf] %v245
                  %v247 = vld [vmem:[%s239 + $0x18] sm:$0xf]
                  %248 = vst [vmem:[%s240 + $0xc] sm:$0xf] %v247
                  %v249 = vld [vmem:[%s239 + $0x20] sm:$0xf]
                  %250 = vst [vmem:[%s240 + $0x10] sm:$0xf] %v249
                  %v251 = vld [vmem:[%s239 + $0x28] sm:$0xf]
                  %252 = vst [vmem:[%s240 + $0x14] sm:$0xf] %v251
                  %v253 = vld [vmem:[%s239 + $0x30] sm:$0xf]
                  %254 = vst [vmem:[%s240 + $0x18] sm:$0xf] %v253
                  %v255 = vld [vmem:[%s239 + $0x38] sm:$0xf]
                  %256 = vst [vmem:[%s240 + $0x1c] sm:$0xf] %v255
                  %v257 = vld [vmem:[%s239 + $0x40] sm:$0xf]
                  %258 = vst [vmem:[%s240 + $0x20] sm:$0xf] %v257
                  %v259 = vld [vmem:[%s239 + $0x48] sm:$0xf]
                  %260 = vst [vmem:[%s240 + $0x24] sm:$0xf] %v259
                  %v261 = vld [vmem:[%s239 + $0x50] sm:$0xf]
                  %262 = vst [vmem:[%s240 + $0x28] sm:$0xf] %v261
                  %v263 = vld [vmem:[%s239 + $0x58] sm:$0xf]
                  %264 = vst [vmem:[%s240 + $0x2c] sm:$0xf] %v263
                $region59: #{drqa_forward.18} parent=46 // loop_footer
                  %s238 = sadd.s32 1, %s234
                $region60: #{drqa_forward.18} parent=46 // loop_footer_branch
                  %233 = sbr.rel target = $region56
                $region61: #{drqa_forward.18} parent=46 // loop_exit
                  _
              $region47: #{drqa_forward.18} parent=31 // pred_fallthru
                _
            $region32: #{drqa_forward.18} parent=27 // pred_fallthru
              _
            // Predicated region
            $region33: #{drqa_forward.18} parent=27 // pred_check
              _
            $region34: #{drqa_forward.18} parent=27 // pred_check_branch
              %188 = sbr.rel (0) target = $region36
            $region35: #{drqa_forward.18} parent=27 // pred_region
              loop: start=0, step=1, limit=1
              $region37: #{drqa_forward.18} parent=35 // loop_pre_header
                _
              $region38: #{drqa_forward.18} parent=35 // loop_header
                %s191 = sphi 0, %s195
                %p192 = scmp.ge.s32.totalorder %s191, 1
                %s196 = sphi %s182, %s182
                %s197 = sphi %s172, %s172
              $region39: #{drqa_forward.18} parent=35 // loop_header_branch
                %194 = sbr.rel (%p192) target = $region43
              $region40: #{drqa_forward.18} parent=35 // loop_body
                %v198 = vld [vmem:[%s196] sm:$0xf]
                %199 = vst [vmem:[%s197] sm:$0xf] %v198
                %v200 = vld [vmem:[%s196 + $0x8] sm:$0xf]
                %201 = vst [vmem:[%s197 + $0x4] sm:$0xf] %v200
                %v202 = vld [vmem:[%s196 + $0x10] sm:$0xf]
                %203 = vst [vmem:[%s197 + $0x8] sm:$0xf] %v202
                %v204 = vld [vmem:[%s196 + $0x18] sm:$0xf]
                %205 = vst [vmem:[%s197 + $0xc] sm:$0xf] %v204
                %v206 = vld [vmem:[%s196 + $0x20] sm:$0xf]
                %207 = vst [vmem:[%s197 + $0x10] sm:$0xf] %v206
                %v208 = vld [vmem:[%s196 + $0x28] sm:$0xf]
                %209 = vst [vmem:[%s197 + $0x14] sm:$0xf] %v208
                %v210 = vld [vmem:[%s196 + $0x30] sm:$0xf]
                %211 = vst [vmem:[%s197 + $0x18] sm:$0xf] %v210
                %v212 = vld [vmem:[%s196 + $0x38] sm:$0xf]
                %213 = vst [vmem:[%s197 + $0x1c] sm:$0xf] %v212
                %v214 = vld [vmem:[%s196 + $0x40] sm:$0xf]
                %215 = vst [vmem:[%s197 + $0x20] sm:$0xf] %v214
                %v216 = vld [vmem:[%s196 + $0x48] sm:$0xf]
                %217 = vst [vmem:[%s197 + $0x24] sm:$0xf] %v216
                %v218 = vld [vmem:[%s196 + $0x50] sm:$0xf]
                %219 = vst [vmem:[%s197 + $0x28] sm:$0xf] %v218
                %v220 = vld [vmem:[%s196 + $0x58] sm:$0xf]
                %221 = vst [vmem:[%s197 + $0x2c] sm:$0xf] %v220
              $region41: #{drqa_forward.18} parent=35 // loop_footer
                %s195 = sadd.s32 1, %s191
              $region42: #{drqa_forward.18} parent=35 // loop_footer_branch
                %190 = sbr.rel target = $region38
              $region43: #{drqa_forward.18} parent=35 // loop_exit
                _
            $region36: #{drqa_forward.18} parent=27 // pred_fallthru
              _
          $region28: #{drqa_forward.18} parent=23 // pred_fallthru
            _
          %265 = vnop
        $region24: #{drqa_forward.18} parent=19 // pred_fallthru
          _
        // Predicated region
        $region62: #{drqa_forward.18} parent=19 // pred_check
          %p266 = pneg %p79
        $region63: #{drqa_forward.18} parent=19 // pred_check_branch
          %268 = sbr.rel (%p266) target = $region65
        $region64: #{drqa_forward.18} parent=19 // pred_region
          %p269 = scmp.lt.s32.totalorder %s16, 1
          %s270 = scalar_select %p269, %s16, 1
          %s271 = smul.addr %s270, 64
          %s272 = smul.addr %s271, 4
          %s273 = scalar_lea.vmem %s1, %s272
        $region65: #{drqa_forward.18} parent=19 // pred_fallthru
          _
      $region20: #{drqa_forward.18} parent=5 // pred_fallthru
        _
      %p274 = scmp.le.s32.totalorder 1, %s9
      %p275 = scmp.lt.s32.totalorder %s9, 3
      %p276 = pnand %p274, %p275
      %p277 = pneg %p276
      // Predicated region
      $region66: #{drqa_forward.18} parent=5 // pred_check
        _
      $region67: #{drqa_forward.18} parent=5 // pred_check_branch
        %279 = sbr.rel (%p276) target = $region69
      $region68: #{drqa_forward.18} parent=5 // pred_region
        %s280 = ssub.s32 %s9, 1
        %s281 = sand.u32 %s46, 1
        %s282 = sand.u32 %s46, 1
        %s283 = smul.addr %s282, 48
        %s284 = scalar_lea.vmem [#allocation4], %s283
        // Predicated region
        $region70: #{drqa_forward.18} parent=68 // pred_check
          %p285 = pneg %p59
        $region71: #{drqa_forward.18} parent=68 // pred_check_branch
          %287 = sbr.rel (%p285) target = $region73
        $region72: #{drqa_forward.18} parent=68 // pred_region
          _
        $region73: #{drqa_forward.18} parent=68 // pred_fallthru
          _
        %s288 = sand.u32 %s46, 1
        %s289 = sand.u32 %s46, 1
        %s290 = smul.addr %s289, 48
        %s291 = scalar_lea.vmem [#allocation4], %s290
        %p292 = pneg %p59
        %p293 = pneg %p56
        %p294 = scmp.lt.s32.totalorder %s18, 1
        %s295 = scalar_select %p294, %s18, 1
        %s296 = smul.addr %s295, 64
        %s297 = smul.addr %s296, 4
        %s298 = scalar_lea.vmem %s1, %s297
        %p299 = pneg %p85
        %p300 = pneg %p82
        %p301 = pneg %p106
        %p302 = pneg %p103
        %p303 = pneg %p144
        %p304 = pneg %p141
        %s305 = ssub.s32 1, %s18
        %s306 = smul.u32 %s305, %s19
        %s307 = ssub.s32 0, %s19
        %s308 = smul.u32 %s18, %s307
        %s309 = sadd.s32 %s306, %s308
        %s310 = smul.u32 12, %s309
        %p311 = scmp.lt.s32.totalorder %s18, 1
        %s312 = scalar_select %p311, %s18, 1
        %p313 = scmp.lt.s32.totalorder %s310, 11
        %s314 = scalar_select %p313, %s310, 11
        %s315 = smul.addr %s312, 12
        %s316 = sadd.s32 %s314, %s315
        %s317 = smul.addr %s316, 2
        %s318 = scalar_lea.vmem %s3, %s317
        %s319 = ssub.s32 1, %s18
        %s320 = smul.u32 %s319, %s19
        %s321 = ssub.s32 0, %s19
        %s322 = smul.u32 %s18, %s321
        %s323 = sadd.s32 %s320, %s322
        %s324 = smul.u32 12, %s323
        %s325 = smul.u32 4, %s18
        %p326 = scmp.lt.s32.totalorder %s18, 1
        %s327 = scalar_select %p326, %s18, 1
        %s328 = smul.addr %s327, 64
        %s329 = smul.addr %s328, 4
        %s330 = scalar_lea.vmem %s1, %s329
        %s331 = ssub.s32 1, %s18
        %s332 = smul.u32 %s331, %s19
        %s333 = ssub.s32 0, %s19
        %s334 = smul.u32 %s18, %s333
        %s335 = sadd.s32 %s332, %s334
        %s336 = smul.u32 12, %s335
        %p337 = scmp.lt.s32.totalorder %s18, 1
        %s338 = scalar_select %p337, %s18, 1
        %p339 = scmp.lt.s32.totalorder %s336, 11
        %s340 = scalar_select %p339, %s336, 11
        %s341 = smul.addr %s338, 12
        %s342 = sadd.s32 %s340, %s341
        %s343 = smul.addr %s342, 2
        %s344 = scalar_lea.vmem %s3, %s343
        %s345 = ssub.s32 1, %s18
        %s346 = smul.u32 %s345, %s19
        %s347 = ssub.s32 0, %s19
        %s348 = smul.u32 %s18, %s347
        %s349 = sadd.s32 %s346, %s348
        %s350 = smul.u32 12, %s349
        %p352 = scmp.eq.s32.totalorder %s19, 0
        // Predicated region
        $region74: #{drqa_forward.18} parent=68 // pred_check
          %p353 = pneg %p352
        $region75: #{drqa_forward.18} parent=68 // pred_check_branch
          %355 = sbr.rel (%p353) target = $region77
        $region76: #{drqa_forward.18} parent=68 // pred_region
          %356 = vst [vmem:[#allocation2] sm:$0x3] 0.0
          %357 = vst [vmem:[#allocation3] sm:$0x3] 0.0
        $region77: #{drqa_forward.18} parent=68 // pred_fallthru
          _
        %s358 = ssub.s32 1, %s18
        %s359 = smul.u32 %s358, %s19
        %s360 = ssub.s32 0, %s19
        %s361 = smul.u32 %s18, %s360
        %s362 = sadd.s32 %s359, %s361
        %s363 = smul.u32 %s362, 12
        %v364 = vld [vmem:[%s2] sm:$0x3]
        %v365 = vld [vmem:[%s330] sm:$0xff]
        %v366 = vld [vmem:[%s330 + $0x8] sm:$0xff]
        %v367 = vld [vmem:[%s330 + $0x10] sm:$0xff]
        %v368 = vld [vmem:[%s330 + $0x18] sm:$0xff]
        %v369 = vld [vmem:[%s330 + $0x20] sm:$0xff]
        %v370 = vld [vmem:[%s330 + $0x28] sm:$0xff]
        %v371 = vld [vmem:[%s330 + $0x30] sm:$0xff]
        %v372 = vld [vmem:[%s330 + $0x38] sm:$0xff]
        %v373 = vld [vmem:[%s330 + $0x40] sm:$0xff]
        %v374 = vld [vmem:[%s330 + $0x48] sm:$0xff]
        %v375 = vld [vmem:[%s330 + $0x50] sm:$0xff]
        %v376 = vld [vmem:[%s330 + $0x58] sm:$0xff]
        %v377 = vld [vmem:[%s330 + $0x60] sm:$0xff]
        %v378 = vld [vmem:[%s330 + $0x68] sm:$0xff]
        %v379 = vld [vmem:[%s330 + $0x70] sm:$0xff]
        %v380 = vld [vmem:[%s330 + $0x78] sm:$0xff]
        %v381 = vld [vmem:[%s330 + $0x80] sm:$0xff]
        %v382 = vld [vmem:[%s330 + $0x88] sm:$0xff]
        %v383 = vld [vmem:[%s330 + $0x90] sm:$0xff]
        %v384 = vld [vmem:[%s330 + $0x98] sm:$0xff]
        %v385 = vld [vmem:[%s330 + $0xa0] sm:$0xff]
        %v386 = vld [vmem:[%s330 + $0xa8] sm:$0xff]
        %v387 = vld [vmem:[%s330 + $0xb0] sm:$0xff]
        %v388 = vld [vmem:[%s330 + $0xb8] sm:$0xff]
        %v389 = vld [vmem:[%s330 + $0xc0] sm:$0xff]
        %v390 = vld [vmem:[%s330 + $0xc8] sm:$0xff]
        %v391 = vld [vmem:[%s330 + $0xd0] sm:$0xff]
        %v392 = vld [vmem:[%s330 + $0xd8] sm:$0xff]
        %v393 = vld [vmem:[%s330 + $0xe0] sm:$0xff]
        %v394 = vld [vmem:[%s330 + $0xe8] sm:$0xff]
        %v395 = vld [vmem:[%s330 + $0xf0] sm:$0xff]
        %v396 = vld [vmem:[%s330 + $0xf8] sm:$0xff]
        %s397 = smul.u32 %s18, 11
        %s398 = sadd.s32 %s363, %s397
        %v399 = vld [vmem:[#allocation2] sm:$0x3]
        %v400 = vld [vmem:[#allocation3] sm:$0x3]
        %s401 = smul.u32 %s397, 4
        %s402 = scalar_lea.vmem %s284, %s401 [#allocation4]
        %v403 = vld [vmem:[%s402] sm:$0xf]
        %v404 = vunpack.c.l.bf16 %v403
        %v405 = vpack.c.bf16 %v399, %v399
        %v438 = vunpack.c.l.b16 %v365
        %v439 = vunpack.c.h.b16 %v365
        %v440 = vunpack.c.l.b16 %v366
        %v441 = vunpack.c.h.b16 %v366
        %v442 = vunpack.c.l.b16 %v367
        %v443 = vunpack.c.h.b16 %v367
        %v444 = vunpack.c.l.b16 %v368
        %v445 = vunpack.c.h.b16 %v368
        %v446 = vunpack.c.l.b16 %v369
        %v447 = vunpack.c.h.b16 %v369
        %v448 = vunpack.c.l.b16 %v370
        %v449 = vunpack.c.h.b16 %v370
        %v450 = vunpack.c.l.b16 %v371
        %v451 = vunpack.c.h.b16 %v371
        %v452 = vunpack.c.l.b16 %v372
        %v453 = vunpack.c.h.b16 %v372
        %v454 = vunpack.c.l.b16 %v373
        %v455 = vunpack.c.h.b16 %v373
        %v456 = vunpack.c.l.b16 %v374
        %v457 = vunpack.c.h.b16 %v374
        %v458 = vunpack.c.l.b16 %v375
        %v459 = vunpack.c.h.b16 %v375
        %v460 = vunpack.c.l.b16 %v376
        %v461 = vunpack.c.h.b16 %v376
        %v462 = vunpack.c.l.b16 %v377
        %v463 = vunpack.c.h.b16 %v377
        %v464 = vunpack.c.l.b16 %v378
        %v465 = vunpack.c.h.b16 %v378
        %v466 = vunpack.c.l.b16 %v379
        %v467 = vunpack.c.h.b16 %v379
        %v468 = vunpack.c.l.b16 %v380
        %v469 = vunpack.c.h.b16 %v380
        %v470 = vunpack.c.l.b16 %v381
        %v471 = vunpack.c.h.b16 %v381
        %v472 = vunpack.c.l.b16 %v382
        %v473 = vunpack.c.h.b16 %v382
        %v474 = vunpack.c.l.b16 %v383
        %v475 = vunpack.c.h.b16 %v383
        %v476 = vunpack.c.l.b16 %v384
        %v477 = vunpack.c.h.b16 %v384
        %v478 = vunpack.c.l.b16 %v385
        %v479 = vunpack.c.h.b16 %v385
        %v480 = vunpack.c.l.b16 %v386
        %v481 = vunpack.c.h.b16 %v386
        %v482 = vunpack.c.l.b16 %v387
        %v483 = vunpack.c.h.b16 %v387
        %v484 = vunpack.c.l.b16 %v388
        %v485 = vunpack.c.h.b16 %v388
        %v486 = vunpack.c.l.b16 %v389
        %v487 = vunpack.c.h.b16 %v389
        %v488 = vunpack.c.l.b16 %v390
        %v489 = vunpack.c.h.b16 %v390
        %v490 = vunpack.c.l.b16 %v391
        %v491 = vunpack.c.h.b16 %v391
        %v492 = vunpack.c.l.b16 %v392
        %v493 = vunpack.c.h.b16 %v392
        %v494 = vunpack.c.l.b16 %v393
        %v495 = vunpack.c.h.b16 %v393
        %v496 = vunpack.c.l.b16 %v394
        %v497 = vunpack.c.h.b16 %v394
        %v498 = vunpack.c.l.b16 %v395
        %v499 = vunpack.c.h.b16 %v395
        %v500 = vunpack.c.l.b16 %v396
        %v501 = vunpack.c.h.b16 %v396
        %v502 = vpack.c.b16 %v442, %v438
        %v503 = vpack.c.b16 %v443, %v439
        %v504 = vpack.c.b16 %v444, %v440
        %v505 = vpack.c.b16 %v445, %v441
        %v506 = vpack.c.b16 %v450, %v446
        %v507 = vpack.c.b16 %v451, %v447
        %v508 = vpack.c.b16 %v452, %v448
        %v509 = vpack.c.b16 %v453, %v449
        %v510 = vpack.c.b16 %v458, %v454
        %v511 = vpack.c.b16 %v459, %v455
        %v512 = vpack.c.b16 %v460, %v456
        %v513 = vpack.c.b16 %v461, %v457
        %v514 = vpack.c.b16 %v466, %v462
        %v515 = vpack.c.b16 %v467, %v463
        %v516 = vpack.c.b16 %v468, %v464
        %v517 = vpack.c.b16 %v469, %v465
        %v518 = vpack.c.b16 %v474, %v470
        %v519 = vpack.c.b16 %v475, %v471
        %v520 = vpack.c.b16 %v476, %v472
        %v521 = vpack.c.b16 %v477, %v473
        %v522 = vpack.c.b16 %v482, %v478
        %v523 = vpack.c.b16 %v483, %v479
        %v524 = vpack.c.b16 %v484, %v480
        %v525 = vpack.c.b16 %v485, %v481
        %v526 = vpack.c.b16 %v490, %v486
        %v527 = vpack.c.b16 %v491, %v487
        %v528 = vpack.c.b16 %v492, %v488
        %v529 = vpack.c.b16 %v493, %v489
        %v530 = vpack.c.b16 %v498, %v494
        %v531 = vpack.c.b16 %v499, %v495
        %v532 = vpack.c.b16 %v500, %v496
        %v533 = vpack.c.b16 %v501, %v497
        %566 = vmatprep.subr.bf16.mxu0 %v503
        %567 = vmatpush1.bf16.msra.mxu0 %v502
        %568 = vmatprep.subr.bf16.mxu0 %v507
        %569 = vmatpush1.bf16.msra.mxu0 %v506
        %570 = vmatprep.subr.bf16.mxu0 %v511
        %571 = vmatpush1.bf16.msra.mxu0 %v510
        %572 = vmatprep.subr.bf16.mxu0 %v515
        %573 = vmatpush1.bf16.msra.mxu0 %v514
        %574 = vmatprep.subr.bf16.mxu0 %v519
        %575 = vmatpush1.bf16.msra.mxu0 %v518
        %576 = vmatprep.subr.bf16.mxu0 %v523
        %577 = vmatpush1.bf16.msra.mxu0 %v522
        %578 = vmatprep.subr.bf16.mxu0 %v527
        %579 = vmatpush1.bf16.msra.mxu0 %v526
        %580 = vmatprep.subr.bf16.mxu0 %v531
        %581 = vmatpush1.bf16.msra.mxu0 %v530
        %582 = vmatprep.subr.bf16.mxu0 0
        %583 = vmatpush1.bf16.msra.mxu0 0
        %584 = vmatprep.subr.bf16.mxu0 0
        %585 = vmatpush1.bf16.msra.mxu0 0
        %586 = vmatprep.subr.bf16.mxu0 0
        %587 = vmatpush1.bf16.msra.mxu0 0
        %588 = vmatprep.subr.bf16.mxu0 0
        %589 = vmatpush1.bf16.msra.mxu0 0
        %590 = vmatprep.subr.bf16.mxu0 0
        %591 = vmatpush1.bf16.msra.mxu0 0
        %592 = vmatprep.subr.bf16.mxu0 0
        %593 = vmatpush1.bf16.msra.mxu0 0
        %594 = vmatprep.subr.bf16.mxu0 0
        %595 = vmatpush1.bf16.msra.mxu0 0
        %596 = vmatprep.subr.bf16.mxu0 0
        %597 = vmatpush1.bf16.msra.mxu0 0
        %598 = vmatprep.mubr.bf16.mxu0 0
        %599 = vmatmul.mubr.bf16.gmra.mrb[0].mxu0 %v405
        %v600 = vpop.f32.mrb[0].mxu0
        %v601 = vadd.f32 0.0, %v600
        %v602 = vpop.f32.mrb[0].mxu0
        %v603 = vadd.f32 0.0, %v602
        %v604 = vpop.f32.mrb[0].mxu0
        %v605 = vpop.f32.mrb[0].mxu0
        %606 = vdwg.mxu0
        %607 = vmatprep.subr.bf16.mxu0 %v505
        %608 = vmatpush1.bf16.msra.mxu0 %v504
        %609 = vmatprep.subr.bf16.mxu0 %v509
        %610 = vmatpush1.bf16.msra.mxu0 %v508
        %611 = vmatprep.subr.bf16.mxu0 %v513
        %612 = vmatpush1.bf16.msra.mxu0 %v512
        %613 = vmatprep.subr.bf16.mxu0 %v517
        %614 = vmatpush1.bf16.msra.mxu0 %v516
        %615 = vmatprep.subr.bf16.mxu0 %v521
        %616 = vmatpush1.bf16.msra.mxu0 %v520
        %617 = vmatprep.subr.bf16.mxu0 %v525
        %618 = vmatpush1.bf16.msra.mxu0 %v524
        %619 = vmatprep.subr.bf16.mxu0 %v529
        %620 = vmatpush1.bf16.msra.mxu0 %v528
        %621 = vmatprep.subr.bf16.mxu0 %v533
        %622 = vmatpush1.bf16.msra.mxu0 %v532
        %623 = vmatprep.subr.bf16.mxu0 0
        %624 = vmatpush1.bf16.msra.mxu0 0
        %625 = vmatprep.subr.bf16.mxu0 0
        %626 = vmatpush1.bf16.msra.mxu0 0
        %627 = vmatprep.subr.bf16.mxu0 0
        %628 = vmatpush1.bf16.msra.mxu0 0
        %629 = vmatprep.subr.bf16.mxu0 0
        %630 = vmatpush1.bf16.msra.mxu0 0
        %631 = vmatprep.subr.bf16.mxu0 0
        %632 = vmatpush1.bf16.msra.mxu0 0
        %633 = vmatprep.subr.bf16.mxu0 0
        %634 = vmatpush1.bf16.msra.mxu0 0
        %635 = vmatprep.subr.bf16.mxu0 0
        %636 = vmatpush1.bf16.msra.mxu0 0
        %637 = vmatprep.subr.bf16.mxu0 0
        %638 = vmatpush1.bf16.msra.mxu0 0
        %639 = vmatprep.mubr.bf16.mxu0 0
        %640 = vmatmul.mubr.bf16.gmra.mrb[0].mxu0 %v405
        %v641 = vpop.f32.mrb[0].mxu0
        %v642 = vadd.f32 0.0, %v641
        %v643 = vpop.f32.mrb[0].mxu0
        %v644 = vadd.f32 0.0, %v643
        %v645 = vpop.f32.mrb[0].mxu0
        %v646 = vpop.f32.mrb[0].mxu0
        %647 = vdwg.mxu0
        %v652 = vcombine.low %v601, %v603
        %v653 = vcombine.low %v642, %v644
        %v655 = vunpack.c.l.s4 1983009808
        %v656 = vunpack.c.0.s8 %v655
        %v657 = vlaneseq
        %v658 = vshrl.u32 %v657, 7
        %v659 = vsub.s32 %v656, %v658
        %v660 = vrot.slane %v652, %v659
        %v662 = vunpack.c.l.s4 1983009808
        %v663 = vunpack.c.0.s8 %v662
        %v664 = vlaneseq
        %v665 = vshrl.u32 %v664, 7
        %v666 = vsub.s32 %v663, %v665
        %v667 = vrot.slane %v653, %v666
        %v668 = vcombine.low %v660, %v667
        %v670 = vadd.f32 %v404, %v668
        %v671 = vxor.u32 %v670, 2147483648
        %v672 = vmul.f32 %v671, 1.442695
        %v673 = vpow.pop %v672
        %v674 = vadd.f32 %v673, 1.0
        %v675 = vrcp.pop %v674
        %v676 = vmul.f32 1.0, %v675
        %v678 = vrot.slane %v670, 2
        %v680 = vxor.u32 %v678, 2147483648
        %v681 = vmul.f32 %v680, 1.442695
        %v682 = vpow.pop %v681
        %v683 = vadd.f32 %v682, 1.0
        %v684 = vrcp.pop %v683
        %v685 = vmul.f32 1.0, %v684
        %v686 = vrot.slane %v670, 4
        %v688 = vtanh.pop %v686
        %v689 = vrot.slane %v670, 6
        %v691 = vxor.u32 %v689, 2147483648
        %v692 = vmul.f32 %v691, 1.442695
        %v693 = vpow.pop %v692
        %v694 = vadd.f32 %v693, 1.0
        %v695 = vrcp.pop %v694
        %v696 = vmul.f32 1.0, %v695
        %v697 = vmul.f32 %v685, %v400
        %v698 = vmul.f32 %v676, %v688
        %v699 = vadd.f32 %v697, %v698
        %v700 = vtanh.pop %v699
        %v701 = vmul.f32 %v696, %v700
        %v702 = vstv %s398
        %vm703 = vcmp.gt.s32.totalorder %v364, %v702
        %v704 = vsel %vm703, 1, 0
        %705 = vset.pattern.permute.xlu0 0
        %706 = vperm.xlu0 %705, %v704
        %v707 = vpop.permute.xlu0 %706
        %vm708 = vcmp.eq.s32.totalorder %v707, 1
        %v709 = vsel %vm708, %v701, %v399
        %710 = vst [vmem:[#allocation2] sm:$0x3] %v709
        %v711 = vsel %vm708, %v699, %v400
        %712 = vst [vmem:[#allocation3] sm:$0x3] %v711
        %v713 = vsel %vm708, %v701, 0.0
        %s714 = smul.u32 %s397, 2
        %s715 = scalar_lea.vmem %s344, %s714
        %716 = vst [vmem:[%s715] sm:$0x3] %v713
        %s717 = smul.u32 %s18, 10
        %s718 = sadd.s32 %s358, %s717
        %s719 = sadd.s32 %s363, %s718
        %v720 = vld [vmem:[#allocation2] sm:$0x3]
        %v721 = vld [vmem:[#allocation3] sm:$0x3]
        %s722 = smul.u32 %s718, 4
        %s723 = scalar_lea.vmem %s284, %s722 [#allocation4]
        %v724 = vld [vmem:[%s723] sm:$0xf]
        %v725 = vunpack.c.l.bf16 %v724
        %v726 = vpack.c.bf16 %v720, %v720
        %727 = vmatprep.subr.bf16.mxu0 %v503
        %728 = vmatpush1.bf16.msra.mxu0 %v502
        %729 = vmatprep.subr.bf16.mxu0 %v507
        %730 = vmatpush1.bf16.msra.mxu0 %v506
        %731 = vmatprep.subr.bf16.mxu0 %v511
        %732 = vmatpush1.bf16.msra.mxu0 %v510
        %733 = vmatprep.subr.bf16.mxu0 %v515
        %734 = vmatpush1.bf16.msra.mxu0 %v514
        %735 = vmatprep.subr.bf16.mxu0 %v519
        %736 = vmatpush1.bf16.msra.mxu0 %v518
        %737 = vmatprep.subr.bf16.mxu0 %v523
        %738 = vmatpush1.bf16.msra.mxu0 %v522
        %739 = vmatprep.subr.bf16.mxu0 %v527
        %740 = vmatpush1.bf16.msra.mxu0 %v526
        %741 = vmatprep.subr.bf16.mxu0 %v531
        %742 = vmatpush1.bf16.msra.mxu0 %v530
        %743 = vmatprep.subr.bf16.mxu0 0
        %744 = vmatpush1.bf16.msra.mxu0 0
        %745 = vmatprep.subr.bf16.mxu0 0
        %746 = vmatpush1.bf16.msra.mxu0 0
        %747 = vmatprep.subr.bf16.mxu0 0
        %748 = vmatpush1.bf16.msra.mxu0 0
        %749 = vmatprep.subr.bf16.mxu0 0
        %750 = vmatpush1.bf16.msra.mxu0 0
        %751 = vmatprep.subr.bf16.mxu0 0
        %752 = vmatpush1.bf16.msra.mxu0 0
        %753 = vmatprep.subr.bf16.mxu0 0
        %754 = vmatpush1.bf16.msra.mxu0 0
        %755 = vmatprep.subr.bf16.mxu0 0
        %756 = vmatpush1.bf16.msra.mxu0 0
        %757 = vmatprep.subr.bf16.mxu0 0
        %758 = vmatpush1.bf16.msra.mxu0 0
        %759 = vmatprep.mubr.bf16.mxu0 0
        %760 = vmatmul.mubr.bf16.gmra.mrb[0].mxu0 %v726
        %v761 = vpop.f32.mrb[0].mxu0
        %v762 = vadd.f32 0.0, %v761
        %v763 = vpop.f32.mrb[0].mxu0
        %v764 = vadd.f32 0.0, %v763
        %v765 = vpop.f32.mrb[0].mxu0
        %v766 = vpop.f32.mrb[0].mxu0
        %767 = vdwg.mxu0
        %768 = vmatprep.subr.bf16.mxu0 %v505
        %769 = vmatpush1.bf16.msra.mxu0 %v504
        %770 = vmatprep.subr.bf16.mxu0 %v509
        %771 = vmatpush1.bf16.msra.mxu0 %v508
        %772 = vmatprep.subr.bf16.mxu0 %v513
        %773 = vmatpush1.bf16.msra.mxu0 %v512
        %774 = vmatprep.subr.bf16.mxu0 %v517
        %775 = vmatpush1.bf16.msra.mxu0 %v516
        %776 = vmatprep.subr.bf16.mxu0 %v521
        %777 = vmatpush1.bf16.msra.mxu0 %v520
        %778 = vmatprep.subr.bf16.mxu0 %v525
        %779 = vmatpush1.bf16.msra.mxu0 %v524
        %780 = vmatprep.subr.bf16.mxu0 %v529
        %781 = vmatpush1.bf16.msra.mxu0 %v528
        %782 = vmatprep.subr.bf16.mxu0 %v533
        %783 = vmatpush1.bf16.msra.mxu0 %v532
        %784 = vmatprep.subr.bf16.mxu0 0
        %785 = vmatpush1.bf16.msra.mxu0 0
        %786 = vmatprep.subr.bf16.mxu0 0
        %787 = vmatpush1.bf16.msra.mxu0 0
        %788 = vmatprep.subr.bf16.mxu0 0
        %789 = vmatpush1.bf16.msra.mxu0 0
        %790 = vmatprep.subr.bf16.mxu0 0
        %791 = vmatpush1.bf16.msra.mxu0 0
        %792 = vmatprep.subr.bf16.mxu0 0
        %793 = vmatpush1.bf16.msra.mxu0 0
        %794 = vmatprep.subr.bf16.mxu0 0
        %795 = vmatpush1.bf16.msra.mxu0 0
        %796 = vmatprep.subr.bf16.mxu0 0
        %797 = vmatpush1.bf16.msra.mxu0 0
        %798 = vmatprep.subr.bf16.mxu0 0
        %799 = vmatpush1.bf16.msra.mxu0 0
        %800 = vmatprep.mubr.bf16.mxu0 0
        %801 = vmatmul.mubr.bf16.gmra.mrb[0].mxu0 %v726
        %v802 = vpop.f32.mrb[0].mxu0
        %v803 = vadd.f32 0.0, %v802
        %v804 = vpop.f32.mrb[0].mxu0
        %v805 = vadd.f32 0.0, %v804
        %v806 = vpop.f32.mrb[0].mxu0
        %v807 = vpop.f32.mrb[0].mxu0
        %808 = vdwg.mxu0
        %v813 = vcombine.low %v762, %v764
        %v814 = vcombine.low %v803, %v805
        %v816 = vunpack.c.l.s4 1983009808
        %v817 = vunpack.c.0.s8 %v816
        %v818 = vlaneseq
        %v819 = vshrl.u32 %v818, 7
        %v820 = vsub.s32 %v817, %v819
        %v821 = vrot.slane %v813, %v820
        %v823 = vunpack.c.l.s4 1983009808
        %v824 = vunpack.c.0.s8 %v823
        %v825 = vlaneseq
        %v826 = vshrl.u32 %v825, 7
        %v827 = vsub.s32 %v824, %v826
        %v828 = vrot.slane %v814, %v827
        %v829 = vcombine.low %v821, %v828
        %v831 = vadd.f32 %v725, %v829
        %v832 = vxor.u32 %v831, 2147483648
        %v833 = vmul.f32 %v832, 1.442695
        %v834 = vpow.pop %v833
        %v835 = vadd.f32 %v834, 1.0
        %v836 = vrcp.pop %v835
        %v837 = vmul.f32 1.0, %v836
        %v839 = vrot.slane %v831, 2
        %v841 = vxor.u32 %v839, 2147483648
        %v842 = vmul.f32 %v841, 1.442695
        %v843 = vpow.pop %v842
        %v844 = vadd.f32 %v843, 1.0
        %v845 = vrcp.pop %v844
        %v846 = vmul.f32 1.0, %v845
        %v847 = vrot.slane %v831, 4
        %v849 = vtanh.pop %v847
        %v850 = vrot.slane %v831, 6
        %v852 = vxor.u32 %v850, 2147483648
        %v853 = vmul.f32 %v852, 1.442695
        %v854 = vpow.pop %v853
        %v855 = vadd.f32 %v854, 1.0
        %v856 = vrcp.pop %v855
        %v857 = vmul.f32 1.0, %v856
        %v858 = vmul.f32 %v846, %v721
        %v859 = vmul.f32 %v837, %v849
        %v860 = vadd.f32 %v858, %v859
        %v861 = vtanh.pop %v860
        %v862 = vmul.f32 %v857, %v861
        %v863 = vstv %s719
        %vm864 = vcmp.gt.s32.totalorder %v364, %v863
        %v865 = vsel %vm864, 1, 0
        %866 = vset.pattern.permute.xlu0 0
        %867 = vperm.xlu0 %866, %v865
        %v868 = vpop.permute.xlu0 %867
        %vm869 = vcmp.eq.s32.totalorder %v868, 1
        %v870 = vsel %vm869, %v862, %v720
        %871 = vst [vmem:[#allocation2] sm:$0x3] %v870
        %v872 = vsel %vm869, %v860, %v721
        %873 = vst [vmem:[#allocation3] sm:$0x3] %v872
        %v874 = vsel %vm869, %v862, 0.0
        %s875 = smul.u32 %s718, 2
        %s876 = scalar_lea.vmem %s344, %s875
        %877 = vst [vmem:[%s876] sm:$0x3] %v874
        %s878 = smul.u32 %s358, 2
        %s879 = smul.u32 %s18, 9
        %s880 = sadd.s32 %s878, %s879
        %s881 = sadd.s32 %s363, %s880
        %v882 = vld [vmem:[#allocation2] sm:$0x3]
        %v883 = vld [vmem:[#allocation3] sm:$0x3]
        %s884 = smul.u32 %s880, 4
        %s885 = scalar_lea.vmem %s284, %s884 [#allocation4]
        %v886 = vld [vmem:[%s885] sm:$0xf]
        %v887 = vunpack.c.l.bf16 %v886
        %v888 = vpack.c.bf16 %v882, %v882
        %889 = vmatprep.subr.bf16.mxu0 %v503
        %890 = vmatpush1.bf16.msra.mxu0 %v502
        %891 = vmatprep.subr.bf16.mxu0 %v507
        %892 = vmatpush1.bf16.msra.mxu0 %v506
        %893 = vmatprep.subr.bf16.mxu0 %v511
        %894 = vmatpush1.bf16.msra.mxu0 %v510
        %895 = vmatprep.subr.bf16.mxu0 %v515
        %896 = vmatpush1.bf16.msra.mxu0 %v514
        %897 = vmatprep.subr.bf16.mxu0 %v519
        %898 = vmatpush1.bf16.msra.mxu0 %v518
        %899 = vmatprep.subr.bf16.mxu0 %v523
        %900 = vmatpush1.bf16.msra.mxu0 %v522
        %901 = vmatprep.subr.bf16.mxu0 %v527
        %902 = vmatpush1.bf16.msra.mxu0 %v526
        %903 = vmatprep.subr.bf16.mxu0 %v531
        %904 = vmatpush1.bf16.msra.mxu0 %v530
        %905 = vmatprep.subr.bf16.mxu0 0
        %906 = vmatpush1.bf16.msra.mxu0 0
        %907 = vmatprep.subr.bf16.mxu0 0
        %908 = vmatpush1.bf16.msra.mxu0 0
        %909 = vmatprep.subr.bf16.mxu0 0
        %910 = vmatpush1.bf16.msra.mxu0 0
        %911 = vmatprep.subr.bf16.mxu0 0
        %912 = vmatpush1.bf16.msra.mxu0 0
        %913 = vmatprep.subr.bf16.mxu0 0
        %914 = vmatpush1.bf16.msra.mxu0 0
        %915 = vmatprep.subr.bf16.mxu0 0
        %916 = vmatpush1.bf16.msra.mxu0 0
        %917 = vmatprep.subr.bf16.mxu0 0
        %918 = vmatpush1.bf16.msra.mxu0 0
        %919 = vmatprep.subr.bf16.mxu0 0
        %920 = vmatpush1.bf16.msra.mxu0 0
        %921 = vmatprep.mubr.bf16.mxu0 0
        %922 = vmatmul.mubr.bf16.gmra.mrb[0].mxu0 %v888
        %v923 = vpop.f32.mrb[0].mxu0
        %v924 = vadd.f32 0.0, %v923
        %v925 = vpop.f32.mrb[0].mxu0
        %v926 = vadd.f32 0.0, %v925
        %v927 = vpop.f32.mrb[0].mxu0
        %v928 = vpop.f32.mrb[0].mxu0
        %929 = vdwg.mxu0
        %930 = vmatprep.subr.bf16.mxu0 %v505
        %931 = vmatpush1.bf16.msra.mxu0 %v504
        %932 = vmatprep.subr.bf16.mxu0 %v509
        %933 = vmatpush1.bf16.msra.mxu0 %v508
        %934 = vmatprep.subr.bf16.mxu0 %v513
        %935 = vmatpush1.bf16.msra.mxu0 %v512
        %936 = vmatprep.subr.bf16.mxu0 %v517
        %937 = vmatpush1.bf16.msra.mxu0 %v516
        %938 = vmatprep.subr.bf16.mxu0 %v521
        %939 = vmatpush1.bf16.msra.mxu0 %v520
        %940 = vmatprep.subr.bf16.mxu0 %v525
        %941 = vmatpush1.bf16.msra.mxu0 %v524
        %942 = vmatprep.subr.bf16.mxu0 %v529
        %943 = vmatpush1.bf16.msra.mxu0 %v528
        %944 = vmatprep.subr.bf16.mxu0 %v533
        %945 = vmatpush1.bf16.msra.mxu0 %v532
        %946 = vmatprep.subr.bf16.mxu0 0
        %947 = vmatpush1.bf16.msra.mxu0 0
        %948 = vmatprep.subr.bf16.mxu0 0
        %949 = vmatpush1.bf16.msra.mxu0 0
        %950 = vmatprep.subr.bf16.mxu0 0
        %951 = vmatpush1.bf16.msra.mxu0 0
        %952 = vmatprep.subr.bf16.mxu0 0
        %953 = vmatpush1.bf16.msra.mxu0 0
        %954 = vmatprep.subr.bf16.mxu0 0
        %955 = vmatpush1.bf16.msra.mxu0 0
        %956 = vmatprep.subr.bf16.mxu0 0
        %957 = vmatpush1.bf16.msra.mxu0 0
        %958 = vmatprep.subr.bf16.mxu0 0
        %959 = vmatpush1.bf16.msra.mxu0 0
        %960 = vmatprep.subr.bf16.mxu0 0
        %961 = vmatpush1.bf16.msra.mxu0 0
        %962 = vmatprep.mubr.bf16.mxu0 0
        %963 = vmatmul.mubr.bf16.gmra.mrb[0].mxu0 %v888
        %v964 = vpop.f32.mrb[0].mxu0
        %v965 = vadd.f32 0.0, %v964
        %v966 = vpop.f32.mrb[0].mxu0
        %v967 = vadd.f32 0.0, %v966
        %v968 = vpop.f32.mrb[0].mxu0
        %v969 = vpop.f32.mrb[0].mxu0
        %970 = vdwg.mxu0
        %v975 = vcombine.low %v924, %v926
        %v976 = vcombine.low %v965, %v967
        %v978 = vunpack.c.l.s4 1983009808
        %v979 = vunpack.c.0.s8 %v978
        %v980 = vlaneseq
        %v981 = vshrl.u32 %v980, 7
        %v982 = vsub.s32 %v979, %v981
        %v983 = vrot.slane %v975, %v982
        %v985 = vunpack.c.l.s4 1983009808
        %v986 = vunpack.c.0.s8 %v985
        %v987 = vlaneseq
        %v988 = vshrl.u32 %v987, 7
        %v989 = vsub.s32 %v986, %v988
        %v990 = vrot.slane %v976, %v989
        %v991 = vcombine.low %v983, %v990
        %v993 = vadd.f32 %v887, %v991
        %v994 = vxor.u32 %v993, 2147483648
        %v995 = vmul.f32 %v994, 1.442695
        %v996 = vpow.pop %v995
        %v997 = vadd.f32 %v996, 1.0
        %v998 = vrcp.pop %v997
        %v999 = vmul.f32 1.0, %v998
        %v1001 = vrot.slane %v993, 2
        %v1003 = vxor.u32 %v1001, 2147483648
        %v1004 = vmul.f32 %v1003, 1.442695
        %v1005 = vpow.pop %v1004
        %v1006 = vadd.f32 %v1005, 1.0
        %v1007 = vrcp.pop %v1006
        %v1008 = vmul.f32 1.0, %v1007
        %v1009 = vrot.slane %v993, 4
        %v1011 = vtanh.pop %v1009
        %v1012 = vrot.slane %v993, 6
        %v1014 = vxor.u32 %v1012, 2147483648
        %v1015 = vmul.f32 %v1014, 1.442695
        %v1016 = vpow.pop %v1015
        %v1017 = vadd.f32 %v1016, 1.0
        %v1018 = vrcp.pop %v1017
        %v1019 = vmul.f32 1.0, %v1018
        %v1020 = vmul.f32 %v1008, %v883
        %v1021 = vmul.f32 %v999, %v1011
        %v1022 = vadd.f32 %v1020, %v1021
        %v1023 = vtanh.pop %v1022
        %v1024 = vmul.f32 %v1019, %v1023
        %v1025 = vstv %s881
        %vm1026 = vcmp.gt.s32.totalorder %v364, %v1025
        %v1027 = vsel %vm1026, 1, 0
        %1028 = vset.pattern.permute.xlu0 0
        %1029 = vperm.xlu0 %1028, %v1027
        %v1030 = vpop.permute.xlu0 %1029
        %vm1031 = vcmp.eq.s32.totalorder %v1030, 1
        %v1032 = vsel %vm1031, %v1024, %v882
        %1033 = vst [vmem:[#allocation2] sm:$0x3] %v1032
        %v1034 = vsel %vm1031, %v1022, %v883
        %1035 = vst [vmem:[#allocation3] sm:$0x3] %v1034
        %v1036 = vsel %vm1031, %v1024, 0.0
        %s1037 = smul.u32 %s880, 2
        %s1038 = scalar_lea.vmem %s344, %s1037
        %1039 = vst [vmem:[%s1038] sm:$0x3] %v1036
        %s1040 = smul.u32 %s358, 3
        %s1041 = smul.u32 %s18, 8
        %s1042 = sadd.s32 %s1040, %s1041
        %s1043 = sadd.s32 %s363, %s1042
        %v1044 = vld [vmem:[#allocation2] sm:$0x3]
        %v1045 = vld [vmem:[#allocation3] sm:$0x3]
        %s1046 = smul.u32 %s1042, 4
        %s1047 = scalar_lea.vmem %s284, %s1046 [#allocation4]
        %v1048 = vld [vmem:[%s1047] sm:$0xf]
        %v1049 = vunpack.c.l.bf16 %v1048
        %v1050 = vpack.c.bf16 %v1044, %v1044
        %1051 = vmatprep.subr.bf16.mxu0 %v503
        %1052 = vmatpush1.bf16.msra.mxu0 %v502
        %1053 = vmatprep.subr.bf16.mxu0 %v507
        %1054 = vmatpush1.bf16.msra.mxu0 %v506
        %1055 = vmatprep.subr.bf16.mxu0 %v511
        %1056 = vmatpush1.bf16.msra.mxu0 %v510
        %1057 = vmatprep.subr.bf16.mxu0 %v515
        %1058 = vmatpush1.bf16.msra.mxu0 %v514
        %1059 = vmatprep.subr.bf16.mxu0 %v519
        %1060 = vmatpush1.bf16.msra.mxu0 %v518
        %1061 = vmatprep.subr.bf16.mxu0 %v523
        %1062 = vmatpush1.bf16.msra.mxu0 %v522
        %1063 = vmatprep.subr.bf16.mxu0 %v527
        %1064 = vmatpush1.bf16.msra.mxu0 %v526
        %1065 = vmatprep.subr.bf16.mxu0 %v531
        %1066 = vmatpush1.bf16.msra.mxu0 %v530
        %1067 = vmatprep.subr.bf16.mxu0 0
        %1068 = vmatpush1.bf16.msra.mxu0 0
        %1069 = vmatprep.subr.bf16.mxu0 0
        %1070 = vmatpush1.bf16.msra.mxu0 0
        %1071 = vmatprep.subr.bf16.mxu0 0
        %1072 = vmatpush1.bf16.msra.mxu0 0
        %1073 = vmatprep.subr.bf16.mxu0 0
        %1074 = vmatpush1.bf16.msra.mxu0 0
        %1075 = vmatprep.subr.bf16.mxu0 0
        %1076 = vmatpush1.bf16.msra.mxu0 0
        %1077 = vmatprep.subr.bf16.mxu0 0
        %1078 = vmatpush1.bf16.msra.mxu0 0
        %1079 = vmatprep.subr.bf16.mxu0 0
        %1080 = vmatpush1.bf16.msra.mxu0 0
        %1081 = vmatprep.subr.bf16.mxu0 0
        %1082 = vmatpush1.bf16.msra.mxu0 0
        %1083 = vmatprep.mubr.bf16.mxu0 0
        %1084 = vmatmul.mubr.bf16.gmra.mrb[0].mxu0 %v1050
        %v1085 = vpop.f32.mrb[0].mxu0
        %v1086 = vadd.f32 0.0, %v1085
        %v1087 = vpop.f32.mrb[0].mxu0
        %v1088 = vadd.f32 0.0, %v1087
        %v1089 = vpop.f32.mrb[0].mxu0
        %v1090 = vpop.f32.mrb[0].mxu0
        %1091 = vdwg.mxu0
        %1092 = vmatprep.subr.bf16.mxu0 %v505
        %1093 = vmatpush1.bf16.msra.mxu0 %v504
        %1094 = vmatprep.subr.bf16.mxu0 %v509
        %1095 = vmatpush1.bf16.msra.mxu0 %v508
        %1096 = vmatprep.subr.bf16.mxu0 %v513
        %1097 = vmatpush1.bf16.msra.mxu0 %v512
        %1098 = vmatprep.subr.bf16.mxu0 %v517
        %1099 = vmatpush1.bf16.msra.mxu0 %v516
        %1100 = vmatprep.subr.bf16.mxu0 %v521
        %1101 = vmatpush1.bf16.msra.mxu0 %v520
        %1102 = vmatprep.subr.bf16.mxu0 %v525
        %1103 = vmatpush1.bf16.msra.mxu0 %v524
        %1104 = vmatprep.subr.bf16.mxu0 %v529
        %1105 = vmatpush1.bf16.msra.mxu0 %v528
        %1106 = vmatprep.subr.bf16.mxu0 %v533
        %1107 = vmatpush1.bf16.msra.mxu0 %v532
        %1108 = vmatprep.subr.bf16.mxu0 0
        %1109 = vmatpush1.bf16.msra.mxu0 0
        %1110 = vmatprep.subr.bf16.mxu0 0
        %1111 = vmatpush1.bf16.msra.mxu0 0
        %1112 = vmatprep.subr.bf16.mxu0 0
        %1113 = vmatpush1.bf16.msra.mxu0 0
        %1114 = vmatprep.subr.bf16.mxu0 0
        %1115 = vmatpush1.bf16.msra.mxu0 0
        %1116 = vmatprep.subr.bf16.mxu0 0
        %1117 = vmatpush1.bf16.msra.mxu0 0
        %1118 = vmatprep.subr.bf16.mxu0 0
        %1119 = vmatpush1.bf16.msra.mxu0 0
        %1120 = vmatprep.subr.bf16.mxu0 0
        %1121 = vmatpush1.bf16.msra.mxu0 0
        %1122 = vmatprep.subr.bf16.mxu0 0
        %1123 = vmatpush1.bf16.msra.mxu0 0
        %1124 = vmatprep.mubr.bf16.mxu0 0
        %1125 = vmatmul.mubr.bf16.gmra.mrb[0].mxu0 %v1050
        %v1126 = vpop.f32.mrb[0].mxu0
        %v1127 = vadd.f32 0.0, %v1126
        %v1128 = vpop.f32.mrb[0].mxu0
        %v1129 = vadd.f32 0.0, %v1128
        %v1130 = vpop.f32.mrb[0].mxu0
        %v1131 = vpop.f32.mrb[0].mxu0
        %1132 = vdwg.mxu0
        %v1137 = vcombine.low %v1086, %v1088
        %v1138 = vcombine.low %v1127, %v1129
        %v1140 = vunpack.c.l.s4 1983009808
        %v1141 = vunpack.c.0.s8 %v1140
        %v1142 = vlaneseq
        %v1143 = vshrl.u32 %v1142, 7
        %v1144 = vsub.s32 %v1141, %v1143
        %v1145 = vrot.slane %v1137, %v1144
        %v1147 = vunpack.c.l.s4 1983009808
        %v1148 = vunpack.c.0.s8 %v1147
        %v1149 = vlaneseq
        %v1150 = vshrl.u32 %v1149, 7
        %v1151 = vsub.s32 %v1148, %v1150
        %v1152 = vrot.slane %v1138, %v1151
        %v1153 = vcombine.low %v1145, %v1152
        %v1155 = vadd.f32 %v1049, %v1153
        %v1156 = vxor.u32 %v1155, 2147483648
        %v1157 = vmul.f32 %v1156, 1.442695
        %v1158 = vpow.pop %v1157
        %v1159 = vadd.f32 %v1158, 1.0
        %v1160 = vrcp.pop %v1159
        %v1161 = vmul.f32 1.0, %v1160
        %v1163 = vrot.slane %v1155, 2
        %v1165 = vxor.u32 %v1163, 2147483648
        %v1166 = vmul.f32 %v1165, 1.442695
        %v1167 = vpow.pop %v1166
        %v1168 = vadd.f32 %v1167, 1.0
        %v1169 = vrcp.pop %v1168
        %v1170 = vmul.f32 1.0, %v1169
        %v1171 = vrot.slane %v1155, 4
        %v1173 = vtanh.pop %v1171
        %v1174 = vrot.slane %v1155, 6
        %v1176 = vxor.u32 %v1174, 2147483648
        %v1177 = vmul.f32 %v1176, 1.442695
        %v1178 = vpow.pop %v1177
        %v1179 = vadd.f32 %v1178, 1.0
        %v1180 = vrcp.pop %v1179
        %v1181 = vmul.f32 1.0, %v1180
        %v1182 = vmul.f32 %v1170, %v1045
        %v1183 = vmul.f32 %v1161, %v1173
        %v1184 = vadd.f32 %v1182, %v1183
        %v1185 = vtanh.pop %v1184
        %v1186 = vmul.f32 %v1181, %v1185
        %v1187 = vstv %s1043
        %vm1188 = vcmp.gt.s32.totalorder %v364, %v1187
        %v1189 = vsel %vm1188, 1, 0
        %1190 = vset.pattern.permute.xlu0 0
        %1191 = vperm.xlu0 %1190, %v1189
        %v1192 = vpop.permute.xlu0 %1191
        %vm1193 = vcmp.eq.s32.totalorder %v1192, 1
        %v1194 = vsel %vm1193, %v1186, %v1044
        %1195 = vst [vmem:[#allocation2] sm:$0x3] %v1194
        %v1196 = vsel %vm1193, %v1184, %v1045
        %1197 = vst [vmem:[#allocation3] sm:$0x3] %v1196
        %v1198 = vsel %vm1193, %v1186, 0.0
        %s1199 = smul.u32 %s1042, 2
        %s1200 = scalar_lea.vmem %s344, %s1199
        %1201 = vst [vmem:[%s1200] sm:$0x3] %v1198
        %s1202 = smul.u32 %s358, 4
        %s1203 = smul.u32 %s18, 7
        %s1204 = sadd.s32 %s1202, %s1203
        %s1205 = sadd.s32 %s363, %s1204
        %v1206 = vld [vmem:[#allocation2] sm:$0x3]
        %v1207 = vld [vmem:[#allocation3] sm:$0x3]
        %s1208 = smul.u32 %s1204, 4
        %s1209 = scalar_lea.vmem %s284, %s1208 [#allocation4]
        %v1210 = vld [vmem:[%s1209] sm:$0xf]
        %v1211 = vunpack.c.l.bf16 %v1210
        %v1212 = vpack.c.bf16 %v1206, %v1206
        %1213 = vmatprep.subr.bf16.mxu0 %v503
        %1214 = vmatpush1.bf16.msra.mxu0 %v502
        %1215 = vmatprep.subr.bf16.mxu0 %v507
        %1216 = vmatpush1.bf16.msra.mxu0 %v506
        %1217 = vmatprep.subr.bf16.mxu0 %v511
        %1218 = vmatpush1.bf16.msra.mxu0 %v510
        %1219 = vmatprep.subr.bf16.mxu0 %v515
        %1220 = vmatpush1.bf16.msra.mxu0 %v514
        %1221 = vmatprep.subr.bf16.mxu0 %v519
        %1222 = vmatpush1.bf16.msra.mxu0 %v518
        %1223 = vmatprep.subr.bf16.mxu0 %v523
        %1224 = vmatpush1.bf16.msra.mxu0 %v522
        %1225 = vmatprep.subr.bf16.mxu0 %v527
        %1226 = vmatpush1.bf16.msra.mxu0 %v526
        %1227 = vmatprep.subr.bf16.mxu0 %v531
        %1228 = vmatpush1.bf16.msra.mxu0 %v530
        %1229 = vmatprep.subr.bf16.mxu0 0
        %1230 = vmatpush1.bf16.msra.mxu0 0
        %1231 = vmatprep.subr.bf16.mxu0 0
        %1232 = vmatpush1.bf16.msra.mxu0 0
        %1233 = vmatprep.subr.bf16.mxu0 0
        %1234 = vmatpush1.bf16.msra.mxu0 0
        %1235 = vmatprep.subr.bf16.mxu0 0
        %1236 = vmatpush1.bf16.msra.mxu0 0
        %1237 = vmatprep.subr.bf16.mxu0 0
        %1238 = vmatpush1.bf16.msra.mxu0 0
        %1239 = vmatprep.subr.bf16.mxu0 0
        %1240 = vmatpush1.bf16.msra.mxu0 0
        %1241 = vmatprep.subr.bf16.mxu0 0
        %1242 = vmatpush1.bf16.msra.mxu0 0
        %1243 = vmatprep.subr.bf16.mxu0 0
        %1244 = vmatpush1.bf16.msra.mxu0 0
        %1245 = vmatprep.mubr.bf16.mxu0 0
        %1246 = vmatmul.mubr.bf16.gmra.mrb[0].mxu0 %v1212
        %v1247 = vpop.f32.mrb[0].mxu0
        %v1248 = vadd.f32 0.0, %v1247
        %v1249 = vpop.f32.mrb[0].mxu0
        %v1250 = vadd.f32 0.0, %v1249
        %v1251 = vpop.f32.mrb[0].mxu0
        %v1252 = vpop.f32.mrb[0].mxu0
        %1253 = vdwg.mxu0
        %1254 = vmatprep.subr.bf16.mxu0 %v505
        %1255 = vmatpush1.bf16.msra.mxu0 %v504
        %1256 = vmatprep.subr.bf16.mxu0 %v509
        %1257 = vmatpush1.bf16.msra.mxu0 %v508
        %1258 = vmatprep.subr.bf16.mxu0 %v513
        %1259 = vmatpush1.bf16.msra.mxu0 %v512
        %1260 = vmatprep.subr.bf16.mxu0 %v517
        %1261 = vmatpush1.bf16.msra.mxu0 %v516
        %1262 = vmatprep.subr.bf16.mxu0 %v521
        %1263 = vmatpush1.bf16.msra.mxu0 %v520
        %1264 = vmatprep.subr.bf16.mxu0 %v525
        %1265 = vmatpush1.bf16.msra.mxu0 %v524
        %1266 = vmatprep.subr.bf16.mxu0 %v529
        %1267 = vmatpush1.bf16.msra.mxu0 %v528
        %1268 = vmatprep.subr.bf16.mxu0 %v533
        %1269 = vmatpush1.bf16.msra.mxu0 %v532
        %1270 = vmatprep.subr.bf16.mxu0 0
        %1271 = vmatpush1.bf16.msra.mxu0 0
        %1272 = vmatprep.subr.bf16.mxu0 0
        %1273 = vmatpush1.bf16.msra.mxu0 0
        %1274 = vmatprep.subr.bf16.mxu0 0
        %1275 = vmatpush1.bf16.msra.mxu0 0
        %1276 = vmatprep.subr.bf16.mxu0 0
        %1277 = vmatpush1.bf16.msra.mxu0 0
        %1278 = vmatprep.subr.bf16.mxu0 0
        %1279 = vmatpush1.bf16.msra.mxu0 0
        %1280 = vmatprep.subr.bf16.mxu0 0
        %1281 = vmatpush1.bf16.msra.mxu0 0
        %1282 = vmatprep.subr.bf16.mxu0 0
        %1283 = vmatpush1.bf16.msra.mxu0 0
        %1284 = vmatprep.subr.bf16.mxu0 0
        %1285 = vmatpush1.bf16.msra.mxu0 0
        %1286 = vmatprep.mubr.bf16.mxu0 0
        %1287 = vmatmul.mubr.bf16.gmra.mrb[0].mxu0 %v1212
        %v1288 = vpop.f32.mrb[0].mxu0
        %v1289 = vadd.f32 0.0, %v1288
        %v1290 = vpop.f32.mrb[0].mxu0
        %v1291 = vadd.f32 0.0, %v1290
        %v1292 = vpop.f32.mrb[0].mxu0
        %v1293 = vpop.f32.mrb[0].mxu0
        %1294 = vdwg.mxu0
        %v1299 = vcombine.low %v1248, %v1250
        %v1300 = vcombine.low %v1289, %v1291
        %v1302 = vunpack.c.l.s4 1983009808
        %v1303 = vunpack.c.0.s8 %v1302
        %v1304 = vlaneseq
        %v1305 = vshrl.u32 %v1304, 7
        %v1306 = vsub.s32 %v1303, %v1305
        %v1307 = vrot.slane %v1299, %v1306
        %v1309 = vunpack.c.l.s4 1983009808
        %v1310 = vunpack.c.0.s8 %v1309
        %v1311 = vlaneseq
        %v1312 = vshrl.u32 %v1311, 7
        %v1313 = vsub.s32 %v1310, %v1312
        %v1314 = vrot.slane %v1300, %v1313
        %v1315 = vcombine.low %v1307, %v1314
        %v1317 = vadd.f32 %v1211, %v1315
        %v1318 = vxor.u32 %v1317, 2147483648
        %v1319 = vmul.f32 %v1318, 1.442695
        %v1320 = vpow.pop %v1319
        %v1321 = vadd.f32 %v1320, 1.0
        %v1322 = vrcp.pop %v1321
        %v1323 = vmul.f32 1.0, %v1322
        %v1325 = vrot.slane %v1317, 2
        %v1327 = vxor.u32 %v1325, 2147483648
        %v1328 = vmul.f32 %v1327, 1.442695
        %v1329 = vpow.pop %v1328
        %v1330 = vadd.f32 %v1329, 1.0
        %v1331 = vrcp.pop %v1330
        %v1332 = vmul.f32 1.0, %v1331
        %v1333 = vrot.slane %v1317, 4
        %v1335 = vtanh.pop %v1333
        %v1336 = vrot.slane %v1317, 6
        %v1338 = vxor.u32 %v1336, 2147483648
        %v1339 = vmul.f32 %v1338, 1.442695
        %v1340 = vpow.pop %v1339
        %v1341 = vadd.f32 %v1340, 1.0
        %v1342 = vrcp.pop %v1341
        %v1343 = vmul.f32 1.0, %v1342
        %v1344 = vmul.f32 %v1332, %v1207
        %v1345 = vmul.f32 %v1323, %v1335
        %v1346 = vadd.f32 %v1344, %v1345
        %v1347 = vtanh.pop %v1346
        %v1348 = vmul.f32 %v1343, %v1347
        %v1349 = vstv %s1205
        %vm1350 = vcmp.gt.s32.totalorder %v364, %v1349
        %v1351 = vsel %vm1350, 1, 0
        %1352 = vset.pattern.permute.xlu0 0
        %1353 = vperm.xlu0 %1352, %v1351
        %v1354 = vpop.permute.xlu0 %1353
        %vm1355 = vcmp.eq.s32.totalorder %v1354, 1
        %v1356 = vsel %vm1355, %v1348, %v1206
        %1357 = vst [vmem:[#allocation2] sm:$0x3] %v1356
        %v1358 = vsel %vm1355, %v1346, %v1207
        %1359 = vst [vmem:[#allocation3] sm:$0x3] %v1358
        %v1360 = vsel %vm1355, %v1348, 0.0
        %s1361 = smul.u32 %s1204, 2
        %s1362 = scalar_lea.vmem %s344, %s1361
        %1363 = vst [vmem:[%s1362] sm:$0x3] %v1360
        %s1364 = smul.u32 %s358, 5
        %s1365 = smul.u32 %s18, 6
        %s1366 = sadd.s32 %s1364, %s1365
        %s1367 = sadd.s32 %s363, %s1366
        %v1368 = vld [vmem:[#allocation2] sm:$0x3]
        %v1369 = vld [vmem:[#allocation3] sm:$0x3]
        %s1370 = smul.u32 %s1366, 4
        %s1371 = scalar_lea.vmem %s284, %s1370 [#allocation4]
        %v1372 = vld [vmem:[%s1371] sm:$0xf]
        %v1373 = vunpack.c.l.bf16 %v1372
        %v1374 = vpack.c.bf16 %v1368, %v1368
        %1375 = vmatprep.subr.bf16.mxu0 %v503
        %1376 = vmatpush1.bf16.msra.mxu0 %v502
        %1377 = vmatprep.subr.bf16.mxu0 %v507
        %1378 = vmatpush1.bf16.msra.mxu0 %v506
        %1379 = vmatprep.subr.bf16.mxu0 %v511
        %1380 = vmatpush1.bf16.msra.mxu0 %v510
        %1381 = vmatprep.subr.bf16.mxu0 %v515
        %1382 = vmatpush1.bf16.msra.mxu0 %v514
        %1383 = vmatprep.subr.bf16.mxu0 %v519
        %1384 = vmatpush1.bf16.msra.mxu0 %v518
        %1385 = vmatprep.subr.bf16.mxu0 %v523
        %1386 = vmatpush1.bf16.msra.mxu0 %v522
        %1387 = vmatprep.subr.bf16.mxu0 %v527
        %1388 = vmatpush1.bf16.msra.mxu0 %v526
        %1389 = vmatprep.subr.bf16.mxu0 %v531
        %1390 = vmatpush1.bf16.msra.mxu0 %v530
        %1391 = vmatprep.subr.bf16.mxu0 0
        %1392 = vmatpush1.bf16.msra.mxu0 0
        %1393 = vmatprep.subr.bf16.mxu0 0
        %1394 = vmatpush1.bf16.msra.mxu0 0
        %1395 = vmatprep.subr.bf16.mxu0 0
        %1396 = vmatpush1.bf16.msra.mxu0 0
        %1397 = vmatprep.subr.bf16.mxu0 0
        %1398 = vmatpush1.bf16.msra.mxu0 0
        %1399 = vmatprep.subr.bf16.mxu0 0
        %1400 = vmatpush1.bf16.msra.mxu0 0
        %1401 = vmatprep.subr.bf16.mxu0 0
        %1402 = vmatpush1.bf16.msra.mxu0 0
        %1403 = vmatprep.subr.bf16.mxu0 0
        %1404 = vmatpush1.bf16.msra.mxu0 0
        %1405 = vmatprep.subr.bf16.mxu0 0
        %1406 = vmatpush1.bf16.msra.mxu0 0
        %1407 = vmatprep.mubr.bf16.mxu0 0
        %1408 = vmatmul.mubr.bf16.gmra.mrb[0].mxu0 %v1374
        %v1409 = vpop.f32.mrb[0].mxu0
        %v1410 = vadd.f32 0.0, %v1409
        %v1411 = vpop.f32.mrb[0].mxu0
        %v1412 = vadd.f32 0.0, %v1411
        %v1413 = vpop.f32.mrb[0].mxu0
        %v1414 = vpop.f32.mrb[0].mxu0
        %1415 = vdwg.mxu0
        %1416 = vmatprep.subr.bf16.mxu0 %v505
        %1417 = vmatpush1.bf16.msra.mxu0 %v504
        %1418 = vmatprep.subr.bf16.mxu0 %v509
        %1419 = vmatpush1.bf16.msra.mxu0 %v508
        %1420 = vmatprep.subr.bf16.mxu0 %v513
        %1421 = vmatpush1.bf16.msra.mxu0 %v512
        %1422 = vmatprep.subr.bf16.mxu0 %v517
        %1423 = vmatpush1.bf16.msra.mxu0 %v516
        %1424 = vmatprep.subr.bf16.mxu0 %v521
        %1425 = vmatpush1.bf16.msra.mxu0 %v520
        %1426 = vmatprep.subr.bf16.mxu0 %v525
        %1427 = vmatpush1.bf16.msra.mxu0 %v524
        %1428 = vmatprep.subr.bf16.mxu0 %v529
        %1429 = vmatpush1.bf16.msra.mxu0 %v528
        %1430 = vmatprep.subr.bf16.mxu0 %v533
        %1431 = vmatpush1.bf16.msra.mxu0 %v532
        %1432 = vmatprep.subr.bf16.mxu0 0
        %1433 = vmatpush1.bf16.msra.mxu0 0
        %1434 = vmatprep.subr.bf16.mxu0 0
        %1435 = vmatpush1.bf16.msra.mxu0 0
        %1436 = vmatprep.subr.bf16.mxu0 0
        %1437 = vmatpush1.bf16.msra.mxu0 0
        %1438 = vmatprep.subr.bf16.mxu0 0
        %1439 = vmatpush1.bf16.msra.mxu0 0
        %1440 = vmatprep.subr.bf16.mxu0 0
        %1441 = vmatpush1.bf16.msra.mxu0 0
        %1442 = vmatprep.subr.bf16.mxu0 0
        %1443 = vmatpush1.bf16.msra.mxu0 0
        %1444 = vmatprep.subr.bf16.mxu0 0
        %1445 = vmatpush1.bf16.msra.mxu0 0
        %1446 = vmatprep.subr.bf16.mxu0 0
        %1447 = vmatpush1.bf16.msra.mxu0 0
        %1448 = vmatprep.mubr.bf16.mxu0 0
        %1449 = vmatmul.mubr.bf16.gmra.mrb[0].mxu0 %v1374
        %v1450 = vpop.f32.mrb[0].mxu0
        %v1451 = vadd.f32 0.0, %v1450
        %v1452 = vpop.f32.mrb[0].mxu0
        %v1453 = vadd.f32 0.0, %v1452
        %v1454 = vpop.f32.mrb[0].mxu0
        %v1455 = vpop.f32.mrb[0].mxu0
        %1456 = vdwg.mxu0
        %v1461 = vcombine.low %v1410, %v1412
        %v1462 = vcombine.low %v1451, %v1453
        %v1464 = vunpack.c.l.s4 1983009808
        %v1465 = vunpack.c.0.s8 %v1464
        %v1466 = vlaneseq
        %v1467 = vshrl.u32 %v1466, 7
        %v1468 = vsub.s32 %v1465, %v1467
        %v1469 = vrot.slane %v1461, %v1468
        %v1471 = vunpack.c.l.s4 1983009808
        %v1472 = vunpack.c.0.s8 %v1471
        %v1473 = vlaneseq
        %v1474 = vshrl.u32 %v1473, 7
        %v1475 = vsub.s32 %v1472, %v1474
        %v1476 = vrot.slane %v1462, %v1475
        %v1477 = vcombine.low %v1469, %v1476
        %v1479 = vadd.f32 %v1373, %v1477
        %v1480 = vxor.u32 %v1479, 2147483648
        %v1481 = vmul.f32 %v1480, 1.442695
        %v1482 = vpow.pop %v1481
        %v1483 = vadd.f32 %v1482, 1.0
        %v1484 = vrcp.pop %v1483
        %v1485 = vmul.f32 1.0, %v1484
        %v1487 = vrot.slane %v1479, 2
        %v1489 = vxor.u32 %v1487, 2147483648
        %v1490 = vmul.f32 %v1489, 1.442695
        %v1491 = vpow.pop %v1490
        %v1492 = vadd.f32 %v1491, 1.0
        %v1493 = vrcp.pop %v1492
        %v1494 = vmul.f32 1.0, %v1493
        %v1495 = vrot.slane %v1479, 4
        %v1497 = vtanh.pop %v1495
        %v1498 = vrot.slane %v1479, 6
        %v1500 = vxor.u32 %v1498, 2147483648
        %v1501 = vmul.f32 %v1500, 1.442695
        %v1502 = vpow.pop %v1501
        %v1503 = vadd.f32 %v1502, 1.0
        %v1504 = vrcp.pop %v1503
        %v1505 = vmul.f32 1.0, %v1504
        %v1506 = vmul.f32 %v1494, %v1369
        %v1507 = vmul.f32 %v1485, %v1497
        %v1508 = vadd.f32 %v1506, %v1507
        %v1509 = vtanh.pop %v1508
        %v1510 = vmul.f32 %v1505, %v1509
        %v1511 = vstv %s1367
        %vm1512 = vcmp.gt.s32.totalorder %v364, %v1511
        %v1513 = vsel %vm1512, 1, 0
        %1514 = vset.pattern.permute.xlu0 0
        %1515 = vperm.xlu0 %1514, %v1513
        %v1516 = vpop.permute.xlu0 %1515
        %vm1517 = vcmp.eq.s32.totalorder %v1516, 1
        %v1518 = vsel %vm1517, %v1510, %v1368
        %1519 = vst [vmem:[#allocation2] sm:$0x3] %v1518
        %v1520 = vsel %vm1517, %v1508, %v1369
        %1521 = vst [vmem:[#allocation3] sm:$0x3] %v1520
        %v1522 = vsel %vm1517, %v1510, 0.0
        %s1523 = smul.u32 %s1366, 2
        %s1524 = scalar_lea.vmem %s344, %s1523
        %1525 = vst [vmem:[%s1524] sm:$0x3] %v1522
        %s1526 = smul.u32 %s358, 6
        %s1527 = smul.u32 %s18, 5
        %s1528 = sadd.s32 %s1526, %s1527
        %s1529 = sadd.s32 %s363, %s1528
        %v1530 = vld [vmem:[#allocation2] sm:$0x3]
        %v1531 = vld [vmem:[#allocation3] sm:$0x3]
        %s1532 = smul.u32 %s1528, 4
        %s1533 = scalar_lea.vmem %s284, %s1532 [#allocation4]
        %v1534 = vld [vmem:[%s1533] sm:$0xf]
        %v1535 = vunpack.c.l.bf16 %v1534
        %v1536 = vpack.c.bf16 %v1530, %v1530
        %1537 = vmatprep.subr.bf16.mxu0 %v503
        %1538 = vmatpush1.bf16.msra.mxu0 %v502
        %1539 = vmatprep.subr.bf16.mxu0 %v507
        %1540 = vmatpush1.bf16.msra.mxu0 %v506
        %1541 = vmatprep.subr.bf16.mxu0 %v511
        %1542 = vmatpush1.bf16.msra.mxu0 %v510
        %1543 = vmatprep.subr.bf16.mxu0 %v515
        %1544 = vmatpush1.bf16.msra.mxu0 %v514
        %1545 = vmatprep.subr.bf16.mxu0 %v519
        %1546 = vmatpush1.bf16.msra.mxu0 %v518
        %1547 = vmatprep.subr.bf16.mxu0 %v523
        %1548 = vmatpush1.bf16.msra.mxu0 %v522
        %1549 = vmatprep.subr.bf16.mxu0 %v527
        %1550 = vmatpush1.bf16.msra.mxu0 %v526
        %1551 = vmatprep.subr.bf16.mxu0 %v531
        %1552 = vmatpush1.bf16.msra.mxu0 %v530
        %1553 = vmatprep.subr.bf16.mxu0 0
        %1554 = vmatpush1.bf16.msra.mxu0 0
        %1555 = vmatprep.subr.bf16.mxu0 0
        %1556 = vmatpush1.bf16.msra.mxu0 0
        %1557 = vmatprep.subr.bf16.mxu0 0
        %1558 = vmatpush1.bf16.msra.mxu0 0
        %1559 = vmatprep.subr.bf16.mxu0 0
        %1560 = vmatpush1.bf16.msra.mxu0 0
        %1561 = vmatprep.subr.bf16.mxu0 0
        %1562 = vmatpush1.bf16.msra.mxu0 0
        %1563 = vmatprep.subr.bf16.mxu0 0
        %1564 = vmatpush1.bf16.msra.mxu0 0
        %1565 = vmatprep.subr.bf16.mxu0 0
        %1566 = vmatpush1.bf16.msra.mxu0 0
        %1567 = vmatprep.subr.bf16.mxu0 0
        %1568 = vmatpush1.bf16.msra.mxu0 0
        %1569 = vmatprep.mubr.bf16.mxu0 0
        %1570 = vmatmul.mubr.bf16.gmra.mrb[0].mxu0 %v1536
        %v1571 = vpop.f32.mrb[0].mxu0
        %v1572 = vadd.f32 0.0, %v1571
        %v1573 = vpop.f32.mrb[0].mxu0
        %v1574 = vadd.f32 0.0, %v1573
        %v1575 = vpop.f32.mrb[0].mxu0
        %v1576 = vpop.f32.mrb[0].mxu0
        %1577 = vdwg.mxu0
        %1578 = vmatprep.subr.bf16.mxu0 %v505
        %1579 = vmatpush1.bf16.msra.mxu0 %v504
        %1580 = vmatprep.subr.bf16.mxu0 %v509
        %1581 = vmatpush1.bf16.msra.mxu0 %v508
        %1582 = vmatprep.subr.bf16.mxu0 %v513
        %1583 = vmatpush1.bf16.msra.mxu0 %v512
        %1584 = vmatprep.subr.bf16.mxu0 %v517
        %1585 = vmatpush1.bf16.msra.mxu0 %v516
        %1586 = vmatprep.subr.bf16.mxu0 %v521
        %1587 = vmatpush1.bf16.msra.mxu0 %v520
        %1588 = vmatprep.subr.bf16.mxu0 %v525
        %1589 = vmatpush1.bf16.msra.mxu0 %v524
        %1590 = vmatprep.subr.bf16.mxu0 %v529
        %1591 = vmatpush1.bf16.msra.mxu0 %v528
        %1592 = vmatprep.subr.bf16.mxu0 %v533
        %1593 = vmatpush1.bf16.msra.mxu0 %v532
        %1594 = vmatprep.subr.bf16.mxu0 0
        %1595 = vmatpush1.bf16.msra.mxu0 0
        %1596 = vmatprep.subr.bf16.mxu0 0
        %1597 = vmatpush1.bf16.msra.mxu0 0
        %1598 = vmatprep.subr.bf16.mxu0 0
        %1599 = vmatpush1.bf16.msra.mxu0 0
        %1600 = vmatprep.subr.bf16.mxu0 0
        %1601 = vmatpush1.bf16.msra.mxu0 0
        %1602 = vmatprep.subr.bf16.mxu0 0
        %1603 = vmatpush1.bf16.msra.mxu0 0
        %1604 = vmatprep.subr.bf16.mxu0 0
        %1605 = vmatpush1.bf16.msra.mxu0 0
        %1606 = vmatprep.subr.bf16.mxu0 0
        %1607 = vmatpush1.bf16.msra.mxu0 0
        %1608 = vmatprep.subr.bf16.mxu0 0
        %1609 = vmatpush1.bf16.msra.mxu0 0
        %1610 = vmatprep.mubr.bf16.mxu0 0
        %1611 = vmatmul.mubr.bf16.gmra.mrb[0].mxu0 %v1536
        %v1612 = vpop.f32.mrb[0].mxu0
        %v1613 = vadd.f32 0.0, %v1612
        %v1614 = vpop.f32.mrb[0].mxu0
        %v1615 = vadd.f32 0.0, %v1614
        %v1616 = vpop.f32.mrb[0].mxu0
        %v1617 = vpop.f32.mrb[0].mxu0
        %1618 = vdwg.mxu0
        %v1623 = vcombine.low %v1572, %v1574
        %v1624 = vcombine.low %v1613, %v1615
        %v1626 = vunpack.c.l.s4 1983009808
        %v1627 = vunpack.c.0.s8 %v1626
        %v1628 = vlaneseq
        %v1629 = vshrl.u32 %v1628, 7
        %v1630 = vsub.s32 %v1627, %v1629
        %v1631 = vrot.slane %v1623, %v1630
        %v1633 = vunpack.c.l.s4 1983009808
        %v1634 = vunpack.c.0.s8 %v1633
        %v1635 = vlaneseq
        %v1636 = vshrl.u32 %v1635, 7
        %v1637 = vsub.s32 %v1634, %v1636
        %v1638 = vrot.slane %v1624, %v1637
        %v1639 = vcombine.low %v1631, %v1638
        %v1641 = vadd.f32 %v1535, %v1639
        %v1642 = vxor.u32 %v1641, 2147483648
        %v1643 = vmul.f32 %v1642, 1.442695
        %v1644 = vpow.pop %v1643
        %v1645 = vadd.f32 %v1644, 1.0
        %v1646 = vrcp.pop %v1645
        %v1647 = vmul.f32 1.0, %v1646
        %v1649 = vrot.slane %v1641, 2
        %v1651 = vxor.u32 %v1649, 2147483648
        %v1652 = vmul.f32 %v1651, 1.442695
        %v1653 = vpow.pop %v1652
        %v1654 = vadd.f32 %v1653, 1.0
        %v1655 = vrcp.pop %v1654
        %v1656 = vmul.f32 1.0, %v1655
        %v1657 = vrot.slane %v1641, 4
        %v1659 = vtanh.pop %v1657
        %v1660 = vrot.slane %v1641, 6
        %v1662 = vxor.u32 %v1660, 2147483648
        %v1663 = vmul.f32 %v1662, 1.442695
        %v1664 = vpow.pop %v1663
        %v1665 = vadd.f32 %v1664, 1.0
        %v1666 = vrcp.pop %v1665
        %v1667 = vmul.f32 1.0, %v1666
        %v1668 = vmul.f32 %v1656, %v1531
        %v1669 = vmul.f32 %v1647, %v1659
        %v1670 = vadd.f32 %v1668, %v1669
        %v1671 = vtanh.pop %v1670
        %v1672 = vmul.f32 %v1667, %v1671
        %v1673 = vstv %s1529
        %vm1674 = vcmp.gt.s32.totalorder %v364, %v1673
        %v1675 = vsel %vm1674, 1, 0
        %1676 = vset.pattern.permute.xlu0 0
        %1677 = vperm.xlu0 %1676, %v1675
        %v1678 = vpop.permute.xlu0 %1677
        %vm1679 = vcmp.eq.s32.totalorder %v1678, 1
        %v1680 = vsel %vm1679, %v1672, %v1530
        %1681 = vst [vmem:[#allocation2] sm:$0x3] %v1680
        %v1682 = vsel %vm1679, %v1670, %v1531
        %1683 = vst [vmem:[#allocation3] sm:$0x3] %v1682
        %v1684 = vsel %vm1679, %v1672, 0.0
        %s1685 = smul.u32 %s1528, 2
        %s1686 = scalar_lea.vmem %s344, %s1685
        %1687 = vst [vmem:[%s1686] sm:$0x3] %v1684
        %s1688 = smul.u32 %s358, 7
        %s1689 = smul.u32 %s18, 4
        %s1690 = sadd.s32 %s1688, %s1689
        %s1691 = sadd.s32 %s363, %s1690
        %v1692 = vld [vmem:[#allocation2] sm:$0x3]
        %v1693 = vld [vmem:[#allocation3] sm:$0x3]
        %s1694 = smul.u32 %s1690, 4
        %s1695 = scalar_lea.vmem %s284, %s1694 [#allocation4]
        %v1696 = vld [vmem:[%s1695] sm:$0xf]
        %v1697 = vunpack.c.l.bf16 %v1696
        %v1698 = vpack.c.bf16 %v1692, %v1692
        %1699 = vmatprep.subr.bf16.mxu0 %v503
        %1700 = vmatpush1.bf16.msra.mxu0 %v502
        %1701 = vmatprep.subr.bf16.mxu0 %v507
        %1702 = vmatpush1.bf16.msra.mxu0 %v506
        %1703 = vmatprep.subr.bf16.mxu0 %v511
        %1704 = vmatpush1.bf16.msra.mxu0 %v510
        %1705 = vmatprep.subr.bf16.mxu0 %v515
        %1706 = vmatpush1.bf16.msra.mxu0 %v514
        %1707 = vmatprep.subr.bf16.mxu0 %v519
        %1708 = vmatpush1.bf16.msra.mxu0 %v518
        %1709 = vmatprep.subr.bf16.mxu0 %v523
        %1710 = vmatpush1.bf16.msra.mxu0 %v522
        %1711 = vmatprep.subr.bf16.mxu0 %v527
        %1712 = vmatpush1.bf16.msra.mxu0 %v526
        %1713 = vmatprep.subr.bf16.mxu0 %v531
        %1714 = vmatpush1.bf16.msra.mxu0 %v530
        %1715 = vmatprep.subr.bf16.mxu0 0
        %1716 = vmatpush1.bf16.msra.mxu0 0
        %1717 = vmatprep.subr.bf16.mxu0 0
        %1718 = vmatpush1.bf16.msra.mxu0 0
        %1719 = vmatprep.subr.bf16.mxu0 0
        %1720 = vmatpush1.bf16.msra.mxu0 0
        %1721 = vmatprep.subr.bf16.mxu0 0
        %1722 = vmatpush1.bf16.msra.mxu0 0
        %1723 = vmatprep.subr.bf16.mxu0 0
        %1724 = vmatpush1.bf16.msra.mxu0 0
        %1725 = vmatprep.subr.bf16.mxu0 0
        %1726 = vmatpush1.bf16.msra.mxu0 0
        %1727 = vmatprep.subr.bf16.mxu0 0
        %1728 = vmatpush1.bf16.msra.mxu0 0
        %1729 = vmatprep.subr.bf16.mxu0 0
        %1730 = vmatpush1.bf16.msra.mxu0 0
        %1731 = vmatprep.mubr.bf16.mxu0 0
        %1732 = vmatmul.mubr.bf16.gmra.mrb[0].mxu0 %v1698
        %v1733 = vpop.f32.mrb[0].mxu0
        %v1734 = vadd.f32 0.0, %v1733
        %v1735 = vpop.f32.mrb[0].mxu0
        %v1736 = vadd.f32 0.0, %v1735
        %v1737 = vpop.f32.mrb[0].mxu0
        %v1738 = vpop.f32.mrb[0].mxu0
        %1739 = vdwg.mxu0
        %1740 = vmatprep.subr.bf16.mxu0 %v505
        %1741 = vmatpush1.bf16.msra.mxu0 %v504
        %1742 = vmatprep.subr.bf16.mxu0 %v509
        %1743 = vmatpush1.bf16.msra.mxu0 %v508
        %1744 = vmatprep.subr.bf16.mxu0 %v513
        %1745 = vmatpush1.bf16.msra.mxu0 %v512
        %1746 = vmatprep.subr.bf16.mxu0 %v517
        %1747 = vmatpush1.bf16.msra.mxu0 %v516
        %1748 = vmatprep.subr.bf16.mxu0 %v521
        %1749 = vmatpush1.bf16.msra.mxu0 %v520
        %1750 = vmatprep.subr.bf16.mxu0 %v525
        %1751 = vmatpush1.bf16.msra.mxu0 %v524
        %1752 = vmatprep.subr.bf16.mxu0 %v529
        %1753 = vmatpush1.bf16.msra.mxu0 %v528
        %1754 = vmatprep.subr.bf16.mxu0 %v533
        %1755 = vmatpush1.bf16.msra.mxu0 %v532
        %1756 = vmatprep.subr.bf16.mxu0 0
        %1757 = vmatpush1.bf16.msra.mxu0 0
        %1758 = vmatprep.subr.bf16.mxu0 0
        %1759 = vmatpush1.bf16.msra.mxu0 0
        %1760 = vmatprep.subr.bf16.mxu0 0
        %1761 = vmatpush1.bf16.msra.mxu0 0
        %1762 = vmatprep.subr.bf16.mxu0 0
        %1763 = vmatpush1.bf16.msra.mxu0 0
        %1764 = vmatprep.subr.bf16.mxu0 0
        %1765 = vmatpush1.bf16.msra.mxu0 0
        %1766 = vmatprep.subr.bf16.mxu0 0
        %1767 = vmatpush1.bf16.msra.mxu0 0
        %1768 = vmatprep.subr.bf16.mxu0 0
        %1769 = vmatpush1.bf16.msra.mxu0 0
        %1770 = vmatprep.subr.bf16.mxu0 0
        %1771 = vmatpush1.bf16.msra.mxu0 0
        %1772 = vmatprep.mubr.bf16.mxu0 0
        %1773 = vmatmul.mubr.bf16.gmra.mrb[0].mxu0 %v1698
        %v1774 = vpop.f32.mrb[0].mxu0
        %v1775 = vadd.f32 0.0, %v1774
        %v1776 = vpop.f32.mrb[0].mxu0
        %v1777 = vadd.f32 0.0, %v1776
        %v1778 = vpop.f32.mrb[0].mxu0
        %v1779 = vpop.f32.mrb[0].mxu0
        %1780 = vdwg.mxu0
        %v1785 = vcombine.low %v1734, %v1736
        %v1786 = vcombine.low %v1775, %v1777
        %v1788 = vunpack.c.l.s4 1983009808
        %v1789 = vunpack.c.0.s8 %v1788
        %v1790 = vlaneseq
        %v1791 = vshrl.u32 %v1790, 7
        %v1792 = vsub.s32 %v1789, %v1791
        %v1793 = vrot.slane %v1785, %v1792
        %v1795 = vunpack.c.l.s4 1983009808
        %v1796 = vunpack.c.0.s8 %v1795
        %v1797 = vlaneseq
        %v1798 = vshrl.u32 %v1797, 7
        %v1799 = vsub.s32 %v1796, %v1798
        %v1800 = vrot.slane %v1786, %v1799
        %v1801 = vcombine.low %v1793, %v1800
        %v1803 = vadd.f32 %v1697, %v1801
        %v1804 = vxor.u32 %v1803, 2147483648
        %v1805 = vmul.f32 %v1804, 1.442695
        %v1806 = vpow.pop %v1805
        %v1807 = vadd.f32 %v1806, 1.0
        %v1808 = vrcp.pop %v1807
        %v1809 = vmul.f32 1.0, %v1808
        %v1811 = vrot.slane %v1803, 2
        %v1813 = vxor.u32 %v1811, 2147483648
        %v1814 = vmul.f32 %v1813, 1.442695
        %v1815 = vpow.pop %v1814
        %v1816 = vadd.f32 %v1815, 1.0
        %v1817 = vrcp.pop %v1816
        %v1818 = vmul.f32 1.0, %v1817
        %v1819 = vrot.slane %v1803, 4
        %v1821 = vtanh.pop %v1819
        %v1822 = vrot.slane %v1803, 6
        %v1824 = vxor.u32 %v1822, 2147483648
        %v1825 = vmul.f32 %v1824, 1.442695
        %v1826 = vpow.pop %v1825
        %v1827 = vadd.f32 %v1826, 1.0
        %v1828 = vrcp.pop %v1827
        %v1829 = vmul.f32 1.0, %v1828
        %v1830 = vmul.f32 %v1818, %v1693
        %v1831 = vmul.f32 %v1809, %v1821
        %v1832 = vadd.f32 %v1830, %v1831
        %v1833 = vtanh.pop %v1832
        %v1834 = vmul.f32 %v1829, %v1833
        %v1835 = vstv %s1691
        %vm1836 = vcmp.gt.s32.totalorder %v364, %v1835
        %v1837 = vsel %vm1836, 1, 0
        %1838 = vset.pattern.permute.xlu0 0
        %1839 = vperm.xlu0 %1838, %v1837
        %v1840 = vpop.permute.xlu0 %1839
        %vm1841 = vcmp.eq.s32.totalorder %v1840, 1
        %v1842 = vsel %vm1841, %v1834, %v1692
        %1843 = vst [vmem:[#allocation2] sm:$0x3] %v1842
        %v1844 = vsel %vm1841, %v1832, %v1693
        %1845 = vst [vmem:[#allocation3] sm:$0x3] %v1844
        %v1846 = vsel %vm1841, %v1834, 0.0
        %s1847 = smul.u32 %s1690, 2
        %s1848 = scalar_lea.vmem %s344, %s1847
        %1849 = vst [vmem:[%s1848] sm:$0x3] %v1846
        %s1850 = smul.u32 %s358, 8
        %s1851 = smul.u32 %s18, 3
        %s1852 = sadd.s32 %s1850, %s1851
        %s1853 = sadd.s32 %s363, %s1852
        %v1854 = vld [vmem:[#allocation2] sm:$0x3]
        %v1855 = vld [vmem:[#allocation3] sm:$0x3]
        %s1856 = smul.u32 %s1852, 4
        %s1857 = scalar_lea.vmem %s284, %s1856 [#allocation4]
        %v1858 = vld [vmem:[%s1857] sm:$0xf]
        %v1859 = vunpack.c.l.bf16 %v1858
        %v1860 = vpack.c.bf16 %v1854, %v1854
        %1861 = vmatprep.subr.bf16.mxu0 %v503
        %1862 = vmatpush1.bf16.msra.mxu0 %v502
        %1863 = vmatprep.subr.bf16.mxu0 %v507
        %1864 = vmatpush1.bf16.msra.mxu0 %v506
        %1865 = vmatprep.subr.bf16.mxu0 %v511
        %1866 = vmatpush1.bf16.msra.mxu0 %v510
        %1867 = vmatprep.subr.bf16.mxu0 %v515
        %1868 = vmatpush1.bf16.msra.mxu0 %v514
        %1869 = vmatprep.subr.bf16.mxu0 %v519
        %1870 = vmatpush1.bf16.msra.mxu0 %v518
        %1871 = vmatprep.subr.bf16.mxu0 %v523
        %1872 = vmatpush1.bf16.msra.mxu0 %v522
        %1873 = vmatprep.subr.bf16.mxu0 %v527
        %1874 = vmatpush1.bf16.msra.mxu0 %v526
        %1875 = vmatprep.subr.bf16.mxu0 %v531
        %1876 = vmatpush1.bf16.msra.mxu0 %v530
        %1877 = vmatprep.subr.bf16.mxu0 0
        %1878 = vmatpush1.bf16.msra.mxu0 0
        %1879 = vmatprep.subr.bf16.mxu0 0
        %1880 = vmatpush1.bf16.msra.mxu0 0
        %1881 = vmatprep.subr.bf16.mxu0 0
        %1882 = vmatpush1.bf16.msra.mxu0 0
        %1883 = vmatprep.subr.bf16.mxu0 0
        %1884 = vmatpush1.bf16.msra.mxu0 0
        %1885 = vmatprep.subr.bf16.mxu0 0
        %1886 = vmatpush1.bf16.msra.mxu0 0
        %1887 = vmatprep.subr.bf16.mxu0 0
        %1888 = vmatpush1.bf16.msra.mxu0 0
        %1889 = vmatprep.subr.bf16.mxu0 0
        %1890 = vmatpush1.bf16.msra.mxu0 0
        %1891 = vmatprep.subr.bf16.mxu0 0
        %1892 = vmatpush1.bf16.msra.mxu0 0
        %1893 = vmatprep.mubr.bf16.mxu0 0
        %1894 = vmatmul.mubr.bf16.gmra.mrb[0].mxu0 %v1860
        %v1895 = vpop.f32.mrb[0].mxu0
        %v1896 = vadd.f32 0.0, %v1895
        %v1897 = vpop.f32.mrb[0].mxu0
        %v1898 = vadd.f32 0.0, %v1897
        %v1899 = vpop.f32.mrb[0].mxu0
        %v1900 = vpop.f32.mrb[0].mxu0
        %1901 = vdwg.mxu0
        %1902 = vmatprep.subr.bf16.mxu0 %v505
        %1903 = vmatpush1.bf16.msra.mxu0 %v504
        %1904 = vmatprep.subr.bf16.mxu0 %v509
        %1905 = vmatpush1.bf16.msra.mxu0 %v508
        %1906 = vmatprep.subr.bf16.mxu0 %v513
        %1907 = vmatpush1.bf16.msra.mxu0 %v512
        %1908 = vmatprep.subr.bf16.mxu0 %v517
        %1909 = vmatpush1.bf16.msra.mxu0 %v516
        %1910 = vmatprep.subr.bf16.mxu0 %v521
        %1911 = vmatpush1.bf16.msra.mxu0 %v520
        %1912 = vmatprep.subr.bf16.mxu0 %v525
        %1913 = vmatpush1.bf16.msra.mxu0 %v524
        %1914 = vmatprep.subr.bf16.mxu0 %v529
        %1915 = vmatpush1.bf16.msra.mxu0 %v528
        %1916 = vmatprep.subr.bf16.mxu0 %v533
        %1917 = vmatpush1.bf16.msra.mxu0 %v532
        %1918 = vmatprep.subr.bf16.mxu0 0
        %1919 = vmatpush1.bf16.msra.mxu0 0
        %1920 = vmatprep.subr.bf16.mxu0 0
        %1921 = vmatpush1.bf16.msra.mxu0 0
        %1922 = vmatprep.subr.bf16.mxu0 0
        %1923 = vmatpush1.bf16.msra.mxu0 0
        %1924 = vmatprep.subr.bf16.mxu0 0
        %1925 = vmatpush1.bf16.msra.mxu0 0
        %1926 = vmatprep.subr.bf16.mxu0 0
        %1927 = vmatpush1.bf16.msra.mxu0 0
        %1928 = vmatprep.subr.bf16.mxu0 0
        %1929 = vmatpush1.bf16.msra.mxu0 0
        %1930 = vmatprep.subr.bf16.mxu0 0
        %1931 = vmatpush1.bf16.msra.mxu0 0
        %1932 = vmatprep.subr.bf16.mxu0 0
        %1933 = vmatpush1.bf16.msra.mxu0 0
        %1934 = vmatprep.mubr.bf16.mxu0 0
        %1935 = vmatmul.mubr.bf16.gmra.mrb[0].mxu0 %v1860
        %v1936 = vpop.f32.mrb[0].mxu0
        %v1937 = vadd.f32 0.0, %v1936
        %v1938 = vpop.f32.mrb[0].mxu0
        %v1939 = vadd.f32 0.0, %v1938
        %v1940 = vpop.f32.mrb[0].mxu0
        %v1941 = vpop.f32.mrb[0].mxu0
        %1942 = vdwg.mxu0
        %v1947 = vcombine.low %v1896, %v1898
        %v1948 = vcombine.low %v1937, %v1939
        %v1950 = vunpack.c.l.s4 1983009808
        %v1951 = vunpack.c.0.s8 %v1950
        %v1952 = vlaneseq
        %v1953 = vshrl.u32 %v1952, 7
        %v1954 = vsub.s32 %v1951, %v1953
        %v1955 = vrot.slane %v1947, %v1954
        %v1957 = vunpack.c.l.s4 1983009808
        %v1958 = vunpack.c.0.s8 %v1957
        %v1959 = vlaneseq
        %v1960 = vshrl.u32 %v1959, 7
        %v1961 = vsub.s32 %v1958, %v1960
        %v1962 = vrot.slane %v1948, %v1961
        %v1963 = vcombine.low %v1955, %v1962
        %v1965 = vadd.f32 %v1859, %v1963
        %v1966 = vxor.u32 %v1965, 2147483648
        %v1967 = vmul.f32 %v1966, 1.442695
        %v1968 = vpow.pop %v1967
        %v1969 = vadd.f32 %v1968, 1.0
        %v1970 = vrcp.pop %v1969
        %v1971 = vmul.f32 1.0, %v1970
        %v1973 = vrot.slane %v1965, 2
        %v1975 = vxor.u32 %v1973, 2147483648
        %v1976 = vmul.f32 %v1975, 1.442695
        %v1977 = vpow.pop %v1976
        %v1978 = vadd.f32 %v1977, 1.0
        %v1979 = vrcp.pop %v1978
        %v1980 = vmul.f32 1.0, %v1979
        %v1981 = vrot.slane %v1965, 4
        %v1983 = vtanh.pop %v1981
        %v1984 = vrot.slane %v1965, 6
        %v1986 = vxor.u32 %v1984, 2147483648
        %v1987 = vmul.f32 %v1986, 1.442695
        %v1988 = vpow.pop %v1987
        %v1989 = vadd.f32 %v1988, 1.0
        %v1990 = vrcp.pop %v1989
        %v1991 = vmul.f32 1.0, %v1990
        %v1992 = vmul.f32 %v1980, %v1855
        %v1993 = vmul.f32 %v1971, %v1983
        %v1994 = vadd.f32 %v1992, %v1993
        %v1995 = vtanh.pop %v1994
        %v1996 = vmul.f32 %v1991, %v1995
        %v1997 = vstv %s1853
        %vm1998 = vcmp.gt.s32.totalorder %v364, %v1997
        %v1999 = vsel %vm1998, 1, 0
        %2000 = vset.pattern.permute.xlu0 0
        %2001 = vperm.xlu0 %2000, %v1999
        %v2002 = vpop.permute.xlu0 %2001
        %vm2003 = vcmp.eq.s32.totalorder %v2002, 1
        %v2004 = vsel %vm2003, %v1996, %v1854
        %2005 = vst [vmem:[#allocation2] sm:$0x3] %v2004
        %v2006 = vsel %vm2003, %v1994, %v1855
        %2007 = vst [vmem:[#allocation3] sm:$0x3] %v2006
        %v2008 = vsel %vm2003, %v1996, 0.0
        %s2009 = smul.u32 %s1852, 2
        %s2010 = scalar_lea.vmem %s344, %s2009
        %2011 = vst [vmem:[%s2010] sm:$0x3] %v2008
        %s2012 = smul.u32 %s358, 9
        %s2013 = smul.u32 %s18, 2
        %s2014 = sadd.s32 %s2012, %s2013
        %s2015 = sadd.s32 %s363, %s2014
        %v2016 = vld [vmem:[#allocation2] sm:$0x3]
        %v2017 = vld [vmem:[#allocation3] sm:$0x3]
        %s2018 = smul.u32 %s2014, 4
        %s2019 = scalar_lea.vmem %s284, %s2018 [#allocation4]
        %v2020 = vld [vmem:[%s2019] sm:$0xf]
        %v2021 = vunpack.c.l.bf16 %v2020
        %v2022 = vpack.c.bf16 %v2016, %v2016
        %2023 = vmatprep.subr.bf16.mxu0 %v503
        %2024 = vmatpush1.bf16.msra.mxu0 %v502
        %2025 = vmatprep.subr.bf16.mxu0 %v507
        %2026 = vmatpush1.bf16.msra.mxu0 %v506
        %2027 = vmatprep.subr.bf16.mxu0 %v511
        %2028 = vmatpush1.bf16.msra.mxu0 %v510
        %2029 = vmatprep.subr.bf16.mxu0 %v515
        %2030 = vmatpush1.bf16.msra.mxu0 %v514
        %2031 = vmatprep.subr.bf16.mxu0 %v519
        %2032 = vmatpush1.bf16.msra.mxu0 %v518
        %2033 = vmatprep.subr.bf16.mxu0 %v523
        %2034 = vmatpush1.bf16.msra.mxu0 %v522
        %2035 = vmatprep.subr.bf16.mxu0 %v527
        %2036 = vmatpush1.bf16.msra.mxu0 %v526
        %2037 = vmatprep.subr.bf16.mxu0 %v531
        %2038 = vmatpush1.bf16.msra.mxu0 %v530
        %2039 = vmatprep.subr.bf16.mxu0 0
        %2040 = vmatpush1.bf16.msra.mxu0 0
        %2041 = vmatprep.subr.bf16.mxu0 0
        %2042 = vmatpush1.bf16.msra.mxu0 0
        %2043 = vmatprep.subr.bf16.mxu0 0
        %2044 = vmatpush1.bf16.msra.mxu0 0
        %2045 = vmatprep.subr.bf16.mxu0 0
        %2046 = vmatpush1.bf16.msra.mxu0 0
        %2047 = vmatprep.subr.bf16.mxu0 0
        %2048 = vmatpush1.bf16.msra.mxu0 0
        %2049 = vmatprep.subr.bf16.mxu0 0
        %2050 = vmatpush1.bf16.msra.mxu0 0
        %2051 = vmatprep.subr.bf16.mxu0 0
        %2052 = vmatpush1.bf16.msra.mxu0 0
        %2053 = vmatprep.subr.bf16.mxu0 0
        %2054 = vmatpush1.bf16.msra.mxu0 0
        %2055 = vmatprep.mubr.bf16.mxu0 0
        %2056 = vmatmul.mubr.bf16.gmra.mrb[0].mxu0 %v2022
        %v2057 = vpop.f32.mrb[0].mxu0
        %v2058 = vadd.f32 0.0, %v2057
        %v2059 = vpop.f32.mrb[0].mxu0
        %v2060 = vadd.f32 0.0, %v2059
        %v2061 = vpop.f32.mrb[0].mxu0
        %v2062 = vpop.f32.mrb[0].mxu0
        %2063 = vdwg.mxu0
        %2064 = vmatprep.subr.bf16.mxu0 %v505
        %2065 = vmatpush1.bf16.msra.mxu0 %v504
        %2066 = vmatprep.subr.bf16.mxu0 %v509
        %2067 = vmatpush1.bf16.msra.mxu0 %v508
        %2068 = vmatprep.subr.bf16.mxu0 %v513
        %2069 = vmatpush1.bf16.msra.mxu0 %v512
        %2070 = vmatprep.subr.bf16.mxu0 %v517
        %2071 = vmatpush1.bf16.msra.mxu0 %v516
        %2072 = vmatprep.subr.bf16.mxu0 %v521
        %2073 = vmatpush1.bf16.msra.mxu0 %v520
        %2074 = vmatprep.subr.bf16.mxu0 %v525
        %2075 = vmatpush1.bf16.msra.mxu0 %v524
        %2076 = vmatprep.subr.bf16.mxu0 %v529
        %2077 = vmatpush1.bf16.msra.mxu0 %v528
        %2078 = vmatprep.subr.bf16.mxu0 %v533
        %2079 = vmatpush1.bf16.msra.mxu0 %v532
        %2080 = vmatprep.subr.bf16.mxu0 0
        %2081 = vmatpush1.bf16.msra.mxu0 0
        %2082 = vmatprep.subr.bf16.mxu0 0
        %2083 = vmatpush1.bf16.msra.mxu0 0
        %2084 = vmatprep.subr.bf16.mxu0 0
        %2085 = vmatpush1.bf16.msra.mxu0 0
        %2086 = vmatprep.subr.bf16.mxu0 0
        %2087 = vmatpush1.bf16.msra.mxu0 0
        %2088 = vmatprep.subr.bf16.mxu0 0
        %2089 = vmatpush1.bf16.msra.mxu0 0
        %2090 = vmatprep.subr.bf16.mxu0 0
        %2091 = vmatpush1.bf16.msra.mxu0 0
        %2092 = vmatprep.subr.bf16.mxu0 0
        %2093 = vmatpush1.bf16.msra.mxu0 0
        %2094 = vmatprep.subr.bf16.mxu0 0
        %2095 = vmatpush1.bf16.msra.mxu0 0
        %2096 = vmatprep.mubr.bf16.mxu0 0
        %2097 = vmatmul.mubr.bf16.gmra.mrb[0].mxu0 %v2022
        %v2098 = vpop.f32.mrb[0].mxu0
        %v2099 = vadd.f32 0.0, %v2098
        %v2100 = vpop.f32.mrb[0].mxu0
        %v2101 = vadd.f32 0.0, %v2100
        %v2102 = vpop.f32.mrb[0].mxu0
        %v2103 = vpop.f32.mrb[0].mxu0
        %2104 = vdwg.mxu0
        %v2109 = vcombine.low %v2058, %v2060
        %v2110 = vcombine.low %v2099, %v2101
        %v2112 = vunpack.c.l.s4 1983009808
        %v2113 = vunpack.c.0.s8 %v2112
        %v2114 = vlaneseq
        %v2115 = vshrl.u32 %v2114, 7
        %v2116 = vsub.s32 %v2113, %v2115
        %v2117 = vrot.slane %v2109, %v2116
        %v2119 = vunpack.c.l.s4 1983009808
        %v2120 = vunpack.c.0.s8 %v2119
        %v2121 = vlaneseq
        %v2122 = vshrl.u32 %v2121, 7
        %v2123 = vsub.s32 %v2120, %v2122
        %v2124 = vrot.slane %v2110, %v2123
        %v2125 = vcombine.low %v2117, %v2124
        %v2127 = vadd.f32 %v2021, %v2125
        %v2128 = vxor.u32 %v2127, 2147483648
        %v2129 = vmul.f32 %v2128, 1.442695
        %v2130 = vpow.pop %v2129
        %v2131 = vadd.f32 %v2130, 1.0
        %v2132 = vrcp.pop %v2131
        %v2133 = vmul.f32 1.0, %v2132
        %v2135 = vrot.slane %v2127, 2
        %v2137 = vxor.u32 %v2135, 2147483648
        %v2138 = vmul.f32 %v2137, 1.442695
        %v2139 = vpow.pop %v2138
        %v2140 = vadd.f32 %v2139, 1.0
        %v2141 = vrcp.pop %v2140
        %v2142 = vmul.f32 1.0, %v2141
        %v2143 = vrot.slane %v2127, 4
        %v2145 = vtanh.pop %v2143
        %v2146 = vrot.slane %v2127, 6
        %v2148 = vxor.u32 %v2146, 2147483648
        %v2149 = vmul.f32 %v2148, 1.442695
        %v2150 = vpow.pop %v2149
        %v2151 = vadd.f32 %v2150, 1.0
        %v2152 = vrcp.pop %v2151
        %v2153 = vmul.f32 1.0, %v2152
        %v2154 = vmul.f32 %v2142, %v2017
        %v2155 = vmul.f32 %v2133, %v2145
        %v2156 = vadd.f32 %v2154, %v2155
        %v2157 = vtanh.pop %v2156
        %v2158 = vmul.f32 %v2153, %v2157
        %v2159 = vstv %s2015
        %vm2160 = vcmp.gt.s32.totalorder %v364, %v2159
        %v2161 = vsel %vm2160, 1, 0
        %2162 = vset.pattern.permute.xlu0 0
        %2163 = vperm.xlu0 %2162, %v2161
        %v2164 = vpop.permute.xlu0 %2163
        %vm2165 = vcmp.eq.s32.totalorder %v2164, 1
        %v2166 = vsel %vm2165, %v2158, %v2016
        %2167 = vst [vmem:[#allocation2] sm:$0x3] %v2166
        %v2168 = vsel %vm2165, %v2156, %v2017
        %2169 = vst [vmem:[#allocation3] sm:$0x3] %v2168
        %v2170 = vsel %vm2165, %v2158, 0.0
        %s2171 = smul.u32 %s2014, 2
        %s2172 = scalar_lea.vmem %s344, %s2171
        %2173 = vst [vmem:[%s2172] sm:$0x3] %v2170
        %s2174 = smul.u32 %s358, 10
        %s2175 = sadd.s32 %s2174, %s18
        %s2176 = sadd.s32 %s363, %s2175
        %v2177 = vld [vmem:[#allocation2] sm:$0x3]
        %v2178 = vld [vmem:[#allocation3] sm:$0x3]
        %s2179 = smul.u32 %s2175, 4
        %s2180 = scalar_lea.vmem %s284, %s2179 [#allocation4]
        %v2181 = vld [vmem:[%s2180] sm:$0xf]
        %v2182 = vunpack.c.l.bf16 %v2181
        %v2183 = vpack.c.bf16 %v2177, %v2177
        %2184 = vmatprep.subr.bf16.mxu0 %v503
        %2185 = vmatpush1.bf16.msra.mxu0 %v502
        %2186 = vmatprep.subr.bf16.mxu0 %v507
        %2187 = vmatpush1.bf16.msra.mxu0 %v506
        %2188 = vmatprep.subr.bf16.mxu0 %v511
        %2189 = vmatpush1.bf16.msra.mxu0 %v510
        %2190 = vmatprep.subr.bf16.mxu0 %v515
        %2191 = vmatpush1.bf16.msra.mxu0 %v514
        %2192 = vmatprep.subr.bf16.mxu0 %v519
        %2193 = vmatpush1.bf16.msra.mxu0 %v518
        %2194 = vmatprep.subr.bf16.mxu0 %v523
        %2195 = vmatpush1.bf16.msra.mxu0 %v522
        %2196 = vmatprep.subr.bf16.mxu0 %v527
        %2197 = vmatpush1.bf16.msra.mxu0 %v526
        %2198 = vmatprep.subr.bf16.mxu0 %v531
        %2199 = vmatpush1.bf16.msra.mxu0 %v530
        %2200 = vmatprep.subr.bf16.mxu0 0
        %2201 = vmatpush1.bf16.msra.mxu0 0
        %2202 = vmatprep.subr.bf16.mxu0 0
        %2203 = vmatpush1.bf16.msra.mxu0 0
        %2204 = vmatprep.subr.bf16.mxu0 0
        %2205 = vmatpush1.bf16.msra.mxu0 0
        %2206 = vmatprep.subr.bf16.mxu0 0
        %2207 = vmatpush1.bf16.msra.mxu0 0
        %2208 = vmatprep.subr.bf16.mxu0 0
        %2209 = vmatpush1.bf16.msra.mxu0 0
        %2210 = vmatprep.subr.bf16.mxu0 0
        %2211 = vmatpush1.bf16.msra.mxu0 0
        %2212 = vmatprep.subr.bf16.mxu0 0
        %2213 = vmatpush1.bf16.msra.mxu0 0
        %2214 = vmatprep.subr.bf16.mxu0 0
        %2215 = vmatpush1.bf16.msra.mxu0 0
        %2216 = vmatprep.mubr.bf16.mxu0 0
        %2217 = vmatmul.mubr.bf16.gmra.mrb[0].mxu0 %v2183
        %v2218 = vpop.f32.mrb[0].mxu0
        %v2219 = vadd.f32 0.0, %v2218
        %v2220 = vpop.f32.mrb[0].mxu0
        %v2221 = vadd.f32 0.0, %v2220
        %v2222 = vpop.f32.mrb[0].mxu0
        %v2223 = vpop.f32.mrb[0].mxu0
        %2224 = vdwg.mxu0
        %2225 = vmatprep.subr.bf16.mxu0 %v505
        %2226 = vmatpush1.bf16.msra.mxu0 %v504
        %2227 = vmatprep.subr.bf16.mxu0 %v509
        %2228 = vmatpush1.bf16.msra.mxu0 %v508
        %2229 = vmatprep.subr.bf16.mxu0 %v513
        %2230 = vmatpush1.bf16.msra.mxu0 %v512
        %2231 = vmatprep.subr.bf16.mxu0 %v517
        %2232 = vmatpush1.bf16.msra.mxu0 %v516
        %2233 = vmatprep.subr.bf16.mxu0 %v521
        %2234 = vmatpush1.bf16.msra.mxu0 %v520
        %2235 = vmatprep.subr.bf16.mxu0 %v525
        %2236 = vmatpush1.bf16.msra.mxu0 %v524
        %2237 = vmatprep.subr.bf16.mxu0 %v529
        %2238 = vmatpush1.bf16.msra.mxu0 %v528
        %2239 = vmatprep.subr.bf16.mxu0 %v533
        %2240 = vmatpush1.bf16.msra.mxu0 %v532
        %2241 = vmatprep.subr.bf16.mxu0 0
        %2242 = vmatpush1.bf16.msra.mxu0 0
        %2243 = vmatprep.subr.bf16.mxu0 0
        %2244 = vmatpush1.bf16.msra.mxu0 0
        %2245 = vmatprep.subr.bf16.mxu0 0
        %2246 = vmatpush1.bf16.msra.mxu0 0
        %2247 = vmatprep.subr.bf16.mxu0 0
        %2248 = vmatpush1.bf16.msra.mxu0 0
        %2249 = vmatprep.subr.bf16.mxu0 0
        %2250 = vmatpush1.bf16.msra.mxu0 0
        %2251 = vmatprep.subr.bf16.mxu0 0
        %2252 = vmatpush1.bf16.msra.mxu0 0
        %2253 = vmatprep.subr.bf16.mxu0 0
        %2254 = vmatpush1.bf16.msra.mxu0 0
        %2255 = vmatprep.subr.bf16.mxu0 0
        %2256 = vmatpush1.bf16.msra.mxu0 0
        %2257 = vmatprep.mubr.bf16.mxu0 0
        %2258 = vmatmul.mubr.bf16.gmra.mrb[0].mxu0 %v2183
        %v2259 = vpop.f32.mrb[0].mxu0
        %v2260 = vadd.f32 0.0, %v2259
        %v2261 = vpop.f32.mrb[0].mxu0
        %v2262 = vadd.f32 0.0, %v2261
        %v2263 = vpop.f32.mrb[0].mxu0
        %v2264 = vpop.f32.mrb[0].mxu0
        %2265 = vdwg.mxu0
        %v2270 = vcombine.low %v2219, %v2221
        %v2271 = vcombine.low %v2260, %v2262
        %v2273 = vunpack.c.l.s4 1983009808
        %v2274 = vunpack.c.0.s8 %v2273
        %v2275 = vlaneseq
        %v2276 = vshrl.u32 %v2275, 7
        %v2277 = vsub.s32 %v2274, %v2276
        %v2278 = vrot.slane %v2270, %v2277
        %v2280 = vunpack.c.l.s4 1983009808
        %v2281 = vunpack.c.0.s8 %v2280
        %v2282 = vlaneseq
        %v2283 = vshrl.u32 %v2282, 7
        %v2284 = vsub.s32 %v2281, %v2283
        %v2285 = vrot.slane %v2271, %v2284
        %v2286 = vcombine.low %v2278, %v2285
        %v2288 = vadd.f32 %v2182, %v2286
        %v2289 = vxor.u32 %v2288, 2147483648
        %v2290 = vmul.f32 %v2289, 1.442695
        %v2291 = vpow.pop %v2290
        %v2292 = vadd.f32 %v2291, 1.0
        %v2293 = vrcp.pop %v2292
        %v2294 = vmul.f32 1.0, %v2293
        %v2296 = vrot.slane %v2288, 2
        %v2298 = vxor.u32 %v2296, 2147483648
        %v2299 = vmul.f32 %v2298, 1.442695
        %v2300 = vpow.pop %v2299
        %v2301 = vadd.f32 %v2300, 1.0
        %v2302 = vrcp.pop %v2301
        %v2303 = vmul.f32 1.0, %v2302
        %v2304 = vrot.slane %v2288, 4
        %v2306 = vtanh.pop %v2304
        %v2307 = vrot.slane %v2288, 6
        %v2309 = vxor.u32 %v2307, 2147483648
        %v2310 = vmul.f32 %v2309, 1.442695
        %v2311 = vpow.pop %v2310
        %v2312 = vadd.f32 %v2311, 1.0
        %v2313 = vrcp.pop %v2312
        %v2314 = vmul.f32 1.0, %v2313
        %v2315 = vmul.f32 %v2303, %v2178
        %v2316 = vmul.f32 %v2294, %v2306
        %v2317 = vadd.f32 %v2315, %v2316
        %v2318 = vtanh.pop %v2317
        %v2319 = vmul.f32 %v2314, %v2318
        %v2320 = vstv %s2176
        %vm2321 = vcmp.gt.s32.totalorder %v364, %v2320
        %v2322 = vsel %vm2321, 1, 0
        %2323 = vset.pattern.permute.xlu0 0
        %2324 = vperm.xlu0 %2323, %v2322
        %v2325 = vpop.permute.xlu0 %2324
        %vm2326 = vcmp.eq.s32.totalorder %v2325, 1
        %v2327 = vsel %vm2326, %v2319, %v2177
        %2328 = vst [vmem:[#allocation2] sm:$0x3] %v2327
        %v2329 = vsel %vm2326, %v2317, %v2178
        %2330 = vst [vmem:[#allocation3] sm:$0x3] %v2329
        %v2331 = vsel %vm2326, %v2319, 0.0
        %s2332 = smul.u32 %s2175, 2
        %s2333 = scalar_lea.vmem %s344, %s2332
        %2334 = vst [vmem:[%s2333] sm:$0x3] %v2331
        %s2335 = smul.u32 %s358, 11
        %s2336 = sadd.s32 %s363, %s2335
        %v2337 = vld [vmem:[#allocation2] sm:$0x3]
        %v2338 = vld [vmem:[#allocation3] sm:$0x3]
        %s2339 = smul.u32 %s2335, 4
        %s2340 = scalar_lea.vmem %s284, %s2339 [#allocation4]
        %v2341 = vld [vmem:[%s2340] sm:$0xf]
        %v2342 = vunpack.c.l.bf16 %v2341
        %v2343 = vpack.c.bf16 %v2337, %v2337
        %2344 = vmatprep.subr.bf16.mxu0 %v503
        %2345 = vmatpush1.bf16.msra.mxu0 %v502
        %2346 = vmatprep.subr.bf16.mxu0 %v507
        %2347 = vmatpush1.bf16.msra.mxu0 %v506
        %2348 = vmatprep.subr.bf16.mxu0 %v511
        %2349 = vmatpush1.bf16.msra.mxu0 %v510
        %2350 = vmatprep.subr.bf16.mxu0 %v515
        %2351 = vmatpush1.bf16.msra.mxu0 %v514
        %2352 = vmatprep.subr.bf16.mxu0 %v519
        %2353 = vmatpush1.bf16.msra.mxu0 %v518
        %2354 = vmatprep.subr.bf16.mxu0 %v523
        %2355 = vmatpush1.bf16.msra.mxu0 %v522
        %2356 = vmatprep.subr.bf16.mxu0 %v527
        %2357 = vmatpush1.bf16.msra.mxu0 %v526
        %2358 = vmatprep.subr.bf16.mxu0 %v531
        %2359 = vmatpush1.bf16.msra.mxu0 %v530
        %2360 = vmatprep.subr.bf16.mxu0 0
        %2361 = vmatpush1.bf16.msra.mxu0 0
        %2362 = vmatprep.subr.bf16.mxu0 0
        %2363 = vmatpush1.bf16.msra.mxu0 0
        %2364 = vmatprep.subr.bf16.mxu0 0
        %2365 = vmatpush1.bf16.msra.mxu0 0
        %2366 = vmatprep.subr.bf16.mxu0 0
        %2367 = vmatpush1.bf16.msra.mxu0 0
        %2368 = vmatprep.subr.bf16.mxu0 0
        %2369 = vmatpush1.bf16.msra.mxu0 0
        %2370 = vmatprep.subr.bf16.mxu0 0
        %2371 = vmatpush1.bf16.msra.mxu0 0
        %2372 = vmatprep.subr.bf16.mxu0 0
        %2373 = vmatpush1.bf16.msra.mxu0 0
        %2374 = vmatprep.subr.bf16.mxu0 0
        %2375 = vmatpush1.bf16.msra.mxu0 0
        %2376 = vmatprep.mubr.bf16.mxu0 0
        %2377 = vmatmul.mubr.bf16.gmra.mrb[0].mxu0 %v2343
        %v2378 = vpop.f32.mrb[0].mxu0
        %v2379 = vadd.f32 0.0, %v2378
        %v2380 = vpop.f32.mrb[0].mxu0
        %v2381 = vadd.f32 0.0, %v2380
        %v2382 = vpop.f32.mrb[0].mxu0
        %v2383 = vpop.f32.mrb[0].mxu0
        %2384 = vdwg.mxu0
        %2385 = vmatprep.subr.bf16.mxu0 %v505
        %2386 = vmatpush1.bf16.msra.mxu0 %v504
        %2387 = vmatprep.subr.bf16.mxu0 %v509
        %2388 = vmatpush1.bf16.msra.mxu0 %v508
        %2389 = vmatprep.subr.bf16.mxu0 %v513
        %2390 = vmatpush1.bf16.msra.mxu0 %v512
        %2391 = vmatprep.subr.bf16.mxu0 %v517
        %2392 = vmatpush1.bf16.msra.mxu0 %v516
        %2393 = vmatprep.subr.bf16.mxu0 %v521
        %2394 = vmatpush1.bf16.msra.mxu0 %v520
        %2395 = vmatprep.subr.bf16.mxu0 %v525
        %2396 = vmatpush1.bf16.msra.mxu0 %v524
        %2397 = vmatprep.subr.bf16.mxu0 %v529
        %2398 = vmatpush1.bf16.msra.mxu0 %v528
        %2399 = vmatprep.subr.bf16.mxu0 %v533
        %2400 = vmatpush1.bf16.msra.mxu0 %v532
        %2401 = vmatprep.subr.bf16.mxu0 0
        %2402 = vmatpush1.bf16.msra.mxu0 0
        %2403 = vmatprep.subr.bf16.mxu0 0
        %2404 = vmatpush1.bf16.msra.mxu0 0
        %2405 = vmatprep.subr.bf16.mxu0 0
        %2406 = vmatpush1.bf16.msra.mxu0 0
        %2407 = vmatprep.subr.bf16.mxu0 0
        %2408 = vmatpush1.bf16.msra.mxu0 0
        %2409 = vmatprep.subr.bf16.mxu0 0
        %2410 = vmatpush1.bf16.msra.mxu0 0
        %2411 = vmatprep.subr.bf16.mxu0 0
        %2412 = vmatpush1.bf16.msra.mxu0 0
        %2413 = vmatprep.subr.bf16.mxu0 0
        %2414 = vmatpush1.bf16.msra.mxu0 0
        %2415 = vmatprep.subr.bf16.mxu0 0
        %2416 = vmatpush1.bf16.msra.mxu0 0
        %2417 = vmatprep.mubr.bf16.mxu0 0
        %2418 = vmatmul.mubr.bf16.gmra.mrb[0].mxu0 %v2343
        %v2419 = vpop.f32.mrb[0].mxu0
        %v2420 = vadd.f32 0.0, %v2419
        %v2421 = vpop.f32.mrb[0].mxu0
        %v2422 = vadd.f32 0.0, %v2421
        %v2423 = vpop.f32.mrb[0].mxu0
        %v2424 = vpop.f32.mrb[0].mxu0
        %2425 = vdwg.mxu0
        %v2430 = vcombine.low %v2379, %v2381
        %v2431 = vcombine.low %v2420, %v2422
        %v2433 = vunpack.c.l.s4 1983009808
        %v2434 = vunpack.c.0.s8 %v2433
        %v2435 = vlaneseq
        %v2436 = vshrl.u32 %v2435, 7
        %v2437 = vsub.s32 %v2434, %v2436
        %v2438 = vrot.slane %v2430, %v2437
        %v2440 = vunpack.c.l.s4 1983009808
        %v2441 = vunpack.c.0.s8 %v2440
        %v2442 = vlaneseq
        %v2443 = vshrl.u32 %v2442, 7
        %v2444 = vsub.s32 %v2441, %v2443
        %v2445 = vrot.slane %v2431, %v2444
        %v2446 = vcombine.low %v2438, %v2445
        %v2448 = vadd.f32 %v2342, %v2446
        %v2449 = vxor.u32 %v2448, 2147483648
        %v2450 = vmul.f32 %v2449, 1.442695
        %v2451 = vpow.pop %v2450
        %v2452 = vadd.f32 %v2451, 1.0
        %v2453 = vrcp.pop %v2452
        %v2454 = vmul.f32 1.0, %v2453
        %v2456 = vrot.slane %v2448, 2
        %v2458 = vxor.u32 %v2456, 2147483648
        %v2459 = vmul.f32 %v2458, 1.442695
        %v2460 = vpow.pop %v2459
        %v2461 = vadd.f32 %v2460, 1.0
        %v2462 = vrcp.pop %v2461
        %v2463 = vmul.f32 1.0, %v2462
        %v2464 = vrot.slane %v2448, 4
        %v2466 = vtanh.pop %v2464
        %v2467 = vrot.slane %v2448, 6
        %v2469 = vxor.u32 %v2467, 2147483648
        %v2470 = vmul.f32 %v2469, 1.442695
        %v2471 = vpow.pop %v2470
        %v2472 = vadd.f32 %v2471, 1.0
        %v2473 = vrcp.pop %v2472
        %v2474 = vmul.f32 1.0, %v2473
        %v2475 = vmul.f32 %v2463, %v2338
        %v2476 = vmul.f32 %v2454, %v2466
        %v2477 = vadd.f32 %v2475, %v2476
        %v2478 = vtanh.pop %v2477
        %v2479 = vmul.f32 %v2474, %v2478
        %v2480 = vstv %s2336
        %vm2481 = vcmp.gt.s32.totalorder %v364, %v2480
        %v2482 = vsel %vm2481, 1, 0
        %2483 = vset.pattern.permute.xlu0 0
        %2484 = vperm.xlu0 %2483, %v2482
        %v2485 = vpop.permute.xlu0 %2484
        %vm2486 = vcmp.eq.s32.totalorder %v2485, 1
        %v2487 = vsel %vm2486, %v2479, %v2337
        %2488 = vst [vmem:[#allocation2] sm:$0x3] %v2487
        %v2489 = vsel %vm2486, %v2477, %v2338
        %2490 = vst [vmem:[#allocation3] sm:$0x3] %v2489
        %v2491 = vsel %vm2486, %v2479, 0.0
        %s2492 = smul.u32 %s2335, 2
        %s2493 = scalar_lea.vmem %s344, %s2492
        %2494 = vst [vmem:[%s2493] sm:$0x3] %v2491
        %s2495 = ssub.s32 1, %s18
        %s2496 = smul.u32 %s2495, %s19
        %s2497 = ssub.s32 0, %s19
        %s2498 = smul.u32 %s18, %s2497
        %s2499 = sadd.s32 %s2496, %s2498
        %s2500 = smul.u32 12, %s2499
        %p2501 = scmp.lt.s32.totalorder %s18, 1
        %s2502 = scalar_select %p2501, %s18, 1
        %p2503 = scmp.lt.s32.totalorder %s2500, 11
        %s2504 = scalar_select %p2503, %s2500, 11
        %s2505 = smul.addr %s2502, 12
        %s2506 = sadd.s32 %s2504, %s2505
        %s2507 = smul.addr %s2506, 2
        %s2508 = scalar_lea.vmem %s3, %s2507
        // Predicated region
        $region78: #{drqa_forward.18} parent=68 // pred_check
          %p2509 = pneg %p141
        $region79: #{drqa_forward.18} parent=68 // pred_check_branch
          %2511 = sbr.rel (%p2509) target = $region81
        $region80: #{drqa_forward.18} parent=68 // pred_region
          %s2512 = ssub.s32 1, %s18
          %s2513 = smul.u32 %s2512, %s19
          %s2514 = ssub.s32 0, %s19
          %s2515 = smul.u32 %s18, %s2514
          %s2516 = sadd.s32 %s2513, %s2515
          %s2517 = smul.u32 12, %s2516
        $region81: #{drqa_forward.18} parent=68 // pred_fallthru
          _
      $region69: #{drqa_forward.18} parent=5 // pred_fallthru
        _
      %p2518 = scmp.le.s32.totalorder 2, %s9
      // Predicated region
      $region82: #{drqa_forward.18} parent=5 // pred_check
        %p2519 = pneg %p2518
      $region83: #{drqa_forward.18} parent=5 // pred_check_branch
        %2521 = sbr.rel (%p2519) target = $region85
      $region84: #{drqa_forward.18} parent=5 // pred_region
        %s2522 = ssub.s32 %s9, 2
        // Predicated region
        $region86: #{drqa_forward.18} parent=84 // pred_check
          %p2523 = pneg %p147
        $region87: #{drqa_forward.18} parent=84 // pred_check_branch
          %2525 = sbr.rel (%p2523) target = $region89
        $region88: #{drqa_forward.18} parent=84 // pred_region
          %s2526 = ssub.s32 1, %s20
          %s2527 = smul.u32 %s2526, %s21
          %s2528 = ssub.s32 0, %s21
          %s2529 = smul.u32 %s20, %s2528
          %s2530 = sadd.s32 %s2527, %s2529
          %s2531 = smul.u32 12, %s2530
          %p2532 = scmp.lt.s32.totalorder %s20, 1
          %s2533 = scalar_select %p2532, %s20, 1
          %p2534 = scmp.lt.s32.totalorder %s2531, 11
          %s2535 = scalar_select %p2534, %s2531, 11
          %s2536 = smul.addr %s2533, 12
          %s2537 = sadd.s32 %s2535, %s2536
          %s2538 = smul.addr %s2537, 2
          %s2539 = scalar_lea.vmem %s3, %s2538
        $region89: #{drqa_forward.18} parent=84 // pred_fallthru
          _
      $region85: #{drqa_forward.18} parent=5 // pred_fallthru
        _
    $region6: #{drqa_forward.18} parent=1 // loop_footer
      %s13 = sadd.s32 1, %s9
    $region7: #{drqa_forward.18} parent=1 // loop_footer_branch
      %8 = sbr.rel target = $region3
    $region8: #{drqa_forward.18} parent=1 // loop_exit
      _

</llo_original>
